<compile_context>
chip_gen: v7x
topology: tpu7x:2x2x1
jax: 0.10.0
libtpu: 0.0.40
codegen_flags: <defaults>
</compile_context>

<pallas_src>
import functools

import jax
import jax.numpy as jnp
from jax import lax
from jax.experimental import pallas as pl
from jax.experimental.pallas import tpu as pltpu


# ------------------------------ fused kernel --------------------------------

def _fused_forward_kernel(
    x_ref,        # (1, 1, 28, 28)  input image (one batch element)
    e1_ref,       # (25, 24, 144)   conv1 taps, block-diagonal expanded
    b1_ref,       # (1, 144)        conv1 bias tiled over W
    s1_ref,       # (138, 72)       pool1 lane-compaction (0/1)
    t1_ref,       # (12, 23)        pool1 sublane-compaction (0/1)
    e2_ref,       # (25, 48, 128)   conv2 taps, block-diagonal expanded
    b2_ref,       # (1, 128)        conv2 bias tiled over W
    s2_ref,       # (112, 64)       pool2 lane-compaction (0/1)
    t2_ref,       # (4, 7)          pool2 sublane-compaction (0/1)
    wfc1_ref,     # (4, 64, H1)     fc1 weight, rows permuted to kernel layout
    bfc1_ref,     # (1, H1)
    wfc2_ref,     # (H1, H2)
    bfc2_ref,     # (1, H2)
    wfc3_ref,     # (H2, OUT)
    bfc3_ref,     # (1, OUT)
    logits_ref,   # (1, 1, OUT)
    feat_ref,     # (1, 1, H2)
):
    f32 = jnp.float32
    x = x_ref[0, 0]                                            # (28, 28)

    # ---- conv1 (5x5, 1->6) + relu, output layout (H, W*C) = (24, 144) ------
    acc1 = jnp.zeros((24, 144), f32)
    for dh in range(5):
        for dw in range(5):
            win = x[dh:dh + 24, dw:dw + 24]                    # (24, 24)
            acc1 = acc1 + jnp.dot(win, e1_ref[dh * 5 + dw],
                                  preferred_element_type=f32)
    y1 = jnp.maximum(acc1 + b1_ref[...], 0.0)                  # (24, 144)

    # ---- 2x2 max pool -> (12, 72): slice-max + 0/1 selection matmuls -------
    mw = jnp.maximum(y1[:, 0:138], y1[:, 6:144])               # pair along W
    pw = jnp.dot(mw, s1_ref[...], preferred_element_type=f32)  # (24, 72)
    mh = jnp.maximum(pw[0:23, :], pw[1:24, :])                 # pair along H
    p1 = jnp.dot(t1_ref[...], mh, preferred_element_type=f32)  # (12, 72)

    # ---- conv2 (5x5, 6->16) + relu, output is one (8, 128) slab ------------
    acc2 = jnp.zeros((8, 128), f32)
    for dh in range(5):
        for dw in range(5):
            win = p1[dh:dh + 8, dw * 6:dw * 6 + 48]            # (8, 48)
            acc2 = acc2 + jnp.dot(win, e2_ref[dh * 5 + dw],
                                  preferred_element_type=f32)
    y2 = jnp.maximum(acc2 + b2_ref[...], 0.0)                  # (8, 128)

    # ---- 2x2 max pool -> (4, 64) -------------------------------------------
    mw2 = jnp.maximum(y2[:, 0:112], y2[:, 16:128])
    pw2 = jnp.dot(mw2, s2_ref[...], preferred_element_type=f32)   # (8, 64)
    mh2 = jnp.maximum(pw2[0:7, :], pw2[1:8, :])
    p2 = jnp.dot(t2_ref[...], mh2, preferred_element_type=f32)    # (4, 64)

    # ---- fc1 (256->H1) + relu; torch's NCHW flatten is absorbed into the
    # row permutation of wfc1 done in prepare_params() -----------------------
    h1_dim = bfc1_ref.shape[1]
    h = jnp.zeros((1, h1_dim), f32)
    for r in range(4):
        h = h + jnp.dot(p2[r:r + 1, :], wfc1_ref[r],
                        preferred_element_type=f32)
    h = jnp.maximum(h + bfc1_ref[...], 0.0)                    # (1, H1)

    # ---- fc2 + relu (= feature), fc3 ----------------------------------------
    h = jnp.dot(h, wfc2_ref[...], preferred_element_type=f32)
    h = jnp.maximum(h + bfc2_ref[...], 0.0)                    # (1, H2)
    feat_ref[0] = h.astype(feat_ref.dtype)
    out = jnp.dot(h, wfc3_ref[...], preferred_element_type=f32)
    logits_ref[0] = (out + bfc3_ref[...]).astype(logits_ref.dtype)


# -------------------------- one-time weight prep -----------------------------

def prepare_params(p):
    """Hoisted out of the forward path: all layout work done once."""
    f32 = jnp.float32
    conv1_w = p["conv1_w"].astype(f32)    # (6, 1, 5, 5)  OIHW
    conv2_w = p["conv2_w"].astype(f32)    # (16, 6, 5, 5) OIHW

    # Block-diagonal expansion so that, in (H, W*C) layout,
    #   out[:, w*C_out + co] += window[:, w*C_in + ci] @ E_tap.
    eye24 = jnp.eye(24, dtype=f32)
    e1 = jnp.stack([jnp.kron(eye24, conv1_w[:, 0, dh, dw][None, :])
                    for dh in range(5) for dw in range(5)])        # (25, 24, 144)
    eye8 = jnp.eye(8, dtype=f32)
    e2 = jnp.stack([jnp.kron(eye8, conv2_w[:, :, dh, dw].T)
                    for dh in range(5) for dw in range(5)])        # (25, 48, 128)

    b1 = jnp.tile(p["conv1_b"].astype(f32), 24)[None, :]           # (1, 144)
    b2 = jnp.tile(p["conv2_b"].astype(f32), 8)[None, :]            # (1, 128)

    # 0/1 compaction matrices for the 2x2 max pools.
    k = jnp.arange(12)[:, None]
    c = jnp.arange(6)[None, :]
    s1 = jnp.zeros((138, 72), f32).at[(12 * k + c).reshape(-1),
                                      (6 * k + c).reshape(-1)].set(1.0)
    t1 = jnp.zeros((12, 23), f32).at[jnp.arange(12),
                                     2 * jnp.arange(12)].set(1.0)
    k = jnp.arange(4)[:, None]
    c = jnp.arange(16)[None, :]
    s2 = jnp.zeros((112, 64), f32).at[(32 * k + c).reshape(-1),
                                      (16 * k + c).reshape(-1)].set(1.0)
    t2 = jnp.zeros((4, 7), f32).at[jnp.arange(4),
                                   2 * jnp.arange(4)].set(1.0)

    # fc1 weight in (K, N) form with rows permuted from torch's NCHW flatten
    # order k = co*16 + h*4 + w to the kernel's (h, w*16 + co) layout.
    wfc1 = p["fc1_w"].astype(f32).T                                # (256, H1)
    hp = jnp.arange(4)[:, None, None]
    wp = jnp.arange(4)[None, :, None]
    co = jnp.arange(16)[None, None, :]
    idx = (co * 16 + hp * 4 + wp).reshape(4, 64)                   # [h, w*16+co]
    wfc1 = wfc1[idx]                                               # (4, 64, H1)

    return {
        "e1": e1, "b1": b1, "s1": s1, "t1": t1,
        "e2": e2, "b2": b2, "s2": s2, "t2": t2,
        "wfc1": wfc1, "bfc1": p["fc1_b"].astype(f32)[None, :],
        "wfc2": p["fc2_w"].astype(f32).T, "bfc2": p["fc2_b"].astype(f32)[None, :],
        "wfc3": p["fc3_w"].astype(f32).T, "bfc3": p["fc3_b"].astype(f32)[None, :],
    }


# ------------------------------ forward wrapper -------------------------------

def _const_spec(arr):
    nd = arr.ndim
    return pl.BlockSpec(arr.shape, lambda b, _nd=nd: (0,) * _nd)


@functools.partial(jax.jit, static_argnames=("return_features",))
def simple_cnn_mnist_forward(x, prep, return_features=False):
    assert x.shape[1:] == (1, 28, 28), "SimpleCNNMNIST expects (B, 1, 28, 28)"
    B = x.shape[0]
    h2_dim = prep["wfc2"].shape[1]
    out_dim = prep["wfc3"].shape[1]

    weight_names = ("e1", "b1", "s1", "t1", "e2", "b2", "s2", "t2",
                    "wfc1", "bfc1", "wfc2", "bfc2", "wfc3", "bfc3")
    weights = [prep[n] for n in weight_names]

    in_specs = [pl.BlockSpec((1, 1, 28, 28), lambda b: (b, 0, 0, 0))]
    in_specs += [_const_spec(w) for w in weights]   # resident, fetched once

    logits3, feat3 = pl.pallas_call(
        _fused_forward_kernel,
        grid=(B,),
        in_specs=in_specs,
        out_specs=(pl.BlockSpec((1, 1, out_dim), lambda b: (b, 0, 0)),
                   pl.BlockSpec((1, 1, h2_dim), lambda b: (b, 0, 0))),
        out_shape=(jax.ShapeDtypeStruct((B, 1, out_dim), jnp.float32),
                   jax.ShapeDtypeStruct((B, 1, h2_dim), jnp.float32)),
        compiler_params=pltpu.CompilerParams(
            dimension_semantics=("parallel",)),   # v7x: batch split over 2 TCs
    )(x, *weights)

    logits = logits3.reshape(B, out_dim)
    feat = feat3.reshape(B, h2_dim)
    return (logits, feat) if return_features else logits


# ------------------------------ reference + init ------------------------------

def ref_forward(x, p, return_features=False):
    hp = lax.Precision.HIGHEST
    dn = ("NCHW", "OIHW", "NCHW")
    y = lax.conv_general_dilated(x, p["conv1_w"], (1, 1), "VALID",
                                 dimension_numbers=dn, precision=hp)
    y = jnp.maximum(y + p["conv1_b"][None, :, None, None], 0.0)
    y = lax.reduce_window(y, -jnp.inf, lax.max, (1, 1, 2, 2), (1, 1, 2, 2), "VALID")
    y = lax.conv_general_dilated(y, p["conv2_w"], (1, 1), "VALID",
                                 dimension_numbers=dn, precision=hp)
    y = jnp.maximum(y + p["conv2_b"][None, :, None, None], 0.0)
    y = lax.reduce_window(y, -jnp.inf, lax.max, (1, 1, 2, 2), (1, 1, 2, 2), "VALID")
    flat = y.reshape(y.shape[0], -1)
    h = jnp.maximum(jnp.dot(flat, p["fc1_w"].T, precision=hp) + p["fc1_b"], 0.0)
    h = jnp.maximum(jnp.dot(h, p["fc2_w"].T, precision=hp) + p["fc2_b"], 0.0)
    logits = jnp.dot(h, p["fc3_w"].T, precision=hp) + p["fc3_b"]
    return (logits, h) if return_features else logits


def init_params(key, input_dim=256, hidden_dims=(120, 84), output_dim=10):
    ks = jax.random.split(key, 10)

    def w(k, shape, fan_in):
        return jax.random.normal(k, shape, jnp.float32) / jnp.sqrt(
            jnp.float32(fan_in))

    return {
        "conv1_w": w(ks[0], (6, 1, 5, 5), 25),
        "conv1_b": w(ks[1], (6,), 25),
        "conv2_w": w(ks[2], (16, 6, 5, 5), 150),
        "conv2_b": w(ks[3], (16,), 150),
        "fc1_w": w(ks[4], (hidden_dims[0], input_dim), input_dim),
        "fc1_b": w(ks[5], (hidden_dims[0],), input_dim),
        "fc2_w": w(ks[6], (hidden_dims[1], hidden_dims[0]), hidden_dims[0]),
        "fc2_b": w(ks[7], (hidden_dims[1],), hidden_dims[0]),
        "fc3_w": w(ks[8], (output_dim, hidden_dims[1]), hidden_dims[1]),
        "fc3_b": w(ks[9], (output_dim,), hidden_dims[1]),
    }


if __name__ == "__main__":
    key = jax.random.PRNGKey(0)
    k_x, k_p = jax.random.split(key)
    # input_dim must be 16*4*4 = 256 for this architecture -> MNIST 28x28 input.
    params = init_params(k_p, input_dim=256, hidden_dims=(120, 84), output_dim=10)
    prep = prepare_params(params)                 # one-time layout work
    x = jax.random.normal(k_x, (2, 1, 28, 28), jnp.float32)   # NCHW, batch=2

    logits, feat = simple_cnn_mnist_forward(x, prep, return_features=True)
    jax.block_until_ready((logits, feat))

    assert logits.shape == (2, 10) and feat.shape == (2, 84)
    ref_logits, ref_feat = ref_forward(x, params, return_features=True)
    assert bool(jnp.allclose(logits, ref_logits, atol=1e-3, rtol=1e-3))
    assert bool(jnp.allclose(feat, ref_feat, atol=1e-3, rtol=1e-3))
    print("KERNEL_OK")
</pallas_src>

<mosaic_0001>
module attributes {stable_mosaic.version = 11 : i64} {
  func.func @_fused_forward_kernel(%arg0: i32, %arg1: memref<1x1x28x28xf32, #tpu.memory_space<vmem>>, %arg2: memref<25x24x144xf32, #tpu.memory_space<vmem>>, %arg3: memref<1x144xf32, #tpu.memory_space<vmem>>, %arg4: memref<138x72xf32, #tpu.memory_space<vmem>>, %arg5: memref<12x23xf32, #tpu.memory_space<vmem>>, %arg6: memref<25x48x128xf32, #tpu.memory_space<vmem>>, %arg7: memref<1x128xf32, #tpu.memory_space<vmem>>, %arg8: memref<112x64xf32, #tpu.memory_space<vmem>>, %arg9: memref<4x7xf32, #tpu.memory_space<vmem>>, %arg10: memref<4x64x120xf32, #tpu.memory_space<vmem>>, %arg11: memref<1x120xf32, #tpu.memory_space<vmem>>, %arg12: memref<120x84xf32, #tpu.memory_space<vmem>>, %arg13: memref<1x84xf32, #tpu.memory_space<vmem>>, %arg14: memref<84x10xf32, #tpu.memory_space<vmem>>, %arg15: memref<1x10xf32, #tpu.memory_space<vmem>>, %arg16: memref<1x1x10xf32, #tpu.memory_space<vmem>>, %arg17: memref<1x1x84xf32, #tpu.memory_space<vmem>>) attributes {dimension_semantics = [#tpu.dimension_semantics<parallel>], iteration_bounds = array<i64: 2>, scalar_prefetch = 0 : i64, scratch_operands = 0 : i64, tpu.core_type = #tpu.core_type<tc>, window_params = [{transform_indices = @transform_0, window_bounds = array<i64: 1, 1, 28, 28>}, {pipeline_mode = #tpu.pipeline_mode<synchronous>, transform_indices = @transform_1, window_bounds = array<i64: 25, 24, 144>}, {pipeline_mode = #tpu.pipeline_mode<synchronous>, transform_indices = @transform_2, window_bounds = array<i64: 1, 144>}, {pipeline_mode = #tpu.pipeline_mode<synchronous>, transform_indices = @transform_3, window_bounds = array<i64: 138, 72>}, {pipeline_mode = #tpu.pipeline_mode<synchronous>, transform_indices = @transform_4, window_bounds = array<i64: 12, 23>}, {pipeline_mode = #tpu.pipeline_mode<synchronous>, transform_indices = @transform_5, window_bounds = array<i64: 25, 48, 128>}, {pipeline_mode = #tpu.pipeline_mode<synchronous>, transform_indices = @transform_6, window_bounds = array<i64: 1, 128>}, {pipeline_mode = #tpu.pipeline_mode<synchronous>, transform_indices = @transform_7, window_bounds = array<i64: 112, 64>}, {pipeline_mode = #tpu.pipeline_mode<synchronous>, transform_indices = @transform_8, window_bounds = array<i64: 4, 7>}, {pipeline_mode = #tpu.pipeline_mode<synchronous>, transform_indices = @transform_9, window_bounds = array<i64: 4, 64, 120>}, {pipeline_mode = #tpu.pipeline_mode<synchronous>, transform_indices = @transform_10, window_bounds = array<i64: 1, 120>}, {pipeline_mode = #tpu.pipeline_mode<synchronous>, transform_indices = @transform_11, window_bounds = array<i64: 120, 84>}, {pipeline_mode = #tpu.pipeline_mode<synchronous>, transform_indices = @transform_12, window_bounds = array<i64: 1, 84>}, {pipeline_mode = #tpu.pipeline_mode<synchronous>, transform_indices = @transform_13, window_bounds = array<i64: 84, 10>}, {pipeline_mode = #tpu.pipeline_mode<synchronous>, transform_indices = @transform_14, window_bounds = array<i64: 1, 10>}, {transform_indices = @transform_15, window_bounds = array<i64: 1, 1, 10>}, {transform_indices = @transform_16, window_bounds = array<i64: 1, 1, 84>}]} {
    %c0 = arith.constant 0 : index
    %c0_0 = arith.constant 0 : index
    %c0_1 = arith.constant 0 : index
    %c0_2 = arith.constant 0 : index
    %0 = vector.load %arg1[%c0, %c0_0, %c0_1, %c0_2] : memref<1x1x28x28xf32, #tpu.memory_space<vmem>>, vector<1x1x28x28xf32>
    %1 = vector.shape_cast %0 : vector<1x1x28x28xf32> to vector<28x28xf32>
    %cst = arith.constant 0.000000e+00 : f32
    %2 = vector.broadcast %cst : f32 to vector<24x144xf32>
    %3 = vector.extract_strided_slice %1 {offsets = [0, 0], sizes = [24, 24], strides = [1, 1]} : vector<28x28xf32> to vector<24x24xf32>
    %c0_3 = arith.constant 0 : index
    %c0_4 = arith.constant 0 : index
    %c0_5 = arith.constant 0 : index
    %4 = vector.load %arg2[%c0_3, %c0_4, %c0_5] : memref<25x24x144xf32, #tpu.memory_space<vmem>>, vector<1x24x144xf32>
    %5 = vector.shape_cast %4 : vector<1x24x144xf32> to vector<24x144xf32>
    %cst_6 = arith.constant dense<0.000000e+00> : vector<24x144xf32>
    %6 = tpu.matmul %3, %5, %cst_6 {dimension_numbers = #tpu.dot_dimension_numbers<[1], [0], [0], [1], [0, 0, 1, 1], [], []>} : vector<24x24xf32>, vector<24x144xf32>, vector<24x144xf32> -> vector<24x144xf32>
    %7 = arith.addf %2, %6 : vector<24x144xf32>
    %8 = vector.extract_strided_slice %1 {offsets = [0, 1], sizes = [24, 24], strides = [1, 1]} : vector<28x28xf32> to vector<24x24xf32>
    %c1 = arith.constant 1 : index
    %c0_7 = arith.constant 0 : index
    %c0_8 = arith.constant 0 : index
    %9 = vector.load %arg2[%c1, %c0_7, %c0_8] : memref<25x24x144xf32, #tpu.memory_space<vmem>>, vector<1x24x144xf32>
    %10 = vector.shape_cast %9 : vector<1x24x144xf32> to vector<24x144xf32>
    %cst_9 = arith.constant dense<0.000000e+00> : vector<24x144xf32>
    %11 = tpu.matmul %8, %10, %cst_9 {dimension_numbers = #tpu.dot_dimension_numbers<[1], [0], [0], [1], [0, 0, 1, 1], [], []>} : vector<24x24xf32>, vector<24x144xf32>, vector<24x144xf32> -> vector<24x144xf32>
    %12 = arith.addf %7, %11 : vector<24x144xf32>
    %13 = vector.extract_strided_slice %1 {offsets = [0, 2], sizes = [24, 24], strides = [1, 1]} : vector<28x28xf32> to vector<24x24xf32>
    %c2 = arith.constant 2 : index
    %c0_10 = arith.constant 0 : index
    %c0_11 = arith.constant 0 : index
    %14 = vector.load %arg2[%c2, %c0_10, %c0_11] : memref<25x24x144xf32, #tpu.memory_space<vmem>>, vector<1x24x144xf32>
    %15 = vector.shape_cast %14 : vector<1x24x144xf32> to vector<24x144xf32>
    %cst_12 = arith.constant dense<0.000000e+00> : vector<24x144xf32>
    %16 = tpu.matmul %13, %15, %cst_12 {dimension_numbers = #tpu.dot_dimension_numbers<[1], [0], [0], [1], [0, 0, 1, 1], [], []>} : vector<24x24xf32>, vector<24x144xf32>, vector<24x144xf32> -> vector<24x144xf32>
    %17 = arith.addf %12, %16 : vector<24x144xf32>
    %18 = vector.extract_strided_slice %1 {offsets = [0, 3], sizes = [24, 24], strides = [1, 1]} : vector<28x28xf32> to vector<24x24xf32>
    %c3 = arith.constant 3 : index
    %c0_13 = arith.constant 0 : index
    %c0_14 = arith.constant 0 : index
    %19 = vector.load %arg2[%c3, %c0_13, %c0_14] : memref<25x24x144xf32, #tpu.memory_space<vmem>>, vector<1x24x144xf32>
    %20 = vector.shape_cast %19 : vector<1x24x144xf32> to vector<24x144xf32>
    %cst_15 = arith.constant dense<0.000000e+00> : vector<24x144xf32>
    %21 = tpu.matmul %18, %20, %cst_15 {dimension_numbers = #tpu.dot_dimension_numbers<[1], [0], [0], [1], [0, 0, 1, 1], [], []>} : vector<24x24xf32>, vector<24x144xf32>, vector<24x144xf32> -> vector<24x144xf32>
    %22 = arith.addf %17, %21 : vector<24x144xf32>
    %23 = vector.extract_strided_slice %1 {offsets = [0, 4], sizes = [24, 24], strides = [1, 1]} : vector<28x28xf32> to vector<24x24xf32>
    %c4 = arith.constant 4 : index
    %c0_16 = arith.constant 0 : index
    %c0_17 = arith.constant 0 : index
    %24 = vector.load %arg2[%c4, %c0_16, %c0_17] : memref<25x24x144xf32, #tpu.memory_space<vmem>>, vector<1x24x144xf32>
    %25 = vector.shape_cast %24 : vector<1x24x144xf32> to vector<24x144xf32>
    %cst_18 = arith.constant dense<0.000000e+00> : vector<24x144xf32>
    %26 = tpu.matmul %23, %25, %cst_18 {dimension_numbers = #tpu.dot_dimension_numbers<[1], [0], [0], [1], [0, 0, 1, 1], [], []>} : vector<24x24xf32>, vector<24x144xf32>, vector<24x144xf32> -> vector<24x144xf32>
    %27 = arith.addf %22, %26 : vector<24x144xf32>
    %28 = vector.extract_strided_slice %1 {offsets = [1, 0], sizes = [24, 24], strides = [1, 1]} : vector<28x28xf32> to vector<24x24xf32>
    %c5 = arith.constant 5 : index
    %c0_19 = arith.constant 0 : index
    %c0_20 = arith.constant 0 : index
    %29 = vector.load %arg2[%c5, %c0_19, %c0_20] : memref<25x24x144xf32, #tpu.memory_space<vmem>>, vector<1x24x144xf32>
    %30 = vector.shape_cast %29 : vector<1x24x144xf32> to vector<24x144xf32>
    %cst_21 = arith.constant dense<0.000000e+00> : vector<24x144xf32>
    %31 = tpu.matmul %28, %30, %cst_21 {dimension_numbers = #tpu.dot_dimension_numbers<[1], [0], [0], [1], [0, 0, 1, 1], [], []>} : vector<24x24xf32>, vector<24x144xf32>, vector<24x144xf32> -> vector<24x144xf32>
    %32 = arith.addf %27, %31 : vector<24x144xf32>
    %33 = vector.extract_strided_slice %1 {offsets = [1, 1], sizes = [24, 24], strides = [1, 1]} : vector<28x28xf32> to vector<24x24xf32>
    %c6 = arith.constant 6 : index
    %c0_22 = arith.constant 0 : index
    %c0_23 = arith.constant 0 : index
    %34 = vector.load %arg2[%c6, %c0_22, %c0_23] : memref<25x24x144xf32, #tpu.memory_space<vmem>>, vector<1x24x144xf32>
    %35 = vector.shape_cast %34 : vector<1x24x144xf32> to vector<24x144xf32>
    %cst_24 = arith.constant dense<0.000000e+00> : vector<24x144xf32>
    %36 = tpu.matmul %33, %35, %cst_24 {dimension_numbers = #tpu.dot_dimension_numbers<[1], [0], [0], [1], [0, 0, 1, 1], [], []>} : vector<24x24xf32>, vector<24x144xf32>, vector<24x144xf32> -> vector<24x144xf32>
    %37 = arith.addf %32, %36 : vector<24x144xf32>
    %38 = vector.extract_strided_slice %1 {offsets = [1, 2], sizes = [24, 24], strides = [1, 1]} : vector<28x28xf32> to vector<24x24xf32>
    %c7 = arith.constant 7 : index
    %c0_25 = arith.constant 0 : index
    %c0_26 = arith.constant 0 : index
    %39 = vector.load %arg2[%c7, %c0_25, %c0_26] : memref<25x24x144xf32, #tpu.memory_space<vmem>>, vector<1x24x144xf32>
    %40 = vector.shape_cast %39 : vector<1x24x144xf32> to vector<24x144xf32>
    %cst_27 = arith.constant dense<0.000000e+00> : vector<24x144xf32>
    %41 = tpu.matmul %38, %40, %cst_27 {dimension_numbers = #tpu.dot_dimension_numbers<[1], [0], [0], [1], [0, 0, 1, 1], [], []>} : vector<24x24xf32>, vector<24x144xf32>, vector<24x144xf32> -> vector<24x144xf32>
    %42 = arith.addf %37, %41 : vector<24x144xf32>
    %43 = vector.extract_strided_slice %1 {offsets = [1, 3], sizes = [24, 24], strides = [1, 1]} : vector<28x28xf32> to vector<24x24xf32>
    %c8 = arith.constant 8 : index
    %c0_28 = arith.constant 0 : index
    %c0_29 = arith.constant 0 : index
    %44 = vector.load %arg2[%c8, %c0_28, %c0_29] : memref<25x24x144xf32, #tpu.memory_space<vmem>>, vector<1x24x144xf32>
    %45 = vector.shape_cast %44 : vector<1x24x144xf32> to vector<24x144xf32>
    %cst_30 = arith.constant dense<0.000000e+00> : vector<24x144xf32>
    %46 = tpu.matmul %43, %45, %cst_30 {dimension_numbers = #tpu.dot_dimension_numbers<[1], [0], [0], [1], [0, 0, 1, 1], [], []>} : vector<24x24xf32>, vector<24x144xf32>, vector<24x144xf32> -> vector<24x144xf32>
    %47 = arith.addf %42, %46 : vector<24x144xf32>
    %48 = vector.extract_strided_slice %1 {offsets = [1, 4], sizes = [24, 24], strides = [1, 1]} : vector<28x28xf32> to vector<24x24xf32>
    %c9 = arith.constant 9 : index
    %c0_31 = arith.constant 0 : index
    %c0_32 = arith.constant 0 : index
    %49 = vector.load %arg2[%c9, %c0_31, %c0_32] : memref<25x24x144xf32, #tpu.memory_space<vmem>>, vector<1x24x144xf32>
    %50 = vector.shape_cast %49 : vector<1x24x144xf32> to vector<24x144xf32>
    %cst_33 = arith.constant dense<0.000000e+00> : vector<24x144xf32>
    %51 = tpu.matmul %48, %50, %cst_33 {dimension_numbers = #tpu.dot_dimension_numbers<[1], [0], [0], [1], [0, 0, 1, 1], [], []>} : vector<24x24xf32>, vector<24x144xf32>, vector<24x144xf32> -> vector<24x144xf32>
    %52 = arith.addf %47, %51 : vector<24x144xf32>
    %53 = vector.extract_strided_slice %1 {offsets = [2, 0], sizes = [24, 24], strides = [1, 1]} : vector<28x28xf32> to vector<24x24xf32>
    %c10 = arith.constant 10 : index
    %c0_34 = arith.constant 0 : index
    %c0_35 = arith.constant 0 : index
    %54 = vector.load %arg2[%c10, %c0_34, %c0_35] : memref<25x24x144xf32, #tpu.memory_space<vmem>>, vector<1x24x144xf32>
    %55 = vector.shape_cast %54 : vector<1x24x144xf32> to vector<24x144xf32>
    %cst_36 = arith.constant dense<0.000000e+00> : vector<24x144xf32>
    %56 = tpu.matmul %53, %55, %cst_36 {dimension_numbers = #tpu.dot_dimension_numbers<[1], [0], [0], [1], [0, 0, 1, 1], [], []>} : vector<24x24xf32>, vector<24x144xf32>, vector<24x144xf32> -> vector<24x144xf32>
    %57 = arith.addf %52, %56 : vector<24x144xf32>
    %58 = vector.extract_strided_slice %1 {offsets = [2, 1], sizes = [24, 24], strides = [1, 1]} : vector<28x28xf32> to vector<24x24xf32>
    %c11 = arith.constant 11 : index
    %c0_37 = arith.constant 0 : index
    %c0_38 = arith.constant 0 : index
    %59 = vector.load %arg2[%c11, %c0_37, %c0_38] : memref<25x24x144xf32, #tpu.memory_space<vmem>>, vector<1x24x144xf32>
    %60 = vector.shape_cast %59 : vector<1x24x144xf32> to vector<24x144xf32>
    %cst_39 = arith.constant dense<0.000000e+00> : vector<24x144xf32>
    %61 = tpu.matmul %58, %60, %cst_39 {dimension_numbers = #tpu.dot_dimension_numbers<[1], [0], [0], [1], [0, 0, 1, 1], [], []>} : vector<24x24xf32>, vector<24x144xf32>, vector<24x144xf32> -> vector<24x144xf32>
    %62 = arith.addf %57, %61 : vector<24x144xf32>
    %63 = vector.extract_strided_slice %1 {offsets = [2, 2], sizes = [24, 24], strides = [1, 1]} : vector<28x28xf32> to vector<24x24xf32>
    %c12 = arith.constant 12 : index
    %c0_40 = arith.constant 0 : index
    %c0_41 = arith.constant 0 : index
    %64 = vector.load %arg2[%c12, %c0_40, %c0_41] : memref<25x24x144xf32, #tpu.memory_space<vmem>>, vector<1x24x144xf32>
    %65 = vector.shape_cast %64 : vector<1x24x144xf32> to vector<24x144xf32>
    %cst_42 = arith.constant dense<0.000000e+00> : vector<24x144xf32>
    %66 = tpu.matmul %63, %65, %cst_42 {dimension_numbers = #tpu.dot_dimension_numbers<[1], [0], [0], [1], [0, 0, 1, 1], [], []>} : vector<24x24xf32>, vector<24x144xf32>, vector<24x144xf32> -> vector<24x144xf32>
    %67 = arith.addf %62, %66 : vector<24x144xf32>
    %68 = vector.extract_strided_slice %1 {offsets = [2, 3], sizes = [24, 24], strides = [1, 1]} : vector<28x28xf32> to vector<24x24xf32>
    %c13 = arith.constant 13 : index
    %c0_43 = arith.constant 0 : index
    %c0_44 = arith.constant 0 : index
    %69 = vector.load %arg2[%c13, %c0_43, %c0_44] : memref<25x24x144xf32, #tpu.memory_space<vmem>>, vector<1x24x144xf32>
    %70 = vector.shape_cast %69 : vector<1x24x144xf32> to vector<24x144xf32>
    %cst_45 = arith.constant dense<0.000000e+00> : vector<24x144xf32>
    %71 = tpu.matmul %68, %70, %cst_45 {dimension_numbers = #tpu.dot_dimension_numbers<[1], [0], [0], [1], [0, 0, 1, 1], [], []>} : vector<24x24xf32>, vector<24x144xf32>, vector<24x144xf32> -> vector<24x144xf32>
    %72 = arith.addf %67, %71 : vector<24x144xf32>
    %73 = vector.extract_strided_slice %1 {offsets = [2, 4], sizes = [24, 24], strides = [1, 1]} : vector<28x28xf32> to vector<24x24xf32>
    %c14 = arith.constant 14 : index
    %c0_46 = arith.constant 0 : index
    %c0_47 = arith.constant 0 : index
    %74 = vector.load %arg2[%c14, %c0_46, %c0_47] : memref<25x24x144xf32, #tpu.memory_space<vmem>>, vector<1x24x144xf32>
    %75 = vector.shape_cast %74 : vector<1x24x144xf32> to vector<24x144xf32>
    %cst_48 = arith.constant dense<0.000000e+00> : vector<24x144xf32>
    %76 = tpu.matmul %73, %75, %cst_48 {dimension_numbers = #tpu.dot_dimension_numbers<[1], [0], [0], [1], [0, 0, 1, 1], [], []>} : vector<24x24xf32>, vector<24x144xf32>, vector<24x144xf32> -> vector<24x144xf32>
    %77 = arith.addf %72, %76 : vector<24x144xf32>
    %78 = vector.extract_strided_slice %1 {offsets = [3, 0], sizes = [24, 24], strides = [1, 1]} : vector<28x28xf32> to vector<24x24xf32>
    %c15 = arith.constant 15 : index
    %c0_49 = arith.constant 0 : index
    %c0_50 = arith.constant 0 : index
    %79 = vector.load %arg2[%c15, %c0_49, %c0_50] : memref<25x24x144xf32, #tpu.memory_space<vmem>>, vector<1x24x144xf32>
    %80 = vector.shape_cast %79 : vector<1x24x144xf32> to vector<24x144xf32>
    %cst_51 = arith.constant dense<0.000000e+00> : vector<24x144xf32>
    %81 = tpu.matmul %78, %80, %cst_51 {dimension_numbers = #tpu.dot_dimension_numbers<[1], [0], [0], [1], [0, 0, 1, 1], [], []>} : vector<24x24xf32>, vector<24x144xf32>, vector<24x144xf32> -> vector<24x144xf32>
    %82 = arith.addf %77, %81 : vector<24x144xf32>
    %83 = vector.extract_strided_slice %1 {offsets = [3, 1], sizes = [24, 24], strides = [1, 1]} : vector<28x28xf32> to vector<24x24xf32>
    %c16 = arith.constant 16 : index
    %c0_52 = arith.constant 0 : index
    %c0_53 = arith.constant 0 : index
    %84 = vector.load %arg2[%c16, %c0_52, %c0_53] : memref<25x24x144xf32, #tpu.memory_space<vmem>>, vector<1x24x144xf32>
    %85 = vector.shape_cast %84 : vector<1x24x144xf32> to vector<24x144xf32>
    %cst_54 = arith.constant dense<0.000000e+00> : vector<24x144xf32>
    %86 = tpu.matmul %83, %85, %cst_54 {dimension_numbers = #tpu.dot_dimension_numbers<[1], [0], [0], [1], [0, 0, 1, 1], [], []>} : vector<24x24xf32>, vector<24x144xf32>, vector<24x144xf32> -> vector<24x144xf32>
    %87 = arith.addf %82, %86 : vector<24x144xf32>
    %88 = vector.extract_strided_slice %1 {offsets = [3, 2], sizes = [24, 24], strides = [1, 1]} : vector<28x28xf32> to vector<24x24xf32>
    %c17 = arith.constant 17 : index
    %c0_55 = arith.constant 0 : index
    %c0_56 = arith.constant 0 : index
    %89 = vector.load %arg2[%c17, %c0_55, %c0_56] : memref<25x24x144xf32, #tpu.memory_space<vmem>>, vector<1x24x144xf32>
    %90 = vector.shape_cast %89 : vector<1x24x144xf32> to vector<24x144xf32>
    %cst_57 = arith.constant dense<0.000000e+00> : vector<24x144xf32>
    %91 = tpu.matmul %88, %90, %cst_57 {dimension_numbers = #tpu.dot_dimension_numbers<[1], [0], [0], [1], [0, 0, 1, 1], [], []>} : vector<24x24xf32>, vector<24x144xf32>, vector<24x144xf32> -> vector<24x144xf32>
    %92 = arith.addf %87, %91 : vector<24x144xf32>
    %93 = vector.extract_strided_slice %1 {offsets = [3, 3], sizes = [24, 24], strides = [1, 1]} : vector<28x28xf32> to vector<24x24xf32>
    %c18 = arith.constant 18 : index
    %c0_58 = arith.constant 0 : index
    %c0_59 = arith.constant 0 : index
    %94 = vector.load %arg2[%c18, %c0_58, %c0_59] : memref<25x24x144xf32, #tpu.memory_space<vmem>>, vector<1x24x144xf32>
    %95 = vector.shape_cast %94 : vector<1x24x144xf32> to vector<24x144xf32>
    %cst_60 = arith.constant dense<0.000000e+00> : vector<24x144xf32>
    %96 = tpu.matmul %93, %95, %cst_60 {dimension_numbers = #tpu.dot_dimension_numbers<[1], [0], [0], [1], [0, 0, 1, 1], [], []>} : vector<24x24xf32>, vector<24x144xf32>, vector<24x144xf32> -> vector<24x144xf32>
    %97 = arith.addf %92, %96 : vector<24x144xf32>
    %98 = vector.extract_strided_slice %1 {offsets = [3, 4], sizes = [24, 24], strides = [1, 1]} : vector<28x28xf32> to vector<24x24xf32>
    %c19 = arith.constant 19 : index
    %c0_61 = arith.constant 0 : index
    %c0_62 = arith.constant 0 : index
    %99 = vector.load %arg2[%c19, %c0_61, %c0_62] : memref<25x24x144xf32, #tpu.memory_space<vmem>>, vector<1x24x144xf32>
    %100 = vector.shape_cast %99 : vector<1x24x144xf32> to vector<24x144xf32>
    %cst_63 = arith.constant dense<0.000000e+00> : vector<24x144xf32>
    %101 = tpu.matmul %98, %100, %cst_63 {dimension_numbers = #tpu.dot_dimension_numbers<[1], [0], [0], [1], [0, 0, 1, 1], [], []>} : vector<24x24xf32>, vector<24x144xf32>, vector<24x144xf32> -> vector<24x144xf32>
    %102 = arith.addf %97, %101 : vector<24x144xf32>
    %103 = vector.extract_strided_slice %1 {offsets = [4, 0], sizes = [24, 24], strides = [1, 1]} : vector<28x28xf32> to vector<24x24xf32>
    %c20 = arith.constant 20 : index
    %c0_64 = arith.constant 0 : index
    %c0_65 = arith.constant 0 : index
    %104 = vector.load %arg2[%c20, %c0_64, %c0_65] : memref<25x24x144xf32, #tpu.memory_space<vmem>>, vector<1x24x144xf32>
    %105 = vector.shape_cast %104 : vector<1x24x144xf32> to vector<24x144xf32>
    %cst_66 = arith.constant dense<0.000000e+00> : vector<24x144xf32>
    %106 = tpu.matmul %103, %105, %cst_66 {dimension_numbers = #tpu.dot_dimension_numbers<[1], [0], [0], [1], [0, 0, 1, 1], [], []>} : vector<24x24xf32>, vector<24x144xf32>, vector<24x144xf32> -> vector<24x144xf32>
    %107 = arith.addf %102, %106 : vector<24x144xf32>
    %108 = vector.extract_strided_slice %1 {offsets = [4, 1], sizes = [24, 24], strides = [1, 1]} : vector<28x28xf32> to vector<24x24xf32>
    %c21 = arith.constant 21 : index
    %c0_67 = arith.constant 0 : index
    %c0_68 = arith.constant 0 : index
    %109 = vector.load %arg2[%c21, %c0_67, %c0_68] : memref<25x24x144xf32, #tpu.memory_space<vmem>>, vector<1x24x144xf32>
    %110 = vector.shape_cast %109 : vector<1x24x144xf32> to vector<24x144xf32>
    %cst_69 = arith.constant dense<0.000000e+00> : vector<24x144xf32>
    %111 = tpu.matmul %108, %110, %cst_69 {dimension_numbers = #tpu.dot_dimension_numbers<[1], [0], [0], [1], [0, 0, 1, 1], [], []>} : vector<24x24xf32>, vector<24x144xf32>, vector<24x144xf32> -> vector<24x144xf32>
    %112 = arith.addf %107, %111 : vector<24x144xf32>
    %113 = vector.extract_strided_slice %1 {offsets = [4, 2], sizes = [24, 24], strides = [1, 1]} : vector<28x28xf32> to vector<24x24xf32>
    %c22 = arith.constant 22 : index
    %c0_70 = arith.constant 0 : index
    %c0_71 = arith.constant 0 : index
    %114 = vector.load %arg2[%c22, %c0_70, %c0_71] : memref<25x24x144xf32, #tpu.memory_space<vmem>>, vector<1x24x144xf32>
    %115 = vector.shape_cast %114 : vector<1x24x144xf32> to vector<24x144xf32>
    %cst_72 = arith.constant dense<0.000000e+00> : vector<24x144xf32>
    %116 = tpu.matmul %113, %115, %cst_72 {dimension_numbers = #tpu.dot_dimension_numbers<[1], [0], [0], [1], [0, 0, 1, 1], [], []>} : vector<24x24xf32>, vector<24x144xf32>, vector<24x144xf32> -> vector<24x144xf32>
    %117 = arith.addf %112, %116 : vector<24x144xf32>
    %118 = vector.extract_strided_slice %1 {offsets = [4, 3], sizes = [24, 24], strides = [1, 1]} : vector<28x28xf32> to vector<24x24xf32>
    %c23 = arith.constant 23 : index
    %c0_73 = arith.constant 0 : index
    %c0_74 = arith.constant 0 : index
    %119 = vector.load %arg2[%c23, %c0_73, %c0_74] : memref<25x24x144xf32, #tpu.memory_space<vmem>>, vector<1x24x144xf32>
    %120 = vector.shape_cast %119 : vector<1x24x144xf32> to vector<24x144xf32>
    %cst_75 = arith.constant dense<0.000000e+00> : vector<24x144xf32>
    %121 = tpu.matmul %118, %120, %cst_75 {dimension_numbers = #tpu.dot_dimension_numbers<[1], [0], [0], [1], [0, 0, 1, 1], [], []>} : vector<24x24xf32>, vector<24x144xf32>, vector<24x144xf32> -> vector<24x144xf32>
    %122 = arith.addf %117, %121 : vector<24x144xf32>
    %123 = vector.extract_strided_slice %1 {offsets = [4, 4], sizes = [24, 24], strides = [1, 1]} : vector<28x28xf32> to vector<24x24xf32>
    %c24 = arith.constant 24 : index
    %c0_76 = arith.constant 0 : index
    %c0_77 = arith.constant 0 : index
    %124 = vector.load %arg2[%c24, %c0_76, %c0_77] : memref<25x24x144xf32, #tpu.memory_space<vmem>>, vector<1x24x144xf32>
    %125 = vector.shape_cast %124 : vector<1x24x144xf32> to vector<24x144xf32>
    %cst_78 = arith.constant dense<0.000000e+00> : vector<24x144xf32>
    %126 = tpu.matmul %123, %125, %cst_78 {dimension_numbers = #tpu.dot_dimension_numbers<[1], [0], [0], [1], [0, 0, 1, 1], [], []>} : vector<24x24xf32>, vector<24x144xf32>, vector<24x144xf32> -> vector<24x144xf32>
    %127 = arith.addf %122, %126 : vector<24x144xf32>
    %c0_79 = arith.constant 0 : index
    %c0_80 = arith.constant 0 : index
    %128 = vector.load %arg3[%c0_79, %c0_80] : memref<1x144xf32, #tpu.memory_space<vmem>>, vector<1x144xf32>
    %129 = vector.broadcast %128 : vector<1x144xf32> to vector<24x144xf32>
    %130 = arith.addf %127, %129 : vector<24x144xf32>
    %cst_81 = arith.constant 0.000000e+00 : f32
    %131 = vector.broadcast %cst_81 : f32 to vector<24x144xf32>
    %132 = arith.maximumf %130, %131 : vector<24x144xf32>
    %133 = vector.extract_strided_slice %132 {offsets = [0, 0], sizes = [24, 138], strides = [1, 1]} : vector<24x144xf32> to vector<24x138xf32>
    %134 = vector.extract_strided_slice %132 {offsets = [0, 6], sizes = [24, 138], strides = [1, 1]} : vector<24x144xf32> to vector<24x138xf32>
    %135 = arith.maximumf %133, %134 : vector<24x138xf32>
    %c0_82 = arith.constant 0 : index
    %c0_83 = arith.constant 0 : index
    %136 = vector.load %arg4[%c0_82, %c0_83] : memref<138x72xf32, #tpu.memory_space<vmem>>, vector<138x72xf32>
    %cst_84 = arith.constant dense<0.000000e+00> : vector<24x72xf32>
    %137 = tpu.matmul %135, %136, %cst_84 {dimension_numbers = #tpu.dot_dimension_numbers<[1], [0], [0], [1], [0, 0, 1, 1], [], []>} : vector<24x138xf32>, vector<138x72xf32>, vector<24x72xf32> -> vector<24x72xf32>
    %138 = vector.extract_strided_slice %137 {offsets = [0, 0], sizes = [23, 72], strides = [1, 1]} : vector<24x72xf32> to vector<23x72xf32>
    %139 = vector.extract_strided_slice %137 {offsets = [1, 0], sizes = [23, 72], strides = [1, 1]} : vector<24x72xf32> to vector<23x72xf32>
    %140 = arith.maximumf %138, %139 : vector<23x72xf32>
    %c0_85 = arith.constant 0 : index
    %c0_86 = arith.constant 0 : index
    %141 = vector.load %arg5[%c0_85, %c0_86] : memref<12x23xf32, #tpu.memory_space<vmem>>, vector<12x23xf32>
    %cst_87 = arith.constant dense<0.000000e+00> : vector<12x72xf32>
    %142 = tpu.matmul %141, %140, %cst_87 {dimension_numbers = #tpu.dot_dimension_numbers<[1], [0], [0], [1], [0, 0, 1, 1], [], []>} : vector<12x23xf32>, vector<23x72xf32>, vector<12x72xf32> -> vector<12x72xf32>
    %cst_88 = arith.constant 0.000000e+00 : f32
    %143 = vector.broadcast %cst_88 : f32 to vector<8x128xf32>
    %144 = vector.extract_strided_slice %142 {offsets = [0, 0], sizes = [8, 48], strides = [1, 1]} : vector<12x72xf32> to vector<8x48xf32>
    %c0_89 = arith.constant 0 : index
    %c0_90 = arith.constant 0 : index
    %c0_91 = arith.constant 0 : index
    %145 = vector.load %arg6[%c0_89, %c0_90, %c0_91] : memref<25x48x128xf32, #tpu.memory_space<vmem>>, vector<1x48x128xf32>
    %146 = vector.shape_cast %145 : vector<1x48x128xf32> to vector<48x128xf32>
    %cst_92 = arith.constant dense<0.000000e+00> : vector<8x128xf32>
    %147 = tpu.matmul %144, %146, %cst_92 {dimension_numbers = #tpu.dot_dimension_numbers<[1], [0], [0], [1], [0, 0, 1, 1], [], []>} : vector<8x48xf32>, vector<48x128xf32>, vector<8x128xf32> -> vector<8x128xf32>
    %148 = arith.addf %143, %147 : vector<8x128xf32>
    %149 = vector.extract_strided_slice %142 {offsets = [0, 6], sizes = [8, 48], strides = [1, 1]} : vector<12x72xf32> to vector<8x48xf32>
    %c1_93 = arith.constant 1 : index
    %c0_94 = arith.constant 0 : index
    %c0_95 = arith.constant 0 : index
    %150 = vector.load %arg6[%c1_93, %c0_94, %c0_95] : memref<25x48x128xf32, #tpu.memory_space<vmem>>, vector<1x48x128xf32>
    %151 = vector.shape_cast %150 : vector<1x48x128xf32> to vector<48x128xf32>
    %cst_96 = arith.constant dense<0.000000e+00> : vector<8x128xf32>
    %152 = tpu.matmul %149, %151, %cst_96 {dimension_numbers = #tpu.dot_dimension_numbers<[1], [0], [0], [1], [0, 0, 1, 1], [], []>} : vector<8x48xf32>, vector<48x128xf32>, vector<8x128xf32> -> vector<8x128xf32>
    %153 = arith.addf %148, %152 : vector<8x128xf32>
    %154 = vector.extract_strided_slice %142 {offsets = [0, 12], sizes = [8, 48], strides = [1, 1]} : vector<12x72xf32> to vector<8x48xf32>
    %c2_97 = arith.constant 2 : index
    %c0_98 = arith.constant 0 : index
    %c0_99 = arith.constant 0 : index
    %155 = vector.load %arg6[%c2_97, %c0_98, %c0_99] : memref<25x48x128xf32, #tpu.memory_space<vmem>>, vector<1x48x128xf32>
    %156 = vector.shape_cast %155 : vector<1x48x128xf32> to vector<48x128xf32>
    %cst_100 = arith.constant dense<0.000000e+00> : vector<8x128xf32>
    %157 = tpu.matmul %154, %156, %cst_100 {dimension_numbers = #tpu.dot_dimension_numbers<[1], [0], [0], [1], [0, 0, 1, 1], [], []>} : vector<8x48xf32>, vector<48x128xf32>, vector<8x128xf32> -> vector<8x128xf32>
    %158 = arith.addf %153, %157 : vector<8x128xf32>
    %159 = vector.extract_strided_slice %142 {offsets = [0, 18], sizes = [8, 48], strides = [1, 1]} : vector<12x72xf32> to vector<8x48xf32>
    %c3_101 = arith.constant 3 : index
    %c0_102 = arith.constant 0 : index
    %c0_103 = arith.constant 0 : index
    %160 = vector.load %arg6[%c3_101, %c0_102, %c0_103] : memref<25x48x128xf32, #tpu.memory_space<vmem>>, vector<1x48x128xf32>
    %161 = vector.shape_cast %160 : vector<1x48x128xf32> to vector<48x128xf32>
    %cst_104 = arith.constant dense<0.000000e+00> : vector<8x128xf32>
    %162 = tpu.matmul %159, %161, %cst_104 {dimension_numbers = #tpu.dot_dimension_numbers<[1], [0], [0], [1], [0, 0, 1, 1], [], []>} : vector<8x48xf32>, vector<48x128xf32>, vector<8x128xf32> -> vector<8x128xf32>
    %163 = arith.addf %158, %162 : vector<8x128xf32>
    %164 = vector.extract_strided_slice %142 {offsets = [0, 24], sizes = [8, 48], strides = [1, 1]} : vector<12x72xf32> to vector<8x48xf32>
    %c4_105 = arith.constant 4 : index
    %c0_106 = arith.constant 0 : index
    %c0_107 = arith.constant 0 : index
    %165 = vector.load %arg6[%c4_105, %c0_106, %c0_107] : memref<25x48x128xf32, #tpu.memory_space<vmem>>, vector<1x48x128xf32>
    %166 = vector.shape_cast %165 : vector<1x48x128xf32> to vector<48x128xf32>
    %cst_108 = arith.constant dense<0.000000e+00> : vector<8x128xf32>
    %167 = tpu.matmul %164, %166, %cst_108 {dimension_numbers = #tpu.dot_dimension_numbers<[1], [0], [0], [1], [0, 0, 1, 1], [], []>} : vector<8x48xf32>, vector<48x128xf32>, vector<8x128xf32> -> vector<8x128xf32>
    %168 = arith.addf %163, %167 : vector<8x128xf32>
    %169 = vector.extract_strided_slice %142 {offsets = [1, 0], sizes = [8, 48], strides = [1, 1]} : vector<12x72xf32> to vector<8x48xf32>
    %c5_109 = arith.constant 5 : index
    %c0_110 = arith.constant 0 : index
    %c0_111 = arith.constant 0 : index
    %170 = vector.load %arg6[%c5_109, %c0_110, %c0_111] : memref<25x48x128xf32, #tpu.memory_space<vmem>>, vector<1x48x128xf32>
    %171 = vector.shape_cast %170 : vector<1x48x128xf32> to vector<48x128xf32>
    %cst_112 = arith.constant dense<0.000000e+00> : vector<8x128xf32>
    %172 = tpu.matmul %169, %171, %cst_112 {dimension_numbers = #tpu.dot_dimension_numbers<[1], [0], [0], [1], [0, 0, 1, 1], [], []>} : vector<8x48xf32>, vector<48x128xf32>, vector<8x128xf32> -> vector<8x128xf32>
    %173 = arith.addf %168, %172 : vector<8x128xf32>
    %174 = vector.extract_strided_slice %142 {offsets = [1, 6], sizes = [8, 48], strides = [1, 1]} : vector<12x72xf32> to vector<8x48xf32>
    %c6_113 = arith.constant 6 : index
    %c0_114 = arith.constant 0 : index
    %c0_115 = arith.constant 0 : index
    %175 = vector.load %arg6[%c6_113, %c0_114, %c0_115] : memref<25x48x128xf32, #tpu.memory_space<vmem>>, vector<1x48x128xf32>
    %176 = vector.shape_cast %175 : vector<1x48x128xf32> to vector<48x128xf32>
    %cst_116 = arith.constant dense<0.000000e+00> : vector<8x128xf32>
    %177 = tpu.matmul %174, %176, %cst_116 {dimension_numbers = #tpu.dot_dimension_numbers<[1], [0], [0], [1], [0, 0, 1, 1], [], []>} : vector<8x48xf32>, vector<48x128xf32>, vector<8x128xf32> -> vector<8x128xf32>
    %178 = arith.addf %173, %177 : vector<8x128xf32>
    %179 = vector.extract_strided_slice %142 {offsets = [1, 12], sizes = [8, 48], strides = [1, 1]} : vector<12x72xf32> to vector<8x48xf32>
    %c7_117 = arith.constant 7 : index
    %c0_118 = arith.constant 0 : index
    %c0_119 = arith.constant 0 : index
    %180 = vector.load %arg6[%c7_117, %c0_118, %c0_119] : memref<25x48x128xf32, #tpu.memory_space<vmem>>, vector<1x48x128xf32>
    %181 = vector.shape_cast %180 : vector<1x48x128xf32> to vector<48x128xf32>
    %cst_120 = arith.constant dense<0.000000e+00> : vector<8x128xf32>
    %182 = tpu.matmul %179, %181, %cst_120 {dimension_numbers = #tpu.dot_dimension_numbers<[1], [0], [0], [1], [0, 0, 1, 1], [], []>} : vector<8x48xf32>, vector<48x128xf32>, vector<8x128xf32> -> vector<8x128xf32>
    %183 = arith.addf %178, %182 : vector<8x128xf32>
    %184 = vector.extract_strided_slice %142 {offsets = [1, 18], sizes = [8, 48], strides = [1, 1]} : vector<12x72xf32> to vector<8x48xf32>
    %c8_121 = arith.constant 8 : index
    %c0_122 = arith.constant 0 : index
    %c0_123 = arith.constant 0 : index
    %185 = vector.load %arg6[%c8_121, %c0_122, %c0_123] : memref<25x48x128xf32, #tpu.memory_space<vmem>>, vector<1x48x128xf32>
    %186 = vector.shape_cast %185 : vector<1x48x128xf32> to vector<48x128xf32>
    %cst_124 = arith.constant dense<0.000000e+00> : vector<8x128xf32>
    %187 = tpu.matmul %184, %186, %cst_124 {dimension_numbers = #tpu.dot_dimension_numbers<[1], [0], [0], [1], [0, 0, 1, 1], [], []>} : vector<8x48xf32>, vector<48x128xf32>, vector<8x128xf32> -> vector<8x128xf32>
    %188 = arith.addf %183, %187 : vector<8x128xf32>
    %189 = vector.extract_strided_slice %142 {offsets = [1, 24], sizes = [8, 48], strides = [1, 1]} : vector<12x72xf32> to vector<8x48xf32>
    %c9_125 = arith.constant 9 : index
    %c0_126 = arith.constant 0 : index
    %c0_127 = arith.constant 0 : index
    %190 = vector.load %arg6[%c9_125, %c0_126, %c0_127] : memref<25x48x128xf32, #tpu.memory_space<vmem>>, vector<1x48x128xf32>
    %191 = vector.shape_cast %190 : vector<1x48x128xf32> to vector<48x128xf32>
    %cst_128 = arith.constant dense<0.000000e+00> : vector<8x128xf32>
    %192 = tpu.matmul %189, %191, %cst_128 {dimension_numbers = #tpu.dot_dimension_numbers<[1], [0], [0], [1], [0, 0, 1, 1], [], []>} : vector<8x48xf32>, vector<48x128xf32>, vector<8x128xf32> -> vector<8x128xf32>
    %193 = arith.addf %188, %192 : vector<8x128xf32>
    %194 = vector.extract_strided_slice %142 {offsets = [2, 0], sizes = [8, 48], strides = [1, 1]} : vector<12x72xf32> to vector<8x48xf32>
    %c10_129 = arith.constant 10 : index
    %c0_130 = arith.constant 0 : index
    %c0_131 = arith.constant 0 : index
    %195 = vector.load %arg6[%c10_129, %c0_130, %c0_131] : memref<25x48x128xf32, #tpu.memory_space<vmem>>, vector<1x48x128xf32>
    %196 = vector.shape_cast %195 : vector<1x48x128xf32> to vector<48x128xf32>
    %cst_132 = arith.constant dense<0.000000e+00> : vector<8x128xf32>
    %197 = tpu.matmul %194, %196, %cst_132 {dimension_numbers = #tpu.dot_dimension_numbers<[1], [0], [0], [1], [0, 0, 1, 1], [], []>} : vector<8x48xf32>, vector<48x128xf32>, vector<8x128xf32> -> vector<8x128xf32>
    %198 = arith.addf %193, %197 : vector<8x128xf32>
    %199 = vector.extract_strided_slice %142 {offsets = [2, 6], sizes = [8, 48], strides = [1, 1]} : vector<12x72xf32> to vector<8x48xf32>
    %c11_133 = arith.constant 11 : index
    %c0_134 = arith.constant 0 : index
    %c0_135 = arith.constant 0 : index
    %200 = vector.load %arg6[%c11_133, %c0_134, %c0_135] : memref<25x48x128xf32, #tpu.memory_space<vmem>>, vector<1x48x128xf32>
    %201 = vector.shape_cast %200 : vector<1x48x128xf32> to vector<48x128xf32>
    %cst_136 = arith.constant dense<0.000000e+00> : vector<8x128xf32>
    %202 = tpu.matmul %199, %201, %cst_136 {dimension_numbers = #tpu.dot_dimension_numbers<[1], [0], [0], [1], [0, 0, 1, 1], [], []>} : vector<8x48xf32>, vector<48x128xf32>, vector<8x128xf32> -> vector<8x128xf32>
    %203 = arith.addf %198, %202 : vector<8x128xf32>
    %204 = vector.extract_strided_slice %142 {offsets = [2, 12], sizes = [8, 48], strides = [1, 1]} : vector<12x72xf32> to vector<8x48xf32>
    %c12_137 = arith.constant 12 : index
    %c0_138 = arith.constant 0 : index
    %c0_139 = arith.constant 0 : index
    %205 = vector.load %arg6[%c12_137, %c0_138, %c0_139] : memref<25x48x128xf32, #tpu.memory_space<vmem>>, vector<1x48x128xf32>
    %206 = vector.shape_cast %205 : vector<1x48x128xf32> to vector<48x128xf32>
    %cst_140 = arith.constant dense<0.000000e+00> : vector<8x128xf32>
    %207 = tpu.matmul %204, %206, %cst_140 {dimension_numbers = #tpu.dot_dimension_numbers<[1], [0], [0], [1], [0, 0, 1, 1], [], []>} : vector<8x48xf32>, vector<48x128xf32>, vector<8x128xf32> -> vector<8x128xf32>
    %208 = arith.addf %203, %207 : vector<8x128xf32>
    %209 = vector.extract_strided_slice %142 {offsets = [2, 18], sizes = [8, 48], strides = [1, 1]} : vector<12x72xf32> to vector<8x48xf32>
    %c13_141 = arith.constant 13 : index
    %c0_142 = arith.constant 0 : index
    %c0_143 = arith.constant 0 : index
    %210 = vector.load %arg6[%c13_141, %c0_142, %c0_143] : memref<25x48x128xf32, #tpu.memory_space<vmem>>, vector<1x48x128xf32>
    %211 = vector.shape_cast %210 : vector<1x48x128xf32> to vector<48x128xf32>
    %cst_144 = arith.constant dense<0.000000e+00> : vector<8x128xf32>
    %212 = tpu.matmul %209, %211, %cst_144 {dimension_numbers = #tpu.dot_dimension_numbers<[1], [0], [0], [1], [0, 0, 1, 1], [], []>} : vector<8x48xf32>, vector<48x128xf32>, vector<8x128xf32> -> vector<8x128xf32>
    %213 = arith.addf %208, %212 : vector<8x128xf32>
    %214 = vector.extract_strided_slice %142 {offsets = [2, 24], sizes = [8, 48], strides = [1, 1]} : vector<12x72xf32> to vector<8x48xf32>
    %c14_145 = arith.constant 14 : index
    %c0_146 = arith.constant 0 : index
    %c0_147 = arith.constant 0 : index
    %215 = vector.load %arg6[%c14_145, %c0_146, %c0_147] : memref<25x48x128xf32, #tpu.memory_space<vmem>>, vector<1x48x128xf32>
    %216 = vector.shape_cast %215 : vector<1x48x128xf32> to vector<48x128xf32>
    %cst_148 = arith.constant dense<0.000000e+00> : vector<8x128xf32>
    %217 = tpu.matmul %214, %216, %cst_148 {dimension_numbers = #tpu.dot_dimension_numbers<[1], [0], [0], [1], [0, 0, 1, 1], [], []>} : vector<8x48xf32>, vector<48x128xf32>, vector<8x128xf32> -> vector<8x128xf32>
    %218 = arith.addf %213, %217 : vector<8x128xf32>
    %219 = vector.extract_strided_slice %142 {offsets = [3, 0], sizes = [8, 48], strides = [1, 1]} : vector<12x72xf32> to vector<8x48xf32>
    %c15_149 = arith.constant 15 : index
    %c0_150 = arith.constant 0 : index
    %c0_151 = arith.constant 0 : index
    %220 = vector.load %arg6[%c15_149, %c0_150, %c0_151] : memref<25x48x128xf32, #tpu.memory_space<vmem>>, vector<1x48x128xf32>
    %221 = vector.shape_cast %220 : vector<1x48x128xf32> to vector<48x128xf32>
    %cst_152 = arith.constant dense<0.000000e+00> : vector<8x128xf32>
    %222 = tpu.matmul %219, %221, %cst_152 {dimension_numbers = #tpu.dot_dimension_numbers<[1], [0], [0], [1], [0, 0, 1, 1], [], []>} : vector<8x48xf32>, vector<48x128xf32>, vector<8x128xf32> -> vector<8x128xf32>
    %223 = arith.addf %218, %222 : vector<8x128xf32>
    %224 = vector.extract_strided_slice %142 {offsets = [3, 6], sizes = [8, 48], strides = [1, 1]} : vector<12x72xf32> to vector<8x48xf32>
    %c16_153 = arith.constant 16 : index
    %c0_154 = arith.constant 0 : index
    %c0_155 = arith.constant 0 : index
    %225 = vector.load %arg6[%c16_153, %c0_154, %c0_155] : memref<25x48x128xf32, #tpu.memory_space<vmem>>, vector<1x48x128xf32>
    %226 = vector.shape_cast %225 : vector<1x48x128xf32> to vector<48x128xf32>
    %cst_156 = arith.constant dense<0.000000e+00> : vector<8x128xf32>
    %227 = tpu.matmul %224, %226, %cst_156 {dimension_numbers = #tpu.dot_dimension_numbers<[1], [0], [0], [1], [0, 0, 1, 1], [], []>} : vector<8x48xf32>, vector<48x128xf32>, vector<8x128xf32> -> vector<8x128xf32>
    %228 = arith.addf %223, %227 : vector<8x128xf32>
    %229 = vector.extract_strided_slice %142 {offsets = [3, 12], sizes = [8, 48], strides = [1, 1]} : vector<12x72xf32> to vector<8x48xf32>
    %c17_157 = arith.constant 17 : index
    %c0_158 = arith.constant 0 : index
    %c0_159 = arith.constant 0 : index
    %230 = vector.load %arg6[%c17_157, %c0_158, %c0_159] : memref<25x48x128xf32, #tpu.memory_space<vmem>>, vector<1x48x128xf32>
    %231 = vector.shape_cast %230 : vector<1x48x128xf32> to vector<48x128xf32>
    %cst_160 = arith.constant dense<0.000000e+00> : vector<8x128xf32>
    %232 = tpu.matmul %229, %231, %cst_160 {dimension_numbers = #tpu.dot_dimension_numbers<[1], [0], [0], [1], [0, 0, 1, 1], [], []>} : vector<8x48xf32>, vector<48x128xf32>, vector<8x128xf32> -> vector<8x128xf32>
    %233 = arith.addf %228, %232 : vector<8x128xf32>
    %234 = vector.extract_strided_slice %142 {offsets = [3, 18], sizes = [8, 48], strides = [1, 1]} : vector<12x72xf32> to vector<8x48xf32>
    %c18_161 = arith.constant 18 : index
    %c0_162 = arith.constant 0 : index
    %c0_163 = arith.constant 0 : index
    %235 = vector.load %arg6[%c18_161, %c0_162, %c0_163] : memref<25x48x128xf32, #tpu.memory_space<vmem>>, vector<1x48x128xf32>
    %236 = vector.shape_cast %235 : vector<1x48x128xf32> to vector<48x128xf32>
    %cst_164 = arith.constant dense<0.000000e+00> : vector<8x128xf32>
    %237 = tpu.matmul %234, %236, %cst_164 {dimension_numbers = #tpu.dot_dimension_numbers<[1], [0], [0], [1], [0, 0, 1, 1], [], []>} : vector<8x48xf32>, vector<48x128xf32>, vector<8x128xf32> -> vector<8x128xf32>
    %238 = arith.addf %233, %237 : vector<8x128xf32>
    %239 = vector.extract_strided_slice %142 {offsets = [3, 24], sizes = [8, 48], strides = [1, 1]} : vector<12x72xf32> to vector<8x48xf32>
    %c19_165 = arith.constant 19 : index
    %c0_166 = arith.constant 0 : index
    %c0_167 = arith.constant 0 : index
    %240 = vector.load %arg6[%c19_165, %c0_166, %c0_167] : memref<25x48x128xf32, #tpu.memory_space<vmem>>, vector<1x48x128xf32>
    %241 = vector.shape_cast %240 : vector<1x48x128xf32> to vector<48x128xf32>
    %cst_168 = arith.constant dense<0.000000e+00> : vector<8x128xf32>
    %242 = tpu.matmul %239, %241, %cst_168 {dimension_numbers = #tpu.dot_dimension_numbers<[1], [0], [0], [1], [0, 0, 1, 1], [], []>} : vector<8x48xf32>, vector<48x128xf32>, vector<8x128xf32> -> vector<8x128xf32>
    %243 = arith.addf %238, %242 : vector<8x128xf32>
    %244 = vector.extract_strided_slice %142 {offsets = [4, 0], sizes = [8, 48], strides = [1, 1]} : vector<12x72xf32> to vector<8x48xf32>
    %c20_169 = arith.constant 20 : index
    %c0_170 = arith.constant 0 : index
    %c0_171 = arith.constant 0 : index
    %245 = vector.load %arg6[%c20_169, %c0_170, %c0_171] : memref<25x48x128xf32, #tpu.memory_space<vmem>>, vector<1x48x128xf32>
    %246 = vector.shape_cast %245 : vector<1x48x128xf32> to vector<48x128xf32>
    %cst_172 = arith.constant dense<0.000000e+00> : vector<8x128xf32>
    %247 = tpu.matmul %244, %246, %cst_172 {dimension_numbers = #tpu.dot_dimension_numbers<[1], [0], [0], [1], [0, 0, 1, 1], [], []>} : vector<8x48xf32>, vector<48x128xf32>, vector<8x128xf32> -> vector<8x128xf32>
    %248 = arith.addf %243, %247 : vector<8x128xf32>
    %249 = vector.extract_strided_slice %142 {offsets = [4, 6], sizes = [8, 48], strides = [1, 1]} : vector<12x72xf32> to vector<8x48xf32>
    %c21_173 = arith.constant 21 : index
    %c0_174 = arith.constant 0 : index
    %c0_175 = arith.constant 0 : index
    %250 = vector.load %arg6[%c21_173, %c0_174, %c0_175] : memref<25x48x128xf32, #tpu.memory_space<vmem>>, vector<1x48x128xf32>
    %251 = vector.shape_cast %250 : vector<1x48x128xf32> to vector<48x128xf32>
    %cst_176 = arith.constant dense<0.000000e+00> : vector<8x128xf32>
    %252 = tpu.matmul %249, %251, %cst_176 {dimension_numbers = #tpu.dot_dimension_numbers<[1], [0], [0], [1], [0, 0, 1, 1], [], []>} : vector<8x48xf32>, vector<48x128xf32>, vector<8x128xf32> -> vector<8x128xf32>
    %253 = arith.addf %248, %252 : vector<8x128xf32>
    %254 = vector.extract_strided_slice %142 {offsets = [4, 12], sizes = [8, 48], strides = [1, 1]} : vector<12x72xf32> to vector<8x48xf32>
    %c22_177 = arith.constant 22 : index
    %c0_178 = arith.constant 0 : index
    %c0_179 = arith.constant 0 : index
    %255 = vector.load %arg6[%c22_177, %c0_178, %c0_179] : memref<25x48x128xf32, #tpu.memory_space<vmem>>, vector<1x48x128xf32>
    %256 = vector.shape_cast %255 : vector<1x48x128xf32> to vector<48x128xf32>
    %cst_180 = arith.constant dense<0.000000e+00> : vector<8x128xf32>
    %257 = tpu.matmul %254, %256, %cst_180 {dimension_numbers = #tpu.dot_dimension_numbers<[1], [0], [0], [1], [0, 0, 1, 1], [], []>} : vector<8x48xf32>, vector<48x128xf32>, vector<8x128xf32> -> vector<8x128xf32>
    %258 = arith.addf %253, %257 : vector<8x128xf32>
    %259 = vector.extract_strided_slice %142 {offsets = [4, 18], sizes = [8, 48], strides = [1, 1]} : vector<12x72xf32> to vector<8x48xf32>
    %c23_181 = arith.constant 23 : index
    %c0_182 = arith.constant 0 : index
    %c0_183 = arith.constant 0 : index
    %260 = vector.load %arg6[%c23_181, %c0_182, %c0_183] : memref<25x48x128xf32, #tpu.memory_space<vmem>>, vector<1x48x128xf32>
    %261 = vector.shape_cast %260 : vector<1x48x128xf32> to vector<48x128xf32>
    %cst_184 = arith.constant dense<0.000000e+00> : vector<8x128xf32>
    %262 = tpu.matmul %259, %261, %cst_184 {dimension_numbers = #tpu.dot_dimension_numbers<[1], [0], [0], [1], [0, 0, 1, 1], [], []>} : vector<8x48xf32>, vector<48x128xf32>, vector<8x128xf32> -> vector<8x128xf32>
    %263 = arith.addf %258, %262 : vector<8x128xf32>
    %264 = vector.extract_strided_slice %142 {offsets = [4, 24], sizes = [8, 48], strides = [1, 1]} : vector<12x72xf32> to vector<8x48xf32>
    %c24_185 = arith.constant 24 : index
    %c0_186 = arith.constant 0 : index
    %c0_187 = arith.constant 0 : index
    %265 = vector.load %arg6[%c24_185, %c0_186, %c0_187] : memref<25x48x128xf32, #tpu.memory_space<vmem>>, vector<1x48x128xf32>
    %266 = vector.shape_cast %265 : vector<1x48x128xf32> to vector<48x128xf32>
    %cst_188 = arith.constant dense<0.000000e+00> : vector<8x128xf32>
    %267 = tpu.matmul %264, %266, %cst_188 {dimension_numbers = #tpu.dot_dimension_numbers<[1], [0], [0], [1], [0, 0, 1, 1], [], []>} : vector<8x48xf32>, vector<48x128xf32>, vector<8x128xf32> -> vector<8x128xf32>
    %268 = arith.addf %263, %267 : vector<8x128xf32>
    %c0_189 = arith.constant 0 : index
    %c0_190 = arith.constant 0 : index
    %269 = vector.load %arg7[%c0_189, %c0_190] : memref<1x128xf32, #tpu.memory_space<vmem>>, vector<1x128xf32>
    %270 = vector.broadcast %269 : vector<1x128xf32> to vector<8x128xf32>
    %271 = arith.addf %268, %270 : vector<8x128xf32>
    %cst_191 = arith.constant 0.000000e+00 : f32
    %272 = vector.broadcast %cst_191 : f32 to vector<8x128xf32>
    %273 = arith.maximumf %271, %272 : vector<8x128xf32>
    %274 = vector.extract_strided_slice %273 {offsets = [0, 0], sizes = [8, 112], strides = [1, 1]} : vector<8x128xf32> to vector<8x112xf32>
    %275 = vector.extract_strided_slice %273 {offsets = [0, 16], sizes = [8, 112], strides = [1, 1]} : vector<8x128xf32> to vector<8x112xf32>
    %276 = arith.maximumf %274, %275 : vector<8x112xf32>
    %c0_192 = arith.constant 0 : index
    %c0_193 = arith.constant 0 : index
    %277 = vector.load %arg8[%c0_192, %c0_193] : memref<112x64xf32, #tpu.memory_space<vmem>>, vector<112x64xf32>
    %cst_194 = arith.constant dense<0.000000e+00> : vector<8x64xf32>
    %278 = tpu.matmul %276, %277, %cst_194 {dimension_numbers = #tpu.dot_dimension_numbers<[1], [0], [0], [1], [0, 0, 1, 1], [], []>} : vector<8x112xf32>, vector<112x64xf32>, vector<8x64xf32> -> vector<8x64xf32>
    %279 = vector.extract_strided_slice %278 {offsets = [0, 0], sizes = [7, 64], strides = [1, 1]} : vector<8x64xf32> to vector<7x64xf32>
    %280 = vector.extract_strided_slice %278 {offsets = [1, 0], sizes = [7, 64], strides = [1, 1]} : vector<8x64xf32> to vector<7x64xf32>
    %281 = arith.maximumf %279, %280 : vector<7x64xf32>
    %c0_195 = arith.constant 0 : index
    %c0_196 = arith.constant 0 : index
    %282 = vector.load %arg9[%c0_195, %c0_196] : memref<4x7xf32, #tpu.memory_space<vmem>>, vector<4x7xf32>
    %cst_197 = arith.constant dense<0.000000e+00> : vector<4x64xf32>
    %283 = tpu.matmul %282, %281, %cst_197 {dimension_numbers = #tpu.dot_dimension_numbers<[1], [0], [0], [1], [0, 0, 1, 1], [], []>} : vector<4x7xf32>, vector<7x64xf32>, vector<4x64xf32> -> vector<4x64xf32>
    %cst_198 = arith.constant 0.000000e+00 : f32
    %284 = vector.broadcast %cst_198 : f32 to vector<1x120xf32>
    %285 = vector.extract_strided_slice %283 {offsets = [0, 0], sizes = [1, 64], strides = [1, 1]} : vector<4x64xf32> to vector<1x64xf32>
    %c0_199 = arith.constant 0 : index
    %c0_200 = arith.constant 0 : index
    %c0_201 = arith.constant 0 : index
    %286 = vector.load %arg10[%c0_199, %c0_200, %c0_201] : memref<4x64x120xf32, #tpu.memory_space<vmem>>, vector<1x64x120xf32>
    %287 = vector.shape_cast %286 : vector<1x64x120xf32> to vector<64x120xf32>
    %cst_202 = arith.constant dense<0.000000e+00> : vector<1x120xf32>
    %288 = tpu.matmul %285, %287, %cst_202 {dimension_numbers = #tpu.dot_dimension_numbers<[1], [0], [0], [1], [0, 0, 1, 1], [], []>} : vector<1x64xf32>, vector<64x120xf32>, vector<1x120xf32> -> vector<1x120xf32>
    %289 = arith.addf %284, %288 : vector<1x120xf32>
    %290 = vector.extract_strided_slice %283 {offsets = [1, 0], sizes = [1, 64], strides = [1, 1]} : vector<4x64xf32> to vector<1x64xf32>
    %c1_203 = arith.constant 1 : index
    %c0_204 = arith.constant 0 : index
    %c0_205 = arith.constant 0 : index
    %291 = vector.load %arg10[%c1_203, %c0_204, %c0_205] : memref<4x64x120xf32, #tpu.memory_space<vmem>>, vector<1x64x120xf32>
    %292 = vector.shape_cast %291 : vector<1x64x120xf32> to vector<64x120xf32>
    %cst_206 = arith.constant dense<0.000000e+00> : vector<1x120xf32>
    %293 = tpu.matmul %290, %292, %cst_206 {dimension_numbers = #tpu.dot_dimension_numbers<[1], [0], [0], [1], [0, 0, 1, 1], [], []>} : vector<1x64xf32>, vector<64x120xf32>, vector<1x120xf32> -> vector<1x120xf32>
    %294 = arith.addf %289, %293 : vector<1x120xf32>
    %295 = vector.extract_strided_slice %283 {offsets = [2, 0], sizes = [1, 64], strides = [1, 1]} : vector<4x64xf32> to vector<1x64xf32>
    %c2_207 = arith.constant 2 : index
    %c0_208 = arith.constant 0 : index
    %c0_209 = arith.constant 0 : index
    %296 = vector.load %arg10[%c2_207, %c0_208, %c0_209] : memref<4x64x120xf32, #tpu.memory_space<vmem>>, vector<1x64x120xf32>
    %297 = vector.shape_cast %296 : vector<1x64x120xf32> to vector<64x120xf32>
    %cst_210 = arith.constant dense<0.000000e+00> : vector<1x120xf32>
    %298 = tpu.matmul %295, %297, %cst_210 {dimension_numbers = #tpu.dot_dimension_numbers<[1], [0], [0], [1], [0, 0, 1, 1], [], []>} : vector<1x64xf32>, vector<64x120xf32>, vector<1x120xf32> -> vector<1x120xf32>
    %299 = arith.addf %294, %298 : vector<1x120xf32>
    %300 = vector.extract_strided_slice %283 {offsets = [3, 0], sizes = [1, 64], strides = [1, 1]} : vector<4x64xf32> to vector<1x64xf32>
    %c3_211 = arith.constant 3 : index
    %c0_212 = arith.constant 0 : index
    %c0_213 = arith.constant 0 : index
    %301 = vector.load %arg10[%c3_211, %c0_212, %c0_213] : memref<4x64x120xf32, #tpu.memory_space<vmem>>, vector<1x64x120xf32>
    %302 = vector.shape_cast %301 : vector<1x64x120xf32> to vector<64x120xf32>
    %cst_214 = arith.constant dense<0.000000e+00> : vector<1x120xf32>
    %303 = tpu.matmul %300, %302, %cst_214 {dimension_numbers = #tpu.dot_dimension_numbers<[1], [0], [0], [1], [0, 0, 1, 1], [], []>} : vector<1x64xf32>, vector<64x120xf32>, vector<1x120xf32> -> vector<1x120xf32>
    %304 = arith.addf %299, %303 : vector<1x120xf32>
    %c0_215 = arith.constant 0 : index
    %c0_216 = arith.constant 0 : index
    %305 = vector.load %arg11[%c0_215, %c0_216] : memref<1x120xf32, #tpu.memory_space<vmem>>, vector<1x120xf32>
    %306 = arith.addf %304, %305 : vector<1x120xf32>
    %cst_217 = arith.constant 0.000000e+00 : f32
    %307 = vector.broadcast %cst_217 : f32 to vector<1x120xf32>
    %308 = arith.maximumf %306, %307 : vector<1x120xf32>
    %c0_218 = arith.constant 0 : index
    %c0_219 = arith.constant 0 : index
    %309 = vector.load %arg12[%c0_218, %c0_219] : memref<120x84xf32, #tpu.memory_space<vmem>>, vector<120x84xf32>
    %cst_220 = arith.constant dense<0.000000e+00> : vector<1x84xf32>
    %310 = tpu.matmul %308, %309, %cst_220 {dimension_numbers = #tpu.dot_dimension_numbers<[1], [0], [0], [1], [0, 0, 1, 1], [], []>} : vector<1x120xf32>, vector<120x84xf32>, vector<1x84xf32> -> vector<1x84xf32>
    %c0_221 = arith.constant 0 : index
    %c0_222 = arith.constant 0 : index
    %311 = vector.load %arg13[%c0_221, %c0_222] : memref<1x84xf32, #tpu.memory_space<vmem>>, vector<1x84xf32>
    %312 = arith.addf %310, %311 : vector<1x84xf32>
    %cst_223 = arith.constant 0.000000e+00 : f32
    %313 = vector.broadcast %cst_223 : f32 to vector<1x84xf32>
    %314 = arith.maximumf %312, %313 : vector<1x84xf32>
    %c0_224 = arith.constant 0 : index
    %c0_225 = arith.constant 0 : index
    %c0_226 = arith.constant 0 : index
    %315 = vector.load %arg17[%c0_224, %c0_225, %c0_226] : memref<1x1x84xf32, #tpu.memory_space<vmem>>, vector<1x1x84xf32>
    %316 = vector.shape_cast %315 : vector<1x1x84xf32> to vector<1x84xf32>
    %317 = vector.shape_cast %314 : vector<1x84xf32> to vector<1x1x84xf32>
    tpu.vector_store %arg17[%c0_224, %c0_225, %c0_226], %317 {strides = array<i32>} : memref<1x1x84xf32, #tpu.memory_space<vmem>>, vector<1x1x84xf32>,
    %c0_227 = arith.constant 0 : index
    %c0_228 = arith.constant 0 : index
    %318 = vector.load %arg14[%c0_227, %c0_228] : memref<84x10xf32, #tpu.memory_space<vmem>>, vector<84x10xf32>
    %cst_229 = arith.constant dense<0.000000e+00> : vector<1x10xf32>
    %319 = tpu.matmul %314, %318, %cst_229 {dimension_numbers = #tpu.dot_dimension_numbers<[1], [0], [0], [1], [0, 0, 1, 1], [], []>} : vector<1x84xf32>, vector<84x10xf32>, vector<1x10xf32> -> vector<1x10xf32>
    %c0_230 = arith.constant 0 : index
    %c0_231 = arith.constant 0 : index
    %320 = vector.load %arg15[%c0_230, %c0_231] : memref<1x10xf32, #tpu.memory_space<vmem>>, vector<1x10xf32>
    %321 = arith.addf %319, %320 : vector<1x10xf32>
    %c0_232 = arith.constant 0 : index
    %c0_233 = arith.constant 0 : index
    %c0_234 = arith.constant 0 : index
    %322 = vector.load %arg16[%c0_232, %c0_233, %c0_234] : memref<1x1x10xf32, #tpu.memory_space<vmem>>, vector<1x1x10xf32>
    %323 = vector.shape_cast %322 : vector<1x1x10xf32> to vector<1x10xf32>
    %324 = vector.shape_cast %321 : vector<1x10xf32> to vector<1x1x10xf32>
    tpu.vector_store %arg16[%c0_232, %c0_233, %c0_234], %324 {strides = array<i32>} : memref<1x1x10xf32, #tpu.memory_space<vmem>>, vector<1x1x10xf32>,
    return
  }
  func.func @transform_0(%arg0: i32) -> (i32, i32, i32, i32) {
    %c0_i32 = arith.constant 0 : i32
    %c0_i32_0 = arith.constant 0 : i32
    %c0_i32_1 = arith.constant 0 : i32
    %c0_i32_2 = arith.constant 0 : i32
    return %arg0, %c0_i32, %c0_i32_0, %c0_i32_1 : i32, i32, i32, i32
  }
  func.func @transform_1(%arg0: i32) -> (i32, i32, i32) {
    %c0_i32 = arith.constant 0 : i32
    %c0_i32_0 = arith.constant 0 : i32
    %c0_i32_1 = arith.constant 0 : i32
    %c0_i32_2 = arith.constant 0 : i32
    return %c0_i32, %c0_i32_0, %c0_i32_1 : i32, i32, i32
  }
  func.func @transform_2(%arg0: i32) -> (i32, i32) {
    %c0_i32 = arith.constant 0 : i32
    %c0_i32_0 = arith.constant 0 : i32
    %c0_i32_1 = arith.constant 0 : i32
    return %c0_i32, %c0_i32_0 : i32, i32
  }
  func.func @transform_3(%arg0: i32) -> (i32, i32) {
    %c0_i32 = arith.constant 0 : i32
    %c0_i32_0 = arith.constant 0 : i32
    %c0_i32_1 = arith.constant 0 : i32
    return %c0_i32, %c0_i32_0 : i32, i32
  }
  func.func @transform_4(%arg0: i32) -> (i32, i32) {
    %c0_i32 = arith.constant 0 : i32
    %c0_i32_0 = arith.constant 0 : i32
    %c0_i32_1 = arith.constant 0 : i32
    return %c0_i32, %c0_i32_0 : i32, i32
  }
  func.func @transform_5(%arg0: i32) -> (i32, i32, i32) {
    %c0_i32 = arith.constant 0 : i32
    %c0_i32_0 = arith.constant 0 : i32
    %c0_i32_1 = arith.constant 0 : i32
    %c0_i32_2 = arith.constant 0 : i32
    return %c0_i32, %c0_i32_0, %c0_i32_1 : i32, i32, i32
  }
  func.func @transform_6(%arg0: i32) -> (i32, i32) {
    %c0_i32 = arith.constant 0 : i32
    %c0_i32_0 = arith.constant 0 : i32
    %c0_i32_1 = arith.constant 0 : i32
    return %c0_i32, %c0_i32_0 : i32, i32
  }
  func.func @transform_7(%arg0: i32) -> (i32, i32) {
    %c0_i32 = arith.constant 0 : i32
    %c0_i32_0 = arith.constant 0 : i32
    %c0_i32_1 = arith.constant 0 : i32
    return %c0_i32, %c0_i32_0 : i32, i32
  }
  func.func @transform_8(%arg0: i32) -> (i32, i32) {
    %c0_i32 = arith.constant 0 : i32
    %c0_i32_0 = arith.constant 0 : i32
    %c0_i32_1 = arith.constant 0 : i32
    return %c0_i32, %c0_i32_0 : i32, i32
  }
  func.func @transform_9(%arg0: i32) -> (i32, i32, i32) {
    %c0_i32 = arith.constant 0 : i32
    %c0_i32_0 = arith.constant 0 : i32
    %c0_i32_1 = arith.constant 0 : i32
    %c0_i32_2 = arith.constant 0 : i32
    return %c0_i32, %c0_i32_0, %c0_i32_1 : i32, i32, i32
  }
  func.func @transform_10(%arg0: i32) -> (i32, i32) {
    %c0_i32 = arith.constant 0 : i32
    %c0_i32_0 = arith.constant 0 : i32
    %c0_i32_1 = arith.constant 0 : i32
    return %c0_i32, %c0_i32_0 : i32, i32
  }
  func.func @transform_11(%arg0: i32) -> (i32, i32) {
    %c0_i32 = arith.constant 0 : i32
    %c0_i32_0 = arith.constant 0 : i32
    %c0_i32_1 = arith.constant 0 : i32
    return %c0_i32, %c0_i32_0 : i32, i32
  }
  func.func @transform_12(%arg0: i32) -> (i32, i32) {
    %c0_i32 = arith.constant 0 : i32
    %c0_i32_0 = arith.constant 0 : i32
    %c0_i32_1 = arith.constant 0 : i32
    return %c0_i32, %c0_i32_0 : i32, i32
  }
  func.func @transform_13(%arg0: i32) -> (i32, i32) {
    %c0_i32 = arith.constant 0 : i32
    %c0_i32_0 = arith.constant 0 : i32
    %c0_i32_1 = arith.constant 0 : i32
    return %c0_i32, %c0_i32_0 : i32, i32
  }
  func.func @transform_14(%arg0: i32) -> (i32, i32) {
    %c0_i32 = arith.constant 0 : i32
    %c0_i32_0 = arith.constant 0 : i32
    %c0_i32_1 = arith.constant 0 : i32
    return %c0_i32, %c0_i32_0 : i32, i32
  }
  func.func @transform_15(%arg0: i32) -> (i32, i32, i32) {
    %c0_i32 = arith.constant 0 : i32
    %c0_i32_0 = arith.constant 0 : i32
    %c0_i32_1 = arith.constant 0 : i32
    return %arg0, %c0_i32, %c0_i32_0 : i32, i32, i32
  }
  func.func @transform_16(%arg0: i32) -> (i32, i32, i32) {
    %c0_i32 = arith.constant 0 : i32
    %c0_i32_0 = arith.constant 0 : i32
    %c0_i32_1 = arith.constant 0 : i32
    return %arg0, %c0_i32, %c0_i32_0 : i32, i32, i32
  }
}

</mosaic_0001>

<llo_original>
// kernel: simple_cnn_mnist_forward.1
$region0: #{simple_cnn_mnist_forward.1}
  #allocation0 [shape = 'u32[]', space=smem, size = 0x4, offset = 0x4, fixed_abs, tag = 'smem constant byte address 0x4 - core index']
  #allocation1 [shape = 'u32[144,128]{1,0:T(1,128)}', space=vmem, size = 0x12000, scoped, tag = 'internal scratch']
  %s0 = inlined_call_operand.vmem [shape: f32[2,1,28,28], index: 0, kind: input, shape index: {}]
  %s1 = inlined_call_operand.hbm [shape: f32[25,24,144], index: 1, kind: input, shape index: {}]
  %s2 = inlined_call_operand.vmem [shape: f32[1,144], index: 2, kind: input, shape index: {}]
  %s3 = inlined_call_operand.vmem [shape: f32[138,72], index: 3, kind: input, shape index: {}]
  %s4 = inlined_call_operand.vmem [shape: f32[12,23], index: 4, kind: input, shape index: {}]
  %s5 = inlined_call_operand.hbm [shape: f32[25,48,128], index: 5, kind: input, shape index: {}]
  %s6 = inlined_call_operand.vmem [shape: f32[1,128], index: 6, kind: input, shape index: {}]
  %s7 = inlined_call_operand.vmem [shape: f32[112,64], index: 7, kind: input, shape index: {}]
  %s8 = inlined_call_operand.vmem [shape: f32[4,7], index: 8, kind: input, shape index: {}]
  %s9 = inlined_call_operand.vmem [shape: f32[4,64,120], index: 9, kind: input, shape index: {}]
  %s10 = inlined_call_operand.vmem [shape: f32[1,120], index: 10, kind: input, shape index: {}]
  %s11 = inlined_call_operand.vmem [shape: f32[120,84], index: 11, kind: input, shape index: {}]
  %s12 = inlined_call_operand.vmem [shape: f32[1,84], index: 12, kind: input, shape index: {}]
  %s13 = inlined_call_operand.vmem [shape: f32[84,10], index: 13, kind: input, shape index: {}]
  %s14 = inlined_call_operand.vmem [shape: f32[1,10], index: 14, kind: input, shape index: {}]
  %s15 = inlined_call_operand.hbm [shape: f32[2,1,10], index: 15, kind: output, shape index: {0}]
  %s16 = inlined_call_operand.hbm [shape: f32[2,1,84], index: 16, kind: output, shape index: {1}]
  %17 = xla_tuple %s15, %s16
  %s18 = sld [smem:[#allocation0]]
  $region109: #{simple_cnn_mnist_forward.1} parent=0
    _
  %s20 = ssub.s32 1, %s18
  %s21 = scalar_select 0, %s20, %s18
  $region1: #{simple_cnn_mnist_forward.1} parent=0
    #allocation2 [shape = 'u8[614400]{0}', space=vmem, size = 0x96000, scoped, tag = 'input window, operand 1, single buffered']
    #allocation3 [shape = 's32[2]{0}', space=sflag, size = 0x8, scoped, tag = 'scoped memory for simple_cnn_mnist_forward.1']
    #allocation4 [shape = 's32[2]{0}', space=sflag, size = 0x8, scoped, tag = 'scoped memory for simple_cnn_mnist_forward.1']
    #allocation5 [shape = 'u8[614400]{0}', space=vmem, size = 0x96000, scoped, tag = 'input window, operand 5, single buffered']
    #allocation6 [shape = 's32[1]{0}', space=sflag, size = 0x4, scoped, tag = 'scoped memory for simple_cnn_mnist_forward.1']
    #allocation7 [shape = 'u8[1024]{0}', space=vmem, size = 0x400, scoped, tag = 'output window, operand 0']
    #allocation8 [shape = 'u8[1024]{0}', space=vmem, size = 0x400, scoped, tag = 'output window, operand 1']
    #allocation9 [shape = 's32[2]{0}', space=sflag, size = 0x8, scoped, tag = 'scoped memory for simple_cnn_mnist_forward.1']
    %22 = vsyncpa [#allocation3], 0
    %23 = vsyncpa [#allocation6], 0
    %24 = vsyncpa [#allocation4], 0
    %s25 = scalar_lea.sflag [#allocation4], 1
    %26 = vsyncpa %s25, 0
    %27 = vsyncpa [#allocation9], 0
    %s28 = scalar_lea.sflag [#allocation9], 1
    %29 = vsyncpa %s28, 0
    loop: start=0, step=1, limit=4
    $region2: #{simple_cnn_mnist_forward.1} parent=1 // loop_pre_header
      _
    $region3: #{simple_cnn_mnist_forward.1} parent=1 // loop_header
      %s31 = sphi 0, %s35
      %p32 = scmp.ge.s32.totalorder %s31, 4
      %s41 = sphi 0, %s43
      %s44 = sphi 0, %s41
      %s45 = sphi 0, %s44
      %s61 = sphi 0, %s45
      %s65 = sphi 0, %s65
      %s67 = sphi 0, %s65
      %s68 = sphi 0, %s67
      %s82 = sphi 0, %s68
      %s86 = sphi 0, %s86
      %s88 = sphi 0, %s86
      %s89 = sphi 0, %s88
      %s103 = sphi 0, %s89
      %s107 = sphi 0, %s107
      %s109 = sphi 0, %s107
      %s110 = sphi 0, %s109
      %s124 = sphi 0, %s110
      %s128 = sphi 0, %s128
      %s130 = sphi 0, %s128
      %s131 = sphi 0, %s130
      %s145 = sphi 0, %s131
      %s149 = sphi 0, %s149
      %s151 = sphi 0, %s149
      %s152 = sphi 0, %s151
      %s166 = sphi 0, %s152
      %s170 = sphi 0, %s170
      %s172 = sphi 0, %s170
      %s173 = sphi 0, %s172
      %s187 = sphi 0, %s173
      %s191 = sphi 0, %s191
      %s193 = sphi 0, %s191
      %s194 = sphi 0, %s193
      %s208 = sphi 0, %s194
      %s212 = sphi 0, %s212
      %s214 = sphi 0, %s212
      %s215 = sphi 0, %s214
      %s229 = sphi 0, %s215
      %s233 = sphi 0, %s233
      %s235 = sphi 0, %s233
      %s236 = sphi 0, %s235
      %s250 = sphi 0, %s236
      %s254 = sphi 0, %s254
      %s256 = sphi 0, %s254
      %s257 = sphi 0, %s256
      %s271 = sphi 0, %s257
      %s275 = sphi 0, %s275
      %s277 = sphi 0, %s275
      %s278 = sphi 0, %s277
      %s292 = sphi 0, %s278
      %s296 = sphi 0, %s296
      %s298 = sphi 0, %s296
      %s299 = sphi 0, %s298
      %s313 = sphi 0, %s299
      %s317 = sphi 0, %s317
      %s319 = sphi 0, %s317
      %s320 = sphi 0, %s319
      %s334 = sphi 0, %s320
      %s338 = sphi 0, %s338
      %s340 = sphi 0, %s338
      %s341 = sphi 0, %s340
      %s355 = sphi 0, %s341
      %s361 = sphi 0, %s363
      %s364 = sphi 0, %s361
      %s365 = sphi 0, %s364
      %s381 = sphi 0, %s365
      %s387 = sphi 0, %s389
      %s390 = sphi 0, %s387
      %s391 = sphi 0, %s390
      %s407 = sphi 0, %s391
    $region4: #{simple_cnn_mnist_forward.1} parent=1 // loop_header_branch
      %34 = sbr.rel (%p32) target = $region8
    $region5: #{simple_cnn_mnist_forward.1} parent=1 // loop_body
      %s36 = ssub.s32 %s31, 1
      %s37 = ssub.s32 %s31, 2
      %s38 = sadd.s32 %s31, 1
      %s39 = ssub.s32 %s31, %s38
      %p40 = scmp.eq.s32.totalorder %s39, 0
      %s42 = sadd.s32 %s41, 1
      %s43 = scalar_select %p40, %s41, %s42
      %p46 = pneg %p40
      %p47 = scmp.eq.s32.totalorder %s31, 1
      %p48 = por %p46, %p47
      %p49 = scmp.ne.s32.totalorder %s41, %s44
      %p50 = scmp.eq.s32.totalorder %s31, 0
      %p51 = por %p49, %p50
      %p52 = scmp.ne.s32.totalorder %s41, %s44
      %p53 = scmp.eq.s32.totalorder %s36, 1
      %p54 = por %p52, %p53
      %p55 = scmp.ne.s32.totalorder %s44, %s45
      %p56 = scmp.eq.s32.totalorder %s36, 0
      %p57 = por %p55, %p56
      %p58 = scmp.ne.s32.totalorder %s44, %s45
      %p59 = scmp.eq.s32.totalorder %s37, 1
      %p60 = por %p58, %p59
      %p62 = scmp.ne.s32.totalorder %s45, %s61
      %p63 = scmp.eq.s32.totalorder %s37, 0
      %p64 = por %p62, %p63
      %s66 = sadd.s32 %s65, 1
      %p69 = scmp.eq.s32.totalorder %s31, 1
      %p70 = scmp.ne.s32.totalorder %s65, %s67
      %p71 = scmp.eq.s32.totalorder %s31, 0
      %p72 = por %p70, %p71
      %p73 = scmp.ne.s32.totalorder %s65, %s67
      %p74 = scmp.eq.s32.totalorder %s36, 1
      %p75 = por %p73, %p74
      %p76 = scmp.ne.s32.totalorder %s67, %s68
      %p77 = scmp.eq.s32.totalorder %s36, 0
      %p78 = por %p76, %p77
      %p79 = scmp.ne.s32.totalorder %s67, %s68
      %p80 = scmp.eq.s32.totalorder %s37, 1
      %p81 = por %p79, %p80
      %p83 = scmp.ne.s32.totalorder %s68, %s82
      %p84 = scmp.eq.s32.totalorder %s37, 0
      %p85 = por %p83, %p84
      %s87 = sadd.s32 %s86, 1
      %p90 = scmp.eq.s32.totalorder %s31, 1
      %p91 = scmp.ne.s32.totalorder %s86, %s88
      %p92 = scmp.eq.s32.totalorder %s31, 0
      %p93 = por %p91, %p92
      %p94 = scmp.ne.s32.totalorder %s86, %s88
      %p95 = scmp.eq.s32.totalorder %s36, 1
      %p96 = por %p94, %p95
      %p97 = scmp.ne.s32.totalorder %s88, %s89
      %p98 = scmp.eq.s32.totalorder %s36, 0
      %p99 = por %p97, %p98
      %p100 = scmp.ne.s32.totalorder %s88, %s89
      %p101 = scmp.eq.s32.totalorder %s37, 1
      %p102 = por %p100, %p101
      %p104 = scmp.ne.s32.totalorder %s89, %s103
      %p105 = scmp.eq.s32.totalorder %s37, 0
      %p106 = por %p104, %p105
      %s108 = sadd.s32 %s107, 1
      %p111 = scmp.eq.s32.totalorder %s31, 1
      %p112 = scmp.ne.s32.totalorder %s107, %s109
      %p113 = scmp.eq.s32.totalorder %s31, 0
      %p114 = por %p112, %p113
      %p115 = scmp.ne.s32.totalorder %s107, %s109
      %p116 = scmp.eq.s32.totalorder %s36, 1
      %p117 = por %p115, %p116
      %p118 = scmp.ne.s32.totalorder %s109, %s110
      %p119 = scmp.eq.s32.totalorder %s36, 0
      %p120 = por %p118, %p119
      %p121 = scmp.ne.s32.totalorder %s109, %s110
      %p122 = scmp.eq.s32.totalorder %s37, 1
      %p123 = por %p121, %p122
      %p125 = scmp.ne.s32.totalorder %s110, %s124
      %p126 = scmp.eq.s32.totalorder %s37, 0
      %p127 = por %p125, %p126
      %s129 = sadd.s32 %s128, 1
      %p132 = scmp.eq.s32.totalorder %s31, 1
      %p133 = scmp.ne.s32.totalorder %s128, %s130
      %p134 = scmp.eq.s32.totalorder %s31, 0
      %p135 = por %p133, %p134
      %p136 = scmp.ne.s32.totalorder %s128, %s130
      %p137 = scmp.eq.s32.totalorder %s36, 1
      %p138 = por %p136, %p137
      %p139 = scmp.ne.s32.totalorder %s130, %s131
      %p140 = scmp.eq.s32.totalorder %s36, 0
      %p141 = por %p139, %p140
      %p142 = scmp.ne.s32.totalorder %s130, %s131
      %p143 = scmp.eq.s32.totalorder %s37, 1
      %p144 = por %p142, %p143
      %p146 = scmp.ne.s32.totalorder %s131, %s145
      %p147 = scmp.eq.s32.totalorder %s37, 0
      %p148 = por %p146, %p147
      %s150 = sadd.s32 %s149, 1
      %p153 = scmp.eq.s32.totalorder %s31, 1
      %p154 = scmp.ne.s32.totalorder %s149, %s151
      %p155 = scmp.eq.s32.totalorder %s31, 0
      %p156 = por %p154, %p155
      %p157 = scmp.ne.s32.totalorder %s149, %s151
      %p158 = scmp.eq.s32.totalorder %s36, 1
      %p159 = por %p157, %p158
      %p160 = scmp.ne.s32.totalorder %s151, %s152
      %p161 = scmp.eq.s32.totalorder %s36, 0
      %p162 = por %p160, %p161
      %p163 = scmp.ne.s32.totalorder %s151, %s152
      %p164 = scmp.eq.s32.totalorder %s37, 1
      %p165 = por %p163, %p164
      %p167 = scmp.ne.s32.totalorder %s152, %s166
      %p168 = scmp.eq.s32.totalorder %s37, 0
      %p169 = por %p167, %p168
      %s171 = sadd.s32 %s170, 1
      %p174 = scmp.eq.s32.totalorder %s31, 1
      %p175 = scmp.ne.s32.totalorder %s170, %s172
      %p176 = scmp.eq.s32.totalorder %s31, 0
      %p177 = por %p175, %p176
      %p178 = scmp.ne.s32.totalorder %s170, %s172
      %p179 = scmp.eq.s32.totalorder %s36, 1
      %p180 = por %p178, %p179
      %p181 = scmp.ne.s32.totalorder %s172, %s173
      %p182 = scmp.eq.s32.totalorder %s36, 0
      %p183 = por %p181, %p182
      %p184 = scmp.ne.s32.totalorder %s172, %s173
      %p185 = scmp.eq.s32.totalorder %s37, 1
      %p186 = por %p184, %p185
      %p188 = scmp.ne.s32.totalorder %s173, %s187
      %p189 = scmp.eq.s32.totalorder %s37, 0
      %p190 = por %p188, %p189
      %s192 = sadd.s32 %s191, 1
      %p195 = scmp.eq.s32.totalorder %s31, 1
      %p196 = scmp.ne.s32.totalorder %s191, %s193
      %p197 = scmp.eq.s32.totalorder %s31, 0
      %p198 = por %p196, %p197
      %p199 = scmp.ne.s32.totalorder %s191, %s193
      %p200 = scmp.eq.s32.totalorder %s36, 1
      %p201 = por %p199, %p200
      %p202 = scmp.ne.s32.totalorder %s193, %s194
      %p203 = scmp.eq.s32.totalorder %s36, 0
      %p204 = por %p202, %p203
      %p205 = scmp.ne.s32.totalorder %s193, %s194
      %p206 = scmp.eq.s32.totalorder %s37, 1
      %p207 = por %p205, %p206
      %p209 = scmp.ne.s32.totalorder %s194, %s208
      %p210 = scmp.eq.s32.totalorder %s37, 0
      %p211 = por %p209, %p210
      %s213 = sadd.s32 %s212, 1
      %p216 = scmp.eq.s32.totalorder %s31, 1
      %p217 = scmp.ne.s32.totalorder %s212, %s214
      %p218 = scmp.eq.s32.totalorder %s31, 0
      %p219 = por %p217, %p218
      %p220 = scmp.ne.s32.totalorder %s212, %s214
      %p221 = scmp.eq.s32.totalorder %s36, 1
      %p222 = por %p220, %p221
      %p223 = scmp.ne.s32.totalorder %s214, %s215
      %p224 = scmp.eq.s32.totalorder %s36, 0
      %p225 = por %p223, %p224
      %p226 = scmp.ne.s32.totalorder %s214, %s215
      %p227 = scmp.eq.s32.totalorder %s37, 1
      %p228 = por %p226, %p227
      %p230 = scmp.ne.s32.totalorder %s215, %s229
      %p231 = scmp.eq.s32.totalorder %s37, 0
      %p232 = por %p230, %p231
      %s234 = sadd.s32 %s233, 1
      %p237 = scmp.eq.s32.totalorder %s31, 1
      %p238 = scmp.ne.s32.totalorder %s233, %s235
      %p239 = scmp.eq.s32.totalorder %s31, 0
      %p240 = por %p238, %p239
      %p241 = scmp.ne.s32.totalorder %s233, %s235
      %p242 = scmp.eq.s32.totalorder %s36, 1
      %p243 = por %p241, %p242
      %p244 = scmp.ne.s32.totalorder %s235, %s236
      %p245 = scmp.eq.s32.totalorder %s36, 0
      %p246 = por %p244, %p245
      %p247 = scmp.ne.s32.totalorder %s235, %s236
      %p248 = scmp.eq.s32.totalorder %s37, 1
      %p249 = por %p247, %p248
      %p251 = scmp.ne.s32.totalorder %s236, %s250
      %p252 = scmp.eq.s32.totalorder %s37, 0
      %p253 = por %p251, %p252
      %s255 = sadd.s32 %s254, 1
      %p258 = scmp.eq.s32.totalorder %s31, 1
      %p259 = scmp.ne.s32.totalorder %s254, %s256
      %p260 = scmp.eq.s32.totalorder %s31, 0
      %p261 = por %p259, %p260
      %p262 = scmp.ne.s32.totalorder %s254, %s256
      %p263 = scmp.eq.s32.totalorder %s36, 1
      %p264 = por %p262, %p263
      %p265 = scmp.ne.s32.totalorder %s256, %s257
      %p266 = scmp.eq.s32.totalorder %s36, 0
      %p267 = por %p265, %p266
      %p268 = scmp.ne.s32.totalorder %s256, %s257
      %p269 = scmp.eq.s32.totalorder %s37, 1
      %p270 = por %p268, %p269
      %p272 = scmp.ne.s32.totalorder %s257, %s271
      %p273 = scmp.eq.s32.totalorder %s37, 0
      %p274 = por %p272, %p273
      %s276 = sadd.s32 %s275, 1
      %p279 = scmp.eq.s32.totalorder %s31, 1
      %p280 = scmp.ne.s32.totalorder %s275, %s277
      %p281 = scmp.eq.s32.totalorder %s31, 0
      %p282 = por %p280, %p281
      %p283 = scmp.ne.s32.totalorder %s275, %s277
      %p284 = scmp.eq.s32.totalorder %s36, 1
      %p285 = por %p283, %p284
      %p286 = scmp.ne.s32.totalorder %s277, %s278
      %p287 = scmp.eq.s32.totalorder %s36, 0
      %p288 = por %p286, %p287
      %p289 = scmp.ne.s32.totalorder %s277, %s278
      %p290 = scmp.eq.s32.totalorder %s37, 1
      %p291 = por %p289, %p290
      %p293 = scmp.ne.s32.totalorder %s278, %s292
      %p294 = scmp.eq.s32.totalorder %s37, 0
      %p295 = por %p293, %p294
      %s297 = sadd.s32 %s296, 1
      %p300 = scmp.eq.s32.totalorder %s31, 1
      %p301 = scmp.ne.s32.totalorder %s296, %s298
      %p302 = scmp.eq.s32.totalorder %s31, 0
      %p303 = por %p301, %p302
      %p304 = scmp.ne.s32.totalorder %s296, %s298
      %p305 = scmp.eq.s32.totalorder %s36, 1
      %p306 = por %p304, %p305
      %p307 = scmp.ne.s32.totalorder %s298, %s299
      %p308 = scmp.eq.s32.totalorder %s36, 0
      %p309 = por %p307, %p308
      %p310 = scmp.ne.s32.totalorder %s298, %s299
      %p311 = scmp.eq.s32.totalorder %s37, 1
      %p312 = por %p310, %p311
      %p314 = scmp.ne.s32.totalorder %s299, %s313
      %p315 = scmp.eq.s32.totalorder %s37, 0
      %p316 = por %p314, %p315
      %s318 = sadd.s32 %s317, 1
      %p321 = scmp.eq.s32.totalorder %s31, 1
      %p322 = scmp.ne.s32.totalorder %s317, %s319
      %p323 = scmp.eq.s32.totalorder %s31, 0
      %p324 = por %p322, %p323
      %p325 = scmp.ne.s32.totalorder %s317, %s319
      %p326 = scmp.eq.s32.totalorder %s36, 1
      %p327 = por %p325, %p326
      %p328 = scmp.ne.s32.totalorder %s319, %s320
      %p329 = scmp.eq.s32.totalorder %s36, 0
      %p330 = por %p328, %p329
      %p331 = scmp.ne.s32.totalorder %s319, %s320
      %p332 = scmp.eq.s32.totalorder %s37, 1
      %p333 = por %p331, %p332
      %p335 = scmp.ne.s32.totalorder %s320, %s334
      %p336 = scmp.eq.s32.totalorder %s37, 0
      %p337 = por %p335, %p336
      %s339 = sadd.s32 %s338, 1
      %p342 = scmp.eq.s32.totalorder %s31, 1
      %p343 = scmp.ne.s32.totalorder %s338, %s340
      %p344 = scmp.eq.s32.totalorder %s31, 0
      %p345 = por %p343, %p344
      %p346 = scmp.ne.s32.totalorder %s338, %s340
      %p347 = scmp.eq.s32.totalorder %s36, 1
      %p348 = por %p346, %p347
      %p349 = scmp.ne.s32.totalorder %s340, %s341
      %p350 = scmp.eq.s32.totalorder %s36, 0
      %p351 = por %p349, %p350
      %p352 = scmp.ne.s32.totalorder %s340, %s341
      %p353 = scmp.eq.s32.totalorder %s37, 1
      %p354 = por %p352, %p353
      %p356 = scmp.ne.s32.totalorder %s341, %s355
      %p357 = scmp.eq.s32.totalorder %s37, 0
      %p358 = por %p356, %p357
      %s359 = ssub.s32 %s31, %s38
      %p360 = scmp.eq.s32.totalorder %s359, 0
      %s362 = sadd.s32 %s361, 1
      %s363 = scalar_select %p360, %s361, %s362
      %p366 = pneg %p360
      %p367 = scmp.eq.s32.totalorder %s31, 1
      %p368 = por %p366, %p367
      %p369 = scmp.ne.s32.totalorder %s361, %s364
      %p370 = scmp.eq.s32.totalorder %s31, 0
      %p371 = por %p369, %p370
      %p372 = scmp.ne.s32.totalorder %s361, %s364
      %p373 = scmp.eq.s32.totalorder %s36, 1
      %p374 = por %p372, %p373
      %p375 = scmp.ne.s32.totalorder %s364, %s365
      %p376 = scmp.eq.s32.totalorder %s36, 0
      %p377 = por %p375, %p376
      %p378 = scmp.ne.s32.totalorder %s364, %s365
      %p379 = scmp.eq.s32.totalorder %s37, 1
      %p380 = por %p378, %p379
      %p382 = scmp.ne.s32.totalorder %s365, %s381
      %p383 = scmp.eq.s32.totalorder %s37, 0
      %p384 = por %p382, %p383
      %s385 = ssub.s32 %s31, %s38
      %p386 = scmp.eq.s32.totalorder %s385, 0
      %s388 = sadd.s32 %s387, 1
      %s389 = scalar_select %p386, %s387, %s388
      %p392 = pneg %p386
      %p393 = scmp.eq.s32.totalorder %s31, 1
      %p394 = por %p392, %p393
      %p395 = scmp.ne.s32.totalorder %s387, %s390
      %p396 = scmp.eq.s32.totalorder %s31, 0
      %p397 = por %p395, %p396
      %p398 = scmp.ne.s32.totalorder %s387, %s390
      %p399 = scmp.eq.s32.totalorder %s36, 1
      %p400 = por %p398, %p399
      %p401 = scmp.ne.s32.totalorder %s390, %s391
      %p402 = scmp.eq.s32.totalorder %s36, 0
      %p403 = por %p401, %p402
      %p404 = scmp.ne.s32.totalorder %s390, %s391
      %p405 = scmp.eq.s32.totalorder %s37, 1
      %p406 = por %p404, %p405
      %p408 = scmp.ne.s32.totalorder %s391, %s407
      %p409 = scmp.eq.s32.totalorder %s37, 0
      %p410 = por %p408, %p409
      %p411 = scmp.le.s32.totalorder 1, %s31
      %p412 = scmp.lt.s32.totalorder %s31, 3
      %p413 = pnand %p411, %p412
      %p414 = pneg %p413
      // Predicated region
      $region9: #{simple_cnn_mnist_forward.1} parent=5 // pred_check
        _
      $region10: #{simple_cnn_mnist_forward.1} parent=5 // pred_check_branch
        %416 = sbr.rel (%p413) target = $region12
      $region11: #{simple_cnn_mnist_forward.1} parent=5 // pred_region
        %s417 = ssub.s32 %s31, 1
        // Predicated region
        $region13: #{simple_cnn_mnist_forward.1} parent=11 // pred_check
          %p418 = pneg %p78
        $region14: #{simple_cnn_mnist_forward.1} parent=11 // pred_check_branch
          %420 = sbr.rel (%p418) target = $region16
        $region15: #{simple_cnn_mnist_forward.1} parent=11 // pred_region
          %s422 = ssub.s32 19200, 19200
          %423 = vsyncadd [#allocation3], %s422
          %s424 = sshll.u32 [#allocation2], 4
          %s425 = int_to_ptr.vmem [resolvable:$true] %s424
          %430 = dma.hbm_to_vmem [thread:$0]  %s1, 19200, %s425, [#allocation3], 256, 256, 16
        $region16: #{simple_cnn_mnist_forward.1} parent=11 // pred_fallthru
          _
        // Predicated region
        $region17: #{simple_cnn_mnist_forward.1} parent=11 // pred_check
          %p431 = pneg %p99
        $region18: #{simple_cnn_mnist_forward.1} parent=11 // pred_check_branch
          %433 = sbr.rel (%p431) target = $region20
        $region19: #{simple_cnn_mnist_forward.1} parent=11 // pred_region
          _
        $region20: #{simple_cnn_mnist_forward.1} parent=11 // pred_fallthru
          _
        // Predicated region
        $region21: #{simple_cnn_mnist_forward.1} parent=11 // pred_check
          %p434 = pneg %p120
        $region22: #{simple_cnn_mnist_forward.1} parent=11 // pred_check_branch
          %436 = sbr.rel (%p434) target = $region24
        $region23: #{simple_cnn_mnist_forward.1} parent=11 // pred_region
          _
        $region24: #{simple_cnn_mnist_forward.1} parent=11 // pred_fallthru
          _
        // Predicated region
        $region25: #{simple_cnn_mnist_forward.1} parent=11 // pred_check
          %p437 = pneg %p141
        $region26: #{simple_cnn_mnist_forward.1} parent=11 // pred_check_branch
          %439 = sbr.rel (%p437) target = $region28
        $region27: #{simple_cnn_mnist_forward.1} parent=11 // pred_region
          _
        $region28: #{simple_cnn_mnist_forward.1} parent=11 // pred_fallthru
          _
        // Predicated region
        $region29: #{simple_cnn_mnist_forward.1} parent=11 // pred_check
          %p440 = pneg %p162
        $region30: #{simple_cnn_mnist_forward.1} parent=11 // pred_check_branch
          %442 = sbr.rel (%p440) target = $region32
        $region31: #{simple_cnn_mnist_forward.1} parent=11 // pred_region
          %s444 = ssub.s32 19200, 19200
          %445 = vsyncadd [#allocation6], %s444
          %s446 = sshll.u32 [#allocation5], 4
          %s447 = int_to_ptr.vmem [resolvable:$true] %s446
          %452 = dma.hbm_to_vmem [thread:$0]  %s5, 19200, %s447, [#allocation6], 128, 128, 8
        $region32: #{simple_cnn_mnist_forward.1} parent=11 // pred_fallthru
          _
        // Predicated region
        $region33: #{simple_cnn_mnist_forward.1} parent=11 // pred_check
          %p453 = pneg %p183
        $region34: #{simple_cnn_mnist_forward.1} parent=11 // pred_check_branch
          %455 = sbr.rel (%p453) target = $region36
        $region35: #{simple_cnn_mnist_forward.1} parent=11 // pred_region
          _
        $region36: #{simple_cnn_mnist_forward.1} parent=11 // pred_fallthru
          _
        // Predicated region
        $region37: #{simple_cnn_mnist_forward.1} parent=11 // pred_check
          %p456 = pneg %p204
        $region38: #{simple_cnn_mnist_forward.1} parent=11 // pred_check_branch
          %458 = sbr.rel (%p456) target = $region40
        $region39: #{simple_cnn_mnist_forward.1} parent=11 // pred_region
          _
        $region40: #{simple_cnn_mnist_forward.1} parent=11 // pred_fallthru
          _
        // Predicated region
        $region41: #{simple_cnn_mnist_forward.1} parent=11 // pred_check
          %p459 = pneg %p225
        $region42: #{simple_cnn_mnist_forward.1} parent=11 // pred_check_branch
          %461 = sbr.rel (%p459) target = $region44
        $region43: #{simple_cnn_mnist_forward.1} parent=11 // pred_region
          _
        $region44: #{simple_cnn_mnist_forward.1} parent=11 // pred_fallthru
          _
        // Predicated region
        $region45: #{simple_cnn_mnist_forward.1} parent=11 // pred_check
          %p462 = pneg %p246
        $region46: #{simple_cnn_mnist_forward.1} parent=11 // pred_check_branch
          %464 = sbr.rel (%p462) target = $region48
        $region47: #{simple_cnn_mnist_forward.1} parent=11 // pred_region
          _
        $region48: #{simple_cnn_mnist_forward.1} parent=11 // pred_fallthru
          _
        // Predicated region
        $region49: #{simple_cnn_mnist_forward.1} parent=11 // pred_check
          %p465 = pneg %p267
        $region50: #{simple_cnn_mnist_forward.1} parent=11 // pred_check_branch
          %467 = sbr.rel (%p465) target = $region52
        $region51: #{simple_cnn_mnist_forward.1} parent=11 // pred_region
          _
        $region52: #{simple_cnn_mnist_forward.1} parent=11 // pred_fallthru
          _
        // Predicated region
        $region53: #{simple_cnn_mnist_forward.1} parent=11 // pred_check
          %p468 = pneg %p288
        $region54: #{simple_cnn_mnist_forward.1} parent=11 // pred_check_branch
          %470 = sbr.rel (%p468) target = $region56
        $region55: #{simple_cnn_mnist_forward.1} parent=11 // pred_region
          _
        $region56: #{simple_cnn_mnist_forward.1} parent=11 // pred_fallthru
          _
        // Predicated region
        $region57: #{simple_cnn_mnist_forward.1} parent=11 // pred_check
          %p471 = pneg %p309
        $region58: #{simple_cnn_mnist_forward.1} parent=11 // pred_check_branch
          %473 = sbr.rel (%p471) target = $region60
        $region59: #{simple_cnn_mnist_forward.1} parent=11 // pred_region
          _
        $region60: #{simple_cnn_mnist_forward.1} parent=11 // pred_fallthru
          _
        // Predicated region
        $region61: #{simple_cnn_mnist_forward.1} parent=11 // pred_check
          %p474 = pneg %p330
        $region62: #{simple_cnn_mnist_forward.1} parent=11 // pred_check_branch
          %476 = sbr.rel (%p474) target = $region64
        $region63: #{simple_cnn_mnist_forward.1} parent=11 // pred_region
          _
        $region64: #{simple_cnn_mnist_forward.1} parent=11 // pred_fallthru
          _
        // Predicated region
        $region65: #{simple_cnn_mnist_forward.1} parent=11 // pred_check
          %p477 = pneg %p351
        $region66: #{simple_cnn_mnist_forward.1} parent=11 // pred_check_branch
          %479 = sbr.rel (%p477) target = $region68
        $region67: #{simple_cnn_mnist_forward.1} parent=11 // pred_region
          _
        $region68: #{simple_cnn_mnist_forward.1} parent=11 // pred_fallthru
          _
      $region12: #{simple_cnn_mnist_forward.1} parent=5 // pred_fallthru
        _
      %p480 = scmp.lt.s32.totalorder %s31, 2
      // Predicated region
      $region69: #{simple_cnn_mnist_forward.1} parent=5 // pred_check
        %p481 = pneg %p480
      $region70: #{simple_cnn_mnist_forward.1} parent=5 // pred_check_branch
        %483 = sbr.rel (%p481) target = $region72
      $region71: #{simple_cnn_mnist_forward.1} parent=5 // pred_region
        // Predicated region
        $region73: #{simple_cnn_mnist_forward.1} parent=71 // pred_check
          %p484 = pneg %p51
        $region74: #{simple_cnn_mnist_forward.1} parent=71 // pred_check_branch
          %486 = sbr.rel (%p484) target = $region76
        $region75: #{simple_cnn_mnist_forward.1} parent=71 // pred_region
          %p487 = scmp.lt.s32.totalorder %s31, 1
          %s488 = scalar_select %p487, %s31, 1
          %s489 = smul.addr %s488, 4
          %s490 = smul.addr %s489, 8
          %s491 = scalar_lea.vmem %s0, %s490
        $region76: #{simple_cnn_mnist_forward.1} parent=71 // pred_fallthru
          _
      $region72: #{simple_cnn_mnist_forward.1} parent=5 // pred_fallthru
        _
      %p492 = scmp.le.s32.totalorder 1, %s31
      %p493 = scmp.lt.s32.totalorder %s31, 3
      %p494 = pnand %p492, %p493
      %p495 = pneg %p494
      // Predicated region
      $region77: #{simple_cnn_mnist_forward.1} parent=5 // pred_check
        _
      $region78: #{simple_cnn_mnist_forward.1} parent=5 // pred_check_branch
        %497 = sbr.rel (%p494) target = $region80
      $region79: #{simple_cnn_mnist_forward.1} parent=5 // pred_region
        %s498 = ssub.s32 %s31, 1
        // Predicated region
        $region81: #{simple_cnn_mnist_forward.1} parent=79 // pred_check
          %p499 = pneg %p78
        $region82: #{simple_cnn_mnist_forward.1} parent=79 // pred_check_branch
          %501 = sbr.rel (%p499) target = $region84
        $region83: #{simple_cnn_mnist_forward.1} parent=79 // pred_region
          %502 = dma.done [#allocation3], 19200
        $region84: #{simple_cnn_mnist_forward.1} parent=79 // pred_fallthru
          _
        // Predicated region
        $region85: #{simple_cnn_mnist_forward.1} parent=79 // pred_check
          %p503 = pneg %p162
        $region86: #{simple_cnn_mnist_forward.1} parent=79 // pred_check_branch
          %505 = sbr.rel (%p503) target = $region88
        $region87: #{simple_cnn_mnist_forward.1} parent=79 // pred_region
          %506 = dma.done [#allocation6], 19200
        $region88: #{simple_cnn_mnist_forward.1} parent=79 // pred_fallthru
          _
        %p507 = scmp.lt.s32.totalorder %s36, 1
        %s508 = scalar_select %p507, %s36, 1
        %s509 = smul.addr %s508, 4
        %s510 = smul.addr %s509, 8
        %s511 = scalar_lea.vmem %s0, %s510
        %p512 = pneg %p57
        %p513 = pneg %p54
        %p514 = pneg %p78
        %p515 = pneg %p75
        %p516 = pneg %p99
        %p517 = pneg %p96
        %p518 = pneg %p120
        %p519 = pneg %p117
        %p520 = pneg %p141
        %p521 = pneg %p138
        %p522 = pneg %p162
        %p523 = pneg %p159
        %p524 = pneg %p183
        %p525 = pneg %p180
        %p526 = pneg %p204
        %p527 = pneg %p201
        %p528 = pneg %p225
        %p529 = pneg %p222
        %p530 = pneg %p246
        %p531 = pneg %p243
        %p532 = pneg %p267
        %p533 = pneg %p264
        %p534 = pneg %p288
        %p535 = pneg %p285
        %p536 = pneg %p309
        %p537 = pneg %p306
        %p538 = pneg %p330
        %p539 = pneg %p327
        %p540 = pneg %p351
        %p541 = pneg %p348
        %p542 = pneg %p377
        %p543 = pneg %p374
        %s544 = sand.u32 %s364, 1
        %s545 = scalar_lea.sflag [#allocation4], %s544
        %s546 = sand.u32 %s364, 1
        %s547 = scalar_lea.vmem [#allocation7], %s546
        %p548 = pneg %p403
        %p549 = pneg %p400
        %s550 = sand.u32 %s390, 1
        %s551 = scalar_lea.sflag [#allocation9], %s550
        %s552 = sand.u32 %s390, 1
        %s553 = scalar_lea.vmem [#allocation8], %s552
        %p554 = scmp.lt.s32.totalorder %s36, 1
        %s555 = scalar_select %p554, %s36, 1
        %s556 = smul.addr %s555, 4
        %s557 = smul.addr %s556, 8
        %s558 = scalar_lea.vmem %s0, %s557
        %v559 = vld [vmem:[%s558] sm:$0xff]
        %v560 = vld [vmem:[%s558 + $0x8] sm:$0xff]
        %v561 = vld [vmem:[%s558 + $0x10] sm:$0xff]
        %v562 = vld [vmem:[%s558 + $0x18] sm:$0xf]
        %v563 = vld [vmem:[#allocation2] sm:$0xff]
        %v564 = vld [vmem:[#allocation2 + $0x8] sm:$0xff]
        %v565 = vld [vmem:[#allocation2 + $0x10] sm:$0xff]
        %v566 = vld [vmem:[#allocation2 + $0x18] sm:$0xff]
        %v567 = vld [vmem:[#allocation2 + $0x20] sm:$0xff]
        %v568 = vld [vmem:[#allocation2 + $0x28] sm:$0xff]
        %s569 = scalar_lea.vmem [#allocation2], 48
        %v570 = vld [vmem:[%s569] sm:$0xff]
        %v571 = vld [vmem:[%s569 + $0x8] sm:$0xff]
        %v572 = vld [vmem:[%s569 + $0x10] sm:$0xff]
        %v573 = vld [vmem:[%s569 + $0x18] sm:$0xff]
        %v574 = vld [vmem:[%s569 + $0x20] sm:$0xff]
        %v575 = vld [vmem:[%s569 + $0x28] sm:$0xff]
        %579 = vrot.lane.b32.xlu0 %v559, 127
        %v580 = vpop.permute.xlu0 %579
        %581 = vrot.lane.b32.xlu0 %v560, 127
        %v582 = vpop.permute.xlu0 %581
        %583 = vrot.lane.b32.xlu0 %v561, 127
        %v584 = vpop.permute.xlu0 %583
        %vm585 = vcmask 195584
        %v586 = vsel %vm585, %v580, 0
        %v588 = vsel %vm585, %v582, 0
        %v590 = vsel %vm585, %v584, 0
        %592 = vmatprep.subr.mxu0 %v571
        %593 = vmatpush1.msra.mxu0 %v570
        %594 = vmatprep.subr.mxu0 %v573
        %595 = vmatpush1.msra.mxu0 %v572
        %596 = vmatprep.subr.mxu0 %v575
        %597 = vmatpush1.msra.mxu0 %v574
        %598 = vmatprep.subr.mxu0 0.0
        %599 = vmatpush1.msra.mxu0 0.0
        %600 = vmatprep.subr.mxu0 0.0
        %601 = vmatpush1.msra.mxu0 0.0
        %602 = vmatprep.subr.mxu0 0.0
        %603 = vmatpush1.msra.mxu0 0.0
        %604 = vmatprep.subr.mxu0 0.0
        %605 = vmatpush1.msra.mxu0 0.0
        %606 = vmatprep.subr.mxu0 0.0
        %607 = vmatpush1.msra.mxu0 0.0
        %608 = vmatprep.subr.mxu0 0.0
        %609 = vmatpush1.msra.mxu0 0.0
        %610 = vmatprep.subr.mxu0 0.0
        %611 = vmatpush1.msra.mxu0 0.0
        %612 = vmatprep.subr.mxu0 0.0
        %613 = vmatpush1.msra.mxu0 0.0
        %614 = vmatprep.subr.mxu0 0.0
        %615 = vmatpush1.msra.mxu0 0.0
        %616 = vmatprep.subr.mxu0 0.0
        %617 = vmatpush1.msra.mxu0 0.0
        %618 = vmatprep.subr.mxu0 0.0
        %619 = vmatpush1.msra.mxu0 0.0
        %620 = vmatprep.subr.mxu0 0.0
        %621 = vmatpush1.msra.mxu0 0.0
        %622 = vmatprep.subr.mxu0 0.0
        %623 = vmatpush1.msra.mxu0 0.0
        %624 = vmatprep.subr.mxu0 0.0
        %625 = vmatpush1.msra.mxu0 0.0
        %626 = vmatprep.subr.mxu0 0.0
        %627 = vmatpush1.msra.mxu0 0.0
        %628 = vmatprep.subr.mxu0 0.0
        %629 = vmatpush1.msra.mxu0 0.0
        %630 = vmatprep.subr.mxu0 0.0
        %631 = vmatpush1.msra.mxu0 0.0
        %632 = vmatprep.subr.mxu0 0.0
        %633 = vmatpush1.msra.mxu0 0.0
        %634 = vmatprep.subr.mxu0 0.0
        %635 = vmatpush1.msra.mxu0 0.0
        %636 = vmatprep.subr.mxu0 0.0
        %637 = vmatpush1.msra.mxu0 0.0
        %638 = vmatprep.subr.mxu0 0.0
        %639 = vmatpush1.msra.mxu0 0.0
        %640 = vmatprep.subr.mxu0 0.0
        %641 = vmatpush1.msra.mxu0 0.0
        %642 = vmatprep.subr.mxu0 0.0
        %643 = vmatpush1.msra.mxu0 0.0
        %644 = vmatprep.subr.mxu0 0.0
        %645 = vmatpush1.msra.mxu0 0.0
        %646 = vmatprep.subr.mxu0 0.0
        %647 = vmatpush1.msra.mxu0 0.0
        %648 = vmatprep.subr.mxu0 0.0
        %649 = vmatpush1.msra.mxu0 0.0
        %650 = vmatprep.subr.mxu0 0.0
        %651 = vmatpush1.msra.mxu0 0.0
        %652 = vmatprep.subr.mxu0 0.0
        %653 = vmatpush1.msra.mxu0 0.0
        %654 = vmatprep.subr.mxu0 0.0
        %655 = vmatpush1.msra.mxu0 0.0
        %656 = vmatprep.mubr.f32.mxu0 0.0
        %657 = vmatmul.mubr.f32.gmra.mrb[0].mxu0 %v586
        %v658 = vpop.f32.mrb[0].mxu0
        %v659 = vadd.f32 0.0, %v658
        %v660 = vpop.f32.mrb[0].mxu0
        %v661 = vadd.f32 0.0, %v660
        %662 = vmatprep.mubr.f32.mxu0 0.0
        %663 = vmatmul.mubr.f32.gmra.mrb[0].mxu0 %v588
        %v664 = vpop.f32.mrb[0].mxu0
        %v665 = vadd.f32 0.0, %v664
        %v666 = vpop.f32.mrb[0].mxu0
        %v667 = vadd.f32 0.0, %v666
        %668 = vmatprep.mubr.f32.mxu0 0.0
        %669 = vmatmul.mubr.f32.gmra.mrb[0].mxu0 %v590
        %v670 = vpop.f32.mrb[0].mxu0
        %v671 = vadd.f32 0.0, %v670
        %v672 = vpop.f32.mrb[0].mxu0
        %v673 = vadd.f32 0.0, %v672
        %674 = vdwg.mxu0
        %v675 = vsel %vm585, %v559, 0
        %v677 = vsel %vm585, %v560, 0
        %v679 = vsel %vm585, %v561, 0
        %681 = vmatprep.subr.mxu0 %v564
        %682 = vmatpush1.msra.mxu0 %v563
        %683 = vmatprep.subr.mxu0 %v566
        %684 = vmatpush1.msra.mxu0 %v565
        %685 = vmatprep.subr.mxu0 %v568
        %686 = vmatpush1.msra.mxu0 %v567
        %687 = vmatprep.subr.mxu0 0.0
        %688 = vmatpush1.msra.mxu0 0.0
        %689 = vmatprep.subr.mxu0 0.0
        %690 = vmatpush1.msra.mxu0 0.0
        %691 = vmatprep.subr.mxu0 0.0
        %692 = vmatpush1.msra.mxu0 0.0
        %693 = vmatprep.subr.mxu0 0.0
        %694 = vmatpush1.msra.mxu0 0.0
        %695 = vmatprep.subr.mxu0 0.0
        %696 = vmatpush1.msra.mxu0 0.0
        %697 = vmatprep.subr.mxu0 0.0
        %698 = vmatpush1.msra.mxu0 0.0
        %699 = vmatprep.subr.mxu0 0.0
        %700 = vmatpush1.msra.mxu0 0.0
        %701 = vmatprep.subr.mxu0 0.0
        %702 = vmatpush1.msra.mxu0 0.0
        %703 = vmatprep.subr.mxu0 0.0
        %704 = vmatpush1.msra.mxu0 0.0
        %705 = vmatprep.subr.mxu0 0.0
        %706 = vmatpush1.msra.mxu0 0.0
        %707 = vmatprep.subr.mxu0 0.0
        %708 = vmatpush1.msra.mxu0 0.0
        %709 = vmatprep.subr.mxu0 0.0
        %710 = vmatpush1.msra.mxu0 0.0
        %711 = vmatprep.subr.mxu0 0.0
        %712 = vmatpush1.msra.mxu0 0.0
        %713 = vmatprep.subr.mxu0 0.0
        %714 = vmatpush1.msra.mxu0 0.0
        %715 = vmatprep.subr.mxu0 0.0
        %716 = vmatpush1.msra.mxu0 0.0
        %717 = vmatprep.subr.mxu0 0.0
        %718 = vmatpush1.msra.mxu0 0.0
        %719 = vmatprep.subr.mxu0 0.0
        %720 = vmatpush1.msra.mxu0 0.0
        %721 = vmatprep.subr.mxu0 0.0
        %722 = vmatpush1.msra.mxu0 0.0
        %723 = vmatprep.subr.mxu0 0.0
        %724 = vmatpush1.msra.mxu0 0.0
        %725 = vmatprep.subr.mxu0 0.0
        %726 = vmatpush1.msra.mxu0 0.0
        %727 = vmatprep.subr.mxu0 0.0
        %728 = vmatpush1.msra.mxu0 0.0
        %729 = vmatprep.subr.mxu0 0.0
        %730 = vmatpush1.msra.mxu0 0.0
        %731 = vmatprep.subr.mxu0 0.0
        %732 = vmatpush1.msra.mxu0 0.0
        %733 = vmatprep.subr.mxu0 0.0
        %734 = vmatpush1.msra.mxu0 0.0
        %735 = vmatprep.subr.mxu0 0.0
        %736 = vmatpush1.msra.mxu0 0.0
        %737 = vmatprep.subr.mxu0 0.0
        %738 = vmatpush1.msra.mxu0 0.0
        %739 = vmatprep.subr.mxu0 0.0
        %740 = vmatpush1.msra.mxu0 0.0
        %741 = vmatprep.subr.mxu0 0.0
        %742 = vmatpush1.msra.mxu0 0.0
        %743 = vmatprep.subr.mxu0 0.0
        %744 = vmatpush1.msra.mxu0 0.0
        %745 = vmatprep.mubr.f32.mxu0 0.0
        %746 = vmatmul.mubr.f32.gmra.mrb[0].mxu0 %v675
        %v747 = vpop.f32.mrb[0].mxu0
        %v748 = vadd.f32 %v659, %v747
        %v749 = vpop.f32.mrb[0].mxu0
        %v750 = vadd.f32 %v661, %v749
        %751 = vmatprep.mubr.f32.mxu0 0.0
        %752 = vmatmul.mubr.f32.gmra.mrb[0].mxu0 %v677
        %v753 = vpop.f32.mrb[0].mxu0
        %v754 = vadd.f32 %v665, %v753
        %v755 = vpop.f32.mrb[0].mxu0
        %v756 = vadd.f32 %v667, %v755
        %757 = vmatprep.mubr.f32.mxu0 0.0
        %758 = vmatmul.mubr.f32.gmra.mrb[0].mxu0 %v679
        %v759 = vpop.f32.mrb[0].mxu0
        %v760 = vadd.f32 %v671, %v759
        %v761 = vpop.f32.mrb[0].mxu0
        %v762 = vadd.f32 %v673, %v761
        %763 = vdwg.mxu0
        %s764 = scalar_lea.vmem [#allocation2], 96
        %v765 = vld [vmem:[%s764] sm:$0xff]
        %v766 = vld [vmem:[%s764 + $0x8] sm:$0xff]
        %v767 = vld [vmem:[%s764 + $0x10] sm:$0xff]
        %v768 = vld [vmem:[%s764 + $0x18] sm:$0xff]
        %v769 = vld [vmem:[%s764 + $0x20] sm:$0xff]
        %v770 = vld [vmem:[%s764 + $0x28] sm:$0xff]
        %771 = vrot.lane.b32.xlu0 %v559, 126
        %v772 = vpop.permute.xlu0 %771
        %773 = vrot.lane.b32.xlu0 %v560, 126
        %v774 = vpop.permute.xlu0 %773
        %775 = vrot.lane.b32.xlu0 %v561, 126
        %v776 = vpop.permute.xlu0 %775
        %v777 = vsel %vm585, %v772, 0
        %v779 = vsel %vm585, %v774, 0
        %v781 = vsel %vm585, %v776, 0
        %783 = vmatprep.subr.mxu0 %v766
        %784 = vmatpush1.msra.mxu0 %v765
        %785 = vmatprep.subr.mxu0 %v768
        %786 = vmatpush1.msra.mxu0 %v767
        %787 = vmatprep.subr.mxu0 %v770
        %788 = vmatpush1.msra.mxu0 %v769
        %789 = vmatprep.subr.mxu0 0.0
        %790 = vmatpush1.msra.mxu0 0.0
        %791 = vmatprep.subr.mxu0 0.0
        %792 = vmatpush1.msra.mxu0 0.0
        %793 = vmatprep.subr.mxu0 0.0
        %794 = vmatpush1.msra.mxu0 0.0
        %795 = vmatprep.subr.mxu0 0.0
        %796 = vmatpush1.msra.mxu0 0.0
        %797 = vmatprep.subr.mxu0 0.0
        %798 = vmatpush1.msra.mxu0 0.0
        %799 = vmatprep.subr.mxu0 0.0
        %800 = vmatpush1.msra.mxu0 0.0
        %801 = vmatprep.subr.mxu0 0.0
        %802 = vmatpush1.msra.mxu0 0.0
        %803 = vmatprep.subr.mxu0 0.0
        %804 = vmatpush1.msra.mxu0 0.0
        %805 = vmatprep.subr.mxu0 0.0
        %806 = vmatpush1.msra.mxu0 0.0
        %807 = vmatprep.subr.mxu0 0.0
        %808 = vmatpush1.msra.mxu0 0.0
        %809 = vmatprep.subr.mxu0 0.0
        %810 = vmatpush1.msra.mxu0 0.0
        %811 = vmatprep.subr.mxu0 0.0
        %812 = vmatpush1.msra.mxu0 0.0
        %813 = vmatprep.subr.mxu0 0.0
        %814 = vmatpush1.msra.mxu0 0.0
        %815 = vmatprep.subr.mxu0 0.0
        %816 = vmatpush1.msra.mxu0 0.0
        %817 = vmatprep.subr.mxu0 0.0
        %818 = vmatpush1.msra.mxu0 0.0
        %819 = vmatprep.subr.mxu0 0.0
        %820 = vmatpush1.msra.mxu0 0.0
        %821 = vmatprep.subr.mxu0 0.0
        %822 = vmatpush1.msra.mxu0 0.0
        %823 = vmatprep.subr.mxu0 0.0
        %824 = vmatpush1.msra.mxu0 0.0
        %825 = vmatprep.subr.mxu0 0.0
        %826 = vmatpush1.msra.mxu0 0.0
        %827 = vmatprep.subr.mxu0 0.0
        %828 = vmatpush1.msra.mxu0 0.0
        %829 = vmatprep.subr.mxu0 0.0
        %830 = vmatpush1.msra.mxu0 0.0
        %831 = vmatprep.subr.mxu0 0.0
        %832 = vmatpush1.msra.mxu0 0.0
        %833 = vmatprep.subr.mxu0 0.0
        %834 = vmatpush1.msra.mxu0 0.0
        %835 = vmatprep.subr.mxu0 0.0
        %836 = vmatpush1.msra.mxu0 0.0
        %837 = vmatprep.subr.mxu0 0.0
        %838 = vmatpush1.msra.mxu0 0.0
        %839 = vmatprep.subr.mxu0 0.0
        %840 = vmatpush1.msra.mxu0 0.0
        %841 = vmatprep.subr.mxu0 0.0
        %842 = vmatpush1.msra.mxu0 0.0
        %843 = vmatprep.subr.mxu0 0.0
        %844 = vmatpush1.msra.mxu0 0.0
        %845 = vmatprep.subr.mxu0 0.0
        %846 = vmatpush1.msra.mxu0 0.0
        %847 = vmatprep.mubr.f32.mxu0 0.0
        %848 = vmatmul.mubr.f32.gmra.mrb[0].mxu0 %v777
        %v849 = vpop.f32.mrb[0].mxu0
        %v850 = vadd.f32 0.0, %v849
        %v851 = vpop.f32.mrb[0].mxu0
        %v852 = vadd.f32 0.0, %v851
        %853 = vmatprep.mubr.f32.mxu0 0.0
        %854 = vmatmul.mubr.f32.gmra.mrb[0].mxu0 %v779
        %v855 = vpop.f32.mrb[0].mxu0
        %v856 = vadd.f32 0.0, %v855
        %v857 = vpop.f32.mrb[0].mxu0
        %v858 = vadd.f32 0.0, %v857
        %859 = vmatprep.mubr.f32.mxu0 0.0
        %860 = vmatmul.mubr.f32.gmra.mrb[0].mxu0 %v781
        %v861 = vpop.f32.mrb[0].mxu0
        %v862 = vadd.f32 0.0, %v861
        %v863 = vpop.f32.mrb[0].mxu0
        %v864 = vadd.f32 0.0, %v863
        %865 = vdwg.mxu0
        %v866 = vadd.f32 %v748, %v850
        %v867 = vadd.f32 %v750, %v852
        %v868 = vadd.f32 %v754, %v856
        %v869 = vadd.f32 %v756, %v858
        %v870 = vadd.f32 %v760, %v862
        %v871 = vadd.f32 %v762, %v864
        %s872 = scalar_lea.vmem [#allocation2], 144
        %v873 = vld [vmem:[%s872] sm:$0xff]
        %v874 = vld [vmem:[%s872 + $0x8] sm:$0xff]
        %v875 = vld [vmem:[%s872 + $0x10] sm:$0xff]
        %v876 = vld [vmem:[%s872 + $0x18] sm:$0xff]
        %v877 = vld [vmem:[%s872 + $0x20] sm:$0xff]
        %v878 = vld [vmem:[%s872 + $0x28] sm:$0xff]
        %879 = vrot.lane.b32.xlu0 %v559, 125
        %v880 = vpop.permute.xlu0 %879
        %881 = vrot.lane.b32.xlu0 %v560, 125
        %v882 = vpop.permute.xlu0 %881
        %883 = vrot.lane.b32.xlu0 %v561, 125
        %v884 = vpop.permute.xlu0 %883
        %v885 = vsel %vm585, %v880, 0
        %v887 = vsel %vm585, %v882, 0
        %v889 = vsel %vm585, %v884, 0
        %891 = vmatprep.subr.mxu0 %v874
        %892 = vmatpush1.msra.mxu0 %v873
        %893 = vmatprep.subr.mxu0 %v876
        %894 = vmatpush1.msra.mxu0 %v875
        %895 = vmatprep.subr.mxu0 %v878
        %896 = vmatpush1.msra.mxu0 %v877
        %897 = vmatprep.subr.mxu0 0.0
        %898 = vmatpush1.msra.mxu0 0.0
        %899 = vmatprep.subr.mxu0 0.0
        %900 = vmatpush1.msra.mxu0 0.0
        %901 = vmatprep.subr.mxu0 0.0
        %902 = vmatpush1.msra.mxu0 0.0
        %903 = vmatprep.subr.mxu0 0.0
        %904 = vmatpush1.msra.mxu0 0.0
        %905 = vmatprep.subr.mxu0 0.0
        %906 = vmatpush1.msra.mxu0 0.0
        %907 = vmatprep.subr.mxu0 0.0
        %908 = vmatpush1.msra.mxu0 0.0
        %909 = vmatprep.subr.mxu0 0.0
        %910 = vmatpush1.msra.mxu0 0.0
        %911 = vmatprep.subr.mxu0 0.0
        %912 = vmatpush1.msra.mxu0 0.0
        %913 = vmatprep.subr.mxu0 0.0
        %914 = vmatpush1.msra.mxu0 0.0
        %915 = vmatprep.subr.mxu0 0.0
        %916 = vmatpush1.msra.mxu0 0.0
        %917 = vmatprep.subr.mxu0 0.0
        %918 = vmatpush1.msra.mxu0 0.0
        %919 = vmatprep.subr.mxu0 0.0
        %920 = vmatpush1.msra.mxu0 0.0
        %921 = vmatprep.subr.mxu0 0.0
        %922 = vmatpush1.msra.mxu0 0.0
        %923 = vmatprep.subr.mxu0 0.0
        %924 = vmatpush1.msra.mxu0 0.0
        %925 = vmatprep.subr.mxu0 0.0
        %926 = vmatpush1.msra.mxu0 0.0
        %927 = vmatprep.subr.mxu0 0.0
        %928 = vmatpush1.msra.mxu0 0.0
        %929 = vmatprep.subr.mxu0 0.0
        %930 = vmatpush1.msra.mxu0 0.0
        %931 = vmatprep.subr.mxu0 0.0
        %932 = vmatpush1.msra.mxu0 0.0
        %933 = vmatprep.subr.mxu0 0.0
        %934 = vmatpush1.msra.mxu0 0.0
        %935 = vmatprep.subr.mxu0 0.0
        %936 = vmatpush1.msra.mxu0 0.0
        %937 = vmatprep.subr.mxu0 0.0
        %938 = vmatpush1.msra.mxu0 0.0
        %939 = vmatprep.subr.mxu0 0.0
        %940 = vmatpush1.msra.mxu0 0.0
        %941 = vmatprep.subr.mxu0 0.0
        %942 = vmatpush1.msra.mxu0 0.0
        %943 = vmatprep.subr.mxu0 0.0
        %944 = vmatpush1.msra.mxu0 0.0
        %945 = vmatprep.subr.mxu0 0.0
        %946 = vmatpush1.msra.mxu0 0.0
        %947 = vmatprep.subr.mxu0 0.0
        %948 = vmatpush1.msra.mxu0 0.0
        %949 = vmatprep.subr.mxu0 0.0
        %950 = vmatpush1.msra.mxu0 0.0
        %951 = vmatprep.subr.mxu0 0.0
        %952 = vmatpush1.msra.mxu0 0.0
        %953 = vmatprep.subr.mxu0 0.0
        %954 = vmatpush1.msra.mxu0 0.0
        %955 = vmatprep.mubr.f32.mxu0 0.0
        %956 = vmatmul.mubr.f32.gmra.mrb[0].mxu0 %v885
        %v957 = vpop.f32.mrb[0].mxu0
        %v958 = vadd.f32 0.0, %v957
        %v959 = vpop.f32.mrb[0].mxu0
        %v960 = vadd.f32 0.0, %v959
        %961 = vmatprep.mubr.f32.mxu0 0.0
        %962 = vmatmul.mubr.f32.gmra.mrb[0].mxu0 %v887
        %v963 = vpop.f32.mrb[0].mxu0
        %v964 = vadd.f32 0.0, %v963
        %v965 = vpop.f32.mrb[0].mxu0
        %v966 = vadd.f32 0.0, %v965
        %967 = vmatprep.mubr.f32.mxu0 0.0
        %968 = vmatmul.mubr.f32.gmra.mrb[0].mxu0 %v889
        %v969 = vpop.f32.mrb[0].mxu0
        %v970 = vadd.f32 0.0, %v969
        %v971 = vpop.f32.mrb[0].mxu0
        %v972 = vadd.f32 0.0, %v971
        %973 = vdwg.mxu0
        %v974 = vadd.f32 %v866, %v958
        %v975 = vadd.f32 %v867, %v960
        %v976 = vadd.f32 %v868, %v964
        %v977 = vadd.f32 %v869, %v966
        %v978 = vadd.f32 %v870, %v970
        %v979 = vadd.f32 %v871, %v972
        %s980 = scalar_lea.vmem [#allocation2], 192
        %v981 = vld [vmem:[%s980] sm:$0xff]
        %v982 = vld [vmem:[%s980 + $0x8] sm:$0xff]
        %v983 = vld [vmem:[%s980 + $0x10] sm:$0xff]
        %v984 = vld [vmem:[%s980 + $0x18] sm:$0xff]
        %v985 = vld [vmem:[%s980 + $0x20] sm:$0xff]
        %v986 = vld [vmem:[%s980 + $0x28] sm:$0xff]
        %987 = vrot.lane.b32.xlu0 %v559, 124
        %v988 = vpop.permute.xlu0 %987
        %989 = vrot.lane.b32.xlu0 %v560, 124
        %v990 = vpop.permute.xlu0 %989
        %991 = vrot.lane.b32.xlu0 %v561, 124
        %v992 = vpop.permute.xlu0 %991
        %v993 = vsel %vm585, %v988, 0
        %v995 = vsel %vm585, %v990, 0
        %v997 = vsel %vm585, %v992, 0
        %999 = vmatprep.subr.mxu0 %v982
        %1000 = vmatpush1.msra.mxu0 %v981
        %1001 = vmatprep.subr.mxu0 %v984
        %1002 = vmatpush1.msra.mxu0 %v983
        %1003 = vmatprep.subr.mxu0 %v986
        %1004 = vmatpush1.msra.mxu0 %v985
        %1005 = vmatprep.subr.mxu0 0.0
        %1006 = vmatpush1.msra.mxu0 0.0
        %1007 = vmatprep.subr.mxu0 0.0
        %1008 = vmatpush1.msra.mxu0 0.0
        %1009 = vmatprep.subr.mxu0 0.0
        %1010 = vmatpush1.msra.mxu0 0.0
        %1011 = vmatprep.subr.mxu0 0.0
        %1012 = vmatpush1.msra.mxu0 0.0
        %1013 = vmatprep.subr.mxu0 0.0
        %1014 = vmatpush1.msra.mxu0 0.0
        %1015 = vmatprep.subr.mxu0 0.0
        %1016 = vmatpush1.msra.mxu0 0.0
        %1017 = vmatprep.subr.mxu0 0.0
        %1018 = vmatpush1.msra.mxu0 0.0
        %1019 = vmatprep.subr.mxu0 0.0
        %1020 = vmatpush1.msra.mxu0 0.0
        %1021 = vmatprep.subr.mxu0 0.0
        %1022 = vmatpush1.msra.mxu0 0.0
        %1023 = vmatprep.subr.mxu0 0.0
        %1024 = vmatpush1.msra.mxu0 0.0
        %1025 = vmatprep.subr.mxu0 0.0
        %1026 = vmatpush1.msra.mxu0 0.0
        %1027 = vmatprep.subr.mxu0 0.0
        %1028 = vmatpush1.msra.mxu0 0.0
        %1029 = vmatprep.subr.mxu0 0.0
        %1030 = vmatpush1.msra.mxu0 0.0
        %1031 = vmatprep.subr.mxu0 0.0
        %1032 = vmatpush1.msra.mxu0 0.0
        %1033 = vmatprep.subr.mxu0 0.0
        %1034 = vmatpush1.msra.mxu0 0.0
        %1035 = vmatprep.subr.mxu0 0.0
        %1036 = vmatpush1.msra.mxu0 0.0
        %1037 = vmatprep.subr.mxu0 0.0
        %1038 = vmatpush1.msra.mxu0 0.0
        %1039 = vmatprep.subr.mxu0 0.0
        %1040 = vmatpush1.msra.mxu0 0.0
        %1041 = vmatprep.subr.mxu0 0.0
        %1042 = vmatpush1.msra.mxu0 0.0
        %1043 = vmatprep.subr.mxu0 0.0
        %1044 = vmatpush1.msra.mxu0 0.0
        %1045 = vmatprep.subr.mxu0 0.0
        %1046 = vmatpush1.msra.mxu0 0.0
        %1047 = vmatprep.subr.mxu0 0.0
        %1048 = vmatpush1.msra.mxu0 0.0
        %1049 = vmatprep.subr.mxu0 0.0
        %1050 = vmatpush1.msra.mxu0 0.0
        %1051 = vmatprep.subr.mxu0 0.0
        %1052 = vmatpush1.msra.mxu0 0.0
        %1053 = vmatprep.subr.mxu0 0.0
        %1054 = vmatpush1.msra.mxu0 0.0
        %1055 = vmatprep.subr.mxu0 0.0
        %1056 = vmatpush1.msra.mxu0 0.0
        %1057 = vmatprep.subr.mxu0 0.0
        %1058 = vmatpush1.msra.mxu0 0.0
        %1059 = vmatprep.subr.mxu0 0.0
        %1060 = vmatpush1.msra.mxu0 0.0
        %1061 = vmatprep.subr.mxu0 0.0
        %1062 = vmatpush1.msra.mxu0 0.0
        %1063 = vmatprep.mubr.f32.mxu0 0.0
        %1064 = vmatmul.mubr.f32.gmra.mrb[0].mxu0 %v993
        %v1065 = vpop.f32.mrb[0].mxu0
        %v1066 = vadd.f32 0.0, %v1065
        %v1067 = vpop.f32.mrb[0].mxu0
        %v1068 = vadd.f32 0.0, %v1067
        %1069 = vmatprep.mubr.f32.mxu0 0.0
        %1070 = vmatmul.mubr.f32.gmra.mrb[0].mxu0 %v995
        %v1071 = vpop.f32.mrb[0].mxu0
        %v1072 = vadd.f32 0.0, %v1071
        %v1073 = vpop.f32.mrb[0].mxu0
        %v1074 = vadd.f32 0.0, %v1073
        %1075 = vmatprep.mubr.f32.mxu0 0.0
        %1076 = vmatmul.mubr.f32.gmra.mrb[0].mxu0 %v997
        %v1077 = vpop.f32.mrb[0].mxu0
        %v1078 = vadd.f32 0.0, %v1077
        %v1079 = vpop.f32.mrb[0].mxu0
        %v1080 = vadd.f32 0.0, %v1079
        %1081 = vdwg.mxu0
        %v1082 = vadd.f32 %v974, %v1066
        %v1083 = vadd.f32 %v975, %v1068
        %v1084 = vadd.f32 %v976, %v1072
        %v1085 = vadd.f32 %v977, %v1074
        %v1086 = vadd.f32 %v978, %v1078
        %v1087 = vadd.f32 %v979, %v1080
        %s1088 = scalar_lea.vmem [#allocation2], 240
        %v1089 = vld [vmem:[%s1088] sm:$0xff]
        %v1090 = vld [vmem:[%s1088 + $0x8] sm:$0xff]
        %v1091 = vld [vmem:[%s1088 + $0x10] sm:$0xff]
        %v1092 = vld [vmem:[%s1088 + $0x18] sm:$0xff]
        %v1093 = vld [vmem:[%s1088 + $0x20] sm:$0xff]
        %v1094 = vld [vmem:[%s1088 + $0x28] sm:$0xff]
        %vm1096 = vcmask 1046528
        %v1097 = vrot.slane %v559, 1
        %v1098 = vrot.slane %v560, 1
        %v1099 = vsel %vm1096, %v1097, %v1098
        %v1100 = vrot.slane %v561, 1
        %v1101 = vsel %vm1096, %v1098, %v1100
        %v1102 = vrot.slane %v562, 1
        %v1103 = vsel %vm1096, %v1100, %v1102
        %v1104 = vsel %vm585, %v1099, 0
        %v1106 = vsel %vm585, %v1101, 0
        %v1108 = vsel %vm585, %v1103, 0
        %1110 = vmatprep.subr.mxu0 %v1090
        %1111 = vmatpush1.msra.mxu0 %v1089
        %1112 = vmatprep.subr.mxu0 %v1092
        %1113 = vmatpush1.msra.mxu0 %v1091
        %1114 = vmatprep.subr.mxu0 %v1094
        %1115 = vmatpush1.msra.mxu0 %v1093
        %1116 = vmatprep.subr.mxu0 0.0
        %1117 = vmatpush1.msra.mxu0 0.0
        %1118 = vmatprep.subr.mxu0 0.0
        %1119 = vmatpush1.msra.mxu0 0.0
        %1120 = vmatprep.subr.mxu0 0.0
        %1121 = vmatpush1.msra.mxu0 0.0
        %1122 = vmatprep.subr.mxu0 0.0
        %1123 = vmatpush1.msra.mxu0 0.0
        %1124 = vmatprep.subr.mxu0 0.0
        %1125 = vmatpush1.msra.mxu0 0.0
        %1126 = vmatprep.subr.mxu0 0.0
        %1127 = vmatpush1.msra.mxu0 0.0
        %1128 = vmatprep.subr.mxu0 0.0
        %1129 = vmatpush1.msra.mxu0 0.0
        %1130 = vmatprep.subr.mxu0 0.0
        %1131 = vmatpush1.msra.mxu0 0.0
        %1132 = vmatprep.subr.mxu0 0.0
        %1133 = vmatpush1.msra.mxu0 0.0
        %1134 = vmatprep.subr.mxu0 0.0
        %1135 = vmatpush1.msra.mxu0 0.0
        %1136 = vmatprep.subr.mxu0 0.0
        %1137 = vmatpush1.msra.mxu0 0.0
        %1138 = vmatprep.subr.mxu0 0.0
        %1139 = vmatpush1.msra.mxu0 0.0
        %1140 = vmatprep.subr.mxu0 0.0
        %1141 = vmatpush1.msra.mxu0 0.0
        %1142 = vmatprep.subr.mxu0 0.0
        %1143 = vmatpush1.msra.mxu0 0.0
        %1144 = vmatprep.subr.mxu0 0.0
        %1145 = vmatpush1.msra.mxu0 0.0
        %1146 = vmatprep.subr.mxu0 0.0
        %1147 = vmatpush1.msra.mxu0 0.0
        %1148 = vmatprep.subr.mxu0 0.0
        %1149 = vmatpush1.msra.mxu0 0.0
        %1150 = vmatprep.subr.mxu0 0.0
        %1151 = vmatpush1.msra.mxu0 0.0
        %1152 = vmatprep.subr.mxu0 0.0
        %1153 = vmatpush1.msra.mxu0 0.0
        %1154 = vmatprep.subr.mxu0 0.0
        %1155 = vmatpush1.msra.mxu0 0.0
        %1156 = vmatprep.subr.mxu0 0.0
        %1157 = vmatpush1.msra.mxu0 0.0
        %1158 = vmatprep.subr.mxu0 0.0
        %1159 = vmatpush1.msra.mxu0 0.0
        %1160 = vmatprep.subr.mxu0 0.0
        %1161 = vmatpush1.msra.mxu0 0.0
        %1162 = vmatprep.subr.mxu0 0.0
        %1163 = vmatpush1.msra.mxu0 0.0
        %1164 = vmatprep.subr.mxu0 0.0
        %1165 = vmatpush1.msra.mxu0 0.0
        %1166 = vmatprep.subr.mxu0 0.0
        %1167 = vmatpush1.msra.mxu0 0.0
        %1168 = vmatprep.subr.mxu0 0.0
        %1169 = vmatpush1.msra.mxu0 0.0
        %1170 = vmatprep.subr.mxu0 0.0
        %1171 = vmatpush1.msra.mxu0 0.0
        %1172 = vmatprep.subr.mxu0 0.0
        %1173 = vmatpush1.msra.mxu0 0.0
        %1174 = vmatprep.mubr.f32.mxu0 0.0
        %1175 = vmatmul.mubr.f32.gmra.mrb[0].mxu0 %v1104
        %v1176 = vpop.f32.mrb[0].mxu0
        %v1177 = vadd.f32 0.0, %v1176
        %v1178 = vpop.f32.mrb[0].mxu0
        %v1179 = vadd.f32 0.0, %v1178
        %1180 = vmatprep.mubr.f32.mxu0 0.0
        %1181 = vmatmul.mubr.f32.gmra.mrb[0].mxu0 %v1106
        %v1182 = vpop.f32.mrb[0].mxu0
        %v1183 = vadd.f32 0.0, %v1182
        %v1184 = vpop.f32.mrb[0].mxu0
        %v1185 = vadd.f32 0.0, %v1184
        %1186 = vmatprep.mubr.f32.mxu0 0.0
        %1187 = vmatmul.mubr.f32.gmra.mrb[0].mxu0 %v1108
        %v1188 = vpop.f32.mrb[0].mxu0
        %v1189 = vadd.f32 0.0, %v1188
        %v1190 = vpop.f32.mrb[0].mxu0
        %v1191 = vadd.f32 0.0, %v1190
        %1192 = vdwg.mxu0
        %v1193 = vadd.f32 %v1082, %v1177
        %v1194 = vadd.f32 %v1083, %v1179
        %v1195 = vadd.f32 %v1084, %v1183
        %v1196 = vadd.f32 %v1085, %v1185
        %v1197 = vadd.f32 %v1086, %v1189
        %v1198 = vadd.f32 %v1087, %v1191
        %s1199 = scalar_lea.vmem [#allocation2], 288
        %v1200 = vld [vmem:[%s1199] sm:$0xff]
        %v1201 = vld [vmem:[%s1199 + $0x8] sm:$0xff]
        %v1202 = vld [vmem:[%s1199 + $0x10] sm:$0xff]
        %v1203 = vld [vmem:[%s1199 + $0x18] sm:$0xff]
        %v1204 = vld [vmem:[%s1199 + $0x20] sm:$0xff]
        %v1205 = vld [vmem:[%s1199 + $0x28] sm:$0xff]
        %1206 = vrot.lane.b32.xlu0 %v1099, 127
        %v1207 = vpop.permute.xlu0 %1206
        %1208 = vrot.lane.b32.xlu0 %v1101, 127
        %v1209 = vpop.permute.xlu0 %1208
        %1210 = vrot.lane.b32.xlu0 %v1103, 127
        %v1211 = vpop.permute.xlu0 %1210
        %v1212 = vsel %vm585, %v1207, 0
        %v1214 = vsel %vm585, %v1209, 0
        %v1216 = vsel %vm585, %v1211, 0
        %1218 = vmatprep.subr.mxu0 %v1201
        %1219 = vmatpush1.msra.mxu0 %v1200
        %1220 = vmatprep.subr.mxu0 %v1203
        %1221 = vmatpush1.msra.mxu0 %v1202
        %1222 = vmatprep.subr.mxu0 %v1205
        %1223 = vmatpush1.msra.mxu0 %v1204
        %1224 = vmatprep.subr.mxu0 0.0
        %1225 = vmatpush1.msra.mxu0 0.0
        %1226 = vmatprep.subr.mxu0 0.0
        %1227 = vmatpush1.msra.mxu0 0.0
        %1228 = vmatprep.subr.mxu0 0.0
        %1229 = vmatpush1.msra.mxu0 0.0
        %1230 = vmatprep.subr.mxu0 0.0
        %1231 = vmatpush1.msra.mxu0 0.0
        %1232 = vmatprep.subr.mxu0 0.0
        %1233 = vmatpush1.msra.mxu0 0.0
        %1234 = vmatprep.subr.mxu0 0.0
        %1235 = vmatpush1.msra.mxu0 0.0
        %1236 = vmatprep.subr.mxu0 0.0
        %1237 = vmatpush1.msra.mxu0 0.0
        %1238 = vmatprep.subr.mxu0 0.0
        %1239 = vmatpush1.msra.mxu0 0.0
        %1240 = vmatprep.subr.mxu0 0.0
        %1241 = vmatpush1.msra.mxu0 0.0
        %1242 = vmatprep.subr.mxu0 0.0
        %1243 = vmatpush1.msra.mxu0 0.0
        %1244 = vmatprep.subr.mxu0 0.0
        %1245 = vmatpush1.msra.mxu0 0.0
        %1246 = vmatprep.subr.mxu0 0.0
        %1247 = vmatpush1.msra.mxu0 0.0
        %1248 = vmatprep.subr.mxu0 0.0
        %1249 = vmatpush1.msra.mxu0 0.0
        %1250 = vmatprep.subr.mxu0 0.0
        %1251 = vmatpush1.msra.mxu0 0.0
        %1252 = vmatprep.subr.mxu0 0.0
        %1253 = vmatpush1.msra.mxu0 0.0
        %1254 = vmatprep.subr.mxu0 0.0
        %1255 = vmatpush1.msra.mxu0 0.0
        %1256 = vmatprep.subr.mxu0 0.0
        %1257 = vmatpush1.msra.mxu0 0.0
        %1258 = vmatprep.subr.mxu0 0.0
        %1259 = vmatpush1.msra.mxu0 0.0
        %1260 = vmatprep.subr.mxu0 0.0
        %1261 = vmatpush1.msra.mxu0 0.0
        %1262 = vmatprep.subr.mxu0 0.0
        %1263 = vmatpush1.msra.mxu0 0.0
        %1264 = vmatprep.subr.mxu0 0.0
        %1265 = vmatpush1.msra.mxu0 0.0
        %1266 = vmatprep.subr.mxu0 0.0
        %1267 = vmatpush1.msra.mxu0 0.0
        %1268 = vmatprep.subr.mxu0 0.0
        %1269 = vmatpush1.msra.mxu0 0.0
        %1270 = vmatprep.subr.mxu0 0.0
        %1271 = vmatpush1.msra.mxu0 0.0
        %1272 = vmatprep.subr.mxu0 0.0
        %1273 = vmatpush1.msra.mxu0 0.0
        %1274 = vmatprep.subr.mxu0 0.0
        %1275 = vmatpush1.msra.mxu0 0.0
        %1276 = vmatprep.subr.mxu0 0.0
        %1277 = vmatpush1.msra.mxu0 0.0
        %1278 = vmatprep.subr.mxu0 0.0
        %1279 = vmatpush1.msra.mxu0 0.0
        %1280 = vmatprep.subr.mxu0 0.0
        %1281 = vmatpush1.msra.mxu0 0.0
        %1282 = vmatprep.mubr.f32.mxu0 0.0
        %1283 = vmatmul.mubr.f32.gmra.mrb[0].mxu0 %v1212
        %v1284 = vpop.f32.mrb[0].mxu0
        %v1285 = vadd.f32 0.0, %v1284
        %v1286 = vpop.f32.mrb[0].mxu0
        %v1287 = vadd.f32 0.0, %v1286
        %1288 = vmatprep.mubr.f32.mxu0 0.0
        %1289 = vmatmul.mubr.f32.gmra.mrb[0].mxu0 %v1214
        %v1290 = vpop.f32.mrb[0].mxu0
        %v1291 = vadd.f32 0.0, %v1290
        %v1292 = vpop.f32.mrb[0].mxu0
        %v1293 = vadd.f32 0.0, %v1292
        %1294 = vmatprep.mubr.f32.mxu0 0.0
        %1295 = vmatmul.mubr.f32.gmra.mrb[0].mxu0 %v1216
        %v1296 = vpop.f32.mrb[0].mxu0
        %v1297 = vadd.f32 0.0, %v1296
        %v1298 = vpop.f32.mrb[0].mxu0
        %v1299 = vadd.f32 0.0, %v1298
        %1300 = vdwg.mxu0
        %v1301 = vadd.f32 %v1193, %v1285
        %v1302 = vadd.f32 %v1194, %v1287
        %v1303 = vadd.f32 %v1195, %v1291
        %v1304 = vadd.f32 %v1196, %v1293
        %v1305 = vadd.f32 %v1197, %v1297
        %v1306 = vadd.f32 %v1198, %v1299
        %s1307 = scalar_lea.vmem [#allocation2], 336
        %v1308 = vld [vmem:[%s1307] sm:$0xff]
        %v1309 = vld [vmem:[%s1307 + $0x8] sm:$0xff]
        %v1310 = vld [vmem:[%s1307 + $0x10] sm:$0xff]
        %v1311 = vld [vmem:[%s1307 + $0x18] sm:$0xff]
        %v1312 = vld [vmem:[%s1307 + $0x20] sm:$0xff]
        %v1313 = vld [vmem:[%s1307 + $0x28] sm:$0xff]
        %1314 = vrot.lane.b32.xlu0 %v1099, 126
        %v1315 = vpop.permute.xlu0 %1314
        %1316 = vrot.lane.b32.xlu0 %v1101, 126
        %v1317 = vpop.permute.xlu0 %1316
        %1318 = vrot.lane.b32.xlu0 %v1103, 126
        %v1319 = vpop.permute.xlu0 %1318
        %v1320 = vsel %vm585, %v1315, 0
        %v1322 = vsel %vm585, %v1317, 0
        %v1324 = vsel %vm585, %v1319, 0
        %1326 = vmatprep.subr.mxu0 %v1309
        %1327 = vmatpush1.msra.mxu0 %v1308
        %1328 = vmatprep.subr.mxu0 %v1311
        %1329 = vmatpush1.msra.mxu0 %v1310
        %1330 = vmatprep.subr.mxu0 %v1313
        %1331 = vmatpush1.msra.mxu0 %v1312
        %1332 = vmatprep.subr.mxu0 0.0
        %1333 = vmatpush1.msra.mxu0 0.0
        %1334 = vmatprep.subr.mxu0 0.0
        %1335 = vmatpush1.msra.mxu0 0.0
        %1336 = vmatprep.subr.mxu0 0.0
        %1337 = vmatpush1.msra.mxu0 0.0
        %1338 = vmatprep.subr.mxu0 0.0
        %1339 = vmatpush1.msra.mxu0 0.0
        %1340 = vmatprep.subr.mxu0 0.0
        %1341 = vmatpush1.msra.mxu0 0.0
        %1342 = vmatprep.subr.mxu0 0.0
        %1343 = vmatpush1.msra.mxu0 0.0
        %1344 = vmatprep.subr.mxu0 0.0
        %1345 = vmatpush1.msra.mxu0 0.0
        %1346 = vmatprep.subr.mxu0 0.0
        %1347 = vmatpush1.msra.mxu0 0.0
        %1348 = vmatprep.subr.mxu0 0.0
        %1349 = vmatpush1.msra.mxu0 0.0
        %1350 = vmatprep.subr.mxu0 0.0
        %1351 = vmatpush1.msra.mxu0 0.0
        %1352 = vmatprep.subr.mxu0 0.0
        %1353 = vmatpush1.msra.mxu0 0.0
        %1354 = vmatprep.subr.mxu0 0.0
        %1355 = vmatpush1.msra.mxu0 0.0
        %1356 = vmatprep.subr.mxu0 0.0
        %1357 = vmatpush1.msra.mxu0 0.0
        %1358 = vmatprep.subr.mxu0 0.0
        %1359 = vmatpush1.msra.mxu0 0.0
        %1360 = vmatprep.subr.mxu0 0.0
        %1361 = vmatpush1.msra.mxu0 0.0
        %1362 = vmatprep.subr.mxu0 0.0
        %1363 = vmatpush1.msra.mxu0 0.0
        %1364 = vmatprep.subr.mxu0 0.0
        %1365 = vmatpush1.msra.mxu0 0.0
        %1366 = vmatprep.subr.mxu0 0.0
        %1367 = vmatpush1.msra.mxu0 0.0
        %1368 = vmatprep.subr.mxu0 0.0
        %1369 = vmatpush1.msra.mxu0 0.0
        %1370 = vmatprep.subr.mxu0 0.0
        %1371 = vmatpush1.msra.mxu0 0.0
        %1372 = vmatprep.subr.mxu0 0.0
        %1373 = vmatpush1.msra.mxu0 0.0
        %1374 = vmatprep.subr.mxu0 0.0
        %1375 = vmatpush1.msra.mxu0 0.0
        %1376 = vmatprep.subr.mxu0 0.0
        %1377 = vmatpush1.msra.mxu0 0.0
        %1378 = vmatprep.subr.mxu0 0.0
        %1379 = vmatpush1.msra.mxu0 0.0
        %1380 = vmatprep.subr.mxu0 0.0
        %1381 = vmatpush1.msra.mxu0 0.0
        %1382 = vmatprep.subr.mxu0 0.0
        %1383 = vmatpush1.msra.mxu0 0.0
        %1384 = vmatprep.subr.mxu0 0.0
        %1385 = vmatpush1.msra.mxu0 0.0
        %1386 = vmatprep.subr.mxu0 0.0
        %1387 = vmatpush1.msra.mxu0 0.0
        %1388 = vmatprep.subr.mxu0 0.0
        %1389 = vmatpush1.msra.mxu0 0.0
        %1390 = vmatprep.mubr.f32.mxu0 0.0
        %1391 = vmatmul.mubr.f32.gmra.mrb[0].mxu0 %v1320
        %v1392 = vpop.f32.mrb[0].mxu0
        %v1393 = vadd.f32 0.0, %v1392
        %v1394 = vpop.f32.mrb[0].mxu0
        %v1395 = vadd.f32 0.0, %v1394
        %1396 = vmatprep.mubr.f32.mxu0 0.0
        %1397 = vmatmul.mubr.f32.gmra.mrb[0].mxu0 %v1322
        %v1398 = vpop.f32.mrb[0].mxu0
        %v1399 = vadd.f32 0.0, %v1398
        %v1400 = vpop.f32.mrb[0].mxu0
        %v1401 = vadd.f32 0.0, %v1400
        %1402 = vmatprep.mubr.f32.mxu0 0.0
        %1403 = vmatmul.mubr.f32.gmra.mrb[0].mxu0 %v1324
        %v1404 = vpop.f32.mrb[0].mxu0
        %v1405 = vadd.f32 0.0, %v1404
        %v1406 = vpop.f32.mrb[0].mxu0
        %v1407 = vadd.f32 0.0, %v1406
        %1408 = vdwg.mxu0
        %v1409 = vadd.f32 %v1301, %v1393
        %v1410 = vadd.f32 %v1302, %v1395
        %v1411 = vadd.f32 %v1303, %v1399
        %v1412 = vadd.f32 %v1304, %v1401
        %v1413 = vadd.f32 %v1305, %v1405
        %v1414 = vadd.f32 %v1306, %v1407
        %s1415 = scalar_lea.vmem [#allocation2], 384
        %v1416 = vld [vmem:[%s1415] sm:$0xff]
        %v1417 = vld [vmem:[%s1415 + $0x8] sm:$0xff]
        %v1418 = vld [vmem:[%s1415 + $0x10] sm:$0xff]
        %v1419 = vld [vmem:[%s1415 + $0x18] sm:$0xff]
        %v1420 = vld [vmem:[%s1415 + $0x20] sm:$0xff]
        %v1421 = vld [vmem:[%s1415 + $0x28] sm:$0xff]
        %1422 = vrot.lane.b32.xlu0 %v1099, 125
        %v1423 = vpop.permute.xlu0 %1422
        %1424 = vrot.lane.b32.xlu0 %v1101, 125
        %v1425 = vpop.permute.xlu0 %1424
        %1426 = vrot.lane.b32.xlu0 %v1103, 125
        %v1427 = vpop.permute.xlu0 %1426
        %v1428 = vsel %vm585, %v1423, 0
        %v1430 = vsel %vm585, %v1425, 0
        %v1432 = vsel %vm585, %v1427, 0
        %1434 = vmatprep.subr.mxu0 %v1417
        %1435 = vmatpush1.msra.mxu0 %v1416
        %1436 = vmatprep.subr.mxu0 %v1419
        %1437 = vmatpush1.msra.mxu0 %v1418
        %1438 = vmatprep.subr.mxu0 %v1421
        %1439 = vmatpush1.msra.mxu0 %v1420
        %1440 = vmatprep.subr.mxu0 0.0
        %1441 = vmatpush1.msra.mxu0 0.0
        %1442 = vmatprep.subr.mxu0 0.0
        %1443 = vmatpush1.msra.mxu0 0.0
        %1444 = vmatprep.subr.mxu0 0.0
        %1445 = vmatpush1.msra.mxu0 0.0
        %1446 = vmatprep.subr.mxu0 0.0
        %1447 = vmatpush1.msra.mxu0 0.0
        %1448 = vmatprep.subr.mxu0 0.0
        %1449 = vmatpush1.msra.mxu0 0.0
        %1450 = vmatprep.subr.mxu0 0.0
        %1451 = vmatpush1.msra.mxu0 0.0
        %1452 = vmatprep.subr.mxu0 0.0
        %1453 = vmatpush1.msra.mxu0 0.0
        %1454 = vmatprep.subr.mxu0 0.0
        %1455 = vmatpush1.msra.mxu0 0.0
        %1456 = vmatprep.subr.mxu0 0.0
        %1457 = vmatpush1.msra.mxu0 0.0
        %1458 = vmatprep.subr.mxu0 0.0
        %1459 = vmatpush1.msra.mxu0 0.0
        %1460 = vmatprep.subr.mxu0 0.0
        %1461 = vmatpush1.msra.mxu0 0.0
        %1462 = vmatprep.subr.mxu0 0.0
        %1463 = vmatpush1.msra.mxu0 0.0
        %1464 = vmatprep.subr.mxu0 0.0
        %1465 = vmatpush1.msra.mxu0 0.0
        %1466 = vmatprep.subr.mxu0 0.0
        %1467 = vmatpush1.msra.mxu0 0.0
        %1468 = vmatprep.subr.mxu0 0.0
        %1469 = vmatpush1.msra.mxu0 0.0
        %1470 = vmatprep.subr.mxu0 0.0
        %1471 = vmatpush1.msra.mxu0 0.0
        %1472 = vmatprep.subr.mxu0 0.0
        %1473 = vmatpush1.msra.mxu0 0.0
        %1474 = vmatprep.subr.mxu0 0.0
        %1475 = vmatpush1.msra.mxu0 0.0
        %1476 = vmatprep.subr.mxu0 0.0
        %1477 = vmatpush1.msra.mxu0 0.0
        %1478 = vmatprep.subr.mxu0 0.0
        %1479 = vmatpush1.msra.mxu0 0.0
        %1480 = vmatprep.subr.mxu0 0.0
        %1481 = vmatpush1.msra.mxu0 0.0
        %1482 = vmatprep.subr.mxu0 0.0
        %1483 = vmatpush1.msra.mxu0 0.0
        %1484 = vmatprep.subr.mxu0 0.0
        %1485 = vmatpush1.msra.mxu0 0.0
        %1486 = vmatprep.subr.mxu0 0.0
        %1487 = vmatpush1.msra.mxu0 0.0
        %1488 = vmatprep.subr.mxu0 0.0
        %1489 = vmatpush1.msra.mxu0 0.0
        %1490 = vmatprep.subr.mxu0 0.0
        %1491 = vmatpush1.msra.mxu0 0.0
        %1492 = vmatprep.subr.mxu0 0.0
        %1493 = vmatpush1.msra.mxu0 0.0
        %1494 = vmatprep.subr.mxu0 0.0
        %1495 = vmatpush1.msra.mxu0 0.0
        %1496 = vmatprep.subr.mxu0 0.0
        %1497 = vmatpush1.msra.mxu0 0.0
        %1498 = vmatprep.mubr.f32.mxu0 0.0
        %1499 = vmatmul.mubr.f32.gmra.mrb[0].mxu0 %v1428
        %v1500 = vpop.f32.mrb[0].mxu0
        %v1501 = vadd.f32 0.0, %v1500
        %v1502 = vpop.f32.mrb[0].mxu0
        %v1503 = vadd.f32 0.0, %v1502
        %1504 = vmatprep.mubr.f32.mxu0 0.0
        %1505 = vmatmul.mubr.f32.gmra.mrb[0].mxu0 %v1430
        %v1506 = vpop.f32.mrb[0].mxu0
        %v1507 = vadd.f32 0.0, %v1506
        %v1508 = vpop.f32.mrb[0].mxu0
        %v1509 = vadd.f32 0.0, %v1508
        %1510 = vmatprep.mubr.f32.mxu0 0.0
        %1511 = vmatmul.mubr.f32.gmra.mrb[0].mxu0 %v1432
        %v1512 = vpop.f32.mrb[0].mxu0
        %v1513 = vadd.f32 0.0, %v1512
        %v1514 = vpop.f32.mrb[0].mxu0
        %v1515 = vadd.f32 0.0, %v1514
        %1516 = vdwg.mxu0
        %v1517 = vadd.f32 %v1409, %v1501
        %v1518 = vadd.f32 %v1410, %v1503
        %v1519 = vadd.f32 %v1411, %v1507
        %v1520 = vadd.f32 %v1412, %v1509
        %v1521 = vadd.f32 %v1413, %v1513
        %v1522 = vadd.f32 %v1414, %v1515
        %s1523 = scalar_lea.vmem [#allocation2], 432
        %v1524 = vld [vmem:[%s1523] sm:$0xff]
        %v1525 = vld [vmem:[%s1523 + $0x8] sm:$0xff]
        %v1526 = vld [vmem:[%s1523 + $0x10] sm:$0xff]
        %v1527 = vld [vmem:[%s1523 + $0x18] sm:$0xff]
        %v1528 = vld [vmem:[%s1523 + $0x20] sm:$0xff]
        %v1529 = vld [vmem:[%s1523 + $0x28] sm:$0xff]
        %1530 = vrot.lane.b32.xlu0 %v1099, 124
        %v1531 = vpop.permute.xlu0 %1530
        %1532 = vrot.lane.b32.xlu0 %v1101, 124
        %v1533 = vpop.permute.xlu0 %1532
        %1534 = vrot.lane.b32.xlu0 %v1103, 124
        %v1535 = vpop.permute.xlu0 %1534
        %v1536 = vsel %vm585, %v1531, 0
        %v1538 = vsel %vm585, %v1533, 0
        %v1540 = vsel %vm585, %v1535, 0
        %1542 = vmatprep.subr.mxu0 %v1525
        %1543 = vmatpush1.msra.mxu0 %v1524
        %1544 = vmatprep.subr.mxu0 %v1527
        %1545 = vmatpush1.msra.mxu0 %v1526
        %1546 = vmatprep.subr.mxu0 %v1529
        %1547 = vmatpush1.msra.mxu0 %v1528
        %1548 = vmatprep.subr.mxu0 0.0
        %1549 = vmatpush1.msra.mxu0 0.0
        %1550 = vmatprep.subr.mxu0 0.0
        %1551 = vmatpush1.msra.mxu0 0.0
        %1552 = vmatprep.subr.mxu0 0.0
        %1553 = vmatpush1.msra.mxu0 0.0
        %1554 = vmatprep.subr.mxu0 0.0
        %1555 = vmatpush1.msra.mxu0 0.0
        %1556 = vmatprep.subr.mxu0 0.0
        %1557 = vmatpush1.msra.mxu0 0.0
        %1558 = vmatprep.subr.mxu0 0.0
        %1559 = vmatpush1.msra.mxu0 0.0
        %1560 = vmatprep.subr.mxu0 0.0
        %1561 = vmatpush1.msra.mxu0 0.0
        %1562 = vmatprep.subr.mxu0 0.0
        %1563 = vmatpush1.msra.mxu0 0.0
        %1564 = vmatprep.subr.mxu0 0.0
        %1565 = vmatpush1.msra.mxu0 0.0
        %1566 = vmatprep.subr.mxu0 0.0
        %1567 = vmatpush1.msra.mxu0 0.0
        %1568 = vmatprep.subr.mxu0 0.0
        %1569 = vmatpush1.msra.mxu0 0.0
        %1570 = vmatprep.subr.mxu0 0.0
        %1571 = vmatpush1.msra.mxu0 0.0
        %1572 = vmatprep.subr.mxu0 0.0
        %1573 = vmatpush1.msra.mxu0 0.0
        %1574 = vmatprep.subr.mxu0 0.0
        %1575 = vmatpush1.msra.mxu0 0.0
        %1576 = vmatprep.subr.mxu0 0.0
        %1577 = vmatpush1.msra.mxu0 0.0
        %1578 = vmatprep.subr.mxu0 0.0
        %1579 = vmatpush1.msra.mxu0 0.0
        %1580 = vmatprep.subr.mxu0 0.0
        %1581 = vmatpush1.msra.mxu0 0.0
        %1582 = vmatprep.subr.mxu0 0.0
        %1583 = vmatpush1.msra.mxu0 0.0
        %1584 = vmatprep.subr.mxu0 0.0
        %1585 = vmatpush1.msra.mxu0 0.0
        %1586 = vmatprep.subr.mxu0 0.0
        %1587 = vmatpush1.msra.mxu0 0.0
        %1588 = vmatprep.subr.mxu0 0.0
        %1589 = vmatpush1.msra.mxu0 0.0
        %1590 = vmatprep.subr.mxu0 0.0
        %1591 = vmatpush1.msra.mxu0 0.0
        %1592 = vmatprep.subr.mxu0 0.0
        %1593 = vmatpush1.msra.mxu0 0.0
        %1594 = vmatprep.subr.mxu0 0.0
        %1595 = vmatpush1.msra.mxu0 0.0
        %1596 = vmatprep.subr.mxu0 0.0
        %1597 = vmatpush1.msra.mxu0 0.0
        %1598 = vmatprep.subr.mxu0 0.0
        %1599 = vmatpush1.msra.mxu0 0.0
        %1600 = vmatprep.subr.mxu0 0.0
        %1601 = vmatpush1.msra.mxu0 0.0
        %1602 = vmatprep.subr.mxu0 0.0
        %1603 = vmatpush1.msra.mxu0 0.0
        %1604 = vmatprep.subr.mxu0 0.0
        %1605 = vmatpush1.msra.mxu0 0.0
        %1606 = vmatprep.mubr.f32.mxu0 0.0
        %1607 = vmatmul.mubr.f32.gmra.mrb[0].mxu0 %v1536
        %v1608 = vpop.f32.mrb[0].mxu0
        %v1609 = vadd.f32 0.0, %v1608
        %v1610 = vpop.f32.mrb[0].mxu0
        %v1611 = vadd.f32 0.0, %v1610
        %1612 = vmatprep.mubr.f32.mxu0 0.0
        %1613 = vmatmul.mubr.f32.gmra.mrb[0].mxu0 %v1538
        %v1614 = vpop.f32.mrb[0].mxu0
        %v1615 = vadd.f32 0.0, %v1614
        %v1616 = vpop.f32.mrb[0].mxu0
        %v1617 = vadd.f32 0.0, %v1616
        %1618 = vmatprep.mubr.f32.mxu0 0.0
        %1619 = vmatmul.mubr.f32.gmra.mrb[0].mxu0 %v1540
        %v1620 = vpop.f32.mrb[0].mxu0
        %v1621 = vadd.f32 0.0, %v1620
        %v1622 = vpop.f32.mrb[0].mxu0
        %v1623 = vadd.f32 0.0, %v1622
        %1624 = vdwg.mxu0
        %v1625 = vadd.f32 %v1517, %v1609
        %v1626 = vadd.f32 %v1518, %v1611
        %v1627 = vadd.f32 %v1519, %v1615
        %v1628 = vadd.f32 %v1520, %v1617
        %v1629 = vadd.f32 %v1521, %v1621
        %v1630 = vadd.f32 %v1522, %v1623
        %s1631 = scalar_lea.vmem [#allocation2], 480
        %v1632 = vld [vmem:[%s1631] sm:$0xff]
        %v1633 = vld [vmem:[%s1631 + $0x8] sm:$0xff]
        %v1634 = vld [vmem:[%s1631 + $0x10] sm:$0xff]
        %v1635 = vld [vmem:[%s1631 + $0x18] sm:$0xff]
        %v1636 = vld [vmem:[%s1631 + $0x20] sm:$0xff]
        %v1637 = vld [vmem:[%s1631 + $0x28] sm:$0xff]
        %vm1638 = vcmask 1045504
        %v1639 = vrot.slane %v559, 2
        %v1640 = vrot.slane %v560, 2
        %v1641 = vsel %vm1638, %v1639, %v1640
        %v1642 = vrot.slane %v561, 2
        %v1643 = vsel %vm1638, %v1640, %v1642
        %v1644 = vrot.slane %v562, 2
        %v1645 = vsel %vm1638, %v1642, %v1644
        %v1646 = vsel %vm585, %v1641, 0
        %v1648 = vsel %vm585, %v1643, 0
        %v1650 = vsel %vm585, %v1645, 0
        %1652 = vmatprep.subr.mxu0 %v1633
        %1653 = vmatpush1.msra.mxu0 %v1632
        %1654 = vmatprep.subr.mxu0 %v1635
        %1655 = vmatpush1.msra.mxu0 %v1634
        %1656 = vmatprep.subr.mxu0 %v1637
        %1657 = vmatpush1.msra.mxu0 %v1636
        %1658 = vmatprep.subr.mxu0 0.0
        %1659 = vmatpush1.msra.mxu0 0.0
        %1660 = vmatprep.subr.mxu0 0.0
        %1661 = vmatpush1.msra.mxu0 0.0
        %1662 = vmatprep.subr.mxu0 0.0
        %1663 = vmatpush1.msra.mxu0 0.0
        %1664 = vmatprep.subr.mxu0 0.0
        %1665 = vmatpush1.msra.mxu0 0.0
        %1666 = vmatprep.subr.mxu0 0.0
        %1667 = vmatpush1.msra.mxu0 0.0
        %1668 = vmatprep.subr.mxu0 0.0
        %1669 = vmatpush1.msra.mxu0 0.0
        %1670 = vmatprep.subr.mxu0 0.0
        %1671 = vmatpush1.msra.mxu0 0.0
        %1672 = vmatprep.subr.mxu0 0.0
        %1673 = vmatpush1.msra.mxu0 0.0
        %1674 = vmatprep.subr.mxu0 0.0
        %1675 = vmatpush1.msra.mxu0 0.0
        %1676 = vmatprep.subr.mxu0 0.0
        %1677 = vmatpush1.msra.mxu0 0.0
        %1678 = vmatprep.subr.mxu0 0.0
        %1679 = vmatpush1.msra.mxu0 0.0
        %1680 = vmatprep.subr.mxu0 0.0
        %1681 = vmatpush1.msra.mxu0 0.0
        %1682 = vmatprep.subr.mxu0 0.0
        %1683 = vmatpush1.msra.mxu0 0.0
        %1684 = vmatprep.subr.mxu0 0.0
        %1685 = vmatpush1.msra.mxu0 0.0
        %1686 = vmatprep.subr.mxu0 0.0
        %1687 = vmatpush1.msra.mxu0 0.0
        %1688 = vmatprep.subr.mxu0 0.0
        %1689 = vmatpush1.msra.mxu0 0.0
        %1690 = vmatprep.subr.mxu0 0.0
        %1691 = vmatpush1.msra.mxu0 0.0
        %1692 = vmatprep.subr.mxu0 0.0
        %1693 = vmatpush1.msra.mxu0 0.0
        %1694 = vmatprep.subr.mxu0 0.0
        %1695 = vmatpush1.msra.mxu0 0.0
        %1696 = vmatprep.subr.mxu0 0.0
        %1697 = vmatpush1.msra.mxu0 0.0
        %1698 = vmatprep.subr.mxu0 0.0
        %1699 = vmatpush1.msra.mxu0 0.0
        %1700 = vmatprep.subr.mxu0 0.0
        %1701 = vmatpush1.msra.mxu0 0.0
        %1702 = vmatprep.subr.mxu0 0.0
        %1703 = vmatpush1.msra.mxu0 0.0
        %1704 = vmatprep.subr.mxu0 0.0
        %1705 = vmatpush1.msra.mxu0 0.0
        %1706 = vmatprep.subr.mxu0 0.0
        %1707 = vmatpush1.msra.mxu0 0.0
        %1708 = vmatprep.subr.mxu0 0.0
        %1709 = vmatpush1.msra.mxu0 0.0
        %1710 = vmatprep.subr.mxu0 0.0
        %1711 = vmatpush1.msra.mxu0 0.0
        %1712 = vmatprep.subr.mxu0 0.0
        %1713 = vmatpush1.msra.mxu0 0.0
        %1714 = vmatprep.subr.mxu0 0.0
        %1715 = vmatpush1.msra.mxu0 0.0
        %1716 = vmatprep.mubr.f32.mxu0 0.0
        %1717 = vmatmul.mubr.f32.gmra.mrb[0].mxu0 %v1646
        %v1718 = vpop.f32.mrb[0].mxu0
        %v1719 = vadd.f32 0.0, %v1718
        %v1720 = vpop.f32.mrb[0].mxu0
        %v1721 = vadd.f32 0.0, %v1720
        %1722 = vmatprep.mubr.f32.mxu0 0.0
        %1723 = vmatmul.mubr.f32.gmra.mrb[0].mxu0 %v1648
        %v1724 = vpop.f32.mrb[0].mxu0
        %v1725 = vadd.f32 0.0, %v1724
        %v1726 = vpop.f32.mrb[0].mxu0
        %v1727 = vadd.f32 0.0, %v1726
        %1728 = vmatprep.mubr.f32.mxu0 0.0
        %1729 = vmatmul.mubr.f32.gmra.mrb[0].mxu0 %v1650
        %v1730 = vpop.f32.mrb[0].mxu0
        %v1731 = vadd.f32 0.0, %v1730
        %v1732 = vpop.f32.mrb[0].mxu0
        %v1733 = vadd.f32 0.0, %v1732
        %1734 = vdwg.mxu0
        %v1735 = vadd.f32 %v1625, %v1719
        %v1736 = vadd.f32 %v1626, %v1721
        %v1737 = vadd.f32 %v1627, %v1725
        %v1738 = vadd.f32 %v1628, %v1727
        %v1739 = vadd.f32 %v1629, %v1731
        %v1740 = vadd.f32 %v1630, %v1733
        %s1741 = scalar_lea.vmem [#allocation2], 528
        %v1742 = vld [vmem:[%s1741] sm:$0xff]
        %v1743 = vld [vmem:[%s1741 + $0x8] sm:$0xff]
        %v1744 = vld [vmem:[%s1741 + $0x10] sm:$0xff]
        %v1745 = vld [vmem:[%s1741 + $0x18] sm:$0xff]
        %v1746 = vld [vmem:[%s1741 + $0x20] sm:$0xff]
        %v1747 = vld [vmem:[%s1741 + $0x28] sm:$0xff]
        %1748 = vrot.lane.b32.xlu0 %v1641, 127
        %v1749 = vpop.permute.xlu0 %1748
        %1750 = vrot.lane.b32.xlu0 %v1643, 127
        %v1751 = vpop.permute.xlu0 %1750
        %1752 = vrot.lane.b32.xlu0 %v1645, 127
        %v1753 = vpop.permute.xlu0 %1752
        %v1754 = vsel %vm585, %v1749, 0
        %v1756 = vsel %vm585, %v1751, 0
        %v1758 = vsel %vm585, %v1753, 0
        %1760 = vmatprep.subr.mxu0 %v1743
        %1761 = vmatpush1.msra.mxu0 %v1742
        %1762 = vmatprep.subr.mxu0 %v1745
        %1763 = vmatpush1.msra.mxu0 %v1744
        %1764 = vmatprep.subr.mxu0 %v1747
        %1765 = vmatpush1.msra.mxu0 %v1746
        %1766 = vmatprep.subr.mxu0 0.0
        %1767 = vmatpush1.msra.mxu0 0.0
        %1768 = vmatprep.subr.mxu0 0.0
        %1769 = vmatpush1.msra.mxu0 0.0
        %1770 = vmatprep.subr.mxu0 0.0
        %1771 = vmatpush1.msra.mxu0 0.0
        %1772 = vmatprep.subr.mxu0 0.0
        %1773 = vmatpush1.msra.mxu0 0.0
        %1774 = vmatprep.subr.mxu0 0.0
        %1775 = vmatpush1.msra.mxu0 0.0
        %1776 = vmatprep.subr.mxu0 0.0
        %1777 = vmatpush1.msra.mxu0 0.0
        %1778 = vmatprep.subr.mxu0 0.0
        %1779 = vmatpush1.msra.mxu0 0.0
        %1780 = vmatprep.subr.mxu0 0.0
        %1781 = vmatpush1.msra.mxu0 0.0
        %1782 = vmatprep.subr.mxu0 0.0
        %1783 = vmatpush1.msra.mxu0 0.0
        %1784 = vmatprep.subr.mxu0 0.0
        %1785 = vmatpush1.msra.mxu0 0.0
        %1786 = vmatprep.subr.mxu0 0.0
        %1787 = vmatpush1.msra.mxu0 0.0
        %1788 = vmatprep.subr.mxu0 0.0
        %1789 = vmatpush1.msra.mxu0 0.0
        %1790 = vmatprep.subr.mxu0 0.0
        %1791 = vmatpush1.msra.mxu0 0.0
        %1792 = vmatprep.subr.mxu0 0.0
        %1793 = vmatpush1.msra.mxu0 0.0
        %1794 = vmatprep.subr.mxu0 0.0
        %1795 = vmatpush1.msra.mxu0 0.0
        %1796 = vmatprep.subr.mxu0 0.0
        %1797 = vmatpush1.msra.mxu0 0.0
        %1798 = vmatprep.subr.mxu0 0.0
        %1799 = vmatpush1.msra.mxu0 0.0
        %1800 = vmatprep.subr.mxu0 0.0
        %1801 = vmatpush1.msra.mxu0 0.0
        %1802 = vmatprep.subr.mxu0 0.0
        %1803 = vmatpush1.msra.mxu0 0.0
        %1804 = vmatprep.subr.mxu0 0.0
        %1805 = vmatpush1.msra.mxu0 0.0
        %1806 = vmatprep.subr.mxu0 0.0
        %1807 = vmatpush1.msra.mxu0 0.0
        %1808 = vmatprep.subr.mxu0 0.0
        %1809 = vmatpush1.msra.mxu0 0.0
        %1810 = vmatprep.subr.mxu0 0.0
        %1811 = vmatpush1.msra.mxu0 0.0
        %1812 = vmatprep.subr.mxu0 0.0
        %1813 = vmatpush1.msra.mxu0 0.0
        %1814 = vmatprep.subr.mxu0 0.0
        %1815 = vmatpush1.msra.mxu0 0.0
        %1816 = vmatprep.subr.mxu0 0.0
        %1817 = vmatpush1.msra.mxu0 0.0
        %1818 = vmatprep.subr.mxu0 0.0
        %1819 = vmatpush1.msra.mxu0 0.0
        %1820 = vmatprep.subr.mxu0 0.0
        %1821 = vmatpush1.msra.mxu0 0.0
        %1822 = vmatprep.subr.mxu0 0.0
        %1823 = vmatpush1.msra.mxu0 0.0
        %1824 = vmatprep.mubr.f32.mxu0 0.0
        %1825 = vmatmul.mubr.f32.gmra.mrb[0].mxu0 %v1754
        %v1826 = vpop.f32.mrb[0].mxu0
        %v1827 = vadd.f32 0.0, %v1826
        %v1828 = vpop.f32.mrb[0].mxu0
        %v1829 = vadd.f32 0.0, %v1828
        %1830 = vmatprep.mubr.f32.mxu0 0.0
        %1831 = vmatmul.mubr.f32.gmra.mrb[0].mxu0 %v1756
        %v1832 = vpop.f32.mrb[0].mxu0
        %v1833 = vadd.f32 0.0, %v1832
        %v1834 = vpop.f32.mrb[0].mxu0
        %v1835 = vadd.f32 0.0, %v1834
        %1836 = vmatprep.mubr.f32.mxu0 0.0
        %1837 = vmatmul.mubr.f32.gmra.mrb[0].mxu0 %v1758
        %v1838 = vpop.f32.mrb[0].mxu0
        %v1839 = vadd.f32 0.0, %v1838
        %v1840 = vpop.f32.mrb[0].mxu0
        %v1841 = vadd.f32 0.0, %v1840
        %1842 = vdwg.mxu0
        %v1843 = vadd.f32 %v1735, %v1827
        %v1844 = vadd.f32 %v1736, %v1829
        %v1845 = vadd.f32 %v1737, %v1833
        %v1846 = vadd.f32 %v1738, %v1835
        %v1847 = vadd.f32 %v1739, %v1839
        %v1848 = vadd.f32 %v1740, %v1841
        %s1849 = scalar_lea.vmem [#allocation2], 576
        %v1850 = vld [vmem:[%s1849] sm:$0xff]
        %v1851 = vld [vmem:[%s1849 + $0x8] sm:$0xff]
        %v1852 = vld [vmem:[%s1849 + $0x10] sm:$0xff]
        %v1853 = vld [vmem:[%s1849 + $0x18] sm:$0xff]
        %v1854 = vld [vmem:[%s1849 + $0x20] sm:$0xff]
        %v1855 = vld [vmem:[%s1849 + $0x28] sm:$0xff]
        %1856 = vrot.lane.b32.xlu0 %v1641, 126
        %v1857 = vpop.permute.xlu0 %1856
        %1858 = vrot.lane.b32.xlu0 %v1643, 126
        %v1859 = vpop.permute.xlu0 %1858
        %1860 = vrot.lane.b32.xlu0 %v1645, 126
        %v1861 = vpop.permute.xlu0 %1860
        %v1862 = vsel %vm585, %v1857, 0
        %v1864 = vsel %vm585, %v1859, 0
        %v1866 = vsel %vm585, %v1861, 0
        %1868 = vmatprep.subr.mxu0 %v1851
        %1869 = vmatpush1.msra.mxu0 %v1850
        %1870 = vmatprep.subr.mxu0 %v1853
        %1871 = vmatpush1.msra.mxu0 %v1852
        %1872 = vmatprep.subr.mxu0 %v1855
        %1873 = vmatpush1.msra.mxu0 %v1854
        %1874 = vmatprep.subr.mxu0 0.0
        %1875 = vmatpush1.msra.mxu0 0.0
        %1876 = vmatprep.subr.mxu0 0.0
        %1877 = vmatpush1.msra.mxu0 0.0
        %1878 = vmatprep.subr.mxu0 0.0
        %1879 = vmatpush1.msra.mxu0 0.0
        %1880 = vmatprep.subr.mxu0 0.0
        %1881 = vmatpush1.msra.mxu0 0.0
        %1882 = vmatprep.subr.mxu0 0.0
        %1883 = vmatpush1.msra.mxu0 0.0
        %1884 = vmatprep.subr.mxu0 0.0
        %1885 = vmatpush1.msra.mxu0 0.0
        %1886 = vmatprep.subr.mxu0 0.0
        %1887 = vmatpush1.msra.mxu0 0.0
        %1888 = vmatprep.subr.mxu0 0.0
        %1889 = vmatpush1.msra.mxu0 0.0
        %1890 = vmatprep.subr.mxu0 0.0
        %1891 = vmatpush1.msra.mxu0 0.0
        %1892 = vmatprep.subr.mxu0 0.0
        %1893 = vmatpush1.msra.mxu0 0.0
        %1894 = vmatprep.subr.mxu0 0.0
        %1895 = vmatpush1.msra.mxu0 0.0
        %1896 = vmatprep.subr.mxu0 0.0
        %1897 = vmatpush1.msra.mxu0 0.0
        %1898 = vmatprep.subr.mxu0 0.0
        %1899 = vmatpush1.msra.mxu0 0.0
        %1900 = vmatprep.subr.mxu0 0.0
        %1901 = vmatpush1.msra.mxu0 0.0
        %1902 = vmatprep.subr.mxu0 0.0
        %1903 = vmatpush1.msra.mxu0 0.0
        %1904 = vmatprep.subr.mxu0 0.0
        %1905 = vmatpush1.msra.mxu0 0.0
        %1906 = vmatprep.subr.mxu0 0.0
        %1907 = vmatpush1.msra.mxu0 0.0
        %1908 = vmatprep.subr.mxu0 0.0
        %1909 = vmatpush1.msra.mxu0 0.0
        %1910 = vmatprep.subr.mxu0 0.0
        %1911 = vmatpush1.msra.mxu0 0.0
        %1912 = vmatprep.subr.mxu0 0.0
        %1913 = vmatpush1.msra.mxu0 0.0
        %1914 = vmatprep.subr.mxu0 0.0
        %1915 = vmatpush1.msra.mxu0 0.0
        %1916 = vmatprep.subr.mxu0 0.0
        %1917 = vmatpush1.msra.mxu0 0.0
        %1918 = vmatprep.subr.mxu0 0.0
        %1919 = vmatpush1.msra.mxu0 0.0
        %1920 = vmatprep.subr.mxu0 0.0
        %1921 = vmatpush1.msra.mxu0 0.0
        %1922 = vmatprep.subr.mxu0 0.0
        %1923 = vmatpush1.msra.mxu0 0.0
        %1924 = vmatprep.subr.mxu0 0.0
        %1925 = vmatpush1.msra.mxu0 0.0
        %1926 = vmatprep.subr.mxu0 0.0
        %1927 = vmatpush1.msra.mxu0 0.0
        %1928 = vmatprep.subr.mxu0 0.0
        %1929 = vmatpush1.msra.mxu0 0.0
        %1930 = vmatprep.subr.mxu0 0.0
        %1931 = vmatpush1.msra.mxu0 0.0
        %1932 = vmatprep.mubr.f32.mxu0 0.0
        %1933 = vmatmul.mubr.f32.gmra.mrb[0].mxu0 %v1862
        %v1934 = vpop.f32.mrb[0].mxu0
        %v1935 = vadd.f32 0.0, %v1934
        %v1936 = vpop.f32.mrb[0].mxu0
        %v1937 = vadd.f32 0.0, %v1936
        %1938 = vmatprep.mubr.f32.mxu0 0.0
        %1939 = vmatmul.mubr.f32.gmra.mrb[0].mxu0 %v1864
        %v1940 = vpop.f32.mrb[0].mxu0
        %v1941 = vadd.f32 0.0, %v1940
        %v1942 = vpop.f32.mrb[0].mxu0
        %v1943 = vadd.f32 0.0, %v1942
        %1944 = vmatprep.mubr.f32.mxu0 0.0
        %1945 = vmatmul.mubr.f32.gmra.mrb[0].mxu0 %v1866
        %v1946 = vpop.f32.mrb[0].mxu0
        %v1947 = vadd.f32 0.0, %v1946
        %v1948 = vpop.f32.mrb[0].mxu0
        %v1949 = vadd.f32 0.0, %v1948
        %1950 = vdwg.mxu0
        %v1951 = vadd.f32 %v1843, %v1935
        %v1952 = vadd.f32 %v1844, %v1937
        %v1953 = vadd.f32 %v1845, %v1941
        %v1954 = vadd.f32 %v1846, %v1943
        %v1955 = vadd.f32 %v1847, %v1947
        %v1956 = vadd.f32 %v1848, %v1949
        %s1957 = scalar_lea.vmem [#allocation2], 624
        %v1958 = vld [vmem:[%s1957] sm:$0xff]
        %v1959 = vld [vmem:[%s1957 + $0x8] sm:$0xff]
        %v1960 = vld [vmem:[%s1957 + $0x10] sm:$0xff]
        %v1961 = vld [vmem:[%s1957 + $0x18] sm:$0xff]
        %v1962 = vld [vmem:[%s1957 + $0x20] sm:$0xff]
        %v1963 = vld [vmem:[%s1957 + $0x28] sm:$0xff]
        %1964 = vrot.lane.b32.xlu0 %v1641, 125
        %v1965 = vpop.permute.xlu0 %1964
        %1966 = vrot.lane.b32.xlu0 %v1643, 125
        %v1967 = vpop.permute.xlu0 %1966
        %1968 = vrot.lane.b32.xlu0 %v1645, 125
        %v1969 = vpop.permute.xlu0 %1968
        %v1970 = vsel %vm585, %v1965, 0
        %v1972 = vsel %vm585, %v1967, 0
        %v1974 = vsel %vm585, %v1969, 0
        %1976 = vmatprep.subr.mxu0 %v1959
        %1977 = vmatpush1.msra.mxu0 %v1958
        %1978 = vmatprep.subr.mxu0 %v1961
        %1979 = vmatpush1.msra.mxu0 %v1960
        %1980 = vmatprep.subr.mxu0 %v1963
        %1981 = vmatpush1.msra.mxu0 %v1962
        %1982 = vmatprep.subr.mxu0 0.0
        %1983 = vmatpush1.msra.mxu0 0.0
        %1984 = vmatprep.subr.mxu0 0.0
        %1985 = vmatpush1.msra.mxu0 0.0
        %1986 = vmatprep.subr.mxu0 0.0
        %1987 = vmatpush1.msra.mxu0 0.0
        %1988 = vmatprep.subr.mxu0 0.0
        %1989 = vmatpush1.msra.mxu0 0.0
        %1990 = vmatprep.subr.mxu0 0.0
        %1991 = vmatpush1.msra.mxu0 0.0
        %1992 = vmatprep.subr.mxu0 0.0
        %1993 = vmatpush1.msra.mxu0 0.0
        %1994 = vmatprep.subr.mxu0 0.0
        %1995 = vmatpush1.msra.mxu0 0.0
        %1996 = vmatprep.subr.mxu0 0.0
        %1997 = vmatpush1.msra.mxu0 0.0
        %1998 = vmatprep.subr.mxu0 0.0
        %1999 = vmatpush1.msra.mxu0 0.0
        %2000 = vmatprep.subr.mxu0 0.0
        %2001 = vmatpush1.msra.mxu0 0.0
        %2002 = vmatprep.subr.mxu0 0.0
        %2003 = vmatpush1.msra.mxu0 0.0
        %2004 = vmatprep.subr.mxu0 0.0
        %2005 = vmatpush1.msra.mxu0 0.0
        %2006 = vmatprep.subr.mxu0 0.0
        %2007 = vmatpush1.msra.mxu0 0.0
        %2008 = vmatprep.subr.mxu0 0.0
        %2009 = vmatpush1.msra.mxu0 0.0
        %2010 = vmatprep.subr.mxu0 0.0
        %2011 = vmatpush1.msra.mxu0 0.0
        %2012 = vmatprep.subr.mxu0 0.0
        %2013 = vmatpush1.msra.mxu0 0.0
        %2014 = vmatprep.subr.mxu0 0.0
        %2015 = vmatpush1.msra.mxu0 0.0
        %2016 = vmatprep.subr.mxu0 0.0
        %2017 = vmatpush1.msra.mxu0 0.0
        %2018 = vmatprep.subr.mxu0 0.0
        %2019 = vmatpush1.msra.mxu0 0.0
        %2020 = vmatprep.subr.mxu0 0.0
        %2021 = vmatpush1.msra.mxu0 0.0
        %2022 = vmatprep.subr.mxu0 0.0
        %2023 = vmatpush1.msra.mxu0 0.0
        %2024 = vmatprep.subr.mxu0 0.0
        %2025 = vmatpush1.msra.mxu0 0.0
        %2026 = vmatprep.subr.mxu0 0.0
        %2027 = vmatpush1.msra.mxu0 0.0
        %2028 = vmatprep.subr.mxu0 0.0
        %2029 = vmatpush1.msra.mxu0 0.0
        %2030 = vmatprep.subr.mxu0 0.0
        %2031 = vmatpush1.msra.mxu0 0.0
        %2032 = vmatprep.subr.mxu0 0.0
        %2033 = vmatpush1.msra.mxu0 0.0
        %2034 = vmatprep.subr.mxu0 0.0
        %2035 = vmatpush1.msra.mxu0 0.0
        %2036 = vmatprep.subr.mxu0 0.0
        %2037 = vmatpush1.msra.mxu0 0.0
        %2038 = vmatprep.subr.mxu0 0.0
        %2039 = vmatpush1.msra.mxu0 0.0
        %2040 = vmatprep.mubr.f32.mxu0 0.0
        %2041 = vmatmul.mubr.f32.gmra.mrb[0].mxu0 %v1970
        %v2042 = vpop.f32.mrb[0].mxu0
        %v2043 = vadd.f32 0.0, %v2042
        %v2044 = vpop.f32.mrb[0].mxu0
        %v2045 = vadd.f32 0.0, %v2044
        %2046 = vmatprep.mubr.f32.mxu0 0.0
        %2047 = vmatmul.mubr.f32.gmra.mrb[0].mxu0 %v1972
        %v2048 = vpop.f32.mrb[0].mxu0
        %v2049 = vadd.f32 0.0, %v2048
        %v2050 = vpop.f32.mrb[0].mxu0
        %v2051 = vadd.f32 0.0, %v2050
        %2052 = vmatprep.mubr.f32.mxu0 0.0
        %2053 = vmatmul.mubr.f32.gmra.mrb[0].mxu0 %v1974
        %v2054 = vpop.f32.mrb[0].mxu0
        %v2055 = vadd.f32 0.0, %v2054
        %v2056 = vpop.f32.mrb[0].mxu0
        %v2057 = vadd.f32 0.0, %v2056
        %2058 = vdwg.mxu0
        %v2059 = vadd.f32 %v1951, %v2043
        %v2060 = vadd.f32 %v1952, %v2045
        %v2061 = vadd.f32 %v1953, %v2049
        %v2062 = vadd.f32 %v1954, %v2051
        %v2063 = vadd.f32 %v1955, %v2055
        %v2064 = vadd.f32 %v1956, %v2057
        %s2065 = scalar_lea.vmem [#allocation2], 672
        %v2066 = vld [vmem:[%s2065] sm:$0xff]
        %v2067 = vld [vmem:[%s2065 + $0x8] sm:$0xff]
        %v2068 = vld [vmem:[%s2065 + $0x10] sm:$0xff]
        %v2069 = vld [vmem:[%s2065 + $0x18] sm:$0xff]
        %v2070 = vld [vmem:[%s2065 + $0x20] sm:$0xff]
        %v2071 = vld [vmem:[%s2065 + $0x28] sm:$0xff]
        %2072 = vrot.lane.b32.xlu0 %v1641, 124
        %v2073 = vpop.permute.xlu0 %2072
        %2074 = vrot.lane.b32.xlu0 %v1643, 124
        %v2075 = vpop.permute.xlu0 %2074
        %2076 = vrot.lane.b32.xlu0 %v1645, 124
        %v2077 = vpop.permute.xlu0 %2076
        %v2078 = vsel %vm585, %v2073, 0
        %v2080 = vsel %vm585, %v2075, 0
        %v2082 = vsel %vm585, %v2077, 0
        %2084 = vmatprep.subr.mxu0 %v2067
        %2085 = vmatpush1.msra.mxu0 %v2066
        %2086 = vmatprep.subr.mxu0 %v2069
        %2087 = vmatpush1.msra.mxu0 %v2068
        %2088 = vmatprep.subr.mxu0 %v2071
        %2089 = vmatpush1.msra.mxu0 %v2070
        %2090 = vmatprep.subr.mxu0 0.0
        %2091 = vmatpush1.msra.mxu0 0.0
        %2092 = vmatprep.subr.mxu0 0.0
        %2093 = vmatpush1.msra.mxu0 0.0
        %2094 = vmatprep.subr.mxu0 0.0
        %2095 = vmatpush1.msra.mxu0 0.0
        %2096 = vmatprep.subr.mxu0 0.0
        %2097 = vmatpush1.msra.mxu0 0.0
        %2098 = vmatprep.subr.mxu0 0.0
        %2099 = vmatpush1.msra.mxu0 0.0
        %2100 = vmatprep.subr.mxu0 0.0
        %2101 = vmatpush1.msra.mxu0 0.0
        %2102 = vmatprep.subr.mxu0 0.0
        %2103 = vmatpush1.msra.mxu0 0.0
        %2104 = vmatprep.subr.mxu0 0.0
        %2105 = vmatpush1.msra.mxu0 0.0
        %2106 = vmatprep.subr.mxu0 0.0
        %2107 = vmatpush1.msra.mxu0 0.0
        %2108 = vmatprep.subr.mxu0 0.0
        %2109 = vmatpush1.msra.mxu0 0.0
        %2110 = vmatprep.subr.mxu0 0.0
        %2111 = vmatpush1.msra.mxu0 0.0
        %2112 = vmatprep.subr.mxu0 0.0
        %2113 = vmatpush1.msra.mxu0 0.0
        %2114 = vmatprep.subr.mxu0 0.0
        %2115 = vmatpush1.msra.mxu0 0.0
        %2116 = vmatprep.subr.mxu0 0.0
        %2117 = vmatpush1.msra.mxu0 0.0
        %2118 = vmatprep.subr.mxu0 0.0
        %2119 = vmatpush1.msra.mxu0 0.0
        %2120 = vmatprep.subr.mxu0 0.0
        %2121 = vmatpush1.msra.mxu0 0.0
        %2122 = vmatprep.subr.mxu0 0.0
        %2123 = vmatpush1.msra.mxu0 0.0
        %2124 = vmatprep.subr.mxu0 0.0
        %2125 = vmatpush1.msra.mxu0 0.0
        %2126 = vmatprep.subr.mxu0 0.0
        %2127 = vmatpush1.msra.mxu0 0.0
        %2128 = vmatprep.subr.mxu0 0.0
        %2129 = vmatpush1.msra.mxu0 0.0
        %2130 = vmatprep.subr.mxu0 0.0
        %2131 = vmatpush1.msra.mxu0 0.0
        %2132 = vmatprep.subr.mxu0 0.0
        %2133 = vmatpush1.msra.mxu0 0.0
        %2134 = vmatprep.subr.mxu0 0.0
        %2135 = vmatpush1.msra.mxu0 0.0
        %2136 = vmatprep.subr.mxu0 0.0
        %2137 = vmatpush1.msra.mxu0 0.0
        %2138 = vmatprep.subr.mxu0 0.0
        %2139 = vmatpush1.msra.mxu0 0.0
        %2140 = vmatprep.subr.mxu0 0.0
        %2141 = vmatpush1.msra.mxu0 0.0
        %2142 = vmatprep.subr.mxu0 0.0
        %2143 = vmatpush1.msra.mxu0 0.0
        %2144 = vmatprep.subr.mxu0 0.0
        %2145 = vmatpush1.msra.mxu0 0.0
        %2146 = vmatprep.subr.mxu0 0.0
        %2147 = vmatpush1.msra.mxu0 0.0
        %2148 = vmatprep.mubr.f32.mxu0 0.0
        %2149 = vmatmul.mubr.f32.gmra.mrb[0].mxu0 %v2078
        %v2150 = vpop.f32.mrb[0].mxu0
        %v2151 = vadd.f32 0.0, %v2150
        %v2152 = vpop.f32.mrb[0].mxu0
        %v2153 = vadd.f32 0.0, %v2152
        %2154 = vmatprep.mubr.f32.mxu0 0.0
        %2155 = vmatmul.mubr.f32.gmra.mrb[0].mxu0 %v2080
        %v2156 = vpop.f32.mrb[0].mxu0
        %v2157 = vadd.f32 0.0, %v2156
        %v2158 = vpop.f32.mrb[0].mxu0
        %v2159 = vadd.f32 0.0, %v2158
        %2160 = vmatprep.mubr.f32.mxu0 0.0
        %2161 = vmatmul.mubr.f32.gmra.mrb[0].mxu0 %v2082
        %v2162 = vpop.f32.mrb[0].mxu0
        %v2163 = vadd.f32 0.0, %v2162
        %v2164 = vpop.f32.mrb[0].mxu0
        %v2165 = vadd.f32 0.0, %v2164
        %2166 = vdwg.mxu0
        %v2167 = vadd.f32 %v2059, %v2151
        %v2168 = vadd.f32 %v2060, %v2153
        %v2169 = vadd.f32 %v2061, %v2157
        %v2170 = vadd.f32 %v2062, %v2159
        %v2171 = vadd.f32 %v2063, %v2163
        %v2172 = vadd.f32 %v2064, %v2165
        %s2173 = scalar_lea.vmem [#allocation2], 720
        %v2174 = vld [vmem:[%s2173] sm:$0xff]
        %v2175 = vld [vmem:[%s2173 + $0x8] sm:$0xff]
        %v2176 = vld [vmem:[%s2173 + $0x10] sm:$0xff]
        %v2177 = vld [vmem:[%s2173 + $0x18] sm:$0xff]
        %v2178 = vld [vmem:[%s2173 + $0x20] sm:$0xff]
        %v2179 = vld [vmem:[%s2173 + $0x28] sm:$0xff]
        %vm2180 = vcmask 1044480
        %v2181 = vrot.slane %v559, 3
        %v2182 = vrot.slane %v560, 3
        %v2183 = vsel %vm2180, %v2181, %v2182
        %v2184 = vrot.slane %v561, 3
        %v2185 = vsel %vm2180, %v2182, %v2184
        %v2186 = vrot.slane %v562, 3
        %v2187 = vsel %vm2180, %v2184, %v2186
        %v2188 = vsel %vm585, %v2183, 0
        %v2190 = vsel %vm585, %v2185, 0
        %v2192 = vsel %vm585, %v2187, 0
        %2194 = vmatprep.subr.mxu0 %v2175
        %2195 = vmatpush1.msra.mxu0 %v2174
        %2196 = vmatprep.subr.mxu0 %v2177
        %2197 = vmatpush1.msra.mxu0 %v2176
        %2198 = vmatprep.subr.mxu0 %v2179
        %2199 = vmatpush1.msra.mxu0 %v2178
        %2200 = vmatprep.subr.mxu0 0.0
        %2201 = vmatpush1.msra.mxu0 0.0
        %2202 = vmatprep.subr.mxu0 0.0
        %2203 = vmatpush1.msra.mxu0 0.0
        %2204 = vmatprep.subr.mxu0 0.0
        %2205 = vmatpush1.msra.mxu0 0.0
        %2206 = vmatprep.subr.mxu0 0.0
        %2207 = vmatpush1.msra.mxu0 0.0
        %2208 = vmatprep.subr.mxu0 0.0
        %2209 = vmatpush1.msra.mxu0 0.0
        %2210 = vmatprep.subr.mxu0 0.0
        %2211 = vmatpush1.msra.mxu0 0.0
        %2212 = vmatprep.subr.mxu0 0.0
        %2213 = vmatpush1.msra.mxu0 0.0
        %2214 = vmatprep.subr.mxu0 0.0
        %2215 = vmatpush1.msra.mxu0 0.0
        %2216 = vmatprep.subr.mxu0 0.0
        %2217 = vmatpush1.msra.mxu0 0.0
        %2218 = vmatprep.subr.mxu0 0.0
        %2219 = vmatpush1.msra.mxu0 0.0
        %2220 = vmatprep.subr.mxu0 0.0
        %2221 = vmatpush1.msra.mxu0 0.0
        %2222 = vmatprep.subr.mxu0 0.0
        %2223 = vmatpush1.msra.mxu0 0.0
        %2224 = vmatprep.subr.mxu0 0.0
        %2225 = vmatpush1.msra.mxu0 0.0
        %2226 = vmatprep.subr.mxu0 0.0
        %2227 = vmatpush1.msra.mxu0 0.0
        %2228 = vmatprep.subr.mxu0 0.0
        %2229 = vmatpush1.msra.mxu0 0.0
        %2230 = vmatprep.subr.mxu0 0.0
        %2231 = vmatpush1.msra.mxu0 0.0
        %2232 = vmatprep.subr.mxu0 0.0
        %2233 = vmatpush1.msra.mxu0 0.0
        %2234 = vmatprep.subr.mxu0 0.0
        %2235 = vmatpush1.msra.mxu0 0.0
        %2236 = vmatprep.subr.mxu0 0.0
        %2237 = vmatpush1.msra.mxu0 0.0
        %2238 = vmatprep.subr.mxu0 0.0
        %2239 = vmatpush1.msra.mxu0 0.0
        %2240 = vmatprep.subr.mxu0 0.0
        %2241 = vmatpush1.msra.mxu0 0.0
        %2242 = vmatprep.subr.mxu0 0.0
        %2243 = vmatpush1.msra.mxu0 0.0
        %2244 = vmatprep.subr.mxu0 0.0
        %2245 = vmatpush1.msra.mxu0 0.0
        %2246 = vmatprep.subr.mxu0 0.0
        %2247 = vmatpush1.msra.mxu0 0.0
        %2248 = vmatprep.subr.mxu0 0.0
        %2249 = vmatpush1.msra.mxu0 0.0
        %2250 = vmatprep.subr.mxu0 0.0
        %2251 = vmatpush1.msra.mxu0 0.0
        %2252 = vmatprep.subr.mxu0 0.0
        %2253 = vmatpush1.msra.mxu0 0.0
        %2254 = vmatprep.subr.mxu0 0.0
        %2255 = vmatpush1.msra.mxu0 0.0
        %2256 = vmatprep.subr.mxu0 0.0
        %2257 = vmatpush1.msra.mxu0 0.0
        %2258 = vmatprep.mubr.f32.mxu0 0.0
        %2259 = vmatmul.mubr.f32.gmra.mrb[0].mxu0 %v2188
        %v2260 = vpop.f32.mrb[0].mxu0
        %v2261 = vadd.f32 0.0, %v2260
        %v2262 = vpop.f32.mrb[0].mxu0
        %v2263 = vadd.f32 0.0, %v2262
        %2264 = vmatprep.mubr.f32.mxu0 0.0
        %2265 = vmatmul.mubr.f32.gmra.mrb[0].mxu0 %v2190
        %v2266 = vpop.f32.mrb[0].mxu0
        %v2267 = vadd.f32 0.0, %v2266
        %v2268 = vpop.f32.mrb[0].mxu0
        %v2269 = vadd.f32 0.0, %v2268
        %2270 = vmatprep.mubr.f32.mxu0 0.0
        %2271 = vmatmul.mubr.f32.gmra.mrb[0].mxu0 %v2192
        %v2272 = vpop.f32.mrb[0].mxu0
        %v2273 = vadd.f32 0.0, %v2272
        %v2274 = vpop.f32.mrb[0].mxu0
        %v2275 = vadd.f32 0.0, %v2274
        %2276 = vdwg.mxu0
        %v2277 = vadd.f32 %v2167, %v2261
        %v2278 = vadd.f32 %v2168, %v2263
        %v2279 = vadd.f32 %v2169, %v2267
        %v2280 = vadd.f32 %v2170, %v2269
        %v2281 = vadd.f32 %v2171, %v2273
        %v2282 = vadd.f32 %v2172, %v2275
        %s2283 = scalar_lea.vmem [#allocation2], 768
        %v2284 = vld [vmem:[%s2283] sm:$0xff]
        %v2285 = vld [vmem:[%s2283 + $0x8] sm:$0xff]
        %v2286 = vld [vmem:[%s2283 + $0x10] sm:$0xff]
        %v2287 = vld [vmem:[%s2283 + $0x18] sm:$0xff]
        %v2288 = vld [vmem:[%s2283 + $0x20] sm:$0xff]
        %v2289 = vld [vmem:[%s2283 + $0x28] sm:$0xff]
        %2290 = vrot.lane.b32.xlu0 %v2183, 127
        %v2291 = vpop.permute.xlu0 %2290
        %2292 = vrot.lane.b32.xlu0 %v2185, 127
        %v2293 = vpop.permute.xlu0 %2292
        %2294 = vrot.lane.b32.xlu0 %v2187, 127
        %v2295 = vpop.permute.xlu0 %2294
        %v2296 = vsel %vm585, %v2291, 0
        %v2298 = vsel %vm585, %v2293, 0
        %v2300 = vsel %vm585, %v2295, 0
        %2302 = vmatprep.subr.mxu0 %v2285
        %2303 = vmatpush1.msra.mxu0 %v2284
        %2304 = vmatprep.subr.mxu0 %v2287
        %2305 = vmatpush1.msra.mxu0 %v2286
        %2306 = vmatprep.subr.mxu0 %v2289
        %2307 = vmatpush1.msra.mxu0 %v2288
        %2308 = vmatprep.subr.mxu0 0.0
        %2309 = vmatpush1.msra.mxu0 0.0
        %2310 = vmatprep.subr.mxu0 0.0
        %2311 = vmatpush1.msra.mxu0 0.0
        %2312 = vmatprep.subr.mxu0 0.0
        %2313 = vmatpush1.msra.mxu0 0.0
        %2314 = vmatprep.subr.mxu0 0.0
        %2315 = vmatpush1.msra.mxu0 0.0
        %2316 = vmatprep.subr.mxu0 0.0
        %2317 = vmatpush1.msra.mxu0 0.0
        %2318 = vmatprep.subr.mxu0 0.0
        %2319 = vmatpush1.msra.mxu0 0.0
        %2320 = vmatprep.subr.mxu0 0.0
        %2321 = vmatpush1.msra.mxu0 0.0
        %2322 = vmatprep.subr.mxu0 0.0
        %2323 = vmatpush1.msra.mxu0 0.0
        %2324 = vmatprep.subr.mxu0 0.0
        %2325 = vmatpush1.msra.mxu0 0.0
        %2326 = vmatprep.subr.mxu0 0.0
        %2327 = vmatpush1.msra.mxu0 0.0
        %2328 = vmatprep.subr.mxu0 0.0
        %2329 = vmatpush1.msra.mxu0 0.0
        %2330 = vmatprep.subr.mxu0 0.0
        %2331 = vmatpush1.msra.mxu0 0.0
        %2332 = vmatprep.subr.mxu0 0.0
        %2333 = vmatpush1.msra.mxu0 0.0
        %2334 = vmatprep.subr.mxu0 0.0
        %2335 = vmatpush1.msra.mxu0 0.0
        %2336 = vmatprep.subr.mxu0 0.0
        %2337 = vmatpush1.msra.mxu0 0.0
        %2338 = vmatprep.subr.mxu0 0.0
        %2339 = vmatpush1.msra.mxu0 0.0
        %2340 = vmatprep.subr.mxu0 0.0
        %2341 = vmatpush1.msra.mxu0 0.0
        %2342 = vmatprep.subr.mxu0 0.0
        %2343 = vmatpush1.msra.mxu0 0.0
        %2344 = vmatprep.subr.mxu0 0.0
        %2345 = vmatpush1.msra.mxu0 0.0
        %2346 = vmatprep.subr.mxu0 0.0
        %2347 = vmatpush1.msra.mxu0 0.0
        %2348 = vmatprep.subr.mxu0 0.0
        %2349 = vmatpush1.msra.mxu0 0.0
        %2350 = vmatprep.subr.mxu0 0.0
        %2351 = vmatpush1.msra.mxu0 0.0
        %2352 = vmatprep.subr.mxu0 0.0
        %2353 = vmatpush1.msra.mxu0 0.0
        %2354 = vmatprep.subr.mxu0 0.0
        %2355 = vmatpush1.msra.mxu0 0.0
        %2356 = vmatprep.subr.mxu0 0.0
        %2357 = vmatpush1.msra.mxu0 0.0
        %2358 = vmatprep.subr.mxu0 0.0
        %2359 = vmatpush1.msra.mxu0 0.0
        %2360 = vmatprep.subr.mxu0 0.0
        %2361 = vmatpush1.msra.mxu0 0.0
        %2362 = vmatprep.subr.mxu0 0.0
        %2363 = vmatpush1.msra.mxu0 0.0
        %2364 = vmatprep.subr.mxu0 0.0
        %2365 = vmatpush1.msra.mxu0 0.0
        %2366 = vmatprep.mubr.f32.mxu0 0.0
        %2367 = vmatmul.mubr.f32.gmra.mrb[0].mxu0 %v2296
        %v2368 = vpop.f32.mrb[0].mxu0
        %v2369 = vadd.f32 0.0, %v2368
        %v2370 = vpop.f32.mrb[0].mxu0
        %v2371 = vadd.f32 0.0, %v2370
        %2372 = vmatprep.mubr.f32.mxu0 0.0
        %2373 = vmatmul.mubr.f32.gmra.mrb[0].mxu0 %v2298
        %v2374 = vpop.f32.mrb[0].mxu0
        %v2375 = vadd.f32 0.0, %v2374
        %v2376 = vpop.f32.mrb[0].mxu0
        %v2377 = vadd.f32 0.0, %v2376
        %2378 = vmatprep.mubr.f32.mxu0 0.0
        %2379 = vmatmul.mubr.f32.gmra.mrb[0].mxu0 %v2300
        %v2380 = vpop.f32.mrb[0].mxu0
        %v2381 = vadd.f32 0.0, %v2380
        %v2382 = vpop.f32.mrb[0].mxu0
        %v2383 = vadd.f32 0.0, %v2382
        %2384 = vdwg.mxu0
        %v2385 = vadd.f32 %v2277, %v2369
        %v2386 = vadd.f32 %v2278, %v2371
        %v2387 = vadd.f32 %v2279, %v2375
        %v2388 = vadd.f32 %v2280, %v2377
        %v2389 = vadd.f32 %v2281, %v2381
        %v2390 = vadd.f32 %v2282, %v2383
        %s2391 = scalar_lea.vmem [#allocation2], 816
        %v2392 = vld [vmem:[%s2391] sm:$0xff]
        %v2393 = vld [vmem:[%s2391 + $0x8] sm:$0xff]
        %v2394 = vld [vmem:[%s2391 + $0x10] sm:$0xff]
        %v2395 = vld [vmem:[%s2391 + $0x18] sm:$0xff]
        %v2396 = vld [vmem:[%s2391 + $0x20] sm:$0xff]
        %v2397 = vld [vmem:[%s2391 + $0x28] sm:$0xff]
        %2398 = vrot.lane.b32.xlu0 %v2183, 126
        %v2399 = vpop.permute.xlu0 %2398
        %2400 = vrot.lane.b32.xlu0 %v2185, 126
        %v2401 = vpop.permute.xlu0 %2400
        %2402 = vrot.lane.b32.xlu0 %v2187, 126
        %v2403 = vpop.permute.xlu0 %2402
        %v2404 = vsel %vm585, %v2399, 0
        %v2406 = vsel %vm585, %v2401, 0
        %v2408 = vsel %vm585, %v2403, 0
        %2410 = vmatprep.subr.mxu0 %v2393
        %2411 = vmatpush1.msra.mxu0 %v2392
        %2412 = vmatprep.subr.mxu0 %v2395
        %2413 = vmatpush1.msra.mxu0 %v2394
        %2414 = vmatprep.subr.mxu0 %v2397
        %2415 = vmatpush1.msra.mxu0 %v2396
        %2416 = vmatprep.subr.mxu0 0.0
        %2417 = vmatpush1.msra.mxu0 0.0
        %2418 = vmatprep.subr.mxu0 0.0
        %2419 = vmatpush1.msra.mxu0 0.0
        %2420 = vmatprep.subr.mxu0 0.0
        %2421 = vmatpush1.msra.mxu0 0.0
        %2422 = vmatprep.subr.mxu0 0.0
        %2423 = vmatpush1.msra.mxu0 0.0
        %2424 = vmatprep.subr.mxu0 0.0
        %2425 = vmatpush1.msra.mxu0 0.0
        %2426 = vmatprep.subr.mxu0 0.0
        %2427 = vmatpush1.msra.mxu0 0.0
        %2428 = vmatprep.subr.mxu0 0.0
        %2429 = vmatpush1.msra.mxu0 0.0
        %2430 = vmatprep.subr.mxu0 0.0
        %2431 = vmatpush1.msra.mxu0 0.0
        %2432 = vmatprep.subr.mxu0 0.0
        %2433 = vmatpush1.msra.mxu0 0.0
        %2434 = vmatprep.subr.mxu0 0.0
        %2435 = vmatpush1.msra.mxu0 0.0
        %2436 = vmatprep.subr.mxu0 0.0
        %2437 = vmatpush1.msra.mxu0 0.0
        %2438 = vmatprep.subr.mxu0 0.0
        %2439 = vmatpush1.msra.mxu0 0.0
        %2440 = vmatprep.subr.mxu0 0.0
        %2441 = vmatpush1.msra.mxu0 0.0
        %2442 = vmatprep.subr.mxu0 0.0
        %2443 = vmatpush1.msra.mxu0 0.0
        %2444 = vmatprep.subr.mxu0 0.0
        %2445 = vmatpush1.msra.mxu0 0.0
        %2446 = vmatprep.subr.mxu0 0.0
        %2447 = vmatpush1.msra.mxu0 0.0
        %2448 = vmatprep.subr.mxu0 0.0
        %2449 = vmatpush1.msra.mxu0 0.0
        %2450 = vmatprep.subr.mxu0 0.0
        %2451 = vmatpush1.msra.mxu0 0.0
        %2452 = vmatprep.subr.mxu0 0.0
        %2453 = vmatpush1.msra.mxu0 0.0
        %2454 = vmatprep.subr.mxu0 0.0
        %2455 = vmatpush1.msra.mxu0 0.0
        %2456 = vmatprep.subr.mxu0 0.0
        %2457 = vmatpush1.msra.mxu0 0.0
        %2458 = vmatprep.subr.mxu0 0.0
        %2459 = vmatpush1.msra.mxu0 0.0
        %2460 = vmatprep.subr.mxu0 0.0
        %2461 = vmatpush1.msra.mxu0 0.0
        %2462 = vmatprep.subr.mxu0 0.0
        %2463 = vmatpush1.msra.mxu0 0.0
        %2464 = vmatprep.subr.mxu0 0.0
        %2465 = vmatpush1.msra.mxu0 0.0
        %2466 = vmatprep.subr.mxu0 0.0
        %2467 = vmatpush1.msra.mxu0 0.0
        %2468 = vmatprep.subr.mxu0 0.0
        %2469 = vmatpush1.msra.mxu0 0.0
        %2470 = vmatprep.subr.mxu0 0.0
        %2471 = vmatpush1.msra.mxu0 0.0
        %2472 = vmatprep.subr.mxu0 0.0
        %2473 = vmatpush1.msra.mxu0 0.0
        %2474 = vmatprep.mubr.f32.mxu0 0.0
        %2475 = vmatmul.mubr.f32.gmra.mrb[0].mxu0 %v2404
        %v2476 = vpop.f32.mrb[0].mxu0
        %v2477 = vadd.f32 0.0, %v2476
        %v2478 = vpop.f32.mrb[0].mxu0
        %v2479 = vadd.f32 0.0, %v2478
        %2480 = vmatprep.mubr.f32.mxu0 0.0
        %2481 = vmatmul.mubr.f32.gmra.mrb[0].mxu0 %v2406
        %v2482 = vpop.f32.mrb[0].mxu0
        %v2483 = vadd.f32 0.0, %v2482
        %v2484 = vpop.f32.mrb[0].mxu0
        %v2485 = vadd.f32 0.0, %v2484
        %2486 = vmatprep.mubr.f32.mxu0 0.0
        %2487 = vmatmul.mubr.f32.gmra.mrb[0].mxu0 %v2408
        %v2488 = vpop.f32.mrb[0].mxu0
        %v2489 = vadd.f32 0.0, %v2488
        %v2490 = vpop.f32.mrb[0].mxu0
        %v2491 = vadd.f32 0.0, %v2490
        %2492 = vdwg.mxu0
        %v2493 = vadd.f32 %v2385, %v2477
        %v2494 = vadd.f32 %v2386, %v2479
        %v2495 = vadd.f32 %v2387, %v2483
        %v2496 = vadd.f32 %v2388, %v2485
        %v2497 = vadd.f32 %v2389, %v2489
        %v2498 = vadd.f32 %v2390, %v2491
        %s2499 = scalar_lea.vmem [#allocation2], 864
        %v2500 = vld [vmem:[%s2499] sm:$0xff]
        %v2501 = vld [vmem:[%s2499 + $0x8] sm:$0xff]
        %v2502 = vld [vmem:[%s2499 + $0x10] sm:$0xff]
        %v2503 = vld [vmem:[%s2499 + $0x18] sm:$0xff]
        %v2504 = vld [vmem:[%s2499 + $0x20] sm:$0xff]
        %v2505 = vld [vmem:[%s2499 + $0x28] sm:$0xff]
        %2506 = vrot.lane.b32.xlu0 %v2183, 125
        %v2507 = vpop.permute.xlu0 %2506
        %2508 = vrot.lane.b32.xlu0 %v2185, 125
        %v2509 = vpop.permute.xlu0 %2508
        %2510 = vrot.lane.b32.xlu0 %v2187, 125
        %v2511 = vpop.permute.xlu0 %2510
        %v2512 = vsel %vm585, %v2507, 0
        %v2514 = vsel %vm585, %v2509, 0
        %v2516 = vsel %vm585, %v2511, 0
        %2518 = vmatprep.subr.mxu0 %v2501
        %2519 = vmatpush1.msra.mxu0 %v2500
        %2520 = vmatprep.subr.mxu0 %v2503
        %2521 = vmatpush1.msra.mxu0 %v2502
        %2522 = vmatprep.subr.mxu0 %v2505
        %2523 = vmatpush1.msra.mxu0 %v2504
        %2524 = vmatprep.subr.mxu0 0.0
        %2525 = vmatpush1.msra.mxu0 0.0
        %2526 = vmatprep.subr.mxu0 0.0
        %2527 = vmatpush1.msra.mxu0 0.0
        %2528 = vmatprep.subr.mxu0 0.0
        %2529 = vmatpush1.msra.mxu0 0.0
        %2530 = vmatprep.subr.mxu0 0.0
        %2531 = vmatpush1.msra.mxu0 0.0
        %2532 = vmatprep.subr.mxu0 0.0
        %2533 = vmatpush1.msra.mxu0 0.0
        %2534 = vmatprep.subr.mxu0 0.0
        %2535 = vmatpush1.msra.mxu0 0.0
        %2536 = vmatprep.subr.mxu0 0.0
        %2537 = vmatpush1.msra.mxu0 0.0
        %2538 = vmatprep.subr.mxu0 0.0
        %2539 = vmatpush1.msra.mxu0 0.0
        %2540 = vmatprep.subr.mxu0 0.0
        %2541 = vmatpush1.msra.mxu0 0.0
        %2542 = vmatprep.subr.mxu0 0.0
        %2543 = vmatpush1.msra.mxu0 0.0
        %2544 = vmatprep.subr.mxu0 0.0
        %2545 = vmatpush1.msra.mxu0 0.0
        %2546 = vmatprep.subr.mxu0 0.0
        %2547 = vmatpush1.msra.mxu0 0.0
        %2548 = vmatprep.subr.mxu0 0.0
        %2549 = vmatpush1.msra.mxu0 0.0
        %2550 = vmatprep.subr.mxu0 0.0
        %2551 = vmatpush1.msra.mxu0 0.0
        %2552 = vmatprep.subr.mxu0 0.0
        %2553 = vmatpush1.msra.mxu0 0.0
        %2554 = vmatprep.subr.mxu0 0.0
        %2555 = vmatpush1.msra.mxu0 0.0
        %2556 = vmatprep.subr.mxu0 0.0
        %2557 = vmatpush1.msra.mxu0 0.0
        %2558 = vmatprep.subr.mxu0 0.0
        %2559 = vmatpush1.msra.mxu0 0.0
        %2560 = vmatprep.subr.mxu0 0.0
        %2561 = vmatpush1.msra.mxu0 0.0
        %2562 = vmatprep.subr.mxu0 0.0
        %2563 = vmatpush1.msra.mxu0 0.0
        %2564 = vmatprep.subr.mxu0 0.0
        %2565 = vmatpush1.msra.mxu0 0.0
        %2566 = vmatprep.subr.mxu0 0.0
        %2567 = vmatpush1.msra.mxu0 0.0
        %2568 = vmatprep.subr.mxu0 0.0
        %2569 = vmatpush1.msra.mxu0 0.0
        %2570 = vmatprep.subr.mxu0 0.0
        %2571 = vmatpush1.msra.mxu0 0.0
        %2572 = vmatprep.subr.mxu0 0.0
        %2573 = vmatpush1.msra.mxu0 0.0
        %2574 = vmatprep.subr.mxu0 0.0
        %2575 = vmatpush1.msra.mxu0 0.0
        %2576 = vmatprep.subr.mxu0 0.0
        %2577 = vmatpush1.msra.mxu0 0.0
        %2578 = vmatprep.subr.mxu0 0.0
        %2579 = vmatpush1.msra.mxu0 0.0
        %2580 = vmatprep.subr.mxu0 0.0
        %2581 = vmatpush1.msra.mxu0 0.0
        %2582 = vmatprep.mubr.f32.mxu0 0.0
        %2583 = vmatmul.mubr.f32.gmra.mrb[0].mxu0 %v2512
        %v2584 = vpop.f32.mrb[0].mxu0
        %v2585 = vadd.f32 0.0, %v2584
        %v2586 = vpop.f32.mrb[0].mxu0
        %v2587 = vadd.f32 0.0, %v2586
        %2588 = vmatprep.mubr.f32.mxu0 0.0
        %2589 = vmatmul.mubr.f32.gmra.mrb[0].mxu0 %v2514
        %v2590 = vpop.f32.mrb[0].mxu0
        %v2591 = vadd.f32 0.0, %v2590
        %v2592 = vpop.f32.mrb[0].mxu0
        %v2593 = vadd.f32 0.0, %v2592
        %2594 = vmatprep.mubr.f32.mxu0 0.0
        %2595 = vmatmul.mubr.f32.gmra.mrb[0].mxu0 %v2516
        %v2596 = vpop.f32.mrb[0].mxu0
        %v2597 = vadd.f32 0.0, %v2596
        %v2598 = vpop.f32.mrb[0].mxu0
        %v2599 = vadd.f32 0.0, %v2598
        %2600 = vdwg.mxu0
        %v2601 = vadd.f32 %v2493, %v2585
        %v2602 = vadd.f32 %v2494, %v2587
        %v2603 = vadd.f32 %v2495, %v2591
        %v2604 = vadd.f32 %v2496, %v2593
        %v2605 = vadd.f32 %v2497, %v2597
        %v2606 = vadd.f32 %v2498, %v2599
        %s2607 = scalar_lea.vmem [#allocation2], 912
        %v2608 = vld [vmem:[%s2607] sm:$0xff]
        %v2609 = vld [vmem:[%s2607 + $0x8] sm:$0xff]
        %v2610 = vld [vmem:[%s2607 + $0x10] sm:$0xff]
        %v2611 = vld [vmem:[%s2607 + $0x18] sm:$0xff]
        %v2612 = vld [vmem:[%s2607 + $0x20] sm:$0xff]
        %v2613 = vld [vmem:[%s2607 + $0x28] sm:$0xff]
        %2614 = vrot.lane.b32.xlu0 %v2183, 124
        %v2615 = vpop.permute.xlu0 %2614
        %2616 = vrot.lane.b32.xlu0 %v2185, 124
        %v2617 = vpop.permute.xlu0 %2616
        %2618 = vrot.lane.b32.xlu0 %v2187, 124
        %v2619 = vpop.permute.xlu0 %2618
        %v2620 = vsel %vm585, %v2615, 0
        %v2622 = vsel %vm585, %v2617, 0
        %v2624 = vsel %vm585, %v2619, 0
        %2626 = vmatprep.subr.mxu0 %v2609
        %2627 = vmatpush1.msra.mxu0 %v2608
        %2628 = vmatprep.subr.mxu0 %v2611
        %2629 = vmatpush1.msra.mxu0 %v2610
        %2630 = vmatprep.subr.mxu0 %v2613
        %2631 = vmatpush1.msra.mxu0 %v2612
        %2632 = vmatprep.subr.mxu0 0.0
        %2633 = vmatpush1.msra.mxu0 0.0
        %2634 = vmatprep.subr.mxu0 0.0
        %2635 = vmatpush1.msra.mxu0 0.0
        %2636 = vmatprep.subr.mxu0 0.0
        %2637 = vmatpush1.msra.mxu0 0.0
        %2638 = vmatprep.subr.mxu0 0.0
        %2639 = vmatpush1.msra.mxu0 0.0
        %2640 = vmatprep.subr.mxu0 0.0
        %2641 = vmatpush1.msra.mxu0 0.0
        %2642 = vmatprep.subr.mxu0 0.0
        %2643 = vmatpush1.msra.mxu0 0.0
        %2644 = vmatprep.subr.mxu0 0.0
        %2645 = vmatpush1.msra.mxu0 0.0
        %2646 = vmatprep.subr.mxu0 0.0
        %2647 = vmatpush1.msra.mxu0 0.0
        %2648 = vmatprep.subr.mxu0 0.0
        %2649 = vmatpush1.msra.mxu0 0.0
        %2650 = vmatprep.subr.mxu0 0.0
        %2651 = vmatpush1.msra.mxu0 0.0
        %2652 = vmatprep.subr.mxu0 0.0
        %2653 = vmatpush1.msra.mxu0 0.0
        %2654 = vmatprep.subr.mxu0 0.0
        %2655 = vmatpush1.msra.mxu0 0.0
        %2656 = vmatprep.subr.mxu0 0.0
        %2657 = vmatpush1.msra.mxu0 0.0
        %2658 = vmatprep.subr.mxu0 0.0
        %2659 = vmatpush1.msra.mxu0 0.0
        %2660 = vmatprep.subr.mxu0 0.0
        %2661 = vmatpush1.msra.mxu0 0.0
        %2662 = vmatprep.subr.mxu0 0.0
        %2663 = vmatpush1.msra.mxu0 0.0
        %2664 = vmatprep.subr.mxu0 0.0
        %2665 = vmatpush1.msra.mxu0 0.0
        %2666 = vmatprep.subr.mxu0 0.0
        %2667 = vmatpush1.msra.mxu0 0.0
        %2668 = vmatprep.subr.mxu0 0.0
        %2669 = vmatpush1.msra.mxu0 0.0
        %2670 = vmatprep.subr.mxu0 0.0
        %2671 = vmatpush1.msra.mxu0 0.0
        %2672 = vmatprep.subr.mxu0 0.0
        %2673 = vmatpush1.msra.mxu0 0.0
        %2674 = vmatprep.subr.mxu0 0.0
        %2675 = vmatpush1.msra.mxu0 0.0
        %2676 = vmatprep.subr.mxu0 0.0
        %2677 = vmatpush1.msra.mxu0 0.0
        %2678 = vmatprep.subr.mxu0 0.0
        %2679 = vmatpush1.msra.mxu0 0.0
        %2680 = vmatprep.subr.mxu0 0.0
        %2681 = vmatpush1.msra.mxu0 0.0
        %2682 = vmatprep.subr.mxu0 0.0
        %2683 = vmatpush1.msra.mxu0 0.0
        %2684 = vmatprep.subr.mxu0 0.0
        %2685 = vmatpush1.msra.mxu0 0.0
        %2686 = vmatprep.subr.mxu0 0.0
        %2687 = vmatpush1.msra.mxu0 0.0
        %2688 = vmatprep.subr.mxu0 0.0
        %2689 = vmatpush1.msra.mxu0 0.0
        %2690 = vmatprep.mubr.f32.mxu0 0.0
        %2691 = vmatmul.mubr.f32.gmra.mrb[0].mxu0 %v2620
        %v2692 = vpop.f32.mrb[0].mxu0
        %v2693 = vadd.f32 0.0, %v2692
        %v2694 = vpop.f32.mrb[0].mxu0
        %v2695 = vadd.f32 0.0, %v2694
        %2696 = vmatprep.mubr.f32.mxu0 0.0
        %2697 = vmatmul.mubr.f32.gmra.mrb[0].mxu0 %v2622
        %v2698 = vpop.f32.mrb[0].mxu0
        %v2699 = vadd.f32 0.0, %v2698
        %v2700 = vpop.f32.mrb[0].mxu0
        %v2701 = vadd.f32 0.0, %v2700
        %2702 = vmatprep.mubr.f32.mxu0 0.0
        %2703 = vmatmul.mubr.f32.gmra.mrb[0].mxu0 %v2624
        %v2704 = vpop.f32.mrb[0].mxu0
        %v2705 = vadd.f32 0.0, %v2704
        %v2706 = vpop.f32.mrb[0].mxu0
        %v2707 = vadd.f32 0.0, %v2706
        %2708 = vdwg.mxu0
        %v2709 = vadd.f32 %v2601, %v2693
        %v2710 = vadd.f32 %v2602, %v2695
        %v2711 = vadd.f32 %v2603, %v2699
        %v2712 = vadd.f32 %v2604, %v2701
        %v2713 = vadd.f32 %v2605, %v2705
        %v2714 = vadd.f32 %v2606, %v2707
        %s2715 = scalar_lea.vmem [#allocation2], 960
        %v2716 = vld [vmem:[%s2715] sm:$0xff]
        %v2717 = vld [vmem:[%s2715 + $0x8] sm:$0xff]
        %v2718 = vld [vmem:[%s2715 + $0x10] sm:$0xff]
        %v2719 = vld [vmem:[%s2715 + $0x18] sm:$0xff]
        %v2720 = vld [vmem:[%s2715 + $0x20] sm:$0xff]
        %v2721 = vld [vmem:[%s2715 + $0x28] sm:$0xff]
        %vm2722 = vcmask 1043456
        %v2723 = vrot.slane %v559, 4
        %v2724 = vrot.slane %v560, 4
        %v2725 = vsel %vm2722, %v2723, %v2724
        %v2726 = vrot.slane %v561, 4
        %v2727 = vsel %vm2722, %v2724, %v2726
        %v2728 = vrot.slane %v562, 4
        %v2729 = vsel %vm2722, %v2726, %v2728
        %v2730 = vsel %vm585, %v2725, 0
        %v2732 = vsel %vm585, %v2727, 0
        %v2734 = vsel %vm585, %v2729, 0
        %2736 = vmatprep.subr.mxu0 %v2717
        %2737 = vmatpush1.msra.mxu0 %v2716
        %2738 = vmatprep.subr.mxu0 %v2719
        %2739 = vmatpush1.msra.mxu0 %v2718
        %2740 = vmatprep.subr.mxu0 %v2721
        %2741 = vmatpush1.msra.mxu0 %v2720
        %2742 = vmatprep.subr.mxu0 0.0
        %2743 = vmatpush1.msra.mxu0 0.0
        %2744 = vmatprep.subr.mxu0 0.0
        %2745 = vmatpush1.msra.mxu0 0.0
        %2746 = vmatprep.subr.mxu0 0.0
        %2747 = vmatpush1.msra.mxu0 0.0
        %2748 = vmatprep.subr.mxu0 0.0
        %2749 = vmatpush1.msra.mxu0 0.0
        %2750 = vmatprep.subr.mxu0 0.0
        %2751 = vmatpush1.msra.mxu0 0.0
        %2752 = vmatprep.subr.mxu0 0.0
        %2753 = vmatpush1.msra.mxu0 0.0
        %2754 = vmatprep.subr.mxu0 0.0
        %2755 = vmatpush1.msra.mxu0 0.0
        %2756 = vmatprep.subr.mxu0 0.0
        %2757 = vmatpush1.msra.mxu0 0.0
        %2758 = vmatprep.subr.mxu0 0.0
        %2759 = vmatpush1.msra.mxu0 0.0
        %2760 = vmatprep.subr.mxu0 0.0
        %2761 = vmatpush1.msra.mxu0 0.0
        %2762 = vmatprep.subr.mxu0 0.0
        %2763 = vmatpush1.msra.mxu0 0.0
        %2764 = vmatprep.subr.mxu0 0.0
        %2765 = vmatpush1.msra.mxu0 0.0
        %2766 = vmatprep.subr.mxu0 0.0
        %2767 = vmatpush1.msra.mxu0 0.0
        %2768 = vmatprep.subr.mxu0 0.0
        %2769 = vmatpush1.msra.mxu0 0.0
        %2770 = vmatprep.subr.mxu0 0.0
        %2771 = vmatpush1.msra.mxu0 0.0
        %2772 = vmatprep.subr.mxu0 0.0
        %2773 = vmatpush1.msra.mxu0 0.0
        %2774 = vmatprep.subr.mxu0 0.0
        %2775 = vmatpush1.msra.mxu0 0.0
        %2776 = vmatprep.subr.mxu0 0.0
        %2777 = vmatpush1.msra.mxu0 0.0
        %2778 = vmatprep.subr.mxu0 0.0
        %2779 = vmatpush1.msra.mxu0 0.0
        %2780 = vmatprep.subr.mxu0 0.0
        %2781 = vmatpush1.msra.mxu0 0.0
        %2782 = vmatprep.subr.mxu0 0.0
        %2783 = vmatpush1.msra.mxu0 0.0
        %2784 = vmatprep.subr.mxu0 0.0
        %2785 = vmatpush1.msra.mxu0 0.0
        %2786 = vmatprep.subr.mxu0 0.0
        %2787 = vmatpush1.msra.mxu0 0.0
        %2788 = vmatprep.subr.mxu0 0.0
        %2789 = vmatpush1.msra.mxu0 0.0
        %2790 = vmatprep.subr.mxu0 0.0
        %2791 = vmatpush1.msra.mxu0 0.0
        %2792 = vmatprep.subr.mxu0 0.0
        %2793 = vmatpush1.msra.mxu0 0.0
        %2794 = vmatprep.subr.mxu0 0.0
        %2795 = vmatpush1.msra.mxu0 0.0
        %2796 = vmatprep.subr.mxu0 0.0
        %2797 = vmatpush1.msra.mxu0 0.0
        %2798 = vmatprep.subr.mxu0 0.0
        %2799 = vmatpush1.msra.mxu0 0.0
        %2800 = vmatprep.mubr.f32.mxu0 0.0
        %2801 = vmatmul.mubr.f32.gmra.mrb[0].mxu0 %v2730
        %v2802 = vpop.f32.mrb[0].mxu0
        %v2803 = vadd.f32 0.0, %v2802
        %v2804 = vpop.f32.mrb[0].mxu0
        %v2805 = vadd.f32 0.0, %v2804
        %2806 = vmatprep.mubr.f32.mxu0 0.0
        %2807 = vmatmul.mubr.f32.gmra.mrb[0].mxu0 %v2732
        %v2808 = vpop.f32.mrb[0].mxu0
        %v2809 = vadd.f32 0.0, %v2808
        %v2810 = vpop.f32.mrb[0].mxu0
        %v2811 = vadd.f32 0.0, %v2810
        %2812 = vmatprep.mubr.f32.mxu0 0.0
        %2813 = vmatmul.mubr.f32.gmra.mrb[0].mxu0 %v2734
        %v2814 = vpop.f32.mrb[0].mxu0
        %v2815 = vadd.f32 0.0, %v2814
        %v2816 = vpop.f32.mrb[0].mxu0
        %v2817 = vadd.f32 0.0, %v2816
        %2818 = vdwg.mxu0
        %v2819 = vadd.f32 %v2709, %v2803
        %v2820 = vadd.f32 %v2710, %v2805
        %v2821 = vadd.f32 %v2711, %v2809
        %v2822 = vadd.f32 %v2712, %v2811
        %v2823 = vadd.f32 %v2713, %v2815
        %v2824 = vadd.f32 %v2714, %v2817
        %s2825 = scalar_lea.vmem [#allocation2], 1008
        %v2826 = vld [vmem:[%s2825] sm:$0xff]
        %v2827 = vld [vmem:[%s2825 + $0x8] sm:$0xff]
        %v2828 = vld [vmem:[%s2825 + $0x10] sm:$0xff]
        %v2829 = vld [vmem:[%s2825 + $0x18] sm:$0xff]
        %v2830 = vld [vmem:[%s2825 + $0x20] sm:$0xff]
        %v2831 = vld [vmem:[%s2825 + $0x28] sm:$0xff]
        %2832 = vrot.lane.b32.xlu0 %v2725, 127
        %v2833 = vpop.permute.xlu0 %2832
        %2834 = vrot.lane.b32.xlu0 %v2727, 127
        %v2835 = vpop.permute.xlu0 %2834
        %2836 = vrot.lane.b32.xlu0 %v2729, 127
        %v2837 = vpop.permute.xlu0 %2836
        %v2838 = vsel %vm585, %v2833, 0
        %v2840 = vsel %vm585, %v2835, 0
        %v2842 = vsel %vm585, %v2837, 0
        %2844 = vmatprep.subr.mxu0 %v2827
        %2845 = vmatpush1.msra.mxu0 %v2826
        %2846 = vmatprep.subr.mxu0 %v2829
        %2847 = vmatpush1.msra.mxu0 %v2828
        %2848 = vmatprep.subr.mxu0 %v2831
        %2849 = vmatpush1.msra.mxu0 %v2830
        %2850 = vmatprep.subr.mxu0 0.0
        %2851 = vmatpush1.msra.mxu0 0.0
        %2852 = vmatprep.subr.mxu0 0.0
        %2853 = vmatpush1.msra.mxu0 0.0
        %2854 = vmatprep.subr.mxu0 0.0
        %2855 = vmatpush1.msra.mxu0 0.0
        %2856 = vmatprep.subr.mxu0 0.0
        %2857 = vmatpush1.msra.mxu0 0.0
        %2858 = vmatprep.subr.mxu0 0.0
        %2859 = vmatpush1.msra.mxu0 0.0
        %2860 = vmatprep.subr.mxu0 0.0
        %2861 = vmatpush1.msra.mxu0 0.0
        %2862 = vmatprep.subr.mxu0 0.0
        %2863 = vmatpush1.msra.mxu0 0.0
        %2864 = vmatprep.subr.mxu0 0.0
        %2865 = vmatpush1.msra.mxu0 0.0
        %2866 = vmatprep.subr.mxu0 0.0
        %2867 = vmatpush1.msra.mxu0 0.0
        %2868 = vmatprep.subr.mxu0 0.0
        %2869 = vmatpush1.msra.mxu0 0.0
        %2870 = vmatprep.subr.mxu0 0.0
        %2871 = vmatpush1.msra.mxu0 0.0
        %2872 = vmatprep.subr.mxu0 0.0
        %2873 = vmatpush1.msra.mxu0 0.0
        %2874 = vmatprep.subr.mxu0 0.0
        %2875 = vmatpush1.msra.mxu0 0.0
        %2876 = vmatprep.subr.mxu0 0.0
        %2877 = vmatpush1.msra.mxu0 0.0
        %2878 = vmatprep.subr.mxu0 0.0
        %2879 = vmatpush1.msra.mxu0 0.0
        %2880 = vmatprep.subr.mxu0 0.0
        %2881 = vmatpush1.msra.mxu0 0.0
        %2882 = vmatprep.subr.mxu0 0.0
        %2883 = vmatpush1.msra.mxu0 0.0
        %2884 = vmatprep.subr.mxu0 0.0
        %2885 = vmatpush1.msra.mxu0 0.0
        %2886 = vmatprep.subr.mxu0 0.0
        %2887 = vmatpush1.msra.mxu0 0.0
        %2888 = vmatprep.subr.mxu0 0.0
        %2889 = vmatpush1.msra.mxu0 0.0
        %2890 = vmatprep.subr.mxu0 0.0
        %2891 = vmatpush1.msra.mxu0 0.0
        %2892 = vmatprep.subr.mxu0 0.0
        %2893 = vmatpush1.msra.mxu0 0.0
        %2894 = vmatprep.subr.mxu0 0.0
        %2895 = vmatpush1.msra.mxu0 0.0
        %2896 = vmatprep.subr.mxu0 0.0
        %2897 = vmatpush1.msra.mxu0 0.0
        %2898 = vmatprep.subr.mxu0 0.0
        %2899 = vmatpush1.msra.mxu0 0.0
        %2900 = vmatprep.subr.mxu0 0.0
        %2901 = vmatpush1.msra.mxu0 0.0
        %2902 = vmatprep.subr.mxu0 0.0
        %2903 = vmatpush1.msra.mxu0 0.0
        %2904 = vmatprep.subr.mxu0 0.0
        %2905 = vmatpush1.msra.mxu0 0.0
        %2906 = vmatprep.subr.mxu0 0.0
        %2907 = vmatpush1.msra.mxu0 0.0
        %2908 = vmatprep.mubr.f32.mxu0 0.0
        %2909 = vmatmul.mubr.f32.gmra.mrb[0].mxu0 %v2838
        %v2910 = vpop.f32.mrb[0].mxu0
        %v2911 = vadd.f32 0.0, %v2910
        %v2912 = vpop.f32.mrb[0].mxu0
        %v2913 = vadd.f32 0.0, %v2912
        %2914 = vmatprep.mubr.f32.mxu0 0.0
        %2915 = vmatmul.mubr.f32.gmra.mrb[0].mxu0 %v2840
        %v2916 = vpop.f32.mrb[0].mxu0
        %v2917 = vadd.f32 0.0, %v2916
        %v2918 = vpop.f32.mrb[0].mxu0
        %v2919 = vadd.f32 0.0, %v2918
        %2920 = vmatprep.mubr.f32.mxu0 0.0
        %2921 = vmatmul.mubr.f32.gmra.mrb[0].mxu0 %v2842
        %v2922 = vpop.f32.mrb[0].mxu0
        %v2923 = vadd.f32 0.0, %v2922
        %v2924 = vpop.f32.mrb[0].mxu0
        %v2925 = vadd.f32 0.0, %v2924
        %2926 = vdwg.mxu0
        %v2927 = vadd.f32 %v2819, %v2911
        %v2928 = vadd.f32 %v2820, %v2913
        %v2929 = vadd.f32 %v2821, %v2917
        %v2930 = vadd.f32 %v2822, %v2919
        %v2931 = vadd.f32 %v2823, %v2923
        %v2932 = vadd.f32 %v2824, %v2925
        %s2933 = scalar_lea.vmem [#allocation2], 1056
        %v2934 = vld [vmem:[%s2933] sm:$0xff]
        %v2935 = vld [vmem:[%s2933 + $0x8] sm:$0xff]
        %v2936 = vld [vmem:[%s2933 + $0x10] sm:$0xff]
        %v2937 = vld [vmem:[%s2933 + $0x18] sm:$0xff]
        %v2938 = vld [vmem:[%s2933 + $0x20] sm:$0xff]
        %v2939 = vld [vmem:[%s2933 + $0x28] sm:$0xff]
        %2940 = vrot.lane.b32.xlu0 %v2725, 126
        %v2941 = vpop.permute.xlu0 %2940
        %2942 = vrot.lane.b32.xlu0 %v2727, 126
        %v2943 = vpop.permute.xlu0 %2942
        %2944 = vrot.lane.b32.xlu0 %v2729, 126
        %v2945 = vpop.permute.xlu0 %2944
        %v2946 = vsel %vm585, %v2941, 0
        %v2948 = vsel %vm585, %v2943, 0
        %v2950 = vsel %vm585, %v2945, 0
        %2952 = vmatprep.subr.mxu0 %v2935
        %2953 = vmatpush1.msra.mxu0 %v2934
        %2954 = vmatprep.subr.mxu0 %v2937
        %2955 = vmatpush1.msra.mxu0 %v2936
        %2956 = vmatprep.subr.mxu0 %v2939
        %2957 = vmatpush1.msra.mxu0 %v2938
        %2958 = vmatprep.subr.mxu0 0.0
        %2959 = vmatpush1.msra.mxu0 0.0
        %2960 = vmatprep.subr.mxu0 0.0
        %2961 = vmatpush1.msra.mxu0 0.0
        %2962 = vmatprep.subr.mxu0 0.0
        %2963 = vmatpush1.msra.mxu0 0.0
        %2964 = vmatprep.subr.mxu0 0.0
        %2965 = vmatpush1.msra.mxu0 0.0
        %2966 = vmatprep.subr.mxu0 0.0
        %2967 = vmatpush1.msra.mxu0 0.0
        %2968 = vmatprep.subr.mxu0 0.0
        %2969 = vmatpush1.msra.mxu0 0.0
        %2970 = vmatprep.subr.mxu0 0.0
        %2971 = vmatpush1.msra.mxu0 0.0
        %2972 = vmatprep.subr.mxu0 0.0
        %2973 = vmatpush1.msra.mxu0 0.0
        %2974 = vmatprep.subr.mxu0 0.0
        %2975 = vmatpush1.msra.mxu0 0.0
        %2976 = vmatprep.subr.mxu0 0.0
        %2977 = vmatpush1.msra.mxu0 0.0
        %2978 = vmatprep.subr.mxu0 0.0
        %2979 = vmatpush1.msra.mxu0 0.0
        %2980 = vmatprep.subr.mxu0 0.0
        %2981 = vmatpush1.msra.mxu0 0.0
        %2982 = vmatprep.subr.mxu0 0.0
        %2983 = vmatpush1.msra.mxu0 0.0
        %2984 = vmatprep.subr.mxu0 0.0
        %2985 = vmatpush1.msra.mxu0 0.0
        %2986 = vmatprep.subr.mxu0 0.0
        %2987 = vmatpush1.msra.mxu0 0.0
        %2988 = vmatprep.subr.mxu0 0.0
        %2989 = vmatpush1.msra.mxu0 0.0
        %2990 = vmatprep.subr.mxu0 0.0
        %2991 = vmatpush1.msra.mxu0 0.0
        %2992 = vmatprep.subr.mxu0 0.0
        %2993 = vmatpush1.msra.mxu0 0.0
        %2994 = vmatprep.subr.mxu0 0.0
        %2995 = vmatpush1.msra.mxu0 0.0
        %2996 = vmatprep.subr.mxu0 0.0
        %2997 = vmatpush1.msra.mxu0 0.0
        %2998 = vmatprep.subr.mxu0 0.0
        %2999 = vmatpush1.msra.mxu0 0.0
        %3000 = vmatprep.subr.mxu0 0.0
        %3001 = vmatpush1.msra.mxu0 0.0
        %3002 = vmatprep.subr.mxu0 0.0
        %3003 = vmatpush1.msra.mxu0 0.0
        %3004 = vmatprep.subr.mxu0 0.0
        %3005 = vmatpush1.msra.mxu0 0.0
        %3006 = vmatprep.subr.mxu0 0.0
        %3007 = vmatpush1.msra.mxu0 0.0
        %3008 = vmatprep.subr.mxu0 0.0
        %3009 = vmatpush1.msra.mxu0 0.0
        %3010 = vmatprep.subr.mxu0 0.0
        %3011 = vmatpush1.msra.mxu0 0.0
        %3012 = vmatprep.subr.mxu0 0.0
        %3013 = vmatpush1.msra.mxu0 0.0
        %3014 = vmatprep.subr.mxu0 0.0
        %3015 = vmatpush1.msra.mxu0 0.0
        %3016 = vmatprep.mubr.f32.mxu0 0.0
        %3017 = vmatmul.mubr.f32.gmra.mrb[0].mxu0 %v2946
        %v3018 = vpop.f32.mrb[0].mxu0
        %v3019 = vadd.f32 0.0, %v3018
        %v3020 = vpop.f32.mrb[0].mxu0
        %v3021 = vadd.f32 0.0, %v3020
        %3022 = vmatprep.mubr.f32.mxu0 0.0
        %3023 = vmatmul.mubr.f32.gmra.mrb[0].mxu0 %v2948
        %v3024 = vpop.f32.mrb[0].mxu0
        %v3025 = vadd.f32 0.0, %v3024
        %v3026 = vpop.f32.mrb[0].mxu0
        %v3027 = vadd.f32 0.0, %v3026
        %3028 = vmatprep.mubr.f32.mxu0 0.0
        %3029 = vmatmul.mubr.f32.gmra.mrb[0].mxu0 %v2950
        %v3030 = vpop.f32.mrb[0].mxu0
        %v3031 = vadd.f32 0.0, %v3030
        %v3032 = vpop.f32.mrb[0].mxu0
        %v3033 = vadd.f32 0.0, %v3032
        %3034 = vdwg.mxu0
        %v3035 = vadd.f32 %v2927, %v3019
        %v3036 = vadd.f32 %v2928, %v3021
        %v3037 = vadd.f32 %v2929, %v3025
        %v3038 = vadd.f32 %v2930, %v3027
        %v3039 = vadd.f32 %v2931, %v3031
        %v3040 = vadd.f32 %v2932, %v3033
        %s3041 = scalar_lea.vmem [#allocation2], 1104
        %v3042 = vld [vmem:[%s3041] sm:$0xff]
        %v3043 = vld [vmem:[%s3041 + $0x8] sm:$0xff]
        %v3044 = vld [vmem:[%s3041 + $0x10] sm:$0xff]
        %v3045 = vld [vmem:[%s3041 + $0x18] sm:$0xff]
        %v3046 = vld [vmem:[%s3041 + $0x20] sm:$0xff]
        %v3047 = vld [vmem:[%s3041 + $0x28] sm:$0xff]
        %3048 = vrot.lane.b32.xlu0 %v2725, 125
        %v3049 = vpop.permute.xlu0 %3048
        %3050 = vrot.lane.b32.xlu0 %v2727, 125
        %v3051 = vpop.permute.xlu0 %3050
        %3052 = vrot.lane.b32.xlu0 %v2729, 125
        %v3053 = vpop.permute.xlu0 %3052
        %v3054 = vsel %vm585, %v3049, 0
        %v3056 = vsel %vm585, %v3051, 0
        %v3058 = vsel %vm585, %v3053, 0
        %3060 = vmatprep.subr.mxu0 %v3043
        %3061 = vmatpush1.msra.mxu0 %v3042
        %3062 = vmatprep.subr.mxu0 %v3045
        %3063 = vmatpush1.msra.mxu0 %v3044
        %3064 = vmatprep.subr.mxu0 %v3047
        %3065 = vmatpush1.msra.mxu0 %v3046
        %3066 = vmatprep.subr.mxu0 0.0
        %3067 = vmatpush1.msra.mxu0 0.0
        %3068 = vmatprep.subr.mxu0 0.0
        %3069 = vmatpush1.msra.mxu0 0.0
        %3070 = vmatprep.subr.mxu0 0.0
        %3071 = vmatpush1.msra.mxu0 0.0
        %3072 = vmatprep.subr.mxu0 0.0
        %3073 = vmatpush1.msra.mxu0 0.0
        %3074 = vmatprep.subr.mxu0 0.0
        %3075 = vmatpush1.msra.mxu0 0.0
        %3076 = vmatprep.subr.mxu0 0.0
        %3077 = vmatpush1.msra.mxu0 0.0
        %3078 = vmatprep.subr.mxu0 0.0
        %3079 = vmatpush1.msra.mxu0 0.0
        %3080 = vmatprep.subr.mxu0 0.0
        %3081 = vmatpush1.msra.mxu0 0.0
        %3082 = vmatprep.subr.mxu0 0.0
        %3083 = vmatpush1.msra.mxu0 0.0
        %3084 = vmatprep.subr.mxu0 0.0
        %3085 = vmatpush1.msra.mxu0 0.0
        %3086 = vmatprep.subr.mxu0 0.0
        %3087 = vmatpush1.msra.mxu0 0.0
        %3088 = vmatprep.subr.mxu0 0.0
        %3089 = vmatpush1.msra.mxu0 0.0
        %3090 = vmatprep.subr.mxu0 0.0
        %3091 = vmatpush1.msra.mxu0 0.0
        %3092 = vmatprep.subr.mxu0 0.0
        %3093 = vmatpush1.msra.mxu0 0.0
        %3094 = vmatprep.subr.mxu0 0.0
        %3095 = vmatpush1.msra.mxu0 0.0
        %3096 = vmatprep.subr.mxu0 0.0
        %3097 = vmatpush1.msra.mxu0 0.0
        %3098 = vmatprep.subr.mxu0 0.0
        %3099 = vmatpush1.msra.mxu0 0.0
        %3100 = vmatprep.subr.mxu0 0.0
        %3101 = vmatpush1.msra.mxu0 0.0
        %3102 = vmatprep.subr.mxu0 0.0
        %3103 = vmatpush1.msra.mxu0 0.0
        %3104 = vmatprep.subr.mxu0 0.0
        %3105 = vmatpush1.msra.mxu0 0.0
        %3106 = vmatprep.subr.mxu0 0.0
        %3107 = vmatpush1.msra.mxu0 0.0
        %3108 = vmatprep.subr.mxu0 0.0
        %3109 = vmatpush1.msra.mxu0 0.0
        %3110 = vmatprep.subr.mxu0 0.0
        %3111 = vmatpush1.msra.mxu0 0.0
        %3112 = vmatprep.subr.mxu0 0.0
        %3113 = vmatpush1.msra.mxu0 0.0
        %3114 = vmatprep.subr.mxu0 0.0
        %3115 = vmatpush1.msra.mxu0 0.0
        %3116 = vmatprep.subr.mxu0 0.0
        %3117 = vmatpush1.msra.mxu0 0.0
        %3118 = vmatprep.subr.mxu0 0.0
        %3119 = vmatpush1.msra.mxu0 0.0
        %3120 = vmatprep.subr.mxu0 0.0
        %3121 = vmatpush1.msra.mxu0 0.0
        %3122 = vmatprep.subr.mxu0 0.0
        %3123 = vmatpush1.msra.mxu0 0.0
        %3124 = vmatprep.mubr.f32.mxu0 0.0
        %3125 = vmatmul.mubr.f32.gmra.mrb[0].mxu0 %v3054
        %v3126 = vpop.f32.mrb[0].mxu0
        %v3127 = vadd.f32 0.0, %v3126
        %v3128 = vpop.f32.mrb[0].mxu0
        %v3129 = vadd.f32 0.0, %v3128
        %3130 = vmatprep.mubr.f32.mxu0 0.0
        %3131 = vmatmul.mubr.f32.gmra.mrb[0].mxu0 %v3056
        %v3132 = vpop.f32.mrb[0].mxu0
        %v3133 = vadd.f32 0.0, %v3132
        %v3134 = vpop.f32.mrb[0].mxu0
        %v3135 = vadd.f32 0.0, %v3134
        %3136 = vmatprep.mubr.f32.mxu0 0.0
        %3137 = vmatmul.mubr.f32.gmra.mrb[0].mxu0 %v3058
        %v3138 = vpop.f32.mrb[0].mxu0
        %v3139 = vadd.f32 0.0, %v3138
        %v3140 = vpop.f32.mrb[0].mxu0
        %v3141 = vadd.f32 0.0, %v3140
        %3142 = vdwg.mxu0
        %v3143 = vadd.f32 %v3035, %v3127
        %v3144 = vadd.f32 %v3036, %v3129
        %v3145 = vadd.f32 %v3037, %v3133
        %v3146 = vadd.f32 %v3038, %v3135
        %v3147 = vadd.f32 %v3039, %v3139
        %v3148 = vadd.f32 %v3040, %v3141
        %s3149 = scalar_lea.vmem [#allocation2], 1152
        %v3150 = vld [vmem:[%s3149] sm:$0xff]
        %v3151 = vld [vmem:[%s3149 + $0x8] sm:$0xff]
        %v3152 = vld [vmem:[%s3149 + $0x10] sm:$0xff]
        %v3153 = vld [vmem:[%s3149 + $0x18] sm:$0xff]
        %v3154 = vld [vmem:[%s3149 + $0x20] sm:$0xff]
        %v3155 = vld [vmem:[%s3149 + $0x28] sm:$0xff]
        %3156 = vrot.lane.b32.xlu0 %v2725, 124
        %v3157 = vpop.permute.xlu0 %3156
        %3158 = vrot.lane.b32.xlu0 %v2727, 124
        %v3159 = vpop.permute.xlu0 %3158
        %3160 = vrot.lane.b32.xlu0 %v2729, 124
        %v3161 = vpop.permute.xlu0 %3160
        %v3162 = vsel %vm585, %v3157, 0
        %v3164 = vsel %vm585, %v3159, 0
        %v3166 = vsel %vm585, %v3161, 0
        %3168 = vmatprep.subr.mxu0 %v3151
        %3169 = vmatpush1.msra.mxu0 %v3150
        %3170 = vmatprep.subr.mxu0 %v3153
        %3171 = vmatpush1.msra.mxu0 %v3152
        %3172 = vmatprep.subr.mxu0 %v3155
        %3173 = vmatpush1.msra.mxu0 %v3154
        %3174 = vmatprep.subr.mxu0 0.0
        %3175 = vmatpush1.msra.mxu0 0.0
        %3176 = vmatprep.subr.mxu0 0.0
        %3177 = vmatpush1.msra.mxu0 0.0
        %3178 = vmatprep.subr.mxu0 0.0
        %3179 = vmatpush1.msra.mxu0 0.0
        %3180 = vmatprep.subr.mxu0 0.0
        %3181 = vmatpush1.msra.mxu0 0.0
        %3182 = vmatprep.subr.mxu0 0.0
        %3183 = vmatpush1.msra.mxu0 0.0
        %3184 = vmatprep.subr.mxu0 0.0
        %3185 = vmatpush1.msra.mxu0 0.0
        %3186 = vmatprep.subr.mxu0 0.0
        %3187 = vmatpush1.msra.mxu0 0.0
        %3188 = vmatprep.subr.mxu0 0.0
        %3189 = vmatpush1.msra.mxu0 0.0
        %3190 = vmatprep.subr.mxu0 0.0
        %3191 = vmatpush1.msra.mxu0 0.0
        %3192 = vmatprep.subr.mxu0 0.0
        %3193 = vmatpush1.msra.mxu0 0.0
        %3194 = vmatprep.subr.mxu0 0.0
        %3195 = vmatpush1.msra.mxu0 0.0
        %3196 = vmatprep.subr.mxu0 0.0
        %3197 = vmatpush1.msra.mxu0 0.0
        %3198 = vmatprep.subr.mxu0 0.0
        %3199 = vmatpush1.msra.mxu0 0.0
        %3200 = vmatprep.subr.mxu0 0.0
        %3201 = vmatpush1.msra.mxu0 0.0
        %3202 = vmatprep.subr.mxu0 0.0
        %3203 = vmatpush1.msra.mxu0 0.0
        %3204 = vmatprep.subr.mxu0 0.0
        %3205 = vmatpush1.msra.mxu0 0.0
        %3206 = vmatprep.subr.mxu0 0.0
        %3207 = vmatpush1.msra.mxu0 0.0
        %3208 = vmatprep.subr.mxu0 0.0
        %3209 = vmatpush1.msra.mxu0 0.0
        %3210 = vmatprep.subr.mxu0 0.0
        %3211 = vmatpush1.msra.mxu0 0.0
        %3212 = vmatprep.subr.mxu0 0.0
        %3213 = vmatpush1.msra.mxu0 0.0
        %3214 = vmatprep.subr.mxu0 0.0
        %3215 = vmatpush1.msra.mxu0 0.0
        %3216 = vmatprep.subr.mxu0 0.0
        %3217 = vmatpush1.msra.mxu0 0.0
        %3218 = vmatprep.subr.mxu0 0.0
        %3219 = vmatpush1.msra.mxu0 0.0
        %3220 = vmatprep.subr.mxu0 0.0
        %3221 = vmatpush1.msra.mxu0 0.0
        %3222 = vmatprep.subr.mxu0 0.0
        %3223 = vmatpush1.msra.mxu0 0.0
        %3224 = vmatprep.subr.mxu0 0.0
        %3225 = vmatpush1.msra.mxu0 0.0
        %3226 = vmatprep.subr.mxu0 0.0
        %3227 = vmatpush1.msra.mxu0 0.0
        %3228 = vmatprep.subr.mxu0 0.0
        %3229 = vmatpush1.msra.mxu0 0.0
        %3230 = vmatprep.subr.mxu0 0.0
        %3231 = vmatpush1.msra.mxu0 0.0
        %3232 = vmatprep.mubr.f32.mxu0 0.0
        %3233 = vmatmul.mubr.f32.gmra.mrb[0].mxu0 %v3162
        %v3234 = vpop.f32.mrb[0].mxu0
        %v3235 = vadd.f32 0.0, %v3234
        %v3236 = vpop.f32.mrb[0].mxu0
        %v3237 = vadd.f32 0.0, %v3236
        %3238 = vmatprep.mubr.f32.mxu0 0.0
        %3239 = vmatmul.mubr.f32.gmra.mrb[0].mxu0 %v3164
        %v3240 = vpop.f32.mrb[0].mxu0
        %v3241 = vadd.f32 0.0, %v3240
        %v3242 = vpop.f32.mrb[0].mxu0
        %v3243 = vadd.f32 0.0, %v3242
        %3244 = vmatprep.mubr.f32.mxu0 0.0
        %3245 = vmatmul.mubr.f32.gmra.mrb[0].mxu0 %v3166
        %v3246 = vpop.f32.mrb[0].mxu0
        %v3247 = vadd.f32 0.0, %v3246
        %v3248 = vpop.f32.mrb[0].mxu0
        %v3249 = vadd.f32 0.0, %v3248
        %3250 = vdwg.mxu0
        %v3251 = vadd.f32 %v3143, %v3235
        %v3252 = vadd.f32 %v3144, %v3237
        %v3253 = vadd.f32 %v3145, %v3241
        %v3254 = vadd.f32 %v3146, %v3243
        %v3255 = vadd.f32 %v3147, %v3247
        %v3256 = vadd.f32 %v3148, %v3249
        %v3257 = vld [vmem:[%s2] sm:$0x3]
        %v3259 = vlaneseq
        %v3260 = vshrl.u32 %v3259, 7
        %v3261 = vsub.s32 0, %v3260
        %v3262 = vrot.slane %v3257, %v3261
        %v3263 = vlaneseq
        %v3264 = vshrl.u32 %v3263, 7
        %v3265 = vsub.s32 1, %v3264
        %v3266 = vrot.slane %v3257, %v3265
        %v3269 = vadd.f32 %v3251, %v3262
        %v3270 = vadd.f32 %v3252, %v3266
        %v3271 = vadd.f32 %v3253, %v3262
        %v3272 = vadd.f32 %v3254, %v3266
        %v3273 = vadd.f32 %v3255, %v3262
        %v3274 = vadd.f32 %v3256, %v3266
        %v3275 = vmax.f32 %v3269, 0.0
        %v3276 = vmax.f32 %v3270, 0.0
        %v3277 = vmax.f32 %v3271, 0.0
        %v3278 = vmax.f32 %v3272, 0.0
        %v3279 = vmax.f32 %v3273, 0.0
        %v3280 = vmax.f32 %v3274, 0.0
        %3287 = vrot.lane.b32.xlu0 %v3275, 122
        %v3288 = vpop.permute.xlu0 %3287
        %3289 = vrot.lane.b32.xlu0 %v3276, 122
        %v3290 = vpop.permute.xlu0 %3289
        %3291 = vrot.lane.b32.xlu0 %v3277, 122
        %v3292 = vpop.permute.xlu0 %3291
        %3293 = vrot.lane.b32.xlu0 %v3278, 122
        %v3294 = vpop.permute.xlu0 %3293
        %3295 = vrot.lane.b32.xlu0 %v3279, 122
        %v3296 = vpop.permute.xlu0 %3295
        %3297 = vrot.lane.b32.xlu0 %v3280, 122
        %v3298 = vpop.permute.xlu0 %3297
        %vm3299 = vcmask 998400
        %v3300 = vsel %vm3299, %v3288, %v3290
        %v3301 = vsel %vm3299, %v3292, %v3294
        %v3302 = vsel %vm3299, %v3296, %v3298
        %v3309 = vmax.f32 %v3275, %v3300
        %v3310 = vmax.f32 %v3276, %v3290
        %v3311 = vmax.f32 %v3277, %v3301
        %v3312 = vmax.f32 %v3278, %v3294
        %v3313 = vmax.f32 %v3279, %v3302
        %v3314 = vmax.f32 %v3280, %v3298
        %v3315 = vld [vmem:[%s3] sm:$0xff]
        %v3316 = vld [vmem:[%s3 + $0x8] sm:$0xff]
        %v3317 = vld [vmem:[%s3 + $0x10] sm:$0xff]
        %v3318 = vld [vmem:[%s3 + $0x18] sm:$0xff]
        %v3319 = vld [vmem:[%s3 + $0x20] sm:$0xff]
        %v3320 = vld [vmem:[%s3 + $0x28] sm:$0xff]
        %v3321 = vld [vmem:[%s3 + $0x30] sm:$0xff]
        %v3322 = vld [vmem:[%s3 + $0x38] sm:$0xff]
        %v3323 = vld [vmem:[%s3 + $0x40] sm:$0xff]
        %v3324 = vld [vmem:[%s3 + $0x48] sm:$0xff]
        %v3325 = vld [vmem:[%s3 + $0x50] sm:$0xff]
        %v3326 = vld [vmem:[%s3 + $0x58] sm:$0xff]
        %v3327 = vld [vmem:[%s3 + $0x60] sm:$0xff]
        %v3328 = vld [vmem:[%s3 + $0x68] sm:$0xff]
        %v3329 = vld [vmem:[%s3 + $0x70] sm:$0xff]
        %v3330 = vld [vmem:[%s3 + $0x78] sm:$0xff]
        %v3331 = vld [vmem:[%s3 + $0x80] sm:$0xff]
        %v3332 = vld [vmem:[%s3 + $0x88] sm:$0x3]
        %vm3333 = vcmask 80896
        %v3335 = vsel %vm3333, %v3310, 0
        %v3338 = vsel %vm3333, %v3312, 0
        %v3341 = vsel %vm3333, %v3314, 0
        %vm3343 = vcmask 1041408
        %v3345 = vsel %vm3343, %v3332, 0
        %3347 = vmatprep.subr.mxu0 0.0
        %3348 = vmatpush1.msra.mxu0 %v3315
        %3349 = vmatprep.subr.mxu0 0.0
        %3350 = vmatpush1.msra.mxu0 %v3316
        %3351 = vmatprep.subr.mxu0 0.0
        %3352 = vmatpush1.msra.mxu0 %v3317
        %3353 = vmatprep.subr.mxu0 0.0
        %3354 = vmatpush1.msra.mxu0 %v3318
        %3355 = vmatprep.subr.mxu0 0.0
        %3356 = vmatpush1.msra.mxu0 %v3319
        %3357 = vmatprep.subr.mxu0 0.0
        %3358 = vmatpush1.msra.mxu0 %v3320
        %3359 = vmatprep.subr.mxu0 0.0
        %3360 = vmatpush1.msra.mxu0 %v3321
        %3361 = vmatprep.subr.mxu0 0.0
        %3362 = vmatpush1.msra.mxu0 %v3322
        %3363 = vmatprep.subr.mxu0 0.0
        %3364 = vmatpush1.msra.mxu0 %v3323
        %3365 = vmatprep.subr.mxu0 0.0
        %3366 = vmatpush1.msra.mxu0 %v3324
        %3367 = vmatprep.subr.mxu0 0.0
        %3368 = vmatpush1.msra.mxu0 %v3325
        %3369 = vmatprep.subr.mxu0 0.0
        %3370 = vmatpush1.msra.mxu0 %v3326
        %3371 = vmatprep.subr.mxu0 0.0
        %3372 = vmatpush1.msra.mxu0 %v3327
        %3373 = vmatprep.subr.mxu0 0.0
        %3374 = vmatpush1.msra.mxu0 %v3328
        %3375 = vmatprep.subr.mxu0 0.0
        %3376 = vmatpush1.msra.mxu0 %v3329
        %3377 = vmatprep.subr.mxu0 0.0
        %3378 = vmatpush1.msra.mxu0 %v3330
        %3379 = vmatprep.subr.mxu0 0.0
        %3380 = vmatpush1.msra.mxu0 %v3331
        %3381 = vmatprep.subr.mxu0 0.0
        %3382 = vmatpush1.msra.mxu0 %v3345
        %3383 = vmatprep.subr.mxu0 0.0
        %3384 = vmatpush1.msra.mxu0 0.0
        %3385 = vmatprep.subr.mxu0 0.0
        %3386 = vmatpush1.msra.mxu0 0.0
        %3387 = vmatprep.subr.mxu0 0.0
        %3388 = vmatpush1.msra.mxu0 0.0
        %3389 = vmatprep.subr.mxu0 0.0
        %3390 = vmatpush1.msra.mxu0 0.0
        %3391 = vmatprep.subr.mxu0 0.0
        %3392 = vmatpush1.msra.mxu0 0.0
        %3393 = vmatprep.subr.mxu0 0.0
        %3394 = vmatpush1.msra.mxu0 0.0
        %3395 = vmatprep.subr.mxu0 0.0
        %3396 = vmatpush1.msra.mxu0 0.0
        %3397 = vmatprep.subr.mxu0 0.0
        %3398 = vmatpush1.msra.mxu0 0.0
        %3399 = vmatprep.subr.mxu0 0.0
        %3400 = vmatpush1.msra.mxu0 0.0
        %3401 = vmatprep.subr.mxu0 0.0
        %3402 = vmatpush1.msra.mxu0 0.0
        %3403 = vmatprep.subr.mxu0 0.0
        %3404 = vmatpush1.msra.mxu0 0.0
        %3405 = vmatprep.subr.mxu0 0.0
        %3406 = vmatpush1.msra.mxu0 0.0
        %3407 = vmatprep.subr.mxu0 0.0
        %3408 = vmatpush1.msra.mxu0 0.0
        %3409 = vmatprep.subr.mxu0 0.0
        %3410 = vmatpush1.msra.mxu0 0.0
        %3411 = vmatprep.mubr.f32.mxu0 %v3335
        %3412 = vmatmul.mubr.f32.gmra.mrb[0].mxu0 %v3309
        %v3413 = vpop.f32.mrb[0].mxu0
        %v3414 = vadd.f32 0.0, %v3413
        %v3415 = vpop.f32.mrb[0].mxu0
        %3416 = vmatprep.mubr.f32.mxu0 %v3338
        %3417 = vmatmul.mubr.f32.gmra.mrb[0].mxu0 %v3311
        %v3418 = vpop.f32.mrb[0].mxu0
        %v3419 = vadd.f32 0.0, %v3418
        %v3420 = vpop.f32.mrb[0].mxu0
        %3421 = vmatprep.mubr.f32.mxu0 %v3341
        %3422 = vmatmul.mubr.f32.gmra.mrb[0].mxu0 %v3313
        %v3423 = vpop.f32.mrb[0].mxu0
        %v3424 = vadd.f32 0.0, %v3423
        %v3425 = vpop.f32.mrb[0].mxu0
        %3426 = vdwg.mxu0
        %v3430 = vrot.slane %v3414, 1
        %v3431 = vrot.slane %v3419, 1
        %v3432 = vsel %vm1096, %v3430, %v3431
        %v3433 = vrot.slane %v3424, 1
        %v3434 = vsel %vm1096, %v3431, %v3433
        %v3438 = vmax.f32 %v3414, %v3432
        %v3439 = vmax.f32 %v3419, %v3434
        %v3440 = vmax.f32 %v3424, %v3433
        %v3441 = vld [vmem:[%s4] sm:$0xff]
        %v3442 = vld [vmem:[%s4 + $0x8] sm:$0xf]
        %vm3443 = vcmask 187392
        %v3445 = vsel %vm3443, %v3441, 0
        %v3448 = vsel %vm3443, %v3442, 0
        %v3451 = vsel %vm1096, %v3440, 0
        %3453 = vmatprep.subr.mxu0 0.0
        %3454 = vmatpush1.msra.mxu0 %v3438
        %3455 = vmatprep.subr.mxu0 0.0
        %3456 = vmatpush1.msra.mxu0 %v3439
        %3457 = vmatprep.subr.mxu0 0.0
        %3458 = vmatpush1.msra.mxu0 %v3451
        %3459 = vmatprep.subr.mxu0 0.0
        %3460 = vmatpush1.msra.mxu0 0.0
        %3461 = vmatprep.subr.mxu0 0.0
        %3462 = vmatpush1.msra.mxu0 0.0
        %3463 = vmatprep.subr.mxu0 0.0
        %3464 = vmatpush1.msra.mxu0 0.0
        %3465 = vmatprep.subr.mxu0 0.0
        %3466 = vmatpush1.msra.mxu0 0.0
        %3467 = vmatprep.subr.mxu0 0.0
        %3468 = vmatpush1.msra.mxu0 0.0
        %3469 = vmatprep.subr.mxu0 0.0
        %3470 = vmatpush1.msra.mxu0 0.0
        %3471 = vmatprep.subr.mxu0 0.0
        %3472 = vmatpush1.msra.mxu0 0.0
        %3473 = vmatprep.subr.mxu0 0.0
        %3474 = vmatpush1.msra.mxu0 0.0
        %3475 = vmatprep.subr.mxu0 0.0
        %3476 = vmatpush1.msra.mxu0 0.0
        %3477 = vmatprep.subr.mxu0 0.0
        %3478 = vmatpush1.msra.mxu0 0.0
        %3479 = vmatprep.subr.mxu0 0.0
        %3480 = vmatpush1.msra.mxu0 0.0
        %3481 = vmatprep.subr.mxu0 0.0
        %3482 = vmatpush1.msra.mxu0 0.0
        %3483 = vmatprep.subr.mxu0 0.0
        %3484 = vmatpush1.msra.mxu0 0.0
        %3485 = vmatprep.subr.mxu0 0.0
        %3486 = vmatpush1.msra.mxu0 0.0
        %3487 = vmatprep.subr.mxu0 0.0
        %3488 = vmatpush1.msra.mxu0 0.0
        %3489 = vmatprep.subr.mxu0 0.0
        %3490 = vmatpush1.msra.mxu0 0.0
        %3491 = vmatprep.subr.mxu0 0.0
        %3492 = vmatpush1.msra.mxu0 0.0
        %3493 = vmatprep.subr.mxu0 0.0
        %3494 = vmatpush1.msra.mxu0 0.0
        %3495 = vmatprep.subr.mxu0 0.0
        %3496 = vmatpush1.msra.mxu0 0.0
        %3497 = vmatprep.subr.mxu0 0.0
        %3498 = vmatpush1.msra.mxu0 0.0
        %3499 = vmatprep.subr.mxu0 0.0
        %3500 = vmatpush1.msra.mxu0 0.0
        %3501 = vmatprep.subr.mxu0 0.0
        %3502 = vmatpush1.msra.mxu0 0.0
        %3503 = vmatprep.subr.mxu0 0.0
        %3504 = vmatpush1.msra.mxu0 0.0
        %3505 = vmatprep.subr.mxu0 0.0
        %3506 = vmatpush1.msra.mxu0 0.0
        %3507 = vmatprep.subr.mxu0 0.0
        %3508 = vmatpush1.msra.mxu0 0.0
        %3509 = vmatprep.subr.mxu0 0.0
        %3510 = vmatpush1.msra.mxu0 0.0
        %3511 = vmatprep.subr.mxu0 0.0
        %3512 = vmatpush1.msra.mxu0 0.0
        %3513 = vmatprep.subr.mxu0 0.0
        %3514 = vmatpush1.msra.mxu0 0.0
        %3515 = vmatprep.subr.mxu0 0.0
        %3516 = vmatpush1.msra.mxu0 0.0
        %3517 = vmatprep.mubr.f32.mxu0 0.0
        %3518 = vmatmul.mubr.f32.gmra.mrb[0].mxu0 %v3445
        %v3519 = vpop.f32.mrb[0].mxu0
        %v3520 = vadd.f32 0.0, %v3519
        %v3521 = vpop.f32.mrb[0].mxu0
        %3522 = vmatprep.mubr.f32.mxu0 0.0
        %3523 = vmatmul.mubr.f32.gmra.mrb[0].mxu0 %v3448
        %v3524 = vpop.f32.mrb[0].mxu0
        %v3525 = vadd.f32 0.0, %v3524
        %v3526 = vpop.f32.mrb[0].mxu0
        %3527 = vdwg.mxu0
        %v3528 = vld [vmem:[#allocation5] sm:$0xff]
        %v3529 = vld [vmem:[#allocation5 + $0x8] sm:$0xff]
        %v3530 = vld [vmem:[#allocation5 + $0x10] sm:$0xff]
        %v3531 = vld [vmem:[#allocation5 + $0x18] sm:$0xff]
        %v3532 = vld [vmem:[#allocation5 + $0x20] sm:$0xff]
        %v3533 = vld [vmem:[#allocation5 + $0x28] sm:$0xff]
        %s3534 = scalar_lea.vmem [#allocation5], 48
        %v3535 = vld [vmem:[%s3534] sm:$0xff]
        %v3536 = vld [vmem:[%s3534 + $0x8] sm:$0xff]
        %v3537 = vld [vmem:[%s3534 + $0x10] sm:$0xff]
        %v3538 = vld [vmem:[%s3534 + $0x18] sm:$0xff]
        %v3539 = vld [vmem:[%s3534 + $0x20] sm:$0xff]
        %v3540 = vld [vmem:[%s3534 + $0x28] sm:$0xff]
        %3542 = vrot.lane.b32.xlu0 %v3520, 122
        %v3543 = vpop.permute.xlu0 %3542
        %vm3544 = vcmask 392192
        %v3545 = vsel %vm3544, %v3543, 0
        %3547 = vmatprep.subr.mxu0 0.0
        %3548 = vmatpush1.msra.mxu0 %v3535
        %3549 = vmatprep.subr.mxu0 0.0
        %3550 = vmatpush1.msra.mxu0 %v3536
        %3551 = vmatprep.subr.mxu0 0.0
        %3552 = vmatpush1.msra.mxu0 %v3537
        %3553 = vmatprep.subr.mxu0 0.0
        %3554 = vmatpush1.msra.mxu0 %v3538
        %3555 = vmatprep.subr.mxu0 0.0
        %3556 = vmatpush1.msra.mxu0 %v3539
        %3557 = vmatprep.subr.mxu0 0.0
        %3558 = vmatpush1.msra.mxu0 %v3540
        %3559 = vmatprep.subr.mxu0 0.0
        %3560 = vmatpush1.msra.mxu0 0.0
        %3561 = vmatprep.subr.mxu0 0.0
        %3562 = vmatpush1.msra.mxu0 0.0
        %3563 = vmatprep.subr.mxu0 0.0
        %3564 = vmatpush1.msra.mxu0 0.0
        %3565 = vmatprep.subr.mxu0 0.0
        %3566 = vmatpush1.msra.mxu0 0.0
        %3567 = vmatprep.subr.mxu0 0.0
        %3568 = vmatpush1.msra.mxu0 0.0
        %3569 = vmatprep.subr.mxu0 0.0
        %3570 = vmatpush1.msra.mxu0 0.0
        %3571 = vmatprep.subr.mxu0 0.0
        %3572 = vmatpush1.msra.mxu0 0.0
        %3573 = vmatprep.subr.mxu0 0.0
        %3574 = vmatpush1.msra.mxu0 0.0
        %3575 = vmatprep.subr.mxu0 0.0
        %3576 = vmatpush1.msra.mxu0 0.0
        %3577 = vmatprep.subr.mxu0 0.0
        %3578 = vmatpush1.msra.mxu0 0.0
        %3579 = vmatprep.subr.mxu0 0.0
        %3580 = vmatpush1.msra.mxu0 0.0
        %3581 = vmatprep.subr.mxu0 0.0
        %3582 = vmatpush1.msra.mxu0 0.0
        %3583 = vmatprep.subr.mxu0 0.0
        %3584 = vmatpush1.msra.mxu0 0.0
        %3585 = vmatprep.subr.mxu0 0.0
        %3586 = vmatpush1.msra.mxu0 0.0
        %3587 = vmatprep.subr.mxu0 0.0
        %3588 = vmatpush1.msra.mxu0 0.0
        %3589 = vmatprep.subr.mxu0 0.0
        %3590 = vmatpush1.msra.mxu0 0.0
        %3591 = vmatprep.subr.mxu0 0.0
        %3592 = vmatpush1.msra.mxu0 0.0
        %3593 = vmatprep.subr.mxu0 0.0
        %3594 = vmatpush1.msra.mxu0 0.0
        %3595 = vmatprep.subr.mxu0 0.0
        %3596 = vmatpush1.msra.mxu0 0.0
        %3597 = vmatprep.subr.mxu0 0.0
        %3598 = vmatpush1.msra.mxu0 0.0
        %3599 = vmatprep.subr.mxu0 0.0
        %3600 = vmatpush1.msra.mxu0 0.0
        %3601 = vmatprep.subr.mxu0 0.0
        %3602 = vmatpush1.msra.mxu0 0.0
        %3603 = vmatprep.subr.mxu0 0.0
        %3604 = vmatpush1.msra.mxu0 0.0
        %3605 = vmatprep.subr.mxu0 0.0
        %3606 = vmatpush1.msra.mxu0 0.0
        %3607 = vmatprep.subr.mxu0 0.0
        %3608 = vmatpush1.msra.mxu0 0.0
        %3609 = vmatprep.subr.mxu0 0.0
        %3610 = vmatpush1.msra.mxu0 0.0
        %3611 = vmatprep.mubr.f32.mxu0 0.0
        %3612 = vmatmul.mubr.f32.gmra.mrb[0].mxu0 %v3545
        %v3613 = vpop.f32.mrb[0].mxu0
        %v3614 = vadd.f32 0.0, %v3613
        %v3615 = vpop.f32.mrb[0].mxu0
        %3616 = vdwg.mxu0
        %v3617 = vsel %vm3544, %v3520, 0
        %3619 = vmatprep.subr.mxu0 0.0
        %3620 = vmatpush1.msra.mxu0 %v3528
        %3621 = vmatprep.subr.mxu0 0.0
        %3622 = vmatpush1.msra.mxu0 %v3529
        %3623 = vmatprep.subr.mxu0 0.0
        %3624 = vmatpush1.msra.mxu0 %v3530
        %3625 = vmatprep.subr.mxu0 0.0
        %3626 = vmatpush1.msra.mxu0 %v3531
        %3627 = vmatprep.subr.mxu0 0.0
        %3628 = vmatpush1.msra.mxu0 %v3532
        %3629 = vmatprep.subr.mxu0 0.0
        %3630 = vmatpush1.msra.mxu0 %v3533
        %3631 = vmatprep.subr.mxu0 0.0
        %3632 = vmatpush1.msra.mxu0 0.0
        %3633 = vmatprep.subr.mxu0 0.0
        %3634 = vmatpush1.msra.mxu0 0.0
        %3635 = vmatprep.subr.mxu0 0.0
        %3636 = vmatpush1.msra.mxu0 0.0
        %3637 = vmatprep.subr.mxu0 0.0
        %3638 = vmatpush1.msra.mxu0 0.0
        %3639 = vmatprep.subr.mxu0 0.0
        %3640 = vmatpush1.msra.mxu0 0.0
        %3641 = vmatprep.subr.mxu0 0.0
        %3642 = vmatpush1.msra.mxu0 0.0
        %3643 = vmatprep.subr.mxu0 0.0
        %3644 = vmatpush1.msra.mxu0 0.0
        %3645 = vmatprep.subr.mxu0 0.0
        %3646 = vmatpush1.msra.mxu0 0.0
        %3647 = vmatprep.subr.mxu0 0.0
        %3648 = vmatpush1.msra.mxu0 0.0
        %3649 = vmatprep.subr.mxu0 0.0
        %3650 = vmatpush1.msra.mxu0 0.0
        %3651 = vmatprep.subr.mxu0 0.0
        %3652 = vmatpush1.msra.mxu0 0.0
        %3653 = vmatprep.subr.mxu0 0.0
        %3654 = vmatpush1.msra.mxu0 0.0
        %3655 = vmatprep.subr.mxu0 0.0
        %3656 = vmatpush1.msra.mxu0 0.0
        %3657 = vmatprep.subr.mxu0 0.0
        %3658 = vmatpush1.msra.mxu0 0.0
        %3659 = vmatprep.subr.mxu0 0.0
        %3660 = vmatpush1.msra.mxu0 0.0
        %3661 = vmatprep.subr.mxu0 0.0
        %3662 = vmatpush1.msra.mxu0 0.0
        %3663 = vmatprep.subr.mxu0 0.0
        %3664 = vmatpush1.msra.mxu0 0.0
        %3665 = vmatprep.subr.mxu0 0.0
        %3666 = vmatpush1.msra.mxu0 0.0
        %3667 = vmatprep.subr.mxu0 0.0
        %3668 = vmatpush1.msra.mxu0 0.0
        %3669 = vmatprep.subr.mxu0 0.0
        %3670 = vmatpush1.msra.mxu0 0.0
        %3671 = vmatprep.subr.mxu0 0.0
        %3672 = vmatpush1.msra.mxu0 0.0
        %3673 = vmatprep.subr.mxu0 0.0
        %3674 = vmatpush1.msra.mxu0 0.0
        %3675 = vmatprep.subr.mxu0 0.0
        %3676 = vmatpush1.msra.mxu0 0.0
        %3677 = vmatprep.subr.mxu0 0.0
        %3678 = vmatpush1.msra.mxu0 0.0
        %3679 = vmatprep.subr.mxu0 0.0
        %3680 = vmatpush1.msra.mxu0 0.0
        %3681 = vmatprep.subr.mxu0 0.0
        %3682 = vmatpush1.msra.mxu0 0.0
        %3683 = vmatprep.mubr.f32.mxu0 0.0
        %3684 = vmatmul.mubr.f32.gmra.mrb[0].mxu0 %v3617
        %v3685 = vpop.f32.mrb[0].mxu0
        %v3686 = vadd.f32 %v3614, %v3685
        %v3687 = vpop.f32.mrb[0].mxu0
        %3688 = vdwg.mxu0
        %s3689 = scalar_lea.vmem [#allocation5], 96
        %v3690 = vld [vmem:[%s3689] sm:$0xff]
        %v3691 = vld [vmem:[%s3689 + $0x8] sm:$0xff]
        %v3692 = vld [vmem:[%s3689 + $0x10] sm:$0xff]
        %v3693 = vld [vmem:[%s3689 + $0x18] sm:$0xff]
        %v3694 = vld [vmem:[%s3689 + $0x20] sm:$0xff]
        %v3695 = vld [vmem:[%s3689 + $0x28] sm:$0xff]
        %3696 = vrot.lane.b32.xlu0 %v3520, 116
        %v3697 = vpop.permute.xlu0 %3696
        %v3698 = vsel %vm3544, %v3697, 0
        %3700 = vmatprep.subr.mxu0 0.0
        %3701 = vmatpush1.msra.mxu0 %v3690
        %3702 = vmatprep.subr.mxu0 0.0
        %3703 = vmatpush1.msra.mxu0 %v3691
        %3704 = vmatprep.subr.mxu0 0.0
        %3705 = vmatpush1.msra.mxu0 %v3692
        %3706 = vmatprep.subr.mxu0 0.0
        %3707 = vmatpush1.msra.mxu0 %v3693
        %3708 = vmatprep.subr.mxu0 0.0
        %3709 = vmatpush1.msra.mxu0 %v3694
        %3710 = vmatprep.subr.mxu0 0.0
        %3711 = vmatpush1.msra.mxu0 %v3695
        %3712 = vmatprep.subr.mxu0 0.0
        %3713 = vmatpush1.msra.mxu0 0.0
        %3714 = vmatprep.subr.mxu0 0.0
        %3715 = vmatpush1.msra.mxu0 0.0
        %3716 = vmatprep.subr.mxu0 0.0
        %3717 = vmatpush1.msra.mxu0 0.0
        %3718 = vmatprep.subr.mxu0 0.0
        %3719 = vmatpush1.msra.mxu0 0.0
        %3720 = vmatprep.subr.mxu0 0.0
        %3721 = vmatpush1.msra.mxu0 0.0
        %3722 = vmatprep.subr.mxu0 0.0
        %3723 = vmatpush1.msra.mxu0 0.0
        %3724 = vmatprep.subr.mxu0 0.0
        %3725 = vmatpush1.msra.mxu0 0.0
        %3726 = vmatprep.subr.mxu0 0.0
        %3727 = vmatpush1.msra.mxu0 0.0
        %3728 = vmatprep.subr.mxu0 0.0
        %3729 = vmatpush1.msra.mxu0 0.0
        %3730 = vmatprep.subr.mxu0 0.0
        %3731 = vmatpush1.msra.mxu0 0.0
        %3732 = vmatprep.subr.mxu0 0.0
        %3733 = vmatpush1.msra.mxu0 0.0
        %3734 = vmatprep.subr.mxu0 0.0
        %3735 = vmatpush1.msra.mxu0 0.0
        %3736 = vmatprep.subr.mxu0 0.0
        %3737 = vmatpush1.msra.mxu0 0.0
        %3738 = vmatprep.subr.mxu0 0.0
        %3739 = vmatpush1.msra.mxu0 0.0
        %3740 = vmatprep.subr.mxu0 0.0
        %3741 = vmatpush1.msra.mxu0 0.0
        %3742 = vmatprep.subr.mxu0 0.0
        %3743 = vmatpush1.msra.mxu0 0.0
        %3744 = vmatprep.subr.mxu0 0.0
        %3745 = vmatpush1.msra.mxu0 0.0
        %3746 = vmatprep.subr.mxu0 0.0
        %3747 = vmatpush1.msra.mxu0 0.0
        %3748 = vmatprep.subr.mxu0 0.0
        %3749 = vmatpush1.msra.mxu0 0.0
        %3750 = vmatprep.subr.mxu0 0.0
        %3751 = vmatpush1.msra.mxu0 0.0
        %3752 = vmatprep.subr.mxu0 0.0
        %3753 = vmatpush1.msra.mxu0 0.0
        %3754 = vmatprep.subr.mxu0 0.0
        %3755 = vmatpush1.msra.mxu0 0.0
        %3756 = vmatprep.subr.mxu0 0.0
        %3757 = vmatpush1.msra.mxu0 0.0
        %3758 = vmatprep.subr.mxu0 0.0
        %3759 = vmatpush1.msra.mxu0 0.0
        %3760 = vmatprep.subr.mxu0 0.0
        %3761 = vmatpush1.msra.mxu0 0.0
        %3762 = vmatprep.subr.mxu0 0.0
        %3763 = vmatpush1.msra.mxu0 0.0
        %3764 = vmatprep.mubr.f32.mxu0 0.0
        %3765 = vmatmul.mubr.f32.gmra.mrb[0].mxu0 %v3698
        %v3766 = vpop.f32.mrb[0].mxu0
        %v3767 = vadd.f32 0.0, %v3766
        %v3768 = vpop.f32.mrb[0].mxu0
        %3769 = vdwg.mxu0
        %v3770 = vadd.f32 %v3686, %v3767
        %s3771 = scalar_lea.vmem [#allocation5], 144
        %v3772 = vld [vmem:[%s3771] sm:$0xff]
        %v3773 = vld [vmem:[%s3771 + $0x8] sm:$0xff]
        %v3774 = vld [vmem:[%s3771 + $0x10] sm:$0xff]
        %v3775 = vld [vmem:[%s3771 + $0x18] sm:$0xff]
        %v3776 = vld [vmem:[%s3771 + $0x20] sm:$0xff]
        %v3777 = vld [vmem:[%s3771 + $0x28] sm:$0xff]
        %3778 = vrot.lane.b32.xlu0 %v3520, 110
        %v3779 = vpop.permute.xlu0 %3778
        %v3780 = vsel %vm3544, %v3779, 0
        %3782 = vmatprep.subr.mxu0 0.0
        %3783 = vmatpush1.msra.mxu0 %v3772
        %3784 = vmatprep.subr.mxu0 0.0
        %3785 = vmatpush1.msra.mxu0 %v3773
        %3786 = vmatprep.subr.mxu0 0.0
        %3787 = vmatpush1.msra.mxu0 %v3774
        %3788 = vmatprep.subr.mxu0 0.0
        %3789 = vmatpush1.msra.mxu0 %v3775
        %3790 = vmatprep.subr.mxu0 0.0
        %3791 = vmatpush1.msra.mxu0 %v3776
        %3792 = vmatprep.subr.mxu0 0.0
        %3793 = vmatpush1.msra.mxu0 %v3777
        %3794 = vmatprep.subr.mxu0 0.0
        %3795 = vmatpush1.msra.mxu0 0.0
        %3796 = vmatprep.subr.mxu0 0.0
        %3797 = vmatpush1.msra.mxu0 0.0
        %3798 = vmatprep.subr.mxu0 0.0
        %3799 = vmatpush1.msra.mxu0 0.0
        %3800 = vmatprep.subr.mxu0 0.0
        %3801 = vmatpush1.msra.mxu0 0.0
        %3802 = vmatprep.subr.mxu0 0.0
        %3803 = vmatpush1.msra.mxu0 0.0
        %3804 = vmatprep.subr.mxu0 0.0
        %3805 = vmatpush1.msra.mxu0 0.0
        %3806 = vmatprep.subr.mxu0 0.0
        %3807 = vmatpush1.msra.mxu0 0.0
        %3808 = vmatprep.subr.mxu0 0.0
        %3809 = vmatpush1.msra.mxu0 0.0
        %3810 = vmatprep.subr.mxu0 0.0
        %3811 = vmatpush1.msra.mxu0 0.0
        %3812 = vmatprep.subr.mxu0 0.0
        %3813 = vmatpush1.msra.mxu0 0.0
        %3814 = vmatprep.subr.mxu0 0.0
        %3815 = vmatpush1.msra.mxu0 0.0
        %3816 = vmatprep.subr.mxu0 0.0
        %3817 = vmatpush1.msra.mxu0 0.0
        %3818 = vmatprep.subr.mxu0 0.0
        %3819 = vmatpush1.msra.mxu0 0.0
        %3820 = vmatprep.subr.mxu0 0.0
        %3821 = vmatpush1.msra.mxu0 0.0
        %3822 = vmatprep.subr.mxu0 0.0
        %3823 = vmatpush1.msra.mxu0 0.0
        %3824 = vmatprep.subr.mxu0 0.0
        %3825 = vmatpush1.msra.mxu0 0.0
        %3826 = vmatprep.subr.mxu0 0.0
        %3827 = vmatpush1.msra.mxu0 0.0
        %3828 = vmatprep.subr.mxu0 0.0
        %3829 = vmatpush1.msra.mxu0 0.0
        %3830 = vmatprep.subr.mxu0 0.0
        %3831 = vmatpush1.msra.mxu0 0.0
        %3832 = vmatprep.subr.mxu0 0.0
        %3833 = vmatpush1.msra.mxu0 0.0
        %3834 = vmatprep.subr.mxu0 0.0
        %3835 = vmatpush1.msra.mxu0 0.0
        %3836 = vmatprep.subr.mxu0 0.0
        %3837 = vmatpush1.msra.mxu0 0.0
        %3838 = vmatprep.subr.mxu0 0.0
        %3839 = vmatpush1.msra.mxu0 0.0
        %3840 = vmatprep.subr.mxu0 0.0
        %3841 = vmatpush1.msra.mxu0 0.0
        %3842 = vmatprep.subr.mxu0 0.0
        %3843 = vmatpush1.msra.mxu0 0.0
        %3844 = vmatprep.subr.mxu0 0.0
        %3845 = vmatpush1.msra.mxu0 0.0
        %3846 = vmatprep.mubr.f32.mxu0 0.0
        %3847 = vmatmul.mubr.f32.gmra.mrb[0].mxu0 %v3780
        %v3848 = vpop.f32.mrb[0].mxu0
        %v3849 = vadd.f32 0.0, %v3848
        %v3850 = vpop.f32.mrb[0].mxu0
        %3851 = vdwg.mxu0
        %v3852 = vadd.f32 %v3770, %v3849
        %s3853 = scalar_lea.vmem [#allocation5], 192
        %v3854 = vld [vmem:[%s3853] sm:$0xff]
        %v3855 = vld [vmem:[%s3853 + $0x8] sm:$0xff]
        %v3856 = vld [vmem:[%s3853 + $0x10] sm:$0xff]
        %v3857 = vld [vmem:[%s3853 + $0x18] sm:$0xff]
        %v3858 = vld [vmem:[%s3853 + $0x20] sm:$0xff]
        %v3859 = vld [vmem:[%s3853 + $0x28] sm:$0xff]
        %3860 = vrot.lane.b32.xlu0 %v3520, 104
        %v3861 = vpop.permute.xlu0 %3860
        %v3862 = vsel %vm3544, %v3861, 0
        %3864 = vmatprep.subr.mxu0 0.0
        %3865 = vmatpush1.msra.mxu0 %v3854
        %3866 = vmatprep.subr.mxu0 0.0
        %3867 = vmatpush1.msra.mxu0 %v3855
        %3868 = vmatprep.subr.mxu0 0.0
        %3869 = vmatpush1.msra.mxu0 %v3856
        %3870 = vmatprep.subr.mxu0 0.0
        %3871 = vmatpush1.msra.mxu0 %v3857
        %3872 = vmatprep.subr.mxu0 0.0
        %3873 = vmatpush1.msra.mxu0 %v3858
        %3874 = vmatprep.subr.mxu0 0.0
        %3875 = vmatpush1.msra.mxu0 %v3859
        %3876 = vmatprep.subr.mxu0 0.0
        %3877 = vmatpush1.msra.mxu0 0.0
        %3878 = vmatprep.subr.mxu0 0.0
        %3879 = vmatpush1.msra.mxu0 0.0
        %3880 = vmatprep.subr.mxu0 0.0
        %3881 = vmatpush1.msra.mxu0 0.0
        %3882 = vmatprep.subr.mxu0 0.0
        %3883 = vmatpush1.msra.mxu0 0.0
        %3884 = vmatprep.subr.mxu0 0.0
        %3885 = vmatpush1.msra.mxu0 0.0
        %3886 = vmatprep.subr.mxu0 0.0
        %3887 = vmatpush1.msra.mxu0 0.0
        %3888 = vmatprep.subr.mxu0 0.0
        %3889 = vmatpush1.msra.mxu0 0.0
        %3890 = vmatprep.subr.mxu0 0.0
        %3891 = vmatpush1.msra.mxu0 0.0
        %3892 = vmatprep.subr.mxu0 0.0
        %3893 = vmatpush1.msra.mxu0 0.0
        %3894 = vmatprep.subr.mxu0 0.0
        %3895 = vmatpush1.msra.mxu0 0.0
        %3896 = vmatprep.subr.mxu0 0.0
        %3897 = vmatpush1.msra.mxu0 0.0
        %3898 = vmatprep.subr.mxu0 0.0
        %3899 = vmatpush1.msra.mxu0 0.0
        %3900 = vmatprep.subr.mxu0 0.0
        %3901 = vmatpush1.msra.mxu0 0.0
        %3902 = vmatprep.subr.mxu0 0.0
        %3903 = vmatpush1.msra.mxu0 0.0
        %3904 = vmatprep.subr.mxu0 0.0
        %3905 = vmatpush1.msra.mxu0 0.0
        %3906 = vmatprep.subr.mxu0 0.0
        %3907 = vmatpush1.msra.mxu0 0.0
        %3908 = vmatprep.subr.mxu0 0.0
        %3909 = vmatpush1.msra.mxu0 0.0
        %3910 = vmatprep.subr.mxu0 0.0
        %3911 = vmatpush1.msra.mxu0 0.0
        %3912 = vmatprep.subr.mxu0 0.0
        %3913 = vmatpush1.msra.mxu0 0.0
        %3914 = vmatprep.subr.mxu0 0.0
        %3915 = vmatpush1.msra.mxu0 0.0
        %3916 = vmatprep.subr.mxu0 0.0
        %3917 = vmatpush1.msra.mxu0 0.0
        %3918 = vmatprep.subr.mxu0 0.0
        %3919 = vmatpush1.msra.mxu0 0.0
        %3920 = vmatprep.subr.mxu0 0.0
        %3921 = vmatpush1.msra.mxu0 0.0
        %3922 = vmatprep.subr.mxu0 0.0
        %3923 = vmatpush1.msra.mxu0 0.0
        %3924 = vmatprep.subr.mxu0 0.0
        %3925 = vmatpush1.msra.mxu0 0.0
        %3926 = vmatprep.subr.mxu0 0.0
        %3927 = vmatpush1.msra.mxu0 0.0
        %3928 = vmatprep.mubr.f32.mxu0 0.0
        %3929 = vmatmul.mubr.f32.gmra.mrb[0].mxu0 %v3862
        %v3930 = vpop.f32.mrb[0].mxu0
        %v3931 = vadd.f32 0.0, %v3930
        %v3932 = vpop.f32.mrb[0].mxu0
        %3933 = vdwg.mxu0
        %v3934 = vadd.f32 %v3852, %v3931
        %s3935 = scalar_lea.vmem [#allocation5], 240
        %v3936 = vld [vmem:[%s3935] sm:$0xff]
        %v3937 = vld [vmem:[%s3935 + $0x8] sm:$0xff]
        %v3938 = vld [vmem:[%s3935 + $0x10] sm:$0xff]
        %v3939 = vld [vmem:[%s3935 + $0x18] sm:$0xff]
        %v3940 = vld [vmem:[%s3935 + $0x20] sm:$0xff]
        %v3941 = vld [vmem:[%s3935 + $0x28] sm:$0xff]
        %v3943 = vrot.slane %v3520, 1
        %v3944 = vrot.slane %v3525, 1
        %v3945 = vsel %vm1096, %v3943, %v3944
        %v3946 = vsel %vm3544, %v3945, 0
        %3948 = vmatprep.subr.mxu0 0.0
        %3949 = vmatpush1.msra.mxu0 %v3936
        %3950 = vmatprep.subr.mxu0 0.0
        %3951 = vmatpush1.msra.mxu0 %v3937
        %3952 = vmatprep.subr.mxu0 0.0
        %3953 = vmatpush1.msra.mxu0 %v3938
        %3954 = vmatprep.subr.mxu0 0.0
        %3955 = vmatpush1.msra.mxu0 %v3939
        %3956 = vmatprep.subr.mxu0 0.0
        %3957 = vmatpush1.msra.mxu0 %v3940
        %3958 = vmatprep.subr.mxu0 0.0
        %3959 = vmatpush1.msra.mxu0 %v3941
        %3960 = vmatprep.subr.mxu0 0.0
        %3961 = vmatpush1.msra.mxu0 0.0
        %3962 = vmatprep.subr.mxu0 0.0
        %3963 = vmatpush1.msra.mxu0 0.0
        %3964 = vmatprep.subr.mxu0 0.0
        %3965 = vmatpush1.msra.mxu0 0.0
        %3966 = vmatprep.subr.mxu0 0.0
        %3967 = vmatpush1.msra.mxu0 0.0
        %3968 = vmatprep.subr.mxu0 0.0
        %3969 = vmatpush1.msra.mxu0 0.0
        %3970 = vmatprep.subr.mxu0 0.0
        %3971 = vmatpush1.msra.mxu0 0.0
        %3972 = vmatprep.subr.mxu0 0.0
        %3973 = vmatpush1.msra.mxu0 0.0
        %3974 = vmatprep.subr.mxu0 0.0
        %3975 = vmatpush1.msra.mxu0 0.0
        %3976 = vmatprep.subr.mxu0 0.0
        %3977 = vmatpush1.msra.mxu0 0.0
        %3978 = vmatprep.subr.mxu0 0.0
        %3979 = vmatpush1.msra.mxu0 0.0
        %3980 = vmatprep.subr.mxu0 0.0
        %3981 = vmatpush1.msra.mxu0 0.0
        %3982 = vmatprep.subr.mxu0 0.0
        %3983 = vmatpush1.msra.mxu0 0.0
        %3984 = vmatprep.subr.mxu0 0.0
        %3985 = vmatpush1.msra.mxu0 0.0
        %3986 = vmatprep.subr.mxu0 0.0
        %3987 = vmatpush1.msra.mxu0 0.0
        %3988 = vmatprep.subr.mxu0 0.0
        %3989 = vmatpush1.msra.mxu0 0.0
        %3990 = vmatprep.subr.mxu0 0.0
        %3991 = vmatpush1.msra.mxu0 0.0
        %3992 = vmatprep.subr.mxu0 0.0
        %3993 = vmatpush1.msra.mxu0 0.0
        %3994 = vmatprep.subr.mxu0 0.0
        %3995 = vmatpush1.msra.mxu0 0.0
        %3996 = vmatprep.subr.mxu0 0.0
        %3997 = vmatpush1.msra.mxu0 0.0
        %3998 = vmatprep.subr.mxu0 0.0
        %3999 = vmatpush1.msra.mxu0 0.0
        %4000 = vmatprep.subr.mxu0 0.0
        %4001 = vmatpush1.msra.mxu0 0.0
        %4002 = vmatprep.subr.mxu0 0.0
        %4003 = vmatpush1.msra.mxu0 0.0
        %4004 = vmatprep.subr.mxu0 0.0
        %4005 = vmatpush1.msra.mxu0 0.0
        %4006 = vmatprep.subr.mxu0 0.0
        %4007 = vmatpush1.msra.mxu0 0.0
        %4008 = vmatprep.subr.mxu0 0.0
        %4009 = vmatpush1.msra.mxu0 0.0
        %4010 = vmatprep.subr.mxu0 0.0
        %4011 = vmatpush1.msra.mxu0 0.0
        %4012 = vmatprep.mubr.f32.mxu0 0.0
        %4013 = vmatmul.mubr.f32.gmra.mrb[0].mxu0 %v3946
        %v4014 = vpop.f32.mrb[0].mxu0
        %v4015 = vadd.f32 0.0, %v4014
        %v4016 = vpop.f32.mrb[0].mxu0
        %4017 = vdwg.mxu0
        %v4018 = vadd.f32 %v3934, %v4015
        %s4019 = scalar_lea.vmem [#allocation5], 288
        %v4020 = vld [vmem:[%s4019] sm:$0xff]
        %v4021 = vld [vmem:[%s4019 + $0x8] sm:$0xff]
        %v4022 = vld [vmem:[%s4019 + $0x10] sm:$0xff]
        %v4023 = vld [vmem:[%s4019 + $0x18] sm:$0xff]
        %v4024 = vld [vmem:[%s4019 + $0x20] sm:$0xff]
        %v4025 = vld [vmem:[%s4019 + $0x28] sm:$0xff]
        %4026 = vrot.lane.b32.xlu0 %v3945, 122
        %v4027 = vpop.permute.xlu0 %4026
        %v4028 = vsel %vm3544, %v4027, 0
        %4030 = vmatprep.subr.mxu0 0.0
        %4031 = vmatpush1.msra.mxu0 %v4020
        %4032 = vmatprep.subr.mxu0 0.0
        %4033 = vmatpush1.msra.mxu0 %v4021
        %4034 = vmatprep.subr.mxu0 0.0
        %4035 = vmatpush1.msra.mxu0 %v4022
        %4036 = vmatprep.subr.mxu0 0.0
        %4037 = vmatpush1.msra.mxu0 %v4023
        %4038 = vmatprep.subr.mxu0 0.0
        %4039 = vmatpush1.msra.mxu0 %v4024
        %4040 = vmatprep.subr.mxu0 0.0
        %4041 = vmatpush1.msra.mxu0 %v4025
        %4042 = vmatprep.subr.mxu0 0.0
        %4043 = vmatpush1.msra.mxu0 0.0
        %4044 = vmatprep.subr.mxu0 0.0
        %4045 = vmatpush1.msra.mxu0 0.0
        %4046 = vmatprep.subr.mxu0 0.0
        %4047 = vmatpush1.msra.mxu0 0.0
        %4048 = vmatprep.subr.mxu0 0.0
        %4049 = vmatpush1.msra.mxu0 0.0
        %4050 = vmatprep.subr.mxu0 0.0
        %4051 = vmatpush1.msra.mxu0 0.0
        %4052 = vmatprep.subr.mxu0 0.0
        %4053 = vmatpush1.msra.mxu0 0.0
        %4054 = vmatprep.subr.mxu0 0.0
        %4055 = vmatpush1.msra.mxu0 0.0
        %4056 = vmatprep.subr.mxu0 0.0
        %4057 = vmatpush1.msra.mxu0 0.0
        %4058 = vmatprep.subr.mxu0 0.0
        %4059 = vmatpush1.msra.mxu0 0.0
        %4060 = vmatprep.subr.mxu0 0.0
        %4061 = vmatpush1.msra.mxu0 0.0
        %4062 = vmatprep.subr.mxu0 0.0
        %4063 = vmatpush1.msra.mxu0 0.0
        %4064 = vmatprep.subr.mxu0 0.0
        %4065 = vmatpush1.msra.mxu0 0.0
        %4066 = vmatprep.subr.mxu0 0.0
        %4067 = vmatpush1.msra.mxu0 0.0
        %4068 = vmatprep.subr.mxu0 0.0
        %4069 = vmatpush1.msra.mxu0 0.0
        %4070 = vmatprep.subr.mxu0 0.0
        %4071 = vmatpush1.msra.mxu0 0.0
        %4072 = vmatprep.subr.mxu0 0.0
        %4073 = vmatpush1.msra.mxu0 0.0
        %4074 = vmatprep.subr.mxu0 0.0
        %4075 = vmatpush1.msra.mxu0 0.0
        %4076 = vmatprep.subr.mxu0 0.0
        %4077 = vmatpush1.msra.mxu0 0.0
        %4078 = vmatprep.subr.mxu0 0.0
        %4079 = vmatpush1.msra.mxu0 0.0
        %4080 = vmatprep.subr.mxu0 0.0
        %4081 = vmatpush1.msra.mxu0 0.0
        %4082 = vmatprep.subr.mxu0 0.0
        %4083 = vmatpush1.msra.mxu0 0.0
        %4084 = vmatprep.subr.mxu0 0.0
        %4085 = vmatpush1.msra.mxu0 0.0
        %4086 = vmatprep.subr.mxu0 0.0
        %4087 = vmatpush1.msra.mxu0 0.0
        %4088 = vmatprep.subr.mxu0 0.0
        %4089 = vmatpush1.msra.mxu0 0.0
        %4090 = vmatprep.subr.mxu0 0.0
        %4091 = vmatpush1.msra.mxu0 0.0
        %4092 = vmatprep.subr.mxu0 0.0
        %4093 = vmatpush1.msra.mxu0 0.0
        %4094 = vmatprep.mubr.f32.mxu0 0.0
        %4095 = vmatmul.mubr.f32.gmra.mrb[0].mxu0 %v4028
        %v4096 = vpop.f32.mrb[0].mxu0
        %v4097 = vadd.f32 0.0, %v4096
        %v4098 = vpop.f32.mrb[0].mxu0
        %4099 = vdwg.mxu0
        %v4100 = vadd.f32 %v4018, %v4097
        %s4101 = scalar_lea.vmem [#allocation5], 336
        %v4102 = vld [vmem:[%s4101] sm:$0xff]
        %v4103 = vld [vmem:[%s4101 + $0x8] sm:$0xff]
        %v4104 = vld [vmem:[%s4101 + $0x10] sm:$0xff]
        %v4105 = vld [vmem:[%s4101 + $0x18] sm:$0xff]
        %v4106 = vld [vmem:[%s4101 + $0x20] sm:$0xff]
        %v4107 = vld [vmem:[%s4101 + $0x28] sm:$0xff]
        %4108 = vrot.lane.b32.xlu0 %v3945, 116
        %v4109 = vpop.permute.xlu0 %4108
        %v4110 = vsel %vm3544, %v4109, 0
        %4112 = vmatprep.subr.mxu0 0.0
        %4113 = vmatpush1.msra.mxu0 %v4102
        %4114 = vmatprep.subr.mxu0 0.0
        %4115 = vmatpush1.msra.mxu0 %v4103
        %4116 = vmatprep.subr.mxu0 0.0
        %4117 = vmatpush1.msra.mxu0 %v4104
        %4118 = vmatprep.subr.mxu0 0.0
        %4119 = vmatpush1.msra.mxu0 %v4105
        %4120 = vmatprep.subr.mxu0 0.0
        %4121 = vmatpush1.msra.mxu0 %v4106
        %4122 = vmatprep.subr.mxu0 0.0
        %4123 = vmatpush1.msra.mxu0 %v4107
        %4124 = vmatprep.subr.mxu0 0.0
        %4125 = vmatpush1.msra.mxu0 0.0
        %4126 = vmatprep.subr.mxu0 0.0
        %4127 = vmatpush1.msra.mxu0 0.0
        %4128 = vmatprep.subr.mxu0 0.0
        %4129 = vmatpush1.msra.mxu0 0.0
        %4130 = vmatprep.subr.mxu0 0.0
        %4131 = vmatpush1.msra.mxu0 0.0
        %4132 = vmatprep.subr.mxu0 0.0
        %4133 = vmatpush1.msra.mxu0 0.0
        %4134 = vmatprep.subr.mxu0 0.0
        %4135 = vmatpush1.msra.mxu0 0.0
        %4136 = vmatprep.subr.mxu0 0.0
        %4137 = vmatpush1.msra.mxu0 0.0
        %4138 = vmatprep.subr.mxu0 0.0
        %4139 = vmatpush1.msra.mxu0 0.0
        %4140 = vmatprep.subr.mxu0 0.0
        %4141 = vmatpush1.msra.mxu0 0.0
        %4142 = vmatprep.subr.mxu0 0.0
        %4143 = vmatpush1.msra.mxu0 0.0
        %4144 = vmatprep.subr.mxu0 0.0
        %4145 = vmatpush1.msra.mxu0 0.0
        %4146 = vmatprep.subr.mxu0 0.0
        %4147 = vmatpush1.msra.mxu0 0.0
        %4148 = vmatprep.subr.mxu0 0.0
        %4149 = vmatpush1.msra.mxu0 0.0
        %4150 = vmatprep.subr.mxu0 0.0
        %4151 = vmatpush1.msra.mxu0 0.0
        %4152 = vmatprep.subr.mxu0 0.0
        %4153 = vmatpush1.msra.mxu0 0.0
        %4154 = vmatprep.subr.mxu0 0.0
        %4155 = vmatpush1.msra.mxu0 0.0
        %4156 = vmatprep.subr.mxu0 0.0
        %4157 = vmatpush1.msra.mxu0 0.0
        %4158 = vmatprep.subr.mxu0 0.0
        %4159 = vmatpush1.msra.mxu0 0.0
        %4160 = vmatprep.subr.mxu0 0.0
        %4161 = vmatpush1.msra.mxu0 0.0
        %4162 = vmatprep.subr.mxu0 0.0
        %4163 = vmatpush1.msra.mxu0 0.0
        %4164 = vmatprep.subr.mxu0 0.0
        %4165 = vmatpush1.msra.mxu0 0.0
        %4166 = vmatprep.subr.mxu0 0.0
        %4167 = vmatpush1.msra.mxu0 0.0
        %4168 = vmatprep.subr.mxu0 0.0
        %4169 = vmatpush1.msra.mxu0 0.0
        %4170 = vmatprep.subr.mxu0 0.0
        %4171 = vmatpush1.msra.mxu0 0.0
        %4172 = vmatprep.subr.mxu0 0.0
        %4173 = vmatpush1.msra.mxu0 0.0
        %4174 = vmatprep.subr.mxu0 0.0
        %4175 = vmatpush1.msra.mxu0 0.0
        %4176 = vmatprep.mubr.f32.mxu0 0.0
        %4177 = vmatmul.mubr.f32.gmra.mrb[0].mxu0 %v4110
        %v4178 = vpop.f32.mrb[0].mxu0
        %v4179 = vadd.f32 0.0, %v4178
        %v4180 = vpop.f32.mrb[0].mxu0
        %4181 = vdwg.mxu0
        %v4182 = vadd.f32 %v4100, %v4179
        %s4183 = scalar_lea.vmem [#allocation5], 384
        %v4184 = vld [vmem:[%s4183] sm:$0xff]
        %v4185 = vld [vmem:[%s4183 + $0x8] sm:$0xff]
        %v4186 = vld [vmem:[%s4183 + $0x10] sm:$0xff]
        %v4187 = vld [vmem:[%s4183 + $0x18] sm:$0xff]
        %v4188 = vld [vmem:[%s4183 + $0x20] sm:$0xff]
        %v4189 = vld [vmem:[%s4183 + $0x28] sm:$0xff]
        %4190 = vrot.lane.b32.xlu0 %v3945, 110
        %v4191 = vpop.permute.xlu0 %4190
        %v4192 = vsel %vm3544, %v4191, 0
        %4194 = vmatprep.subr.mxu0 0.0
        %4195 = vmatpush1.msra.mxu0 %v4184
        %4196 = vmatprep.subr.mxu0 0.0
        %4197 = vmatpush1.msra.mxu0 %v4185
        %4198 = vmatprep.subr.mxu0 0.0
        %4199 = vmatpush1.msra.mxu0 %v4186
        %4200 = vmatprep.subr.mxu0 0.0
        %4201 = vmatpush1.msra.mxu0 %v4187
        %4202 = vmatprep.subr.mxu0 0.0
        %4203 = vmatpush1.msra.mxu0 %v4188
        %4204 = vmatprep.subr.mxu0 0.0
        %4205 = vmatpush1.msra.mxu0 %v4189
        %4206 = vmatprep.subr.mxu0 0.0
        %4207 = vmatpush1.msra.mxu0 0.0
        %4208 = vmatprep.subr.mxu0 0.0
        %4209 = vmatpush1.msra.mxu0 0.0
        %4210 = vmatprep.subr.mxu0 0.0
        %4211 = vmatpush1.msra.mxu0 0.0
        %4212 = vmatprep.subr.mxu0 0.0
        %4213 = vmatpush1.msra.mxu0 0.0
        %4214 = vmatprep.subr.mxu0 0.0
        %4215 = vmatpush1.msra.mxu0 0.0
        %4216 = vmatprep.subr.mxu0 0.0
        %4217 = vmatpush1.msra.mxu0 0.0
        %4218 = vmatprep.subr.mxu0 0.0
        %4219 = vmatpush1.msra.mxu0 0.0
        %4220 = vmatprep.subr.mxu0 0.0
        %4221 = vmatpush1.msra.mxu0 0.0
        %4222 = vmatprep.subr.mxu0 0.0
        %4223 = vmatpush1.msra.mxu0 0.0
        %4224 = vmatprep.subr.mxu0 0.0
        %4225 = vmatpush1.msra.mxu0 0.0
        %4226 = vmatprep.subr.mxu0 0.0
        %4227 = vmatpush1.msra.mxu0 0.0
        %4228 = vmatprep.subr.mxu0 0.0
        %4229 = vmatpush1.msra.mxu0 0.0
        %4230 = vmatprep.subr.mxu0 0.0
        %4231 = vmatpush1.msra.mxu0 0.0
        %4232 = vmatprep.subr.mxu0 0.0
        %4233 = vmatpush1.msra.mxu0 0.0
        %4234 = vmatprep.subr.mxu0 0.0
        %4235 = vmatpush1.msra.mxu0 0.0
        %4236 = vmatprep.subr.mxu0 0.0
        %4237 = vmatpush1.msra.mxu0 0.0
        %4238 = vmatprep.subr.mxu0 0.0
        %4239 = vmatpush1.msra.mxu0 0.0
        %4240 = vmatprep.subr.mxu0 0.0
        %4241 = vmatpush1.msra.mxu0 0.0
        %4242 = vmatprep.subr.mxu0 0.0
        %4243 = vmatpush1.msra.mxu0 0.0
        %4244 = vmatprep.subr.mxu0 0.0
        %4245 = vmatpush1.msra.mxu0 0.0
        %4246 = vmatprep.subr.mxu0 0.0
        %4247 = vmatpush1.msra.mxu0 0.0
        %4248 = vmatprep.subr.mxu0 0.0
        %4249 = vmatpush1.msra.mxu0 0.0
        %4250 = vmatprep.subr.mxu0 0.0
        %4251 = vmatpush1.msra.mxu0 0.0
        %4252 = vmatprep.subr.mxu0 0.0
        %4253 = vmatpush1.msra.mxu0 0.0
        %4254 = vmatprep.subr.mxu0 0.0
        %4255 = vmatpush1.msra.mxu0 0.0
        %4256 = vmatprep.subr.mxu0 0.0
        %4257 = vmatpush1.msra.mxu0 0.0
        %4258 = vmatprep.mubr.f32.mxu0 0.0
        %4259 = vmatmul.mubr.f32.gmra.mrb[0].mxu0 %v4192
        %v4260 = vpop.f32.mrb[0].mxu0
        %v4261 = vadd.f32 0.0, %v4260
        %v4262 = vpop.f32.mrb[0].mxu0
        %4263 = vdwg.mxu0
        %v4264 = vadd.f32 %v4182, %v4261
        %s4265 = scalar_lea.vmem [#allocation5], 432
        %v4266 = vld [vmem:[%s4265] sm:$0xff]
        %v4267 = vld [vmem:[%s4265 + $0x8] sm:$0xff]
        %v4268 = vld [vmem:[%s4265 + $0x10] sm:$0xff]
        %v4269 = vld [vmem:[%s4265 + $0x18] sm:$0xff]
        %v4270 = vld [vmem:[%s4265 + $0x20] sm:$0xff]
        %v4271 = vld [vmem:[%s4265 + $0x28] sm:$0xff]
        %4272 = vrot.lane.b32.xlu0 %v3945, 104
        %v4273 = vpop.permute.xlu0 %4272
        %v4274 = vsel %vm3544, %v4273, 0
        %4276 = vmatprep.subr.mxu0 0.0
        %4277 = vmatpush1.msra.mxu0 %v4266
        %4278 = vmatprep.subr.mxu0 0.0
        %4279 = vmatpush1.msra.mxu0 %v4267
        %4280 = vmatprep.subr.mxu0 0.0
        %4281 = vmatpush1.msra.mxu0 %v4268
        %4282 = vmatprep.subr.mxu0 0.0
        %4283 = vmatpush1.msra.mxu0 %v4269
        %4284 = vmatprep.subr.mxu0 0.0
        %4285 = vmatpush1.msra.mxu0 %v4270
        %4286 = vmatprep.subr.mxu0 0.0
        %4287 = vmatpush1.msra.mxu0 %v4271
        %4288 = vmatprep.subr.mxu0 0.0
        %4289 = vmatpush1.msra.mxu0 0.0
        %4290 = vmatprep.subr.mxu0 0.0
        %4291 = vmatpush1.msra.mxu0 0.0
        %4292 = vmatprep.subr.mxu0 0.0
        %4293 = vmatpush1.msra.mxu0 0.0
        %4294 = vmatprep.subr.mxu0 0.0
        %4295 = vmatpush1.msra.mxu0 0.0
        %4296 = vmatprep.subr.mxu0 0.0
        %4297 = vmatpush1.msra.mxu0 0.0
        %4298 = vmatprep.subr.mxu0 0.0
        %4299 = vmatpush1.msra.mxu0 0.0
        %4300 = vmatprep.subr.mxu0 0.0
        %4301 = vmatpush1.msra.mxu0 0.0
        %4302 = vmatprep.subr.mxu0 0.0
        %4303 = vmatpush1.msra.mxu0 0.0
        %4304 = vmatprep.subr.mxu0 0.0
        %4305 = vmatpush1.msra.mxu0 0.0
        %4306 = vmatprep.subr.mxu0 0.0
        %4307 = vmatpush1.msra.mxu0 0.0
        %4308 = vmatprep.subr.mxu0 0.0
        %4309 = vmatpush1.msra.mxu0 0.0
        %4310 = vmatprep.subr.mxu0 0.0
        %4311 = vmatpush1.msra.mxu0 0.0
        %4312 = vmatprep.subr.mxu0 0.0
        %4313 = vmatpush1.msra.mxu0 0.0
        %4314 = vmatprep.subr.mxu0 0.0
        %4315 = vmatpush1.msra.mxu0 0.0
        %4316 = vmatprep.subr.mxu0 0.0
        %4317 = vmatpush1.msra.mxu0 0.0
        %4318 = vmatprep.subr.mxu0 0.0
        %4319 = vmatpush1.msra.mxu0 0.0
        %4320 = vmatprep.subr.mxu0 0.0
        %4321 = vmatpush1.msra.mxu0 0.0
        %4322 = vmatprep.subr.mxu0 0.0
        %4323 = vmatpush1.msra.mxu0 0.0
        %4324 = vmatprep.subr.mxu0 0.0
        %4325 = vmatpush1.msra.mxu0 0.0
        %4326 = vmatprep.subr.mxu0 0.0
        %4327 = vmatpush1.msra.mxu0 0.0
        %4328 = vmatprep.subr.mxu0 0.0
        %4329 = vmatpush1.msra.mxu0 0.0
        %4330 = vmatprep.subr.mxu0 0.0
        %4331 = vmatpush1.msra.mxu0 0.0
        %4332 = vmatprep.subr.mxu0 0.0
        %4333 = vmatpush1.msra.mxu0 0.0
        %4334 = vmatprep.subr.mxu0 0.0
        %4335 = vmatpush1.msra.mxu0 0.0
        %4336 = vmatprep.subr.mxu0 0.0
        %4337 = vmatpush1.msra.mxu0 0.0
        %4338 = vmatprep.subr.mxu0 0.0
        %4339 = vmatpush1.msra.mxu0 0.0
        %4340 = vmatprep.mubr.f32.mxu0 0.0
        %4341 = vmatmul.mubr.f32.gmra.mrb[0].mxu0 %v4274
        %v4342 = vpop.f32.mrb[0].mxu0
        %v4343 = vadd.f32 0.0, %v4342
        %v4344 = vpop.f32.mrb[0].mxu0
        %4345 = vdwg.mxu0
        %v4346 = vadd.f32 %v4264, %v4343
        %s4347 = scalar_lea.vmem [#allocation5], 480
        %v4348 = vld [vmem:[%s4347] sm:$0xff]
        %v4349 = vld [vmem:[%s4347 + $0x8] sm:$0xff]
        %v4350 = vld [vmem:[%s4347 + $0x10] sm:$0xff]
        %v4351 = vld [vmem:[%s4347 + $0x18] sm:$0xff]
        %v4352 = vld [vmem:[%s4347 + $0x20] sm:$0xff]
        %v4353 = vld [vmem:[%s4347 + $0x28] sm:$0xff]
        %v4354 = vrot.slane %v3520, 2
        %v4355 = vrot.slane %v3525, 2
        %v4356 = vsel %vm1638, %v4354, %v4355
        %v4357 = vsel %vm3544, %v4356, 0
        %4359 = vmatprep.subr.mxu0 0.0
        %4360 = vmatpush1.msra.mxu0 %v4348
        %4361 = vmatprep.subr.mxu0 0.0
        %4362 = vmatpush1.msra.mxu0 %v4349
        %4363 = vmatprep.subr.mxu0 0.0
        %4364 = vmatpush1.msra.mxu0 %v4350
        %4365 = vmatprep.subr.mxu0 0.0
        %4366 = vmatpush1.msra.mxu0 %v4351
        %4367 = vmatprep.subr.mxu0 0.0
        %4368 = vmatpush1.msra.mxu0 %v4352
        %4369 = vmatprep.subr.mxu0 0.0
        %4370 = vmatpush1.msra.mxu0 %v4353
        %4371 = vmatprep.subr.mxu0 0.0
        %4372 = vmatpush1.msra.mxu0 0.0
        %4373 = vmatprep.subr.mxu0 0.0
        %4374 = vmatpush1.msra.mxu0 0.0
        %4375 = vmatprep.subr.mxu0 0.0
        %4376 = vmatpush1.msra.mxu0 0.0
        %4377 = vmatprep.subr.mxu0 0.0
        %4378 = vmatpush1.msra.mxu0 0.0
        %4379 = vmatprep.subr.mxu0 0.0
        %4380 = vmatpush1.msra.mxu0 0.0
        %4381 = vmatprep.subr.mxu0 0.0
        %4382 = vmatpush1.msra.mxu0 0.0
        %4383 = vmatprep.subr.mxu0 0.0
        %4384 = vmatpush1.msra.mxu0 0.0
        %4385 = vmatprep.subr.mxu0 0.0
        %4386 = vmatpush1.msra.mxu0 0.0
        %4387 = vmatprep.subr.mxu0 0.0
        %4388 = vmatpush1.msra.mxu0 0.0
        %4389 = vmatprep.subr.mxu0 0.0
        %4390 = vmatpush1.msra.mxu0 0.0
        %4391 = vmatprep.subr.mxu0 0.0
        %4392 = vmatpush1.msra.mxu0 0.0
        %4393 = vmatprep.subr.mxu0 0.0
        %4394 = vmatpush1.msra.mxu0 0.0
        %4395 = vmatprep.subr.mxu0 0.0
        %4396 = vmatpush1.msra.mxu0 0.0
        %4397 = vmatprep.subr.mxu0 0.0
        %4398 = vmatpush1.msra.mxu0 0.0
        %4399 = vmatprep.subr.mxu0 0.0
        %4400 = vmatpush1.msra.mxu0 0.0
        %4401 = vmatprep.subr.mxu0 0.0
        %4402 = vmatpush1.msra.mxu0 0.0
        %4403 = vmatprep.subr.mxu0 0.0
        %4404 = vmatpush1.msra.mxu0 0.0
        %4405 = vmatprep.subr.mxu0 0.0
        %4406 = vmatpush1.msra.mxu0 0.0
        %4407 = vmatprep.subr.mxu0 0.0
        %4408 = vmatpush1.msra.mxu0 0.0
        %4409 = vmatprep.subr.mxu0 0.0
        %4410 = vmatpush1.msra.mxu0 0.0
        %4411 = vmatprep.subr.mxu0 0.0
        %4412 = vmatpush1.msra.mxu0 0.0
        %4413 = vmatprep.subr.mxu0 0.0
        %4414 = vmatpush1.msra.mxu0 0.0
        %4415 = vmatprep.subr.mxu0 0.0
        %4416 = vmatpush1.msra.mxu0 0.0
        %4417 = vmatprep.subr.mxu0 0.0
        %4418 = vmatpush1.msra.mxu0 0.0
        %4419 = vmatprep.subr.mxu0 0.0
        %4420 = vmatpush1.msra.mxu0 0.0
        %4421 = vmatprep.subr.mxu0 0.0
        %4422 = vmatpush1.msra.mxu0 0.0
        %4423 = vmatprep.mubr.f32.mxu0 0.0
        %4424 = vmatmul.mubr.f32.gmra.mrb[0].mxu0 %v4357
        %v4425 = vpop.f32.mrb[0].mxu0
        %v4426 = vadd.f32 0.0, %v4425
        %v4427 = vpop.f32.mrb[0].mxu0
        %4428 = vdwg.mxu0
        %v4429 = vadd.f32 %v4346, %v4426
        %s4430 = scalar_lea.vmem [#allocation5], 528
        %v4431 = vld [vmem:[%s4430] sm:$0xff]
        %v4432 = vld [vmem:[%s4430 + $0x8] sm:$0xff]
        %v4433 = vld [vmem:[%s4430 + $0x10] sm:$0xff]
        %v4434 = vld [vmem:[%s4430 + $0x18] sm:$0xff]
        %v4435 = vld [vmem:[%s4430 + $0x20] sm:$0xff]
        %v4436 = vld [vmem:[%s4430 + $0x28] sm:$0xff]
        %4437 = vrot.lane.b32.xlu0 %v4356, 122
        %v4438 = vpop.permute.xlu0 %4437
        %v4439 = vsel %vm3544, %v4438, 0
        %4441 = vmatprep.subr.mxu0 0.0
        %4442 = vmatpush1.msra.mxu0 %v4431
        %4443 = vmatprep.subr.mxu0 0.0
        %4444 = vmatpush1.msra.mxu0 %v4432
        %4445 = vmatprep.subr.mxu0 0.0
        %4446 = vmatpush1.msra.mxu0 %v4433
        %4447 = vmatprep.subr.mxu0 0.0
        %4448 = vmatpush1.msra.mxu0 %v4434
        %4449 = vmatprep.subr.mxu0 0.0
        %4450 = vmatpush1.msra.mxu0 %v4435
        %4451 = vmatprep.subr.mxu0 0.0
        %4452 = vmatpush1.msra.mxu0 %v4436
        %4453 = vmatprep.subr.mxu0 0.0
        %4454 = vmatpush1.msra.mxu0 0.0
        %4455 = vmatprep.subr.mxu0 0.0
        %4456 = vmatpush1.msra.mxu0 0.0
        %4457 = vmatprep.subr.mxu0 0.0
        %4458 = vmatpush1.msra.mxu0 0.0
        %4459 = vmatprep.subr.mxu0 0.0
        %4460 = vmatpush1.msra.mxu0 0.0
        %4461 = vmatprep.subr.mxu0 0.0
        %4462 = vmatpush1.msra.mxu0 0.0
        %4463 = vmatprep.subr.mxu0 0.0
        %4464 = vmatpush1.msra.mxu0 0.0
        %4465 = vmatprep.subr.mxu0 0.0
        %4466 = vmatpush1.msra.mxu0 0.0
        %4467 = vmatprep.subr.mxu0 0.0
        %4468 = vmatpush1.msra.mxu0 0.0
        %4469 = vmatprep.subr.mxu0 0.0
        %4470 = vmatpush1.msra.mxu0 0.0
        %4471 = vmatprep.subr.mxu0 0.0
        %4472 = vmatpush1.msra.mxu0 0.0
        %4473 = vmatprep.subr.mxu0 0.0
        %4474 = vmatpush1.msra.mxu0 0.0
        %4475 = vmatprep.subr.mxu0 0.0
        %4476 = vmatpush1.msra.mxu0 0.0
        %4477 = vmatprep.subr.mxu0 0.0
        %4478 = vmatpush1.msra.mxu0 0.0
        %4479 = vmatprep.subr.mxu0 0.0
        %4480 = vmatpush1.msra.mxu0 0.0
        %4481 = vmatprep.subr.mxu0 0.0
        %4482 = vmatpush1.msra.mxu0 0.0
        %4483 = vmatprep.subr.mxu0 0.0
        %4484 = vmatpush1.msra.mxu0 0.0
        %4485 = vmatprep.subr.mxu0 0.0
        %4486 = vmatpush1.msra.mxu0 0.0
        %4487 = vmatprep.subr.mxu0 0.0
        %4488 = vmatpush1.msra.mxu0 0.0
        %4489 = vmatprep.subr.mxu0 0.0
        %4490 = vmatpush1.msra.mxu0 0.0
        %4491 = vmatprep.subr.mxu0 0.0
        %4492 = vmatpush1.msra.mxu0 0.0
        %4493 = vmatprep.subr.mxu0 0.0
        %4494 = vmatpush1.msra.mxu0 0.0
        %4495 = vmatprep.subr.mxu0 0.0
        %4496 = vmatpush1.msra.mxu0 0.0
        %4497 = vmatprep.subr.mxu0 0.0
        %4498 = vmatpush1.msra.mxu0 0.0
        %4499 = vmatprep.subr.mxu0 0.0
        %4500 = vmatpush1.msra.mxu0 0.0
        %4501 = vmatprep.subr.mxu0 0.0
        %4502 = vmatpush1.msra.mxu0 0.0
        %4503 = vmatprep.subr.mxu0 0.0
        %4504 = vmatpush1.msra.mxu0 0.0
        %4505 = vmatprep.mubr.f32.mxu0 0.0
        %4506 = vmatmul.mubr.f32.gmra.mrb[0].mxu0 %v4439
        %v4507 = vpop.f32.mrb[0].mxu0
        %v4508 = vadd.f32 0.0, %v4507
        %v4509 = vpop.f32.mrb[0].mxu0
        %4510 = vdwg.mxu0
        %v4511 = vadd.f32 %v4429, %v4508
        %s4512 = scalar_lea.vmem [#allocation5], 576
        %v4513 = vld [vmem:[%s4512] sm:$0xff]
        %v4514 = vld [vmem:[%s4512 + $0x8] sm:$0xff]
        %v4515 = vld [vmem:[%s4512 + $0x10] sm:$0xff]
        %v4516 = vld [vmem:[%s4512 + $0x18] sm:$0xff]
        %v4517 = vld [vmem:[%s4512 + $0x20] sm:$0xff]
        %v4518 = vld [vmem:[%s4512 + $0x28] sm:$0xff]
        %4519 = vrot.lane.b32.xlu0 %v4356, 116
        %v4520 = vpop.permute.xlu0 %4519
        %v4521 = vsel %vm3544, %v4520, 0
        %4523 = vmatprep.subr.mxu0 0.0
        %4524 = vmatpush1.msra.mxu0 %v4513
        %4525 = vmatprep.subr.mxu0 0.0
        %4526 = vmatpush1.msra.mxu0 %v4514
        %4527 = vmatprep.subr.mxu0 0.0
        %4528 = vmatpush1.msra.mxu0 %v4515
        %4529 = vmatprep.subr.mxu0 0.0
        %4530 = vmatpush1.msra.mxu0 %v4516
        %4531 = vmatprep.subr.mxu0 0.0
        %4532 = vmatpush1.msra.mxu0 %v4517
        %4533 = vmatprep.subr.mxu0 0.0
        %4534 = vmatpush1.msra.mxu0 %v4518
        %4535 = vmatprep.subr.mxu0 0.0
        %4536 = vmatpush1.msra.mxu0 0.0
        %4537 = vmatprep.subr.mxu0 0.0
        %4538 = vmatpush1.msra.mxu0 0.0
        %4539 = vmatprep.subr.mxu0 0.0
        %4540 = vmatpush1.msra.mxu0 0.0
        %4541 = vmatprep.subr.mxu0 0.0
        %4542 = vmatpush1.msra.mxu0 0.0
        %4543 = vmatprep.subr.mxu0 0.0
        %4544 = vmatpush1.msra.mxu0 0.0
        %4545 = vmatprep.subr.mxu0 0.0
        %4546 = vmatpush1.msra.mxu0 0.0
        %4547 = vmatprep.subr.mxu0 0.0
        %4548 = vmatpush1.msra.mxu0 0.0
        %4549 = vmatprep.subr.mxu0 0.0
        %4550 = vmatpush1.msra.mxu0 0.0
        %4551 = vmatprep.subr.mxu0 0.0
        %4552 = vmatpush1.msra.mxu0 0.0
        %4553 = vmatprep.subr.mxu0 0.0
        %4554 = vmatpush1.msra.mxu0 0.0
        %4555 = vmatprep.subr.mxu0 0.0
        %4556 = vmatpush1.msra.mxu0 0.0
        %4557 = vmatprep.subr.mxu0 0.0
        %4558 = vmatpush1.msra.mxu0 0.0
        %4559 = vmatprep.subr.mxu0 0.0
        %4560 = vmatpush1.msra.mxu0 0.0
        %4561 = vmatprep.subr.mxu0 0.0
        %4562 = vmatpush1.msra.mxu0 0.0
        %4563 = vmatprep.subr.mxu0 0.0
        %4564 = vmatpush1.msra.mxu0 0.0
        %4565 = vmatprep.subr.mxu0 0.0
        %4566 = vmatpush1.msra.mxu0 0.0
        %4567 = vmatprep.subr.mxu0 0.0
        %4568 = vmatpush1.msra.mxu0 0.0
        %4569 = vmatprep.subr.mxu0 0.0
        %4570 = vmatpush1.msra.mxu0 0.0
        %4571 = vmatprep.subr.mxu0 0.0
        %4572 = vmatpush1.msra.mxu0 0.0
        %4573 = vmatprep.subr.mxu0 0.0
        %4574 = vmatpush1.msra.mxu0 0.0
        %4575 = vmatprep.subr.mxu0 0.0
        %4576 = vmatpush1.msra.mxu0 0.0
        %4577 = vmatprep.subr.mxu0 0.0
        %4578 = vmatpush1.msra.mxu0 0.0
        %4579 = vmatprep.subr.mxu0 0.0
        %4580 = vmatpush1.msra.mxu0 0.0
        %4581 = vmatprep.subr.mxu0 0.0
        %4582 = vmatpush1.msra.mxu0 0.0
        %4583 = vmatprep.subr.mxu0 0.0
        %4584 = vmatpush1.msra.mxu0 0.0
        %4585 = vmatprep.subr.mxu0 0.0
        %4586 = vmatpush1.msra.mxu0 0.0
        %4587 = vmatprep.mubr.f32.mxu0 0.0
        %4588 = vmatmul.mubr.f32.gmra.mrb[0].mxu0 %v4521
        %v4589 = vpop.f32.mrb[0].mxu0
        %v4590 = vadd.f32 0.0, %v4589
        %v4591 = vpop.f32.mrb[0].mxu0
        %4592 = vdwg.mxu0
        %v4593 = vadd.f32 %v4511, %v4590
        %s4594 = scalar_lea.vmem [#allocation5], 624
        %v4595 = vld [vmem:[%s4594] sm:$0xff]
        %v4596 = vld [vmem:[%s4594 + $0x8] sm:$0xff]
        %v4597 = vld [vmem:[%s4594 + $0x10] sm:$0xff]
        %v4598 = vld [vmem:[%s4594 + $0x18] sm:$0xff]
        %v4599 = vld [vmem:[%s4594 + $0x20] sm:$0xff]
        %v4600 = vld [vmem:[%s4594 + $0x28] sm:$0xff]
        %4601 = vrot.lane.b32.xlu0 %v4356, 110
        %v4602 = vpop.permute.xlu0 %4601
        %v4603 = vsel %vm3544, %v4602, 0
        %4605 = vmatprep.subr.mxu0 0.0
        %4606 = vmatpush1.msra.mxu0 %v4595
        %4607 = vmatprep.subr.mxu0 0.0
        %4608 = vmatpush1.msra.mxu0 %v4596
        %4609 = vmatprep.subr.mxu0 0.0
        %4610 = vmatpush1.msra.mxu0 %v4597
        %4611 = vmatprep.subr.mxu0 0.0
        %4612 = vmatpush1.msra.mxu0 %v4598
        %4613 = vmatprep.subr.mxu0 0.0
        %4614 = vmatpush1.msra.mxu0 %v4599
        %4615 = vmatprep.subr.mxu0 0.0
        %4616 = vmatpush1.msra.mxu0 %v4600
        %4617 = vmatprep.subr.mxu0 0.0
        %4618 = vmatpush1.msra.mxu0 0.0
        %4619 = vmatprep.subr.mxu0 0.0
        %4620 = vmatpush1.msra.mxu0 0.0
        %4621 = vmatprep.subr.mxu0 0.0
        %4622 = vmatpush1.msra.mxu0 0.0
        %4623 = vmatprep.subr.mxu0 0.0
        %4624 = vmatpush1.msra.mxu0 0.0
        %4625 = vmatprep.subr.mxu0 0.0
        %4626 = vmatpush1.msra.mxu0 0.0
        %4627 = vmatprep.subr.mxu0 0.0
        %4628 = vmatpush1.msra.mxu0 0.0
        %4629 = vmatprep.subr.mxu0 0.0
        %4630 = vmatpush1.msra.mxu0 0.0
        %4631 = vmatprep.subr.mxu0 0.0
        %4632 = vmatpush1.msra.mxu0 0.0
        %4633 = vmatprep.subr.mxu0 0.0
        %4634 = vmatpush1.msra.mxu0 0.0
        %4635 = vmatprep.subr.mxu0 0.0
        %4636 = vmatpush1.msra.mxu0 0.0
        %4637 = vmatprep.subr.mxu0 0.0
        %4638 = vmatpush1.msra.mxu0 0.0
        %4639 = vmatprep.subr.mxu0 0.0
        %4640 = vmatpush1.msra.mxu0 0.0
        %4641 = vmatprep.subr.mxu0 0.0
        %4642 = vmatpush1.msra.mxu0 0.0
        %4643 = vmatprep.subr.mxu0 0.0
        %4644 = vmatpush1.msra.mxu0 0.0
        %4645 = vmatprep.subr.mxu0 0.0
        %4646 = vmatpush1.msra.mxu0 0.0
        %4647 = vmatprep.subr.mxu0 0.0
        %4648 = vmatpush1.msra.mxu0 0.0
        %4649 = vmatprep.subr.mxu0 0.0
        %4650 = vmatpush1.msra.mxu0 0.0
        %4651 = vmatprep.subr.mxu0 0.0
        %4652 = vmatpush1.msra.mxu0 0.0
        %4653 = vmatprep.subr.mxu0 0.0
        %4654 = vmatpush1.msra.mxu0 0.0
        %4655 = vmatprep.subr.mxu0 0.0
        %4656 = vmatpush1.msra.mxu0 0.0
        %4657 = vmatprep.subr.mxu0 0.0
        %4658 = vmatpush1.msra.mxu0 0.0
        %4659 = vmatprep.subr.mxu0 0.0
        %4660 = vmatpush1.msra.mxu0 0.0
        %4661 = vmatprep.subr.mxu0 0.0
        %4662 = vmatpush1.msra.mxu0 0.0
        %4663 = vmatprep.subr.mxu0 0.0
        %4664 = vmatpush1.msra.mxu0 0.0
        %4665 = vmatprep.subr.mxu0 0.0
        %4666 = vmatpush1.msra.mxu0 0.0
        %4667 = vmatprep.subr.mxu0 0.0
        %4668 = vmatpush1.msra.mxu0 0.0
        %4669 = vmatprep.mubr.f32.mxu0 0.0
        %4670 = vmatmul.mubr.f32.gmra.mrb[0].mxu0 %v4603
        %v4671 = vpop.f32.mrb[0].mxu0
        %v4672 = vadd.f32 0.0, %v4671
        %v4673 = vpop.f32.mrb[0].mxu0
        %4674 = vdwg.mxu0
        %v4675 = vadd.f32 %v4593, %v4672
        %s4676 = scalar_lea.vmem [#allocation5], 672
        %v4677 = vld [vmem:[%s4676] sm:$0xff]
        %v4678 = vld [vmem:[%s4676 + $0x8] sm:$0xff]
        %v4679 = vld [vmem:[%s4676 + $0x10] sm:$0xff]
        %v4680 = vld [vmem:[%s4676 + $0x18] sm:$0xff]
        %v4681 = vld [vmem:[%s4676 + $0x20] sm:$0xff]
        %v4682 = vld [vmem:[%s4676 + $0x28] sm:$0xff]
        %4683 = vrot.lane.b32.xlu0 %v4356, 104
        %v4684 = vpop.permute.xlu0 %4683
        %v4685 = vsel %vm3544, %v4684, 0
        %4687 = vmatprep.subr.mxu0 0.0
        %4688 = vmatpush1.msra.mxu0 %v4677
        %4689 = vmatprep.subr.mxu0 0.0
        %4690 = vmatpush1.msra.mxu0 %v4678
        %4691 = vmatprep.subr.mxu0 0.0
        %4692 = vmatpush1.msra.mxu0 %v4679
        %4693 = vmatprep.subr.mxu0 0.0
        %4694 = vmatpush1.msra.mxu0 %v4680
        %4695 = vmatprep.subr.mxu0 0.0
        %4696 = vmatpush1.msra.mxu0 %v4681
        %4697 = vmatprep.subr.mxu0 0.0
        %4698 = vmatpush1.msra.mxu0 %v4682
        %4699 = vmatprep.subr.mxu0 0.0
        %4700 = vmatpush1.msra.mxu0 0.0
        %4701 = vmatprep.subr.mxu0 0.0
        %4702 = vmatpush1.msra.mxu0 0.0
        %4703 = vmatprep.subr.mxu0 0.0
        %4704 = vmatpush1.msra.mxu0 0.0
        %4705 = vmatprep.subr.mxu0 0.0
        %4706 = vmatpush1.msra.mxu0 0.0
        %4707 = vmatprep.subr.mxu0 0.0
        %4708 = vmatpush1.msra.mxu0 0.0
        %4709 = vmatprep.subr.mxu0 0.0
        %4710 = vmatpush1.msra.mxu0 0.0
        %4711 = vmatprep.subr.mxu0 0.0
        %4712 = vmatpush1.msra.mxu0 0.0
        %4713 = vmatprep.subr.mxu0 0.0
        %4714 = vmatpush1.msra.mxu0 0.0
        %4715 = vmatprep.subr.mxu0 0.0
        %4716 = vmatpush1.msra.mxu0 0.0
        %4717 = vmatprep.subr.mxu0 0.0
        %4718 = vmatpush1.msra.mxu0 0.0
        %4719 = vmatprep.subr.mxu0 0.0
        %4720 = vmatpush1.msra.mxu0 0.0
        %4721 = vmatprep.subr.mxu0 0.0
        %4722 = vmatpush1.msra.mxu0 0.0
        %4723 = vmatprep.subr.mxu0 0.0
        %4724 = vmatpush1.msra.mxu0 0.0
        %4725 = vmatprep.subr.mxu0 0.0
        %4726 = vmatpush1.msra.mxu0 0.0
        %4727 = vmatprep.subr.mxu0 0.0
        %4728 = vmatpush1.msra.mxu0 0.0
        %4729 = vmatprep.subr.mxu0 0.0
        %4730 = vmatpush1.msra.mxu0 0.0
        %4731 = vmatprep.subr.mxu0 0.0
        %4732 = vmatpush1.msra.mxu0 0.0
        %4733 = vmatprep.subr.mxu0 0.0
        %4734 = vmatpush1.msra.mxu0 0.0
        %4735 = vmatprep.subr.mxu0 0.0
        %4736 = vmatpush1.msra.mxu0 0.0
        %4737 = vmatprep.subr.mxu0 0.0
        %4738 = vmatpush1.msra.mxu0 0.0
        %4739 = vmatprep.subr.mxu0 0.0
        %4740 = vmatpush1.msra.mxu0 0.0
        %4741 = vmatprep.subr.mxu0 0.0
        %4742 = vmatpush1.msra.mxu0 0.0
        %4743 = vmatprep.subr.mxu0 0.0
        %4744 = vmatpush1.msra.mxu0 0.0
        %4745 = vmatprep.subr.mxu0 0.0
        %4746 = vmatpush1.msra.mxu0 0.0
        %4747 = vmatprep.subr.mxu0 0.0
        %4748 = vmatpush1.msra.mxu0 0.0
        %4749 = vmatprep.subr.mxu0 0.0
        %4750 = vmatpush1.msra.mxu0 0.0
        %4751 = vmatprep.mubr.f32.mxu0 0.0
        %4752 = vmatmul.mubr.f32.gmra.mrb[0].mxu0 %v4685
        %v4753 = vpop.f32.mrb[0].mxu0
        %v4754 = vadd.f32 0.0, %v4753
        %v4755 = vpop.f32.mrb[0].mxu0
        %4756 = vdwg.mxu0
        %v4757 = vadd.f32 %v4675, %v4754
        %s4758 = scalar_lea.vmem [#allocation5], 720
        %v4759 = vld [vmem:[%s4758] sm:$0xff]
        %v4760 = vld [vmem:[%s4758 + $0x8] sm:$0xff]
        %v4761 = vld [vmem:[%s4758 + $0x10] sm:$0xff]
        %v4762 = vld [vmem:[%s4758 + $0x18] sm:$0xff]
        %v4763 = vld [vmem:[%s4758 + $0x20] sm:$0xff]
        %v4764 = vld [vmem:[%s4758 + $0x28] sm:$0xff]
        %v4765 = vrot.slane %v3520, 3
        %v4766 = vrot.slane %v3525, 3
        %v4767 = vsel %vm2180, %v4765, %v4766
        %v4768 = vsel %vm3544, %v4767, 0
        %4770 = vmatprep.subr.mxu0 0.0
        %4771 = vmatpush1.msra.mxu0 %v4759
        %4772 = vmatprep.subr.mxu0 0.0
        %4773 = vmatpush1.msra.mxu0 %v4760
        %4774 = vmatprep.subr.mxu0 0.0
        %4775 = vmatpush1.msra.mxu0 %v4761
        %4776 = vmatprep.subr.mxu0 0.0
        %4777 = vmatpush1.msra.mxu0 %v4762
        %4778 = vmatprep.subr.mxu0 0.0
        %4779 = vmatpush1.msra.mxu0 %v4763
        %4780 = vmatprep.subr.mxu0 0.0
        %4781 = vmatpush1.msra.mxu0 %v4764
        %4782 = vmatprep.subr.mxu0 0.0
        %4783 = vmatpush1.msra.mxu0 0.0
        %4784 = vmatprep.subr.mxu0 0.0
        %4785 = vmatpush1.msra.mxu0 0.0
        %4786 = vmatprep.subr.mxu0 0.0
        %4787 = vmatpush1.msra.mxu0 0.0
        %4788 = vmatprep.subr.mxu0 0.0
        %4789 = vmatpush1.msra.mxu0 0.0
        %4790 = vmatprep.subr.mxu0 0.0
        %4791 = vmatpush1.msra.mxu0 0.0
        %4792 = vmatprep.subr.mxu0 0.0
        %4793 = vmatpush1.msra.mxu0 0.0
        %4794 = vmatprep.subr.mxu0 0.0
        %4795 = vmatpush1.msra.mxu0 0.0
        %4796 = vmatprep.subr.mxu0 0.0
        %4797 = vmatpush1.msra.mxu0 0.0
        %4798 = vmatprep.subr.mxu0 0.0
        %4799 = vmatpush1.msra.mxu0 0.0
        %4800 = vmatprep.subr.mxu0 0.0
        %4801 = vmatpush1.msra.mxu0 0.0
        %4802 = vmatprep.subr.mxu0 0.0
        %4803 = vmatpush1.msra.mxu0 0.0
        %4804 = vmatprep.subr.mxu0 0.0
        %4805 = vmatpush1.msra.mxu0 0.0
        %4806 = vmatprep.subr.mxu0 0.0
        %4807 = vmatpush1.msra.mxu0 0.0
        %4808 = vmatprep.subr.mxu0 0.0
        %4809 = vmatpush1.msra.mxu0 0.0
        %4810 = vmatprep.subr.mxu0 0.0
        %4811 = vmatpush1.msra.mxu0 0.0
        %4812 = vmatprep.subr.mxu0 0.0
        %4813 = vmatpush1.msra.mxu0 0.0
        %4814 = vmatprep.subr.mxu0 0.0
        %4815 = vmatpush1.msra.mxu0 0.0
        %4816 = vmatprep.subr.mxu0 0.0
        %4817 = vmatpush1.msra.mxu0 0.0
        %4818 = vmatprep.subr.mxu0 0.0
        %4819 = vmatpush1.msra.mxu0 0.0
        %4820 = vmatprep.subr.mxu0 0.0
        %4821 = vmatpush1.msra.mxu0 0.0
        %4822 = vmatprep.subr.mxu0 0.0
        %4823 = vmatpush1.msra.mxu0 0.0
        %4824 = vmatprep.subr.mxu0 0.0
        %4825 = vmatpush1.msra.mxu0 0.0
        %4826 = vmatprep.subr.mxu0 0.0
        %4827 = vmatpush1.msra.mxu0 0.0
        %4828 = vmatprep.subr.mxu0 0.0
        %4829 = vmatpush1.msra.mxu0 0.0
        %4830 = vmatprep.subr.mxu0 0.0
        %4831 = vmatpush1.msra.mxu0 0.0
        %4832 = vmatprep.subr.mxu0 0.0
        %4833 = vmatpush1.msra.mxu0 0.0
        %4834 = vmatprep.mubr.f32.mxu0 0.0
        %4835 = vmatmul.mubr.f32.gmra.mrb[0].mxu0 %v4768
        %v4836 = vpop.f32.mrb[0].mxu0
        %v4837 = vadd.f32 0.0, %v4836
        %v4838 = vpop.f32.mrb[0].mxu0
        %4839 = vdwg.mxu0
        %v4840 = vadd.f32 %v4757, %v4837
        %s4841 = scalar_lea.vmem [#allocation5], 768
        %v4842 = vld [vmem:[%s4841] sm:$0xff]
        %v4843 = vld [vmem:[%s4841 + $0x8] sm:$0xff]
        %v4844 = vld [vmem:[%s4841 + $0x10] sm:$0xff]
        %v4845 = vld [vmem:[%s4841 + $0x18] sm:$0xff]
        %v4846 = vld [vmem:[%s4841 + $0x20] sm:$0xff]
        %v4847 = vld [vmem:[%s4841 + $0x28] sm:$0xff]
        %4848 = vrot.lane.b32.xlu0 %v4767, 122
        %v4849 = vpop.permute.xlu0 %4848
        %v4850 = vsel %vm3544, %v4849, 0
        %4852 = vmatprep.subr.mxu0 0.0
        %4853 = vmatpush1.msra.mxu0 %v4842
        %4854 = vmatprep.subr.mxu0 0.0
        %4855 = vmatpush1.msra.mxu0 %v4843
        %4856 = vmatprep.subr.mxu0 0.0
        %4857 = vmatpush1.msra.mxu0 %v4844
        %4858 = vmatprep.subr.mxu0 0.0
        %4859 = vmatpush1.msra.mxu0 %v4845
        %4860 = vmatprep.subr.mxu0 0.0
        %4861 = vmatpush1.msra.mxu0 %v4846
        %4862 = vmatprep.subr.mxu0 0.0
        %4863 = vmatpush1.msra.mxu0 %v4847
        %4864 = vmatprep.subr.mxu0 0.0
        %4865 = vmatpush1.msra.mxu0 0.0
        %4866 = vmatprep.subr.mxu0 0.0
        %4867 = vmatpush1.msra.mxu0 0.0
        %4868 = vmatprep.subr.mxu0 0.0
        %4869 = vmatpush1.msra.mxu0 0.0
        %4870 = vmatprep.subr.mxu0 0.0
        %4871 = vmatpush1.msra.mxu0 0.0
        %4872 = vmatprep.subr.mxu0 0.0
        %4873 = vmatpush1.msra.mxu0 0.0
        %4874 = vmatprep.subr.mxu0 0.0
        %4875 = vmatpush1.msra.mxu0 0.0
        %4876 = vmatprep.subr.mxu0 0.0
        %4877 = vmatpush1.msra.mxu0 0.0
        %4878 = vmatprep.subr.mxu0 0.0
        %4879 = vmatpush1.msra.mxu0 0.0
        %4880 = vmatprep.subr.mxu0 0.0
        %4881 = vmatpush1.msra.mxu0 0.0
        %4882 = vmatprep.subr.mxu0 0.0
        %4883 = vmatpush1.msra.mxu0 0.0
        %4884 = vmatprep.subr.mxu0 0.0
        %4885 = vmatpush1.msra.mxu0 0.0
        %4886 = vmatprep.subr.mxu0 0.0
        %4887 = vmatpush1.msra.mxu0 0.0
        %4888 = vmatprep.subr.mxu0 0.0
        %4889 = vmatpush1.msra.mxu0 0.0
        %4890 = vmatprep.subr.mxu0 0.0
        %4891 = vmatpush1.msra.mxu0 0.0
        %4892 = vmatprep.subr.mxu0 0.0
        %4893 = vmatpush1.msra.mxu0 0.0
        %4894 = vmatprep.subr.mxu0 0.0
        %4895 = vmatpush1.msra.mxu0 0.0
        %4896 = vmatprep.subr.mxu0 0.0
        %4897 = vmatpush1.msra.mxu0 0.0
        %4898 = vmatprep.subr.mxu0 0.0
        %4899 = vmatpush1.msra.mxu0 0.0
        %4900 = vmatprep.subr.mxu0 0.0
        %4901 = vmatpush1.msra.mxu0 0.0
        %4902 = vmatprep.subr.mxu0 0.0
        %4903 = vmatpush1.msra.mxu0 0.0
        %4904 = vmatprep.subr.mxu0 0.0
        %4905 = vmatpush1.msra.mxu0 0.0
        %4906 = vmatprep.subr.mxu0 0.0
        %4907 = vmatpush1.msra.mxu0 0.0
        %4908 = vmatprep.subr.mxu0 0.0
        %4909 = vmatpush1.msra.mxu0 0.0
        %4910 = vmatprep.subr.mxu0 0.0
        %4911 = vmatpush1.msra.mxu0 0.0
        %4912 = vmatprep.subr.mxu0 0.0
        %4913 = vmatpush1.msra.mxu0 0.0
        %4914 = vmatprep.subr.mxu0 0.0
        %4915 = vmatpush1.msra.mxu0 0.0
        %4916 = vmatprep.mubr.f32.mxu0 0.0
        %4917 = vmatmul.mubr.f32.gmra.mrb[0].mxu0 %v4850
        %v4918 = vpop.f32.mrb[0].mxu0
        %v4919 = vadd.f32 0.0, %v4918
        %v4920 = vpop.f32.mrb[0].mxu0
        %4921 = vdwg.mxu0
        %v4922 = vadd.f32 %v4840, %v4919
        %s4923 = scalar_lea.vmem [#allocation5], 816
        %v4924 = vld [vmem:[%s4923] sm:$0xff]
        %v4925 = vld [vmem:[%s4923 + $0x8] sm:$0xff]
        %v4926 = vld [vmem:[%s4923 + $0x10] sm:$0xff]
        %v4927 = vld [vmem:[%s4923 + $0x18] sm:$0xff]
        %v4928 = vld [vmem:[%s4923 + $0x20] sm:$0xff]
        %v4929 = vld [vmem:[%s4923 + $0x28] sm:$0xff]
        %4930 = vrot.lane.b32.xlu0 %v4767, 116
        %v4931 = vpop.permute.xlu0 %4930
        %v4932 = vsel %vm3544, %v4931, 0
        %4934 = vmatprep.subr.mxu0 0.0
        %4935 = vmatpush1.msra.mxu0 %v4924
        %4936 = vmatprep.subr.mxu0 0.0
        %4937 = vmatpush1.msra.mxu0 %v4925
        %4938 = vmatprep.subr.mxu0 0.0
        %4939 = vmatpush1.msra.mxu0 %v4926
        %4940 = vmatprep.subr.mxu0 0.0
        %4941 = vmatpush1.msra.mxu0 %v4927
        %4942 = vmatprep.subr.mxu0 0.0
        %4943 = vmatpush1.msra.mxu0 %v4928
        %4944 = vmatprep.subr.mxu0 0.0
        %4945 = vmatpush1.msra.mxu0 %v4929
        %4946 = vmatprep.subr.mxu0 0.0
        %4947 = vmatpush1.msra.mxu0 0.0
        %4948 = vmatprep.subr.mxu0 0.0
        %4949 = vmatpush1.msra.mxu0 0.0
        %4950 = vmatprep.subr.mxu0 0.0
        %4951 = vmatpush1.msra.mxu0 0.0
        %4952 = vmatprep.subr.mxu0 0.0
        %4953 = vmatpush1.msra.mxu0 0.0
        %4954 = vmatprep.subr.mxu0 0.0
        %4955 = vmatpush1.msra.mxu0 0.0
        %4956 = vmatprep.subr.mxu0 0.0
        %4957 = vmatpush1.msra.mxu0 0.0
        %4958 = vmatprep.subr.mxu0 0.0
        %4959 = vmatpush1.msra.mxu0 0.0
        %4960 = vmatprep.subr.mxu0 0.0
        %4961 = vmatpush1.msra.mxu0 0.0
        %4962 = vmatprep.subr.mxu0 0.0
        %4963 = vmatpush1.msra.mxu0 0.0
        %4964 = vmatprep.subr.mxu0 0.0
        %4965 = vmatpush1.msra.mxu0 0.0
        %4966 = vmatprep.subr.mxu0 0.0
        %4967 = vmatpush1.msra.mxu0 0.0
        %4968 = vmatprep.subr.mxu0 0.0
        %4969 = vmatpush1.msra.mxu0 0.0
        %4970 = vmatprep.subr.mxu0 0.0
        %4971 = vmatpush1.msra.mxu0 0.0
        %4972 = vmatprep.subr.mxu0 0.0
        %4973 = vmatpush1.msra.mxu0 0.0
        %4974 = vmatprep.subr.mxu0 0.0
        %4975 = vmatpush1.msra.mxu0 0.0
        %4976 = vmatprep.subr.mxu0 0.0
        %4977 = vmatpush1.msra.mxu0 0.0
        %4978 = vmatprep.subr.mxu0 0.0
        %4979 = vmatpush1.msra.mxu0 0.0
        %4980 = vmatprep.subr.mxu0 0.0
        %4981 = vmatpush1.msra.mxu0 0.0
        %4982 = vmatprep.subr.mxu0 0.0
        %4983 = vmatpush1.msra.mxu0 0.0
        %4984 = vmatprep.subr.mxu0 0.0
        %4985 = vmatpush1.msra.mxu0 0.0
        %4986 = vmatprep.subr.mxu0 0.0
        %4987 = vmatpush1.msra.mxu0 0.0
        %4988 = vmatprep.subr.mxu0 0.0
        %4989 = vmatpush1.msra.mxu0 0.0
        %4990 = vmatprep.subr.mxu0 0.0
        %4991 = vmatpush1.msra.mxu0 0.0
        %4992 = vmatprep.subr.mxu0 0.0
        %4993 = vmatpush1.msra.mxu0 0.0
        %4994 = vmatprep.subr.mxu0 0.0
        %4995 = vmatpush1.msra.mxu0 0.0
        %4996 = vmatprep.subr.mxu0 0.0
        %4997 = vmatpush1.msra.mxu0 0.0
        %4998 = vmatprep.mubr.f32.mxu0 0.0
        %4999 = vmatmul.mubr.f32.gmra.mrb[0].mxu0 %v4932
        %v5000 = vpop.f32.mrb[0].mxu0
        %v5001 = vadd.f32 0.0, %v5000
        %v5002 = vpop.f32.mrb[0].mxu0
        %5003 = vdwg.mxu0
        %v5004 = vadd.f32 %v4922, %v5001
        %s5005 = scalar_lea.vmem [#allocation5], 864
        %v5006 = vld [vmem:[%s5005] sm:$0xff]
        %v5007 = vld [vmem:[%s5005 + $0x8] sm:$0xff]
        %v5008 = vld [vmem:[%s5005 + $0x10] sm:$0xff]
        %v5009 = vld [vmem:[%s5005 + $0x18] sm:$0xff]
        %v5010 = vld [vmem:[%s5005 + $0x20] sm:$0xff]
        %v5011 = vld [vmem:[%s5005 + $0x28] sm:$0xff]
        %5012 = vrot.lane.b32.xlu0 %v4767, 110
        %v5013 = vpop.permute.xlu0 %5012
        %v5014 = vsel %vm3544, %v5013, 0
        %5016 = vmatprep.subr.mxu0 0.0
        %5017 = vmatpush1.msra.mxu0 %v5006
        %5018 = vmatprep.subr.mxu0 0.0
        %5019 = vmatpush1.msra.mxu0 %v5007
        %5020 = vmatprep.subr.mxu0 0.0
        %5021 = vmatpush1.msra.mxu0 %v5008
        %5022 = vmatprep.subr.mxu0 0.0
        %5023 = vmatpush1.msra.mxu0 %v5009
        %5024 = vmatprep.subr.mxu0 0.0
        %5025 = vmatpush1.msra.mxu0 %v5010
        %5026 = vmatprep.subr.mxu0 0.0
        %5027 = vmatpush1.msra.mxu0 %v5011
        %5028 = vmatprep.subr.mxu0 0.0
        %5029 = vmatpush1.msra.mxu0 0.0
        %5030 = vmatprep.subr.mxu0 0.0
        %5031 = vmatpush1.msra.mxu0 0.0
        %5032 = vmatprep.subr.mxu0 0.0
        %5033 = vmatpush1.msra.mxu0 0.0
        %5034 = vmatprep.subr.mxu0 0.0
        %5035 = vmatpush1.msra.mxu0 0.0
        %5036 = vmatprep.subr.mxu0 0.0
        %5037 = vmatpush1.msra.mxu0 0.0
        %5038 = vmatprep.subr.mxu0 0.0
        %5039 = vmatpush1.msra.mxu0 0.0
        %5040 = vmatprep.subr.mxu0 0.0
        %5041 = vmatpush1.msra.mxu0 0.0
        %5042 = vmatprep.subr.mxu0 0.0
        %5043 = vmatpush1.msra.mxu0 0.0
        %5044 = vmatprep.subr.mxu0 0.0
        %5045 = vmatpush1.msra.mxu0 0.0
        %5046 = vmatprep.subr.mxu0 0.0
        %5047 = vmatpush1.msra.mxu0 0.0
        %5048 = vmatprep.subr.mxu0 0.0
        %5049 = vmatpush1.msra.mxu0 0.0
        %5050 = vmatprep.subr.mxu0 0.0
        %5051 = vmatpush1.msra.mxu0 0.0
        %5052 = vmatprep.subr.mxu0 0.0
        %5053 = vmatpush1.msra.mxu0 0.0
        %5054 = vmatprep.subr.mxu0 0.0
        %5055 = vmatpush1.msra.mxu0 0.0
        %5056 = vmatprep.subr.mxu0 0.0
        %5057 = vmatpush1.msra.mxu0 0.0
        %5058 = vmatprep.subr.mxu0 0.0
        %5059 = vmatpush1.msra.mxu0 0.0
        %5060 = vmatprep.subr.mxu0 0.0
        %5061 = vmatpush1.msra.mxu0 0.0
        %5062 = vmatprep.subr.mxu0 0.0
        %5063 = vmatpush1.msra.mxu0 0.0
        %5064 = vmatprep.subr.mxu0 0.0
        %5065 = vmatpush1.msra.mxu0 0.0
        %5066 = vmatprep.subr.mxu0 0.0
        %5067 = vmatpush1.msra.mxu0 0.0
        %5068 = vmatprep.subr.mxu0 0.0
        %5069 = vmatpush1.msra.mxu0 0.0
        %5070 = vmatprep.subr.mxu0 0.0
        %5071 = vmatpush1.msra.mxu0 0.0
        %5072 = vmatprep.subr.mxu0 0.0
        %5073 = vmatpush1.msra.mxu0 0.0
        %5074 = vmatprep.subr.mxu0 0.0
        %5075 = vmatpush1.msra.mxu0 0.0
        %5076 = vmatprep.subr.mxu0 0.0
        %5077 = vmatpush1.msra.mxu0 0.0
        %5078 = vmatprep.subr.mxu0 0.0
        %5079 = vmatpush1.msra.mxu0 0.0
        %5080 = vmatprep.mubr.f32.mxu0 0.0
        %5081 = vmatmul.mubr.f32.gmra.mrb[0].mxu0 %v5014
        %v5082 = vpop.f32.mrb[0].mxu0
        %v5083 = vadd.f32 0.0, %v5082
        %v5084 = vpop.f32.mrb[0].mxu0
        %5085 = vdwg.mxu0
        %v5086 = vadd.f32 %v5004, %v5083
        %s5087 = scalar_lea.vmem [#allocation5], 912
        %v5088 = vld [vmem:[%s5087] sm:$0xff]
        %v5089 = vld [vmem:[%s5087 + $0x8] sm:$0xff]
        %v5090 = vld [vmem:[%s5087 + $0x10] sm:$0xff]
        %v5091 = vld [vmem:[%s5087 + $0x18] sm:$0xff]
        %v5092 = vld [vmem:[%s5087 + $0x20] sm:$0xff]
        %v5093 = vld [vmem:[%s5087 + $0x28] sm:$0xff]
        %5094 = vrot.lane.b32.xlu0 %v4767, 104
        %v5095 = vpop.permute.xlu0 %5094
        %v5096 = vsel %vm3544, %v5095, 0
        %5098 = vmatprep.subr.mxu0 0.0
        %5099 = vmatpush1.msra.mxu0 %v5088
        %5100 = vmatprep.subr.mxu0 0.0
        %5101 = vmatpush1.msra.mxu0 %v5089
        %5102 = vmatprep.subr.mxu0 0.0
        %5103 = vmatpush1.msra.mxu0 %v5090
        %5104 = vmatprep.subr.mxu0 0.0
        %5105 = vmatpush1.msra.mxu0 %v5091
        %5106 = vmatprep.subr.mxu0 0.0
        %5107 = vmatpush1.msra.mxu0 %v5092
        %5108 = vmatprep.subr.mxu0 0.0
        %5109 = vmatpush1.msra.mxu0 %v5093
        %5110 = vmatprep.subr.mxu0 0.0
        %5111 = vmatpush1.msra.mxu0 0.0
        %5112 = vmatprep.subr.mxu0 0.0
        %5113 = vmatpush1.msra.mxu0 0.0
        %5114 = vmatprep.subr.mxu0 0.0
        %5115 = vmatpush1.msra.mxu0 0.0
        %5116 = vmatprep.subr.mxu0 0.0
        %5117 = vmatpush1.msra.mxu0 0.0
        %5118 = vmatprep.subr.mxu0 0.0
        %5119 = vmatpush1.msra.mxu0 0.0
        %5120 = vmatprep.subr.mxu0 0.0
        %5121 = vmatpush1.msra.mxu0 0.0
        %5122 = vmatprep.subr.mxu0 0.0
        %5123 = vmatpush1.msra.mxu0 0.0
        %5124 = vmatprep.subr.mxu0 0.0
        %5125 = vmatpush1.msra.mxu0 0.0
        %5126 = vmatprep.subr.mxu0 0.0
        %5127 = vmatpush1.msra.mxu0 0.0
        %5128 = vmatprep.subr.mxu0 0.0
        %5129 = vmatpush1.msra.mxu0 0.0
        %5130 = vmatprep.subr.mxu0 0.0
        %5131 = vmatpush1.msra.mxu0 0.0
        %5132 = vmatprep.subr.mxu0 0.0
        %5133 = vmatpush1.msra.mxu0 0.0
        %5134 = vmatprep.subr.mxu0 0.0
        %5135 = vmatpush1.msra.mxu0 0.0
        %5136 = vmatprep.subr.mxu0 0.0
        %5137 = vmatpush1.msra.mxu0 0.0
        %5138 = vmatprep.subr.mxu0 0.0
        %5139 = vmatpush1.msra.mxu0 0.0
        %5140 = vmatprep.subr.mxu0 0.0
        %5141 = vmatpush1.msra.mxu0 0.0
        %5142 = vmatprep.subr.mxu0 0.0
        %5143 = vmatpush1.msra.mxu0 0.0
        %5144 = vmatprep.subr.mxu0 0.0
        %5145 = vmatpush1.msra.mxu0 0.0
        %5146 = vmatprep.subr.mxu0 0.0
        %5147 = vmatpush1.msra.mxu0 0.0
        %5148 = vmatprep.subr.mxu0 0.0
        %5149 = vmatpush1.msra.mxu0 0.0
        %5150 = vmatprep.subr.mxu0 0.0
        %5151 = vmatpush1.msra.mxu0 0.0
        %5152 = vmatprep.subr.mxu0 0.0
        %5153 = vmatpush1.msra.mxu0 0.0
        %5154 = vmatprep.subr.mxu0 0.0
        %5155 = vmatpush1.msra.mxu0 0.0
        %5156 = vmatprep.subr.mxu0 0.0
        %5157 = vmatpush1.msra.mxu0 0.0
        %5158 = vmatprep.subr.mxu0 0.0
        %5159 = vmatpush1.msra.mxu0 0.0
        %5160 = vmatprep.subr.mxu0 0.0
        %5161 = vmatpush1.msra.mxu0 0.0
        %5162 = vmatprep.mubr.f32.mxu0 0.0
        %5163 = vmatmul.mubr.f32.gmra.mrb[0].mxu0 %v5096
        %v5164 = vpop.f32.mrb[0].mxu0
        %v5165 = vadd.f32 0.0, %v5164
        %v5166 = vpop.f32.mrb[0].mxu0
        %5167 = vdwg.mxu0
        %v5168 = vadd.f32 %v5086, %v5165
        %s5169 = scalar_lea.vmem [#allocation5], 960
        %v5170 = vld [vmem:[%s5169] sm:$0xff]
        %v5171 = vld [vmem:[%s5169 + $0x8] sm:$0xff]
        %v5172 = vld [vmem:[%s5169 + $0x10] sm:$0xff]
        %v5173 = vld [vmem:[%s5169 + $0x18] sm:$0xff]
        %v5174 = vld [vmem:[%s5169 + $0x20] sm:$0xff]
        %v5175 = vld [vmem:[%s5169 + $0x28] sm:$0xff]
        %v5176 = vrot.slane %v3520, 4
        %v5177 = vrot.slane %v3525, 4
        %v5178 = vsel %vm2722, %v5176, %v5177
        %v5179 = vsel %vm3544, %v5178, 0
        %5181 = vmatprep.subr.mxu0 0.0
        %5182 = vmatpush1.msra.mxu0 %v5170
        %5183 = vmatprep.subr.mxu0 0.0
        %5184 = vmatpush1.msra.mxu0 %v5171
        %5185 = vmatprep.subr.mxu0 0.0
        %5186 = vmatpush1.msra.mxu0 %v5172
        %5187 = vmatprep.subr.mxu0 0.0
        %5188 = vmatpush1.msra.mxu0 %v5173
        %5189 = vmatprep.subr.mxu0 0.0
        %5190 = vmatpush1.msra.mxu0 %v5174
        %5191 = vmatprep.subr.mxu0 0.0
        %5192 = vmatpush1.msra.mxu0 %v5175
        %5193 = vmatprep.subr.mxu0 0.0
        %5194 = vmatpush1.msra.mxu0 0.0
        %5195 = vmatprep.subr.mxu0 0.0
        %5196 = vmatpush1.msra.mxu0 0.0
        %5197 = vmatprep.subr.mxu0 0.0
        %5198 = vmatpush1.msra.mxu0 0.0
        %5199 = vmatprep.subr.mxu0 0.0
        %5200 = vmatpush1.msra.mxu0 0.0
        %5201 = vmatprep.subr.mxu0 0.0
        %5202 = vmatpush1.msra.mxu0 0.0
        %5203 = vmatprep.subr.mxu0 0.0
        %5204 = vmatpush1.msra.mxu0 0.0
        %5205 = vmatprep.subr.mxu0 0.0
        %5206 = vmatpush1.msra.mxu0 0.0
        %5207 = vmatprep.subr.mxu0 0.0
        %5208 = vmatpush1.msra.mxu0 0.0
        %5209 = vmatprep.subr.mxu0 0.0
        %5210 = vmatpush1.msra.mxu0 0.0
        %5211 = vmatprep.subr.mxu0 0.0
        %5212 = vmatpush1.msra.mxu0 0.0
        %5213 = vmatprep.subr.mxu0 0.0
        %5214 = vmatpush1.msra.mxu0 0.0
        %5215 = vmatprep.subr.mxu0 0.0
        %5216 = vmatpush1.msra.mxu0 0.0
        %5217 = vmatprep.subr.mxu0 0.0
        %5218 = vmatpush1.msra.mxu0 0.0
        %5219 = vmatprep.subr.mxu0 0.0
        %5220 = vmatpush1.msra.mxu0 0.0
        %5221 = vmatprep.subr.mxu0 0.0
        %5222 = vmatpush1.msra.mxu0 0.0
        %5223 = vmatprep.subr.mxu0 0.0
        %5224 = vmatpush1.msra.mxu0 0.0
        %5225 = vmatprep.subr.mxu0 0.0
        %5226 = vmatpush1.msra.mxu0 0.0
        %5227 = vmatprep.subr.mxu0 0.0
        %5228 = vmatpush1.msra.mxu0 0.0
        %5229 = vmatprep.subr.mxu0 0.0
        %5230 = vmatpush1.msra.mxu0 0.0
        %5231 = vmatprep.subr.mxu0 0.0
        %5232 = vmatpush1.msra.mxu0 0.0
        %5233 = vmatprep.subr.mxu0 0.0
        %5234 = vmatpush1.msra.mxu0 0.0
        %5235 = vmatprep.subr.mxu0 0.0
        %5236 = vmatpush1.msra.mxu0 0.0
        %5237 = vmatprep.subr.mxu0 0.0
        %5238 = vmatpush1.msra.mxu0 0.0
        %5239 = vmatprep.subr.mxu0 0.0
        %5240 = vmatpush1.msra.mxu0 0.0
        %5241 = vmatprep.subr.mxu0 0.0
        %5242 = vmatpush1.msra.mxu0 0.0
        %5243 = vmatprep.subr.mxu0 0.0
        %5244 = vmatpush1.msra.mxu0 0.0
        %5245 = vmatprep.mubr.f32.mxu0 0.0
        %5246 = vmatmul.mubr.f32.gmra.mrb[0].mxu0 %v5179
        %v5247 = vpop.f32.mrb[0].mxu0
        %v5248 = vadd.f32 0.0, %v5247
        %v5249 = vpop.f32.mrb[0].mxu0
        %5250 = vdwg.mxu0
        %v5251 = vadd.f32 %v5168, %v5248
        %s5252 = scalar_lea.vmem [#allocation5], 1008
        %v5253 = vld [vmem:[%s5252] sm:$0xff]
        %v5254 = vld [vmem:[%s5252 + $0x8] sm:$0xff]
        %v5255 = vld [vmem:[%s5252 + $0x10] sm:$0xff]
        %v5256 = vld [vmem:[%s5252 + $0x18] sm:$0xff]
        %v5257 = vld [vmem:[%s5252 + $0x20] sm:$0xff]
        %v5258 = vld [vmem:[%s5252 + $0x28] sm:$0xff]
        %5259 = vrot.lane.b32.xlu0 %v5178, 122
        %v5260 = vpop.permute.xlu0 %5259
        %v5261 = vsel %vm3544, %v5260, 0
        %5263 = vmatprep.subr.mxu0 0.0
        %5264 = vmatpush1.msra.mxu0 %v5253
        %5265 = vmatprep.subr.mxu0 0.0
        %5266 = vmatpush1.msra.mxu0 %v5254
        %5267 = vmatprep.subr.mxu0 0.0
        %5268 = vmatpush1.msra.mxu0 %v5255
        %5269 = vmatprep.subr.mxu0 0.0
        %5270 = vmatpush1.msra.mxu0 %v5256
        %5271 = vmatprep.subr.mxu0 0.0
        %5272 = vmatpush1.msra.mxu0 %v5257
        %5273 = vmatprep.subr.mxu0 0.0
        %5274 = vmatpush1.msra.mxu0 %v5258
        %5275 = vmatprep.subr.mxu0 0.0
        %5276 = vmatpush1.msra.mxu0 0.0
        %5277 = vmatprep.subr.mxu0 0.0
        %5278 = vmatpush1.msra.mxu0 0.0
        %5279 = vmatprep.subr.mxu0 0.0
        %5280 = vmatpush1.msra.mxu0 0.0
        %5281 = vmatprep.subr.mxu0 0.0
        %5282 = vmatpush1.msra.mxu0 0.0
        %5283 = vmatprep.subr.mxu0 0.0
        %5284 = vmatpush1.msra.mxu0 0.0
        %5285 = vmatprep.subr.mxu0 0.0
        %5286 = vmatpush1.msra.mxu0 0.0
        %5287 = vmatprep.subr.mxu0 0.0
        %5288 = vmatpush1.msra.mxu0 0.0
        %5289 = vmatprep.subr.mxu0 0.0
        %5290 = vmatpush1.msra.mxu0 0.0
        %5291 = vmatprep.subr.mxu0 0.0
        %5292 = vmatpush1.msra.mxu0 0.0
        %5293 = vmatprep.subr.mxu0 0.0
        %5294 = vmatpush1.msra.mxu0 0.0
        %5295 = vmatprep.subr.mxu0 0.0
        %5296 = vmatpush1.msra.mxu0 0.0
        %5297 = vmatprep.subr.mxu0 0.0
        %5298 = vmatpush1.msra.mxu0 0.0
        %5299 = vmatprep.subr.mxu0 0.0
        %5300 = vmatpush1.msra.mxu0 0.0
        %5301 = vmatprep.subr.mxu0 0.0
        %5302 = vmatpush1.msra.mxu0 0.0
        %5303 = vmatprep.subr.mxu0 0.0
        %5304 = vmatpush1.msra.mxu0 0.0
        %5305 = vmatprep.subr.mxu0 0.0
        %5306 = vmatpush1.msra.mxu0 0.0
        %5307 = vmatprep.subr.mxu0 0.0
        %5308 = vmatpush1.msra.mxu0 0.0
        %5309 = vmatprep.subr.mxu0 0.0
        %5310 = vmatpush1.msra.mxu0 0.0
        %5311 = vmatprep.subr.mxu0 0.0
        %5312 = vmatpush1.msra.mxu0 0.0
        %5313 = vmatprep.subr.mxu0 0.0
        %5314 = vmatpush1.msra.mxu0 0.0
        %5315 = vmatprep.subr.mxu0 0.0
        %5316 = vmatpush1.msra.mxu0 0.0
        %5317 = vmatprep.subr.mxu0 0.0
        %5318 = vmatpush1.msra.mxu0 0.0
        %5319 = vmatprep.subr.mxu0 0.0
        %5320 = vmatpush1.msra.mxu0 0.0
        %5321 = vmatprep.subr.mxu0 0.0
        %5322 = vmatpush1.msra.mxu0 0.0
        %5323 = vmatprep.subr.mxu0 0.0
        %5324 = vmatpush1.msra.mxu0 0.0
        %5325 = vmatprep.subr.mxu0 0.0
        %5326 = vmatpush1.msra.mxu0 0.0
        %5327 = vmatprep.mubr.f32.mxu0 0.0
        %5328 = vmatmul.mubr.f32.gmra.mrb[0].mxu0 %v5261
        %v5329 = vpop.f32.mrb[0].mxu0
        %v5330 = vadd.f32 0.0, %v5329
        %v5331 = vpop.f32.mrb[0].mxu0
        %5332 = vdwg.mxu0
        %v5333 = vadd.f32 %v5251, %v5330
        %s5334 = scalar_lea.vmem [#allocation5], 1056
        %v5335 = vld [vmem:[%s5334] sm:$0xff]
        %v5336 = vld [vmem:[%s5334 + $0x8] sm:$0xff]
        %v5337 = vld [vmem:[%s5334 + $0x10] sm:$0xff]
        %v5338 = vld [vmem:[%s5334 + $0x18] sm:$0xff]
        %v5339 = vld [vmem:[%s5334 + $0x20] sm:$0xff]
        %v5340 = vld [vmem:[%s5334 + $0x28] sm:$0xff]
        %5341 = vrot.lane.b32.xlu0 %v5178, 116
        %v5342 = vpop.permute.xlu0 %5341
        %v5343 = vsel %vm3544, %v5342, 0
        %5345 = vmatprep.subr.mxu0 0.0
        %5346 = vmatpush1.msra.mxu0 %v5335
        %5347 = vmatprep.subr.mxu0 0.0
        %5348 = vmatpush1.msra.mxu0 %v5336
        %5349 = vmatprep.subr.mxu0 0.0
        %5350 = vmatpush1.msra.mxu0 %v5337
        %5351 = vmatprep.subr.mxu0 0.0
        %5352 = vmatpush1.msra.mxu0 %v5338
        %5353 = vmatprep.subr.mxu0 0.0
        %5354 = vmatpush1.msra.mxu0 %v5339
        %5355 = vmatprep.subr.mxu0 0.0
        %5356 = vmatpush1.msra.mxu0 %v5340
        %5357 = vmatprep.subr.mxu0 0.0
        %5358 = vmatpush1.msra.mxu0 0.0
        %5359 = vmatprep.subr.mxu0 0.0
        %5360 = vmatpush1.msra.mxu0 0.0
        %5361 = vmatprep.subr.mxu0 0.0
        %5362 = vmatpush1.msra.mxu0 0.0
        %5363 = vmatprep.subr.mxu0 0.0
        %5364 = vmatpush1.msra.mxu0 0.0
        %5365 = vmatprep.subr.mxu0 0.0
        %5366 = vmatpush1.msra.mxu0 0.0
        %5367 = vmatprep.subr.mxu0 0.0
        %5368 = vmatpush1.msra.mxu0 0.0
        %5369 = vmatprep.subr.mxu0 0.0
        %5370 = vmatpush1.msra.mxu0 0.0
        %5371 = vmatprep.subr.mxu0 0.0
        %5372 = vmatpush1.msra.mxu0 0.0
        %5373 = vmatprep.subr.mxu0 0.0
        %5374 = vmatpush1.msra.mxu0 0.0
        %5375 = vmatprep.subr.mxu0 0.0
        %5376 = vmatpush1.msra.mxu0 0.0
        %5377 = vmatprep.subr.mxu0 0.0
        %5378 = vmatpush1.msra.mxu0 0.0
        %5379 = vmatprep.subr.mxu0 0.0
        %5380 = vmatpush1.msra.mxu0 0.0
        %5381 = vmatprep.subr.mxu0 0.0
        %5382 = vmatpush1.msra.mxu0 0.0
        %5383 = vmatprep.subr.mxu0 0.0
        %5384 = vmatpush1.msra.mxu0 0.0
        %5385 = vmatprep.subr.mxu0 0.0
        %5386 = vmatpush1.msra.mxu0 0.0
        %5387 = vmatprep.subr.mxu0 0.0
        %5388 = vmatpush1.msra.mxu0 0.0
        %5389 = vmatprep.subr.mxu0 0.0
        %5390 = vmatpush1.msra.mxu0 0.0
        %5391 = vmatprep.subr.mxu0 0.0
        %5392 = vmatpush1.msra.mxu0 0.0
        %5393 = vmatprep.subr.mxu0 0.0
        %5394 = vmatpush1.msra.mxu0 0.0
        %5395 = vmatprep.subr.mxu0 0.0
        %5396 = vmatpush1.msra.mxu0 0.0
        %5397 = vmatprep.subr.mxu0 0.0
        %5398 = vmatpush1.msra.mxu0 0.0
        %5399 = vmatprep.subr.mxu0 0.0
        %5400 = vmatpush1.msra.mxu0 0.0
        %5401 = vmatprep.subr.mxu0 0.0
        %5402 = vmatpush1.msra.mxu0 0.0
        %5403 = vmatprep.subr.mxu0 0.0
        %5404 = vmatpush1.msra.mxu0 0.0
        %5405 = vmatprep.subr.mxu0 0.0
        %5406 = vmatpush1.msra.mxu0 0.0
        %5407 = vmatprep.subr.mxu0 0.0
        %5408 = vmatpush1.msra.mxu0 0.0
        %5409 = vmatprep.mubr.f32.mxu0 0.0
        %5410 = vmatmul.mubr.f32.gmra.mrb[0].mxu0 %v5343
        %v5411 = vpop.f32.mrb[0].mxu0
        %v5412 = vadd.f32 0.0, %v5411
        %v5413 = vpop.f32.mrb[0].mxu0
        %5414 = vdwg.mxu0
        %v5415 = vadd.f32 %v5333, %v5412
        %s5416 = scalar_lea.vmem [#allocation5], 1104
        %v5417 = vld [vmem:[%s5416] sm:$0xff]
        %v5418 = vld [vmem:[%s5416 + $0x8] sm:$0xff]
        %v5419 = vld [vmem:[%s5416 + $0x10] sm:$0xff]
        %v5420 = vld [vmem:[%s5416 + $0x18] sm:$0xff]
        %v5421 = vld [vmem:[%s5416 + $0x20] sm:$0xff]
        %v5422 = vld [vmem:[%s5416 + $0x28] sm:$0xff]
        %5423 = vrot.lane.b32.xlu0 %v5178, 110
        %v5424 = vpop.permute.xlu0 %5423
        %v5425 = vsel %vm3544, %v5424, 0
        %5427 = vmatprep.subr.mxu0 0.0
        %5428 = vmatpush1.msra.mxu0 %v5417
        %5429 = vmatprep.subr.mxu0 0.0
        %5430 = vmatpush1.msra.mxu0 %v5418
        %5431 = vmatprep.subr.mxu0 0.0
        %5432 = vmatpush1.msra.mxu0 %v5419
        %5433 = vmatprep.subr.mxu0 0.0
        %5434 = vmatpush1.msra.mxu0 %v5420
        %5435 = vmatprep.subr.mxu0 0.0
        %5436 = vmatpush1.msra.mxu0 %v5421
        %5437 = vmatprep.subr.mxu0 0.0
        %5438 = vmatpush1.msra.mxu0 %v5422
        %5439 = vmatprep.subr.mxu0 0.0
        %5440 = vmatpush1.msra.mxu0 0.0
        %5441 = vmatprep.subr.mxu0 0.0
        %5442 = vmatpush1.msra.mxu0 0.0
        %5443 = vmatprep.subr.mxu0 0.0
        %5444 = vmatpush1.msra.mxu0 0.0
        %5445 = vmatprep.subr.mxu0 0.0
        %5446 = vmatpush1.msra.mxu0 0.0
        %5447 = vmatprep.subr.mxu0 0.0
        %5448 = vmatpush1.msra.mxu0 0.0
        %5449 = vmatprep.subr.mxu0 0.0
        %5450 = vmatpush1.msra.mxu0 0.0
        %5451 = vmatprep.subr.mxu0 0.0
        %5452 = vmatpush1.msra.mxu0 0.0
        %5453 = vmatprep.subr.mxu0 0.0
        %5454 = vmatpush1.msra.mxu0 0.0
        %5455 = vmatprep.subr.mxu0 0.0
        %5456 = vmatpush1.msra.mxu0 0.0
        %5457 = vmatprep.subr.mxu0 0.0
        %5458 = vmatpush1.msra.mxu0 0.0
        %5459 = vmatprep.subr.mxu0 0.0
        %5460 = vmatpush1.msra.mxu0 0.0
        %5461 = vmatprep.subr.mxu0 0.0
        %5462 = vmatpush1.msra.mxu0 0.0
        %5463 = vmatprep.subr.mxu0 0.0
        %5464 = vmatpush1.msra.mxu0 0.0
        %5465 = vmatprep.subr.mxu0 0.0
        %5466 = vmatpush1.msra.mxu0 0.0
        %5467 = vmatprep.subr.mxu0 0.0
        %5468 = vmatpush1.msra.mxu0 0.0
        %5469 = vmatprep.subr.mxu0 0.0
        %5470 = vmatpush1.msra.mxu0 0.0
        %5471 = vmatprep.subr.mxu0 0.0
        %5472 = vmatpush1.msra.mxu0 0.0
        %5473 = vmatprep.subr.mxu0 0.0
        %5474 = vmatpush1.msra.mxu0 0.0
        %5475 = vmatprep.subr.mxu0 0.0
        %5476 = vmatpush1.msra.mxu0 0.0
        %5477 = vmatprep.subr.mxu0 0.0
        %5478 = vmatpush1.msra.mxu0 0.0
        %5479 = vmatprep.subr.mxu0 0.0
        %5480 = vmatpush1.msra.mxu0 0.0
        %5481 = vmatprep.subr.mxu0 0.0
        %5482 = vmatpush1.msra.mxu0 0.0
        %5483 = vmatprep.subr.mxu0 0.0
        %5484 = vmatpush1.msra.mxu0 0.0
        %5485 = vmatprep.subr.mxu0 0.0
        %5486 = vmatpush1.msra.mxu0 0.0
        %5487 = vmatprep.subr.mxu0 0.0
        %5488 = vmatpush1.msra.mxu0 0.0
        %5489 = vmatprep.subr.mxu0 0.0
        %5490 = vmatpush1.msra.mxu0 0.0
        %5491 = vmatprep.mubr.f32.mxu0 0.0
        %5492 = vmatmul.mubr.f32.gmra.mrb[0].mxu0 %v5425
        %v5493 = vpop.f32.mrb[0].mxu0
        %v5494 = vadd.f32 0.0, %v5493
        %v5495 = vpop.f32.mrb[0].mxu0
        %5496 = vdwg.mxu0
        %v5497 = vadd.f32 %v5415, %v5494
        %s5498 = scalar_lea.vmem [#allocation5], 1152
        %v5499 = vld [vmem:[%s5498] sm:$0xff]
        %v5500 = vld [vmem:[%s5498 + $0x8] sm:$0xff]
        %v5501 = vld [vmem:[%s5498 + $0x10] sm:$0xff]
        %v5502 = vld [vmem:[%s5498 + $0x18] sm:$0xff]
        %v5503 = vld [vmem:[%s5498 + $0x20] sm:$0xff]
        %v5504 = vld [vmem:[%s5498 + $0x28] sm:$0xff]
        %5505 = vrot.lane.b32.xlu0 %v5178, 104
        %v5506 = vpop.permute.xlu0 %5505
        %v5507 = vsel %vm3544, %v5506, 0
        %5509 = vmatprep.subr.mxu0 0.0
        %5510 = vmatpush1.msra.mxu0 %v5499
        %5511 = vmatprep.subr.mxu0 0.0
        %5512 = vmatpush1.msra.mxu0 %v5500
        %5513 = vmatprep.subr.mxu0 0.0
        %5514 = vmatpush1.msra.mxu0 %v5501
        %5515 = vmatprep.subr.mxu0 0.0
        %5516 = vmatpush1.msra.mxu0 %v5502
        %5517 = vmatprep.subr.mxu0 0.0
        %5518 = vmatpush1.msra.mxu0 %v5503
        %5519 = vmatprep.subr.mxu0 0.0
        %5520 = vmatpush1.msra.mxu0 %v5504
        %5521 = vmatprep.subr.mxu0 0.0
        %5522 = vmatpush1.msra.mxu0 0.0
        %5523 = vmatprep.subr.mxu0 0.0
        %5524 = vmatpush1.msra.mxu0 0.0
        %5525 = vmatprep.subr.mxu0 0.0
        %5526 = vmatpush1.msra.mxu0 0.0
        %5527 = vmatprep.subr.mxu0 0.0
        %5528 = vmatpush1.msra.mxu0 0.0
        %5529 = vmatprep.subr.mxu0 0.0
        %5530 = vmatpush1.msra.mxu0 0.0
        %5531 = vmatprep.subr.mxu0 0.0
        %5532 = vmatpush1.msra.mxu0 0.0
        %5533 = vmatprep.subr.mxu0 0.0
        %5534 = vmatpush1.msra.mxu0 0.0
        %5535 = vmatprep.subr.mxu0 0.0
        %5536 = vmatpush1.msra.mxu0 0.0
        %5537 = vmatprep.subr.mxu0 0.0
        %5538 = vmatpush1.msra.mxu0 0.0
        %5539 = vmatprep.subr.mxu0 0.0
        %5540 = vmatpush1.msra.mxu0 0.0
        %5541 = vmatprep.subr.mxu0 0.0
        %5542 = vmatpush1.msra.mxu0 0.0
        %5543 = vmatprep.subr.mxu0 0.0
        %5544 = vmatpush1.msra.mxu0 0.0
        %5545 = vmatprep.subr.mxu0 0.0
        %5546 = vmatpush1.msra.mxu0 0.0
        %5547 = vmatprep.subr.mxu0 0.0
        %5548 = vmatpush1.msra.mxu0 0.0
        %5549 = vmatprep.subr.mxu0 0.0
        %5550 = vmatpush1.msra.mxu0 0.0
        %5551 = vmatprep.subr.mxu0 0.0
        %5552 = vmatpush1.msra.mxu0 0.0
        %5553 = vmatprep.subr.mxu0 0.0
        %5554 = vmatpush1.msra.mxu0 0.0
        %5555 = vmatprep.subr.mxu0 0.0
        %5556 = vmatpush1.msra.mxu0 0.0
        %5557 = vmatprep.subr.mxu0 0.0
        %5558 = vmatpush1.msra.mxu0 0.0
        %5559 = vmatprep.subr.mxu0 0.0
        %5560 = vmatpush1.msra.mxu0 0.0
        %5561 = vmatprep.subr.mxu0 0.0
        %5562 = vmatpush1.msra.mxu0 0.0
        %5563 = vmatprep.subr.mxu0 0.0
        %5564 = vmatpush1.msra.mxu0 0.0
        %5565 = vmatprep.subr.mxu0 0.0
        %5566 = vmatpush1.msra.mxu0 0.0
        %5567 = vmatprep.subr.mxu0 0.0
        %5568 = vmatpush1.msra.mxu0 0.0
        %5569 = vmatprep.subr.mxu0 0.0
        %5570 = vmatpush1.msra.mxu0 0.0
        %5571 = vmatprep.subr.mxu0 0.0
        %5572 = vmatpush1.msra.mxu0 0.0
        %5573 = vmatprep.mubr.f32.mxu0 0.0
        %5574 = vmatmul.mubr.f32.gmra.mrb[0].mxu0 %v5507
        %v5575 = vpop.f32.mrb[0].mxu0
        %v5576 = vadd.f32 0.0, %v5575
        %v5577 = vpop.f32.mrb[0].mxu0
        %5578 = vdwg.mxu0
        %v5579 = vadd.f32 %v5497, %v5576
        %v5580 = vld [vmem:[%s6] sm:$0x1]
        %v5582 = vlaneseq
        %v5583 = vshrl.u32 %v5582, 7
        %v5584 = vsub.s32 0, %v5583
        %v5585 = vrot.slane %v5580, %v5584
        %v5587 = vadd.f32 %v5579, %v5585
        %v5588 = vmax.f32 %v5587, 0.0
        %5590 = vrot.lane.b32.xlu0 %v5588, 112
        %v5591 = vpop.permute.xlu0 %5590
        %v5593 = vmax.f32 %v5588, %v5591
        %v5594 = vld [vmem:[%s7] sm:$0xff]
        %v5595 = vld [vmem:[%s7 + $0x8] sm:$0xff]
        %v5596 = vld [vmem:[%s7 + $0x10] sm:$0xff]
        %v5597 = vld [vmem:[%s7 + $0x18] sm:$0xff]
        %v5598 = vld [vmem:[%s7 + $0x20] sm:$0xff]
        %v5599 = vld [vmem:[%s7 + $0x28] sm:$0xff]
        %v5600 = vld [vmem:[%s7 + $0x30] sm:$0xff]
        %v5601 = vld [vmem:[%s7 + $0x38] sm:$0xff]
        %v5602 = vld [vmem:[%s7 + $0x40] sm:$0xff]
        %v5603 = vld [vmem:[%s7 + $0x48] sm:$0xff]
        %v5604 = vld [vmem:[%s7 + $0x50] sm:$0xff]
        %v5605 = vld [vmem:[%s7 + $0x58] sm:$0xff]
        %v5606 = vld [vmem:[%s7 + $0x60] sm:$0xff]
        %v5607 = vld [vmem:[%s7 + $0x68] sm:$0xff]
        %vm5608 = vcmask 916480
        %v5610 = vsel %vm5608, %v5593, 0
        %5612 = vmatprep.subr.mxu0 0.0
        %5613 = vmatpush1.msra.mxu0 %v5594
        %5614 = vmatprep.subr.mxu0 0.0
        %5615 = vmatpush1.msra.mxu0 %v5595
        %5616 = vmatprep.subr.mxu0 0.0
        %5617 = vmatpush1.msra.mxu0 %v5596
        %5618 = vmatprep.subr.mxu0 0.0
        %5619 = vmatpush1.msra.mxu0 %v5597
        %5620 = vmatprep.subr.mxu0 0.0
        %5621 = vmatpush1.msra.mxu0 %v5598
        %5622 = vmatprep.subr.mxu0 0.0
        %5623 = vmatpush1.msra.mxu0 %v5599
        %5624 = vmatprep.subr.mxu0 0.0
        %5625 = vmatpush1.msra.mxu0 %v5600
        %5626 = vmatprep.subr.mxu0 0.0
        %5627 = vmatpush1.msra.mxu0 %v5601
        %5628 = vmatprep.subr.mxu0 0.0
        %5629 = vmatpush1.msra.mxu0 %v5602
        %5630 = vmatprep.subr.mxu0 0.0
        %5631 = vmatpush1.msra.mxu0 %v5603
        %5632 = vmatprep.subr.mxu0 0.0
        %5633 = vmatpush1.msra.mxu0 %v5604
        %5634 = vmatprep.subr.mxu0 0.0
        %5635 = vmatpush1.msra.mxu0 %v5605
        %5636 = vmatprep.subr.mxu0 0.0
        %5637 = vmatpush1.msra.mxu0 %v5606
        %5638 = vmatprep.subr.mxu0 0.0
        %5639 = vmatpush1.msra.mxu0 %v5607
        %5640 = vmatprep.subr.mxu0 0.0
        %5641 = vmatpush1.msra.mxu0 0.0
        %5642 = vmatprep.subr.mxu0 0.0
        %5643 = vmatpush1.msra.mxu0 0.0
        %5644 = vmatprep.subr.mxu0 0.0
        %5645 = vmatpush1.msra.mxu0 0.0
        %5646 = vmatprep.subr.mxu0 0.0
        %5647 = vmatpush1.msra.mxu0 0.0
        %5648 = vmatprep.subr.mxu0 0.0
        %5649 = vmatpush1.msra.mxu0 0.0
        %5650 = vmatprep.subr.mxu0 0.0
        %5651 = vmatpush1.msra.mxu0 0.0
        %5652 = vmatprep.subr.mxu0 0.0
        %5653 = vmatpush1.msra.mxu0 0.0
        %5654 = vmatprep.subr.mxu0 0.0
        %5655 = vmatpush1.msra.mxu0 0.0
        %5656 = vmatprep.subr.mxu0 0.0
        %5657 = vmatpush1.msra.mxu0 0.0
        %5658 = vmatprep.subr.mxu0 0.0
        %5659 = vmatpush1.msra.mxu0 0.0
        %5660 = vmatprep.subr.mxu0 0.0
        %5661 = vmatpush1.msra.mxu0 0.0
        %5662 = vmatprep.subr.mxu0 0.0
        %5663 = vmatpush1.msra.mxu0 0.0
        %5664 = vmatprep.subr.mxu0 0.0
        %5665 = vmatpush1.msra.mxu0 0.0
        %5666 = vmatprep.subr.mxu0 0.0
        %5667 = vmatpush1.msra.mxu0 0.0
        %5668 = vmatprep.subr.mxu0 0.0
        %5669 = vmatpush1.msra.mxu0 0.0
        %5670 = vmatprep.subr.mxu0 0.0
        %5671 = vmatpush1.msra.mxu0 0.0
        %5672 = vmatprep.subr.mxu0 0.0
        %5673 = vmatpush1.msra.mxu0 0.0
        %5674 = vmatprep.subr.mxu0 0.0
        %5675 = vmatpush1.msra.mxu0 0.0
        %5676 = vmatprep.mubr.f32.mxu0 0.0
        %5677 = vmatmul.mubr.f32.gmra.mrb[0].mxu0 %v5610
        %v5678 = vpop.f32.mrb[0].mxu0
        %v5679 = vadd.f32 0.0, %v5678
        %v5680 = vpop.f32.mrb[0].mxu0
        %5681 = vdwg.mxu0
        %v5683 = vrot.slane %v5679, 1
        %v5685 = vmax.f32 %v5679, %v5683
        %v5686 = vld [vmem:[%s8] sm:$0xf]
        %vm5687 = vcmask 56320
        %v5689 = vsel %vm5687, %v5686, 0
        %v5692 = vsel %vm1096, %v5685, 0
        %5694 = vmatprep.subr.mxu0 0.0
        %5695 = vmatpush1.msra.mxu0 %v5692
        %5696 = vmatprep.subr.mxu0 0.0
        %5697 = vmatpush1.msra.mxu0 0.0
        %5698 = vmatprep.subr.mxu0 0.0
        %5699 = vmatpush1.msra.mxu0 0.0
        %5700 = vmatprep.subr.mxu0 0.0
        %5701 = vmatpush1.msra.mxu0 0.0
        %5702 = vmatprep.subr.mxu0 0.0
        %5703 = vmatpush1.msra.mxu0 0.0
        %5704 = vmatprep.subr.mxu0 0.0
        %5705 = vmatpush1.msra.mxu0 0.0
        %5706 = vmatprep.subr.mxu0 0.0
        %5707 = vmatpush1.msra.mxu0 0.0
        %5708 = vmatprep.subr.mxu0 0.0
        %5709 = vmatpush1.msra.mxu0 0.0
        %5710 = vmatprep.subr.mxu0 0.0
        %5711 = vmatpush1.msra.mxu0 0.0
        %5712 = vmatprep.subr.mxu0 0.0
        %5713 = vmatpush1.msra.mxu0 0.0
        %5714 = vmatprep.subr.mxu0 0.0
        %5715 = vmatpush1.msra.mxu0 0.0
        %5716 = vmatprep.subr.mxu0 0.0
        %5717 = vmatpush1.msra.mxu0 0.0
        %5718 = vmatprep.subr.mxu0 0.0
        %5719 = vmatpush1.msra.mxu0 0.0
        %5720 = vmatprep.subr.mxu0 0.0
        %5721 = vmatpush1.msra.mxu0 0.0
        %5722 = vmatprep.subr.mxu0 0.0
        %5723 = vmatpush1.msra.mxu0 0.0
        %5724 = vmatprep.subr.mxu0 0.0
        %5725 = vmatpush1.msra.mxu0 0.0
        %5726 = vmatprep.subr.mxu0 0.0
        %5727 = vmatpush1.msra.mxu0 0.0
        %5728 = vmatprep.subr.mxu0 0.0
        %5729 = vmatpush1.msra.mxu0 0.0
        %5730 = vmatprep.subr.mxu0 0.0
        %5731 = vmatpush1.msra.mxu0 0.0
        %5732 = vmatprep.subr.mxu0 0.0
        %5733 = vmatpush1.msra.mxu0 0.0
        %5734 = vmatprep.subr.mxu0 0.0
        %5735 = vmatpush1.msra.mxu0 0.0
        %5736 = vmatprep.subr.mxu0 0.0
        %5737 = vmatpush1.msra.mxu0 0.0
        %5738 = vmatprep.subr.mxu0 0.0
        %5739 = vmatpush1.msra.mxu0 0.0
        %5740 = vmatprep.subr.mxu0 0.0
        %5741 = vmatpush1.msra.mxu0 0.0
        %5742 = vmatprep.subr.mxu0 0.0
        %5743 = vmatpush1.msra.mxu0 0.0
        %5744 = vmatprep.subr.mxu0 0.0
        %5745 = vmatpush1.msra.mxu0 0.0
        %5746 = vmatprep.subr.mxu0 0.0
        %5747 = vmatpush1.msra.mxu0 0.0
        %5748 = vmatprep.subr.mxu0 0.0
        %5749 = vmatpush1.msra.mxu0 0.0
        %5750 = vmatprep.subr.mxu0 0.0
        %5751 = vmatpush1.msra.mxu0 0.0
        %5752 = vmatprep.subr.mxu0 0.0
        %5753 = vmatpush1.msra.mxu0 0.0
        %5754 = vmatprep.subr.mxu0 0.0
        %5755 = vmatpush1.msra.mxu0 0.0
        %5756 = vmatprep.subr.mxu0 0.0
        %5757 = vmatpush1.msra.mxu0 0.0
        %5758 = vmatprep.mubr.f32.mxu0 0.0
        %5759 = vmatmul.mubr.f32.gmra.mrb[0].mxu0 %v5689
        %v5760 = vpop.f32.mrb[0].mxu0
        %v5761 = vadd.f32 0.0, %v5760
        %v5762 = vpop.f32.mrb[0].mxu0
        %5763 = vdwg.mxu0
        %v5764 = vld [vmem:[%s9] sm:$0xff]
        %v5765 = vld [vmem:[%s9 + $0x8] sm:$0xff]
        %v5766 = vld [vmem:[%s9 + $0x10] sm:$0xff]
        %v5767 = vld [vmem:[%s9 + $0x18] sm:$0xff]
        %v5768 = vld [vmem:[%s9 + $0x20] sm:$0xff]
        %v5769 = vld [vmem:[%s9 + $0x28] sm:$0xff]
        %v5770 = vld [vmem:[%s9 + $0x30] sm:$0xff]
        %v5771 = vld [vmem:[%s9 + $0x38] sm:$0xff]
        %s5772 = scalar_lea.vmem %s9, 64
        %v5773 = vld [vmem:[%s5772] sm:$0xff]
        %v5774 = vld [vmem:[%s5772 + $0x8] sm:$0xff]
        %v5775 = vld [vmem:[%s5772 + $0x10] sm:$0xff]
        %v5776 = vld [vmem:[%s5772 + $0x18] sm:$0xff]
        %v5777 = vld [vmem:[%s5772 + $0x20] sm:$0xff]
        %v5778 = vld [vmem:[%s5772 + $0x28] sm:$0xff]
        %v5779 = vld [vmem:[%s5772 + $0x30] sm:$0xff]
        %v5780 = vld [vmem:[%s5772 + $0x38] sm:$0xff]
        %v5782 = vrot.slane %v5761, 1
        %vm5783 = vcmask 523264
        %v5784 = vsel %vm5783, %v5782, 0
        %5786 = vmatprep.subr.mxu0 0.0
        %5787 = vmatpush1.msra.mxu0 %v5773
        %5788 = vmatprep.subr.mxu0 0.0
        %5789 = vmatpush1.msra.mxu0 %v5774
        %5790 = vmatprep.subr.mxu0 0.0
        %5791 = vmatpush1.msra.mxu0 %v5775
        %5792 = vmatprep.subr.mxu0 0.0
        %5793 = vmatpush1.msra.mxu0 %v5776
        %5794 = vmatprep.subr.mxu0 0.0
        %5795 = vmatpush1.msra.mxu0 %v5777
        %5796 = vmatprep.subr.mxu0 0.0
        %5797 = vmatpush1.msra.mxu0 %v5778
        %5798 = vmatprep.subr.mxu0 0.0
        %5799 = vmatpush1.msra.mxu0 %v5779
        %5800 = vmatprep.subr.mxu0 0.0
        %5801 = vmatpush1.msra.mxu0 %v5780
        %5802 = vmatprep.subr.mxu0 0.0
        %5803 = vmatpush1.msra.mxu0 0.0
        %5804 = vmatprep.subr.mxu0 0.0
        %5805 = vmatpush1.msra.mxu0 0.0
        %5806 = vmatprep.subr.mxu0 0.0
        %5807 = vmatpush1.msra.mxu0 0.0
        %5808 = vmatprep.subr.mxu0 0.0
        %5809 = vmatpush1.msra.mxu0 0.0
        %5810 = vmatprep.subr.mxu0 0.0
        %5811 = vmatpush1.msra.mxu0 0.0
        %5812 = vmatprep.subr.mxu0 0.0
        %5813 = vmatpush1.msra.mxu0 0.0
        %5814 = vmatprep.subr.mxu0 0.0
        %5815 = vmatpush1.msra.mxu0 0.0
        %5816 = vmatprep.subr.mxu0 0.0
        %5817 = vmatpush1.msra.mxu0 0.0
        %5818 = vmatprep.subr.mxu0 0.0
        %5819 = vmatpush1.msra.mxu0 0.0
        %5820 = vmatprep.subr.mxu0 0.0
        %5821 = vmatpush1.msra.mxu0 0.0
        %5822 = vmatprep.subr.mxu0 0.0
        %5823 = vmatpush1.msra.mxu0 0.0
        %5824 = vmatprep.subr.mxu0 0.0
        %5825 = vmatpush1.msra.mxu0 0.0
        %5826 = vmatprep.subr.mxu0 0.0
        %5827 = vmatpush1.msra.mxu0 0.0
        %5828 = vmatprep.subr.mxu0 0.0
        %5829 = vmatpush1.msra.mxu0 0.0
        %5830 = vmatprep.subr.mxu0 0.0
        %5831 = vmatpush1.msra.mxu0 0.0
        %5832 = vmatprep.subr.mxu0 0.0
        %5833 = vmatpush1.msra.mxu0 0.0
        %5834 = vmatprep.subr.mxu0 0.0
        %5835 = vmatpush1.msra.mxu0 0.0
        %5836 = vmatprep.subr.mxu0 0.0
        %5837 = vmatpush1.msra.mxu0 0.0
        %5838 = vmatprep.subr.mxu0 0.0
        %5839 = vmatpush1.msra.mxu0 0.0
        %5840 = vmatprep.subr.mxu0 0.0
        %5841 = vmatpush1.msra.mxu0 0.0
        %5842 = vmatprep.subr.mxu0 0.0
        %5843 = vmatpush1.msra.mxu0 0.0
        %5844 = vmatprep.subr.mxu0 0.0
        %5845 = vmatpush1.msra.mxu0 0.0
        %5846 = vmatprep.subr.mxu0 0.0
        %5847 = vmatpush1.msra.mxu0 0.0
        %5848 = vmatprep.subr.mxu0 0.0
        %5849 = vmatpush1.msra.mxu0 0.0
        %5850 = vmatprep.mubr.f32.mxu0 0.0
        %5851 = vmatmul.mubr.f32.gmra.mrb[0].mxu0 %v5784
        %v5852 = vpop.f32.mrb[0].mxu0
        %v5853 = vadd.f32 0.0, %v5852
        %v5854 = vpop.f32.mrb[0].mxu0
        %5855 = vdwg.mxu0
        %v5856 = vsel %vm5783, %v5761, 0
        %5858 = vmatprep.subr.mxu0 0.0
        %5859 = vmatpush1.msra.mxu0 %v5764
        %5860 = vmatprep.subr.mxu0 0.0
        %5861 = vmatpush1.msra.mxu0 %v5765
        %5862 = vmatprep.subr.mxu0 0.0
        %5863 = vmatpush1.msra.mxu0 %v5766
        %5864 = vmatprep.subr.mxu0 0.0
        %5865 = vmatpush1.msra.mxu0 %v5767
        %5866 = vmatprep.subr.mxu0 0.0
        %5867 = vmatpush1.msra.mxu0 %v5768
        %5868 = vmatprep.subr.mxu0 0.0
        %5869 = vmatpush1.msra.mxu0 %v5769
        %5870 = vmatprep.subr.mxu0 0.0
        %5871 = vmatpush1.msra.mxu0 %v5770
        %5872 = vmatprep.subr.mxu0 0.0
        %5873 = vmatpush1.msra.mxu0 %v5771
        %5874 = vmatprep.subr.mxu0 0.0
        %5875 = vmatpush1.msra.mxu0 0.0
        %5876 = vmatprep.subr.mxu0 0.0
        %5877 = vmatpush1.msra.mxu0 0.0
        %5878 = vmatprep.subr.mxu0 0.0
        %5879 = vmatpush1.msra.mxu0 0.0
        %5880 = vmatprep.subr.mxu0 0.0
        %5881 = vmatpush1.msra.mxu0 0.0
        %5882 = vmatprep.subr.mxu0 0.0
        %5883 = vmatpush1.msra.mxu0 0.0
        %5884 = vmatprep.subr.mxu0 0.0
        %5885 = vmatpush1.msra.mxu0 0.0
        %5886 = vmatprep.subr.mxu0 0.0
        %5887 = vmatpush1.msra.mxu0 0.0
        %5888 = vmatprep.subr.mxu0 0.0
        %5889 = vmatpush1.msra.mxu0 0.0
        %5890 = vmatprep.subr.mxu0 0.0
        %5891 = vmatpush1.msra.mxu0 0.0
        %5892 = vmatprep.subr.mxu0 0.0
        %5893 = vmatpush1.msra.mxu0 0.0
        %5894 = vmatprep.subr.mxu0 0.0
        %5895 = vmatpush1.msra.mxu0 0.0
        %5896 = vmatprep.subr.mxu0 0.0
        %5897 = vmatpush1.msra.mxu0 0.0
        %5898 = vmatprep.subr.mxu0 0.0
        %5899 = vmatpush1.msra.mxu0 0.0
        %5900 = vmatprep.subr.mxu0 0.0
        %5901 = vmatpush1.msra.mxu0 0.0
        %5902 = vmatprep.subr.mxu0 0.0
        %5903 = vmatpush1.msra.mxu0 0.0
        %5904 = vmatprep.subr.mxu0 0.0
        %5905 = vmatpush1.msra.mxu0 0.0
        %5906 = vmatprep.subr.mxu0 0.0
        %5907 = vmatpush1.msra.mxu0 0.0
        %5908 = vmatprep.subr.mxu0 0.0
        %5909 = vmatpush1.msra.mxu0 0.0
        %5910 = vmatprep.subr.mxu0 0.0
        %5911 = vmatpush1.msra.mxu0 0.0
        %5912 = vmatprep.subr.mxu0 0.0
        %5913 = vmatpush1.msra.mxu0 0.0
        %5914 = vmatprep.subr.mxu0 0.0
        %5915 = vmatpush1.msra.mxu0 0.0
        %5916 = vmatprep.subr.mxu0 0.0
        %5917 = vmatpush1.msra.mxu0 0.0
        %5918 = vmatprep.subr.mxu0 0.0
        %5919 = vmatpush1.msra.mxu0 0.0
        %5920 = vmatprep.subr.mxu0 0.0
        %5921 = vmatpush1.msra.mxu0 0.0
        %5922 = vmatprep.mubr.f32.mxu0 0.0
        %5923 = vmatmul.mubr.f32.gmra.mrb[0].mxu0 %v5856
        %v5924 = vpop.f32.mrb[0].mxu0
        %v5925 = vadd.f32 %v5853, %v5924
        %v5926 = vpop.f32.mrb[0].mxu0
        %5927 = vdwg.mxu0
        %s5928 = scalar_lea.vmem %s9, 128
        %v5929 = vld [vmem:[%s5928] sm:$0xff]
        %v5930 = vld [vmem:[%s5928 + $0x8] sm:$0xff]
        %v5931 = vld [vmem:[%s5928 + $0x10] sm:$0xff]
        %v5932 = vld [vmem:[%s5928 + $0x18] sm:$0xff]
        %v5933 = vld [vmem:[%s5928 + $0x20] sm:$0xff]
        %v5934 = vld [vmem:[%s5928 + $0x28] sm:$0xff]
        %v5935 = vld [vmem:[%s5928 + $0x30] sm:$0xff]
        %v5936 = vld [vmem:[%s5928 + $0x38] sm:$0xff]
        %v5937 = vrot.slane %v5761, 2
        %v5938 = vsel %vm5783, %v5937, 0
        %5940 = vmatprep.subr.mxu0 0.0
        %5941 = vmatpush1.msra.mxu0 %v5929
        %5942 = vmatprep.subr.mxu0 0.0
        %5943 = vmatpush1.msra.mxu0 %v5930
        %5944 = vmatprep.subr.mxu0 0.0
        %5945 = vmatpush1.msra.mxu0 %v5931
        %5946 = vmatprep.subr.mxu0 0.0
        %5947 = vmatpush1.msra.mxu0 %v5932
        %5948 = vmatprep.subr.mxu0 0.0
        %5949 = vmatpush1.msra.mxu0 %v5933
        %5950 = vmatprep.subr.mxu0 0.0
        %5951 = vmatpush1.msra.mxu0 %v5934
        %5952 = vmatprep.subr.mxu0 0.0
        %5953 = vmatpush1.msra.mxu0 %v5935
        %5954 = vmatprep.subr.mxu0 0.0
        %5955 = vmatpush1.msra.mxu0 %v5936
        %5956 = vmatprep.subr.mxu0 0.0
        %5957 = vmatpush1.msra.mxu0 0.0
        %5958 = vmatprep.subr.mxu0 0.0
        %5959 = vmatpush1.msra.mxu0 0.0
        %5960 = vmatprep.subr.mxu0 0.0
        %5961 = vmatpush1.msra.mxu0 0.0
        %5962 = vmatprep.subr.mxu0 0.0
        %5963 = vmatpush1.msra.mxu0 0.0
        %5964 = vmatprep.subr.mxu0 0.0
        %5965 = vmatpush1.msra.mxu0 0.0
        %5966 = vmatprep.subr.mxu0 0.0
        %5967 = vmatpush1.msra.mxu0 0.0
        %5968 = vmatprep.subr.mxu0 0.0
        %5969 = vmatpush1.msra.mxu0 0.0
        %5970 = vmatprep.subr.mxu0 0.0
        %5971 = vmatpush1.msra.mxu0 0.0
        %5972 = vmatprep.subr.mxu0 0.0
        %5973 = vmatpush1.msra.mxu0 0.0
        %5974 = vmatprep.subr.mxu0 0.0
        %5975 = vmatpush1.msra.mxu0 0.0
        %5976 = vmatprep.subr.mxu0 0.0
        %5977 = vmatpush1.msra.mxu0 0.0
        %5978 = vmatprep.subr.mxu0 0.0
        %5979 = vmatpush1.msra.mxu0 0.0
        %5980 = vmatprep.subr.mxu0 0.0
        %5981 = vmatpush1.msra.mxu0 0.0
        %5982 = vmatprep.subr.mxu0 0.0
        %5983 = vmatpush1.msra.mxu0 0.0
        %5984 = vmatprep.subr.mxu0 0.0
        %5985 = vmatpush1.msra.mxu0 0.0
        %5986 = vmatprep.subr.mxu0 0.0
        %5987 = vmatpush1.msra.mxu0 0.0
        %5988 = vmatprep.subr.mxu0 0.0
        %5989 = vmatpush1.msra.mxu0 0.0
        %5990 = vmatprep.subr.mxu0 0.0
        %5991 = vmatpush1.msra.mxu0 0.0
        %5992 = vmatprep.subr.mxu0 0.0
        %5993 = vmatpush1.msra.mxu0 0.0
        %5994 = vmatprep.subr.mxu0 0.0
        %5995 = vmatpush1.msra.mxu0 0.0
        %5996 = vmatprep.subr.mxu0 0.0
        %5997 = vmatpush1.msra.mxu0 0.0
        %5998 = vmatprep.subr.mxu0 0.0
        %5999 = vmatpush1.msra.mxu0 0.0
        %6000 = vmatprep.subr.mxu0 0.0
        %6001 = vmatpush1.msra.mxu0 0.0
        %6002 = vmatprep.subr.mxu0 0.0
        %6003 = vmatpush1.msra.mxu0 0.0
        %6004 = vmatprep.mubr.f32.mxu0 0.0
        %6005 = vmatmul.mubr.f32.gmra.mrb[0].mxu0 %v5938
        %v6006 = vpop.f32.mrb[0].mxu0
        %v6007 = vadd.f32 0.0, %v6006
        %v6008 = vpop.f32.mrb[0].mxu0
        %6009 = vdwg.mxu0
        %v6010 = vadd.f32 %v5925, %v6007
        %s6011 = scalar_lea.vmem %s9, 192
        %v6012 = vld [vmem:[%s6011] sm:$0xff]
        %v6013 = vld [vmem:[%s6011 + $0x8] sm:$0xff]
        %v6014 = vld [vmem:[%s6011 + $0x10] sm:$0xff]
        %v6015 = vld [vmem:[%s6011 + $0x18] sm:$0xff]
        %v6016 = vld [vmem:[%s6011 + $0x20] sm:$0xff]
        %v6017 = vld [vmem:[%s6011 + $0x28] sm:$0xff]
        %v6018 = vld [vmem:[%s6011 + $0x30] sm:$0xff]
        %v6019 = vld [vmem:[%s6011 + $0x38] sm:$0xff]
        %v6020 = vrot.slane %v5761, 3
        %v6021 = vsel %vm5783, %v6020, 0
        %6023 = vmatprep.subr.mxu0 0.0
        %6024 = vmatpush1.msra.mxu0 %v6012
        %6025 = vmatprep.subr.mxu0 0.0
        %6026 = vmatpush1.msra.mxu0 %v6013
        %6027 = vmatprep.subr.mxu0 0.0
        %6028 = vmatpush1.msra.mxu0 %v6014
        %6029 = vmatprep.subr.mxu0 0.0
        %6030 = vmatpush1.msra.mxu0 %v6015
        %6031 = vmatprep.subr.mxu0 0.0
        %6032 = vmatpush1.msra.mxu0 %v6016
        %6033 = vmatprep.subr.mxu0 0.0
        %6034 = vmatpush1.msra.mxu0 %v6017
        %6035 = vmatprep.subr.mxu0 0.0
        %6036 = vmatpush1.msra.mxu0 %v6018
        %6037 = vmatprep.subr.mxu0 0.0
        %6038 = vmatpush1.msra.mxu0 %v6019
        %6039 = vmatprep.subr.mxu0 0.0
        %6040 = vmatpush1.msra.mxu0 0.0
        %6041 = vmatprep.subr.mxu0 0.0
        %6042 = vmatpush1.msra.mxu0 0.0
        %6043 = vmatprep.subr.mxu0 0.0
        %6044 = vmatpush1.msra.mxu0 0.0
        %6045 = vmatprep.subr.mxu0 0.0
        %6046 = vmatpush1.msra.mxu0 0.0
        %6047 = vmatprep.subr.mxu0 0.0
        %6048 = vmatpush1.msra.mxu0 0.0
        %6049 = vmatprep.subr.mxu0 0.0
        %6050 = vmatpush1.msra.mxu0 0.0
        %6051 = vmatprep.subr.mxu0 0.0
        %6052 = vmatpush1.msra.mxu0 0.0
        %6053 = vmatprep.subr.mxu0 0.0
        %6054 = vmatpush1.msra.mxu0 0.0
        %6055 = vmatprep.subr.mxu0 0.0
        %6056 = vmatpush1.msra.mxu0 0.0
        %6057 = vmatprep.subr.mxu0 0.0
        %6058 = vmatpush1.msra.mxu0 0.0
        %6059 = vmatprep.subr.mxu0 0.0
        %6060 = vmatpush1.msra.mxu0 0.0
        %6061 = vmatprep.subr.mxu0 0.0
        %6062 = vmatpush1.msra.mxu0 0.0
        %6063 = vmatprep.subr.mxu0 0.0
        %6064 = vmatpush1.msra.mxu0 0.0
        %6065 = vmatprep.subr.mxu0 0.0
        %6066 = vmatpush1.msra.mxu0 0.0
        %6067 = vmatprep.subr.mxu0 0.0
        %6068 = vmatpush1.msra.mxu0 0.0
        %6069 = vmatprep.subr.mxu0 0.0
        %6070 = vmatpush1.msra.mxu0 0.0
        %6071 = vmatprep.subr.mxu0 0.0
        %6072 = vmatpush1.msra.mxu0 0.0
        %6073 = vmatprep.subr.mxu0 0.0
        %6074 = vmatpush1.msra.mxu0 0.0
        %6075 = vmatprep.subr.mxu0 0.0
        %6076 = vmatpush1.msra.mxu0 0.0
        %6077 = vmatprep.subr.mxu0 0.0
        %6078 = vmatpush1.msra.mxu0 0.0
        %6079 = vmatprep.subr.mxu0 0.0
        %6080 = vmatpush1.msra.mxu0 0.0
        %6081 = vmatprep.subr.mxu0 0.0
        %6082 = vmatpush1.msra.mxu0 0.0
        %6083 = vmatprep.subr.mxu0 0.0
        %6084 = vmatpush1.msra.mxu0 0.0
        %6085 = vmatprep.subr.mxu0 0.0
        %6086 = vmatpush1.msra.mxu0 0.0
        %6087 = vmatprep.mubr.f32.mxu0 0.0
        %6088 = vmatmul.mubr.f32.gmra.mrb[0].mxu0 %v6021
        %v6089 = vpop.f32.mrb[0].mxu0
        %v6090 = vadd.f32 0.0, %v6089
        %v6091 = vpop.f32.mrb[0].mxu0
        %6092 = vdwg.mxu0
        %v6093 = vadd.f32 %v6010, %v6090
        %v6094 = vld [vmem:[%s10] sm:$0x1]
        %v6095 = vadd.f32 %v6093, %v6094
        %v6096 = vmax.f32 %v6095, 0.0
        %v6097 = vld [vmem:[%s11] sm:$0xff]
        %v6098 = vld [vmem:[%s11 + $0x8] sm:$0xff]
        %v6099 = vld [vmem:[%s11 + $0x10] sm:$0xff]
        %v6100 = vld [vmem:[%s11 + $0x18] sm:$0xff]
        %v6101 = vld [vmem:[%s11 + $0x20] sm:$0xff]
        %v6102 = vld [vmem:[%s11 + $0x28] sm:$0xff]
        %v6103 = vld [vmem:[%s11 + $0x30] sm:$0xff]
        %v6104 = vld [vmem:[%s11 + $0x38] sm:$0xff]
        %v6105 = vld [vmem:[%s11 + $0x40] sm:$0xff]
        %v6106 = vld [vmem:[%s11 + $0x48] sm:$0xff]
        %v6107 = vld [vmem:[%s11 + $0x50] sm:$0xff]
        %v6108 = vld [vmem:[%s11 + $0x58] sm:$0xff]
        %v6109 = vld [vmem:[%s11 + $0x60] sm:$0xff]
        %v6110 = vld [vmem:[%s11 + $0x68] sm:$0xff]
        %v6111 = vld [vmem:[%s11 + $0x70] sm:$0xff]
        %v6112 = vld [vmem:[%s12] sm:$0x1]
        %vm6113 = vcmask 982016
        %v6115 = vsel %vm6113, %v6096, 0
        %6117 = vmatprep.subr.mxu0 0.0
        %6118 = vmatpush1.msra.mxu0 %v6097
        %6119 = vmatprep.subr.mxu0 0.0
        %6120 = vmatpush1.msra.mxu0 %v6098
        %6121 = vmatprep.subr.mxu0 0.0
        %6122 = vmatpush1.msra.mxu0 %v6099
        %6123 = vmatprep.subr.mxu0 0.0
        %6124 = vmatpush1.msra.mxu0 %v6100
        %6125 = vmatprep.subr.mxu0 0.0
        %6126 = vmatpush1.msra.mxu0 %v6101
        %6127 = vmatprep.subr.mxu0 0.0
        %6128 = vmatpush1.msra.mxu0 %v6102
        %6129 = vmatprep.subr.mxu0 0.0
        %6130 = vmatpush1.msra.mxu0 %v6103
        %6131 = vmatprep.subr.mxu0 0.0
        %6132 = vmatpush1.msra.mxu0 %v6104
        %6133 = vmatprep.subr.mxu0 0.0
        %6134 = vmatpush1.msra.mxu0 %v6105
        %6135 = vmatprep.subr.mxu0 0.0
        %6136 = vmatpush1.msra.mxu0 %v6106
        %6137 = vmatprep.subr.mxu0 0.0
        %6138 = vmatpush1.msra.mxu0 %v6107
        %6139 = vmatprep.subr.mxu0 0.0
        %6140 = vmatpush1.msra.mxu0 %v6108
        %6141 = vmatprep.subr.mxu0 0.0
        %6142 = vmatpush1.msra.mxu0 %v6109
        %6143 = vmatprep.subr.mxu0 0.0
        %6144 = vmatpush1.msra.mxu0 %v6110
        %6145 = vmatprep.subr.mxu0 0.0
        %6146 = vmatpush1.msra.mxu0 %v6111
        %6147 = vmatprep.subr.mxu0 0.0
        %6148 = vmatpush1.msra.mxu0 0.0
        %6149 = vmatprep.subr.mxu0 0.0
        %6150 = vmatpush1.msra.mxu0 0.0
        %6151 = vmatprep.subr.mxu0 0.0
        %6152 = vmatpush1.msra.mxu0 0.0
        %6153 = vmatprep.subr.mxu0 0.0
        %6154 = vmatpush1.msra.mxu0 0.0
        %6155 = vmatprep.subr.mxu0 0.0
        %6156 = vmatpush1.msra.mxu0 0.0
        %6157 = vmatprep.subr.mxu0 0.0
        %6158 = vmatpush1.msra.mxu0 0.0
        %6159 = vmatprep.subr.mxu0 0.0
        %6160 = vmatpush1.msra.mxu0 0.0
        %6161 = vmatprep.subr.mxu0 0.0
        %6162 = vmatpush1.msra.mxu0 0.0
        %6163 = vmatprep.subr.mxu0 0.0
        %6164 = vmatpush1.msra.mxu0 0.0
        %6165 = vmatprep.subr.mxu0 0.0
        %6166 = vmatpush1.msra.mxu0 0.0
        %6167 = vmatprep.subr.mxu0 0.0
        %6168 = vmatpush1.msra.mxu0 0.0
        %6169 = vmatprep.subr.mxu0 0.0
        %6170 = vmatpush1.msra.mxu0 0.0
        %6171 = vmatprep.subr.mxu0 0.0
        %6172 = vmatpush1.msra.mxu0 0.0
        %6173 = vmatprep.subr.mxu0 0.0
        %6174 = vmatpush1.msra.mxu0 0.0
        %6175 = vmatprep.subr.mxu0 0.0
        %6176 = vmatpush1.msra.mxu0 0.0
        %6177 = vmatprep.subr.mxu0 0.0
        %6178 = vmatpush1.msra.mxu0 0.0
        %6179 = vmatprep.subr.mxu0 0.0
        %6180 = vmatpush1.msra.mxu0 0.0
        %6181 = vmatprep.mubr.f32.mxu0 0.0
        %6182 = vmatmul.mubr.f32.gmra.mrb[0].mxu0 %v6115
        %v6183 = vpop.f32.mrb[0].mxu0
        %v6184 = vadd.f32 %v6112, %v6183
        %v6185 = vpop.f32.mrb[0].mxu0
        %6186 = vdwg.mxu0
        %v6187 = vmax.f32 %v6184, 0.0
        %vm6188 = vcmask 679936
        %6189 = vst.msk [vmem:[%s553] sm:$0x1] %vm6188, %v6187
        %v6190 = vld [vmem:[%s13] sm:$0xff]
        %v6191 = vld [vmem:[%s13 + $0x8] sm:$0xff]
        %v6192 = vld [vmem:[%s13 + $0x10] sm:$0xff]
        %v6193 = vld [vmem:[%s13 + $0x18] sm:$0xff]
        %v6194 = vld [vmem:[%s13 + $0x20] sm:$0xff]
        %v6195 = vld [vmem:[%s13 + $0x28] sm:$0xff]
        %v6196 = vld [vmem:[%s13 + $0x30] sm:$0xff]
        %v6197 = vld [vmem:[%s13 + $0x38] sm:$0xff]
        %v6198 = vld [vmem:[%s13 + $0x40] sm:$0xff]
        %v6199 = vld [vmem:[%s13 + $0x48] sm:$0xff]
        %v6200 = vld [vmem:[%s13 + $0x50] sm:$0xf]
        %v6201 = vld [vmem:[%s14] sm:$0x1]
        %vm6202 = vcmask 687104
        %v6204 = vsel %vm6202, %v6187, 0
        %v6207 = vsel %vm2722, %v6200, 0
        %6209 = vmatprep.subr.mxu0 0.0
        %6210 = vmatpush1.msra.mxu0 %v6190
        %6211 = vmatprep.subr.mxu0 0.0
        %6212 = vmatpush1.msra.mxu0 %v6191
        %6213 = vmatprep.subr.mxu0 0.0
        %6214 = vmatpush1.msra.mxu0 %v6192
        %6215 = vmatprep.subr.mxu0 0.0
        %6216 = vmatpush1.msra.mxu0 %v6193
        %6217 = vmatprep.subr.mxu0 0.0
        %6218 = vmatpush1.msra.mxu0 %v6194
        %6219 = vmatprep.subr.mxu0 0.0
        %6220 = vmatpush1.msra.mxu0 %v6195
        %6221 = vmatprep.subr.mxu0 0.0
        %6222 = vmatpush1.msra.mxu0 %v6196
        %6223 = vmatprep.subr.mxu0 0.0
        %6224 = vmatpush1.msra.mxu0 %v6197
        %6225 = vmatprep.subr.mxu0 0.0
        %6226 = vmatpush1.msra.mxu0 %v6198
        %6227 = vmatprep.subr.mxu0 0.0
        %6228 = vmatpush1.msra.mxu0 %v6199
        %6229 = vmatprep.subr.mxu0 0.0
        %6230 = vmatpush1.msra.mxu0 %v6207
        %6231 = vmatprep.subr.mxu0 0.0
        %6232 = vmatpush1.msra.mxu0 0.0
        %6233 = vmatprep.subr.mxu0 0.0
        %6234 = vmatpush1.msra.mxu0 0.0
        %6235 = vmatprep.subr.mxu0 0.0
        %6236 = vmatpush1.msra.mxu0 0.0
        %6237 = vmatprep.subr.mxu0 0.0
        %6238 = vmatpush1.msra.mxu0 0.0
        %6239 = vmatprep.subr.mxu0 0.0
        %6240 = vmatpush1.msra.mxu0 0.0
        %6241 = vmatprep.subr.mxu0 0.0
        %6242 = vmatpush1.msra.mxu0 0.0
        %6243 = vmatprep.subr.mxu0 0.0
        %6244 = vmatpush1.msra.mxu0 0.0
        %6245 = vmatprep.subr.mxu0 0.0
        %6246 = vmatpush1.msra.mxu0 0.0
        %6247 = vmatprep.subr.mxu0 0.0
        %6248 = vmatpush1.msra.mxu0 0.0
        %6249 = vmatprep.subr.mxu0 0.0
        %6250 = vmatpush1.msra.mxu0 0.0
        %6251 = vmatprep.subr.mxu0 0.0
        %6252 = vmatpush1.msra.mxu0 0.0
        %6253 = vmatprep.subr.mxu0 0.0
        %6254 = vmatpush1.msra.mxu0 0.0
        %6255 = vmatprep.subr.mxu0 0.0
        %6256 = vmatpush1.msra.mxu0 0.0
        %6257 = vmatprep.subr.mxu0 0.0
        %6258 = vmatpush1.msra.mxu0 0.0
        %6259 = vmatprep.subr.mxu0 0.0
        %6260 = vmatpush1.msra.mxu0 0.0
        %6261 = vmatprep.subr.mxu0 0.0
        %6262 = vmatpush1.msra.mxu0 0.0
        %6263 = vmatprep.subr.mxu0 0.0
        %6264 = vmatpush1.msra.mxu0 0.0
        %6265 = vmatprep.subr.mxu0 0.0
        %6266 = vmatpush1.msra.mxu0 0.0
        %6267 = vmatprep.subr.mxu0 0.0
        %6268 = vmatpush1.msra.mxu0 0.0
        %6269 = vmatprep.subr.mxu0 0.0
        %6270 = vmatpush1.msra.mxu0 0.0
        %6271 = vmatprep.subr.mxu0 0.0
        %6272 = vmatpush1.msra.mxu0 0.0
        %6273 = vmatprep.mubr.f32.mxu0 0.0
        %6274 = vmatmul.mubr.f32.gmra.mrb[0].mxu0 %v6204
        %v6275 = vpop.f32.mrb[0].mxu0
        %v6276 = vadd.f32 %v6201, %v6275
        %v6277 = vpop.f32.mrb[0].mxu0
        %6278 = vdwg.mxu0
        %vm6279 = vcmask 73728
        %6280 = vst.msk [vmem:[%s547] sm:$0x1] %vm6279, %v6276
        %s6281 = sand.u32 %s364, 1
        %s6282 = scalar_lea.sflag [#allocation4], %s6281
        %s6283 = sand.u32 %s364, 1
        %s6284 = scalar_lea.vmem [#allocation7], %s6283
        %s6285 = sand.u32 %s390, 1
        %s6286 = scalar_lea.sflag [#allocation9], %s6285
        %s6287 = sand.u32 %s390, 1
        %s6288 = scalar_lea.vmem [#allocation8], %s6287
        // Predicated region
        $region89: #{simple_cnn_mnist_forward.1} parent=79 // pred_check
          %p6289 = pneg %p374
        $region90: #{simple_cnn_mnist_forward.1} parent=79 // pred_check_branch
          %6291 = sbr.rel (%p6289) target = $region92
        $region91: #{simple_cnn_mnist_forward.1} parent=79 // pred_region
          %s6293 = ssub.s32 16, 16
          %6294 = vsyncadd %s6282, %s6293
          %s6295 = smul.addr %s36, 16
          %s6296 = scalar_lea.hbm %s15, %s6295
          %s6298 = sshll.u32 %s6284, 4
          %s6299 = int_to_ptr.vmem [resolvable:$true] %s6298
          %6301 = dma.vmem_to_hbm [thread:$0]  %s6299, 16, %s6296, %s6282
        $region92: #{simple_cnn_mnist_forward.1} parent=79 // pred_fallthru
          _
        // Predicated region
        $region93: #{simple_cnn_mnist_forward.1} parent=79 // pred_check
          %p6302 = pneg %p400
        $region94: #{simple_cnn_mnist_forward.1} parent=79 // pred_check_branch
          %6304 = sbr.rel (%p6302) target = $region96
        $region95: #{simple_cnn_mnist_forward.1} parent=79 // pred_region
          %s6306 = ssub.s32 16, 16
          %6307 = vsyncadd %s6286, %s6306
          %s6308 = smul.addr %s36, 16
          %s6309 = scalar_lea.hbm %s16, %s6308
          %s6311 = sshll.u32 %s6288, 4
          %s6312 = int_to_ptr.vmem [resolvable:$true] %s6311
          %6314 = dma.vmem_to_hbm [thread:$0]  %s6312, 16, %s6309, %s6286
        $region96: #{simple_cnn_mnist_forward.1} parent=79 // pred_fallthru
          _
      $region80: #{simple_cnn_mnist_forward.1} parent=5 // pred_fallthru
        _
      %p6315 = scmp.le.s32.totalorder 2, %s31
      // Predicated region
      $region97: #{simple_cnn_mnist_forward.1} parent=5 // pred_check
        %p6316 = pneg %p6315
      $region98: #{simple_cnn_mnist_forward.1} parent=5 // pred_check_branch
        %6318 = sbr.rel (%p6316) target = $region100
      $region99: #{simple_cnn_mnist_forward.1} parent=5 // pred_region
        %s6319 = ssub.s32 %s31, 2
        // Predicated region
        $region101: #{simple_cnn_mnist_forward.1} parent=99 // pred_check
          %p6320 = pneg %p380
        $region102: #{simple_cnn_mnist_forward.1} parent=99 // pred_check_branch
          %6322 = sbr.rel (%p6320) target = $region104
        $region103: #{simple_cnn_mnist_forward.1} parent=99 // pred_region
          %s6323 = sand.u32 %s365, 1
          %s6324 = scalar_lea.sflag [#allocation4], %s6323
          %s6325 = sand.u32 %s365, 1
          %s6326 = scalar_lea.vmem [#allocation7], %s6325
          %6327 = dma.done %s6324, 16
        $region104: #{simple_cnn_mnist_forward.1} parent=99 // pred_fallthru
          _
        // Predicated region
        $region105: #{simple_cnn_mnist_forward.1} parent=99 // pred_check
          %p6328 = pneg %p406
        $region106: #{simple_cnn_mnist_forward.1} parent=99 // pred_check_branch
          %6330 = sbr.rel (%p6328) target = $region108
        $region107: #{simple_cnn_mnist_forward.1} parent=99 // pred_region
          %s6331 = sand.u32 %s391, 1
          %s6332 = scalar_lea.sflag [#allocation9], %s6331
          %s6333 = sand.u32 %s391, 1
          %s6334 = scalar_lea.vmem [#allocation8], %s6333
          %6335 = dma.done %s6332, 16
        $region108: #{simple_cnn_mnist_forward.1} parent=99 // pred_fallthru
          _
      $region100: #{simple_cnn_mnist_forward.1} parent=5 // pred_fallthru
        _
    $region6: #{simple_cnn_mnist_forward.1} parent=1 // loop_footer
      %s35 = sadd.s32 1, %s31
    $region7: #{simple_cnn_mnist_forward.1} parent=1 // loop_footer_branch
      %30 = sbr.rel target = $region3
    $region8: #{simple_cnn_mnist_forward.1} parent=1 // loop_exit
      _
    %6336 = vsyncpa [#allocation3], 1
    %s6337 = scalar_lea.sflag [#allocation3], 1
    %6338 = vsyncpa %s6337, 1
    %6339 = vsyncpa [#allocation6], 1
    %6340 = vsyncpa [#allocation4], 1
    %s6341 = scalar_lea.sflag [#allocation4], 1
    %6342 = vsyncpa %s6341, 1
    %6343 = vsyncpa [#allocation9], 1
    %s6344 = scalar_lea.sflag [#allocation9], 1
    %6345 = vsyncpa %s6344, 1

</llo_original>
